<compile_context>
chip_gen: v5e
topology: v5e:2x2
jax: 0.10.0
libtpu: 0.0.40
codegen_flags: <defaults>
</compile_context>

<pallas_src>
import functools
import math
import os

import numpy as np

import jax
import jax.numpy as jnp
from jax.experimental import pallas as pl
from jax.experimental.pallas import tpu as pltpu

L_IN = 8192          # pinned by fc1 = Linear(32*256, 64)
_EPS = 1e-5


# ----------------------------------------------------------------------------
# Fused kernel (one grid step = one batch element)
# ----------------------------------------------------------------------------
def _fused_kernel(x_ref, w1_ref, s1_ref, t1_ref, w2_ref, s2_ref, t2_ref,
                  w3_ref, s3_ref, t3_ref, wf1_ref, s4_ref, t4_ref,
                  wf2_ref, b2_ref, o_ref, y1p_ref, y2p_ref):
    f32 = jnp.float32
    bf16 = jnp.bfloat16

    # --- conv1(1->8,k8,p3) + bn1 + relu + pool ->  Y1P[v,c,m] = y1pad[c,16m+v]
    # x_ref[0, w, m] = xpad[32m + w] (40-row over-extended phase split).
    w1 = w1_ref[...]                                   # (128, 24) bf16
    s1 = s1_ref[...]
    t1 = t1_ref[...]
    for g in range(2):                                 # q1 in [8g, 8g+8)
        op = x_ref[0, 16 * g:16 * g + 24, :].astype(bf16)        # (24, 256)
        r = jnp.dot(w1, op, preferred_element_type=f32)          # (128, 256)
        r = jnp.maximum(r * s1 + t1, 0.0)
        for qq in range(8):
            q1 = 8 * g + qq
            ph = jnp.maximum(r[16 * qq:16 * qq + 8, :],
                             r[16 * qq + 8:16 * qq + 16, :])     # (8, 256)
            v = q1 + 2                                 # y1[16m+q1] -> y1pad row
            y1p_ref[v % 16, :, (v // 16):(v // 16) + 256] = ph
    z81 = jnp.zeros((8, 1), f32)
    y1p_ref[0, :, 0:1] = z81          # y1pad[:, 0]    = 0 (left conv2 padding)
    y1p_ref[1, :, 0:1] = z81          # y1pad[:, 1]    = 0
    y1p_ref[1, :, 256:257] = z81      # y1pad[:, 4097] = 0 (kills invalid tail)
    y1p_ref[2, :, 256:257] = z81      # y1pad[:, 4098] = 0

    # --- conv2(8->16,k4,p2) + bn2 + relu + pool ->  Y2P[u,c,m] = y2pad[c,8m+u]
    w2 = w2_ref[...]                                   # (64, 56) bf16
    s2 = s2_ref[...]
    t2 = t2_ref[...]
    for a in range(4):                                 # q2 in [2a, 2a+2)
        parts = []
        for j in range(7):
            v = 4 * a + j
            parts.append(y1p_ref[v % 16, :, (v // 16):(v // 16) + 256])
        op = jnp.concatenate(parts, axis=0).astype(bf16)         # (56, 256)
        r = jnp.dot(w2, op, preferred_element_type=f32)          # (64, 256)
        r = jnp.maximum(r * s2 + t2, 0.0)
        for q2r in range(2):
            q2 = 2 * a + q2r
            ph = jnp.maximum(r[32 * q2r:32 * q2r + 16, :],
                             r[32 * q2r + 16:32 * q2r + 32, :])  # (16, 256)
            u = q2 + 1
            y2p_ref[u % 8, :, (u // 8):(u // 8) + 256] = ph
    y2p_ref[0, :, 0:1] = jnp.zeros((16, 1), f32)       # y2pad[:, 0] = 0

    # --- conv3(16->32,k2,p1) + bn3 + relu + pool+pool4+pool5 -> y3 (32, 256)
    w3 = w3_ref[...]                                   # (128, 80) bf16
    s3 = s3_ref[...]
    t3 = t3_ref[...]
    y3 = None
    for a in range(2):                                 # q3 in [4a, 4a+4)
        parts = []
        for j in range(5):
            u = 4 * a + j
            parts.append(y2p_ref[u % 8, :, (u // 8):(u // 8) + 256])
        op = jnp.concatenate(parts, axis=0).astype(bf16)         # (80, 256)
        r = jnp.dot(w3, op, preferred_element_type=f32)          # (128, 256)
        r = jnp.maximum(r * s3 + t3, 0.0)
        m = jnp.maximum(jnp.maximum(r[0:32, :], r[32:64, :]),
                        jnp.maximum(r[64:96, :], r[96:128, :]))  # (32, 256)
        y3 = m if y3 is None else jnp.maximum(y3, m)

    # --- flatten + fc1 (bf16 weights, VPU channel accumulation) + bn4 + relu + fc2
    # wf1_ref[c, h, m] = fc1.weight[h, c*256 + m]
    z = jnp.zeros((64, 256), f32)
    for c in range(32):
        z = z + wf1_ref[c].astype(f32) * y3[c:c + 1, :]          # (64, 256)
    h = jnp.sum(z, axis=1, keepdims=True)                        # (64, 1)
    h = jnp.maximum(h * s4_ref[...] + t4_ref[...], 0.0)          # bn4 + relu
    out = jnp.sum(h * wf2_ref[...], axis=0, keepdims=True) + b2_ref[...]  # (1, 2)
    o_ref[0] = out


def _const_spec(arr):
    n = arr.ndim
    return pl.BlockSpec(arr.shape, lambda b, _n=n: (0,) * _n)


def _fused_call(xpe, p):
    B = xpe.shape[0]
    return pl.pallas_call(
        _fused_kernel,
        out_shape=jax.ShapeDtypeStruct((B, 1, 2), jnp.float32),
        grid_spec=pltpu.PrefetchScalarGridSpec(
            num_scalar_prefetch=0,
            grid=(B,),
            in_specs=[
                pl.BlockSpec((1, 40, 256), lambda b: (b, 0, 0)),
                _const_spec(p["w1e"]), _const_spec(p["s1"]), _const_spec(p["t1"]),
                _const_spec(p["w2e"]), _const_spec(p["s2"]), _const_spec(p["t2"]),
                _const_spec(p["w3e"]), _const_spec(p["s3"]), _const_spec(p["t3"]),
                _const_spec(p["wfc1"]), _const_spec(p["s4"]), _const_spec(p["t4"]),
                _const_spec(p["wfc2"]), _const_spec(p["b2"]),
            ],
            out_specs=pl.BlockSpec((1, 1, 2), lambda b: (b, 0, 0)),
            scratch_shapes=[pltpu.VMEM((16, 8, 264), jnp.float32),   # Y1P
                            pltpu.VMEM((8, 16, 264), jnp.float32)],  # Y2P
        ),
        compiler_params=pltpu.CompilerParams(
            dimension_semantics=("parallel",)),
    )(xpe, p["w1e"], p["s1"], p["t1"], p["w2e"], p["s2"], p["t2"],
      p["w3e"], p["s3"], p["t3"], p["wfc1"], p["s4"], p["t4"],
      p["wfc2"], p["b2"])


def forward(params, x):
    """x: (B, 8192) float32 -> (B, 2) float32."""
    B, L = x.shape
    assert L == L_IN, L
    # 32-phase split of the conv1-padded input, over-extended to 40 rows so
    # every conv1 tap slab is a contiguous aligned (k, 256) read in-kernel.
    xpad = jnp.pad(x, ((0, 0), (3, 29)))                          # (B, 8224)
    full = jnp.transpose(xpad.reshape(B, 257, 32), (0, 2, 1))     # (B, 32, 257)
    xpe = jnp.concatenate([full[:, :, :256], full[:, :8, 1:257]], axis=1)
    out = _fused_call(xpe, params)                                # (B, 1, 2)
    return out.reshape(B, 2)


# ----------------------------------------------------------------------------
# Parameter generation (synthetic, deterministic) and kernel-layout packing
# ----------------------------------------------------------------------------
def _uniform(key, shape, bound):
    return jax.random.uniform(key, shape, jnp.float32, -bound, bound)


def _bn_init(key, c):
    k1, k2, k3, k4 = jax.random.split(key, 4)
    gamma = 1.0 + 0.1 * jax.random.uniform(k1, (c,), jnp.float32, -1.0, 1.0)
    beta = 0.05 * jax.random.uniform(k2, (c,), jnp.float32, -1.0, 1.0)
    mean = 0.02 * jax.random.uniform(k3, (c,), jnp.float32, -1.0, 1.0)
    var = 1.0 + 0.2 * jax.random.uniform(k4, (c,), jnp.float32, 0.0, 1.0)
    return gamma, beta, mean, var


def init_raw_params(key):
    ks = jax.random.split(key, 14)
    raw = {}
    raw["w1"] = _uniform(ks[0], (8, 1, 8), 1.0 / math.sqrt(8))
    raw["b1"] = _uniform(ks[1], (8,), 1.0 / math.sqrt(8))
    raw["bn1"] = _bn_init(ks[2], 8)
    raw["w2"] = _uniform(ks[3], (16, 8, 4), 1.0 / math.sqrt(32))
    raw["b2"] = _uniform(ks[4], (16,), 1.0 / math.sqrt(32))
    raw["bn2"] = _bn_init(ks[5], 16)
    raw["w3"] = _uniform(ks[6], (32, 16, 2), 1.0 / math.sqrt(32))
    raw["b3"] = _uniform(ks[7], (32,), 1.0 / math.sqrt(32))
    raw["bn3"] = _bn_init(ks[8], 32)
    raw["wfc1"] = _uniform(ks[9], (64, 8192), 1.0 / math.sqrt(8192))
    raw["bfc1"] = _uniform(ks[10], (64,), 1.0 / math.sqrt(8192))
    raw["bn4"] = _bn_init(ks[11], 64)
    raw["wfc2"] = _uniform(ks[12], (2, 64), 1.0 / math.sqrt(64))
    raw["bfc2"] = _uniform(ks[13], (2,), 1.0 / math.sqrt(64))
    return raw


def _build_w1e(w1):
    """conv1 weight (8,1,8) -> merged-phase weight (128, 24)."""
    w = np.zeros((128, 24), np.float32)
    for qq in range(8):
        for r1 in range(2):
            off = 2 * qq + r1
            row0 = (2 * qq + r1) * 8
            w[row0:row0 + 8, off:off + 8] = w1[:, 0, :]
    return w


def _build_w2e(w2):
    """conv2 weight (16,8,4) -> merged-phase im2col weight (64, 56)."""
    w = np.zeros((64, 56), np.float32)
    for q2r in range(2):
        for r2 in range(2):
            base = 2 * q2r + r2
            row0 = (2 * q2r + r2) * 16
            for k in range(4):
                j = base + k
                w[row0:row0 + 16, j * 8:j * 8 + 8] = w2[:, :, k]
    return w


def _build_w3e(w3):
    """conv3 weight (32,16,2) -> merged-phase im2col weight (128, 80)."""
    w = np.zeros((128, 80), np.float32)
    for q3r in range(4):
        row0 = 32 * q3r
        for k in range(2):
            j = q3r + k
            w[row0:row0 + 32, j * 16:j * 16 + 16] = w3[:, :, k]
    return w


def _fold_bn(bn, conv_bias):
    gamma, beta, mean, var = bn
    scale = gamma / jnp.sqrt(var + _EPS)
    shift = scale * (conv_bias - mean) + beta
    return scale, shift


def pack_params(raw):
    p = {}
    s1, t1 = _fold_bn(raw["bn1"], raw["b1"])
    p["w1e"] = jnp.asarray(_build_w1e(np.asarray(raw["w1"])), jnp.bfloat16)
    p["s1"] = jnp.tile(s1, 16).reshape(128, 1)
    p["t1"] = jnp.tile(t1, 16).reshape(128, 1)

    s2, t2 = _fold_bn(raw["bn2"], raw["b2"])
    p["w2e"] = jnp.asarray(_build_w2e(np.asarray(raw["w2"])), jnp.bfloat16)
    p["s2"] = jnp.tile(s2, 4).reshape(64, 1)
    p["t2"] = jnp.tile(t2, 4).reshape(64, 1)

    s3, t3 = _fold_bn(raw["bn3"], raw["b3"])
    p["w3e"] = jnp.asarray(_build_w3e(np.asarray(raw["w3"])), jnp.bfloat16)
    p["s3"] = jnp.tile(s3, 4).reshape(128, 1)
    p["t3"] = jnp.tile(t3, 4).reshape(128, 1)

    s4, t4 = _fold_bn(raw["bn4"], raw["bfc1"])
    p["wfc1"] = (jnp.asarray(raw["wfc1"]).reshape(64, 32, 256)
                 .transpose(1, 0, 2).astype(jnp.bfloat16))        # (32, 64, 256)
    p["s4"] = s4.reshape(64, 1)
    p["t4"] = t4.reshape(64, 1)

    p["wfc2"] = jnp.asarray(raw["wfc2"]).T.astype(jnp.float32)    # (64, 2)
    p["b2"] = jnp.asarray(raw["bfc2"]).reshape(1, 2)
    return p


# ----------------------------------------------------------------------------
# Pure-JAX float32 reference (PyTorch semantics); used when PALLAS_CHECK_REF=1
# ----------------------------------------------------------------------------
def reference_forward(raw, x):
    def conv(h, w, b, pad):
        y = jax.lax.conv_general_dilated(
            h, w, window_strides=(1,), padding=[(pad, pad)],
            dimension_numbers=("NCH", "OIH", "NCH"))
        return y + b[None, :, None]

    def bn3d(h, bn):
        g, be, m, v = bn
        return ((h - m[None, :, None]) / jnp.sqrt(v[None, :, None] + _EPS)
                * g[None, :, None] + be[None, :, None])

    def pool2(h):
        n = (h.shape[-1] // 2) * 2
        return jnp.max(h[..., :n].reshape(h.shape[0], h.shape[1], n // 2, 2),
                       axis=-1)

    h = x[:, None, :]
    h = pool2(jax.nn.relu(bn3d(conv(h, raw["w1"], raw["b1"], 3), raw["bn1"])))
    h = pool2(jax.nn.relu(bn3d(conv(h, raw["w2"], raw["b2"], 2), raw["bn2"])))
    h = jax.nn.relu(bn3d(conv(h, raw["w3"], raw["b3"], 1), raw["bn3"]))
    h = pool2(pool2(pool2(h)))
    hf = h.reshape(h.shape[0], -1)
    z = hf @ raw["wfc1"].T + raw["bfc1"]
    g, be, m, v = raw["bn4"]
    z = jax.nn.relu((z - m) / jnp.sqrt(v + _EPS) * g + be)
    return z @ raw["wfc2"].T + raw["bfc2"]


# ----------------------------------------------------------------------------
if __name__ == "__main__":
    B, L = 2, L_IN   # L is fixed by fc1 = Linear(32*256, 64)
    key = jax.random.PRNGKey(0)
    raw = init_raw_params(key)
    params = pack_params(raw)
    x = jax.random.normal(jax.random.fold_in(key, 999), (B, L), jnp.float32)

    fwd = jax.jit(functools.partial(forward, params))
    out = jax.block_until_ready(fwd(x))

    assert out.shape == (B, 2), out.shape
    assert bool(jnp.all(jnp.isfinite(out)))

    # Optional numerical check vs float32 reference (bf16 matmuls => ~1e-2 rel).
    if os.environ.get("PALLAS_CHECK_REF", "0") == "1":
        ref = reference_forward(raw, x)
        err = float(jnp.max(jnp.abs(out - ref)))
        tol = 0.05 * float(jnp.max(jnp.abs(ref))) + 0.05
        assert err < tol, (err, tol)

    print("KERNEL_OK")
</pallas_src>

<mosaic_0001>
module attributes {stable_mosaic.version = 11 : i64} {
  func.func @_fused_kernel(%arg0: i32, %arg1: memref<1x40x256xf32, #tpu.memory_space<vmem>>, %arg2: memref<128x24xbf16, #tpu.memory_space<vmem>>, %arg3: memref<128x1xf32, #tpu.memory_space<vmem>>, %arg4: memref<128x1xf32, #tpu.memory_space<vmem>>, %arg5: memref<64x56xbf16, #tpu.memory_space<vmem>>, %arg6: memref<64x1xf32, #tpu.memory_space<vmem>>, %arg7: memref<64x1xf32, #tpu.memory_space<vmem>>, %arg8: memref<128x80xbf16, #tpu.memory_space<vmem>>, %arg9: memref<128x1xf32, #tpu.memory_space<vmem>>, %arg10: memref<128x1xf32, #tpu.memory_space<vmem>>, %arg11: memref<32x64x256xbf16, #tpu.memory_space<vmem>>, %arg12: memref<64x1xf32, #tpu.memory_space<vmem>>, %arg13: memref<64x1xf32, #tpu.memory_space<vmem>>, %arg14: memref<64x2xf32, #tpu.memory_space<vmem>>, %arg15: memref<1x2xf32, #tpu.memory_space<vmem>>, %arg16: memref<1x1x2xf32, #tpu.memory_space<vmem>>, %arg17: memref<16x8x264xf32, #tpu.memory_space<vmem>>, %arg18: memref<8x16x264xf32, #tpu.memory_space<vmem>>) attributes {dimension_semantics = [#tpu.dimension_semantics<parallel>], iteration_bounds = array<i64: 2>, scalar_prefetch = 0 : i64, scratch_operands = 2 : i64, tpu.core_type = #tpu.core_type<tc>, window_params = [{transform_indices = @transform_0, window_bounds = array<i64: 1, 40, 256>}, {pipeline_mode = #tpu.pipeline_mode<synchronous>, transform_indices = @transform_1, window_bounds = array<i64: 128, 24>}, {pipeline_mode = #tpu.pipeline_mode<synchronous>, transform_indices = @transform_2, window_bounds = array<i64: 128, 1>}, {pipeline_mode = #tpu.pipeline_mode<synchronous>, transform_indices = @transform_3, window_bounds = array<i64: 128, 1>}, {pipeline_mode = #tpu.pipeline_mode<synchronous>, transform_indices = @transform_4, window_bounds = array<i64: 64, 56>}, {pipeline_mode = #tpu.pipeline_mode<synchronous>, transform_indices = @transform_5, window_bounds = array<i64: 64, 1>}, {pipeline_mode = #tpu.pipeline_mode<synchronous>, transform_indices = @transform_6, window_bounds = array<i64: 64, 1>}, {pipeline_mode = #tpu.pipeline_mode<synchronous>, transform_indices = @transform_7, window_bounds = array<i64: 128, 80>}, {pipeline_mode = #tpu.pipeline_mode<synchronous>, transform_indices = @transform_8, window_bounds = array<i64: 128, 1>}, {pipeline_mode = #tpu.pipeline_mode<synchronous>, transform_indices = @transform_9, window_bounds = array<i64: 128, 1>}, {pipeline_mode = #tpu.pipeline_mode<synchronous>, transform_indices = @transform_10, window_bounds = array<i64: 32, 64, 256>}, {pipeline_mode = #tpu.pipeline_mode<synchronous>, transform_indices = @transform_11, window_bounds = array<i64: 64, 1>}, {pipeline_mode = #tpu.pipeline_mode<synchronous>, transform_indices = @transform_12, window_bounds = array<i64: 64, 1>}, {pipeline_mode = #tpu.pipeline_mode<synchronous>, transform_indices = @transform_13, window_bounds = array<i64: 64, 2>}, {pipeline_mode = #tpu.pipeline_mode<synchronous>, transform_indices = @transform_14, window_bounds = array<i64: 1, 2>}, {transform_indices = @transform_15, window_bounds = array<i64: 1, 1, 2>}]} {
    %c0 = arith.constant 0 : index
    %c0_0 = arith.constant 0 : index
    %0 = vector.load %arg2[%c0, %c0_0] : memref<128x24xbf16, #tpu.memory_space<vmem>>, vector<128x24xbf16>
    %c0_1 = arith.constant 0 : index
    %c0_2 = arith.constant 0 : index
    %1 = vector.load %arg3[%c0_1, %c0_2] : memref<128x1xf32, #tpu.memory_space<vmem>>, vector<128x1xf32>
    %c0_3 = arith.constant 0 : index
    %c0_4 = arith.constant 0 : index
    %2 = vector.load %arg4[%c0_3, %c0_4] : memref<128x1xf32, #tpu.memory_space<vmem>>, vector<128x1xf32>
    %c0_5 = arith.constant 0 : index
    %c0_6 = arith.constant 0 : index
    %c0_7 = arith.constant 0 : index
    %3 = vector.load %arg1[%c0_5, %c0_6, %c0_7] : memref<1x40x256xf32, #tpu.memory_space<vmem>>, vector<1x24x256xf32>
    %4 = vector.shape_cast %3 : vector<1x24x256xf32> to vector<24x256xf32>
    %5 = arith.truncf %4 : vector<24x256xf32> to vector<24x256xbf16>
    %cst = arith.constant dense<0.000000e+00> : vector<128x256xf32>
    %6 = tpu.matmul %0, %5, %cst {dimension_numbers = #tpu.dot_dimension_numbers<[1], [0], [0], [1], [0, 0, 1, 1], [], []>} : vector<128x24xbf16>, vector<24x256xbf16>, vector<128x256xf32> -> vector<128x256xf32>
    %7 = vector.broadcast %1 : vector<128x1xf32> to vector<128x256xf32>
    %8 = arith.mulf %6, %7 : vector<128x256xf32>
    %9 = vector.broadcast %2 : vector<128x1xf32> to vector<128x256xf32>
    %10 = arith.addf %8, %9 : vector<128x256xf32>
    %cst_8 = arith.constant 0.000000e+00 : f32
    %11 = vector.broadcast %cst_8 : f32 to vector<128x256xf32>
    %12 = arith.maximumf %10, %11 : vector<128x256xf32>
    %13 = vector.extract_strided_slice %12 {offsets = [0, 0], sizes = [8, 256], strides = [1, 1]} : vector<128x256xf32> to vector<8x256xf32>
    %14 = vector.extract_strided_slice %12 {offsets = [8, 0], sizes = [8, 256], strides = [1, 1]} : vector<128x256xf32> to vector<8x256xf32>
    %15 = arith.maximumf %13, %14 : vector<8x256xf32>
    %c2 = arith.constant 2 : index
    %c0_9 = arith.constant 0 : index
    %c0_10 = arith.constant 0 : index
    %16 = vector.load %arg17[%c2, %c0_9, %c0_10] : memref<16x8x264xf32, #tpu.memory_space<vmem>>, vector<1x8x256xf32>
    %17 = vector.shape_cast %16 : vector<1x8x256xf32> to vector<8x256xf32>
    %18 = vector.shape_cast %15 : vector<8x256xf32> to vector<1x8x256xf32>
    tpu.vector_store %arg17[%c2, %c0_9, %c0_10], %18 {strides = array<i32>} : memref<16x8x264xf32, #tpu.memory_space<vmem>>, vector<1x8x256xf32>,
    %19 = vector.extract_strided_slice %12 {offsets = [16, 0], sizes = [8, 256], strides = [1, 1]} : vector<128x256xf32> to vector<8x256xf32>
    %20 = vector.extract_strided_slice %12 {offsets = [24, 0], sizes = [8, 256], strides = [1, 1]} : vector<128x256xf32> to vector<8x256xf32>
    %21 = arith.maximumf %19, %20 : vector<8x256xf32>
    %c3 = arith.constant 3 : index
    %c0_11 = arith.constant 0 : index
    %c0_12 = arith.constant 0 : index
    %22 = vector.load %arg17[%c3, %c0_11, %c0_12] : memref<16x8x264xf32, #tpu.memory_space<vmem>>, vector<1x8x256xf32>
    %23 = vector.shape_cast %22 : vector<1x8x256xf32> to vector<8x256xf32>
    %24 = vector.shape_cast %21 : vector<8x256xf32> to vector<1x8x256xf32>
    tpu.vector_store %arg17[%c3, %c0_11, %c0_12], %24 {strides = array<i32>} : memref<16x8x264xf32, #tpu.memory_space<vmem>>, vector<1x8x256xf32>,
    %25 = vector.extract_strided_slice %12 {offsets = [32, 0], sizes = [8, 256], strides = [1, 1]} : vector<128x256xf32> to vector<8x256xf32>
    %26 = vector.extract_strided_slice %12 {offsets = [40, 0], sizes = [8, 256], strides = [1, 1]} : vector<128x256xf32> to vector<8x256xf32>
    %27 = arith.maximumf %25, %26 : vector<8x256xf32>
    %c4 = arith.constant 4 : index
    %c0_13 = arith.constant 0 : index
    %c0_14 = arith.constant 0 : index
    %28 = vector.load %arg17[%c4, %c0_13, %c0_14] : memref<16x8x264xf32, #tpu.memory_space<vmem>>, vector<1x8x256xf32>
    %29 = vector.shape_cast %28 : vector<1x8x256xf32> to vector<8x256xf32>
    %30 = vector.shape_cast %27 : vector<8x256xf32> to vector<1x8x256xf32>
    tpu.vector_store %arg17[%c4, %c0_13, %c0_14], %30 {strides = array<i32>} : memref<16x8x264xf32, #tpu.memory_space<vmem>>, vector<1x8x256xf32>,
    %31 = vector.extract_strided_slice %12 {offsets = [48, 0], sizes = [8, 256], strides = [1, 1]} : vector<128x256xf32> to vector<8x256xf32>
    %32 = vector.extract_strided_slice %12 {offsets = [56, 0], sizes = [8, 256], strides = [1, 1]} : vector<128x256xf32> to vector<8x256xf32>
    %33 = arith.maximumf %31, %32 : vector<8x256xf32>
    %c5 = arith.constant 5 : index
    %c0_15 = arith.constant 0 : index
    %c0_16 = arith.constant 0 : index
    %34 = vector.load %arg17[%c5, %c0_15, %c0_16] : memref<16x8x264xf32, #tpu.memory_space<vmem>>, vector<1x8x256xf32>
    %35 = vector.shape_cast %34 : vector<1x8x256xf32> to vector<8x256xf32>
    %36 = vector.shape_cast %33 : vector<8x256xf32> to vector<1x8x256xf32>
    tpu.vector_store %arg17[%c5, %c0_15, %c0_16], %36 {strides = array<i32>} : memref<16x8x264xf32, #tpu.memory_space<vmem>>, vector<1x8x256xf32>,
    %37 = vector.extract_strided_slice %12 {offsets = [64, 0], sizes = [8, 256], strides = [1, 1]} : vector<128x256xf32> to vector<8x256xf32>
    %38 = vector.extract_strided_slice %12 {offsets = [72, 0], sizes = [8, 256], strides = [1, 1]} : vector<128x256xf32> to vector<8x256xf32>
    %39 = arith.maximumf %37, %38 : vector<8x256xf32>
    %c6 = arith.constant 6 : index
    %c0_17 = arith.constant 0 : index
    %c0_18 = arith.constant 0 : index
    %40 = vector.load %arg17[%c6, %c0_17, %c0_18] : memref<16x8x264xf32, #tpu.memory_space<vmem>>, vector<1x8x256xf32>
    %41 = vector.shape_cast %40 : vector<1x8x256xf32> to vector<8x256xf32>
    %42 = vector.shape_cast %39 : vector<8x256xf32> to vector<1x8x256xf32>
    tpu.vector_store %arg17[%c6, %c0_17, %c0_18], %42 {strides = array<i32>} : memref<16x8x264xf32, #tpu.memory_space<vmem>>, vector<1x8x256xf32>,
    %43 = vector.extract_strided_slice %12 {offsets = [80, 0], sizes = [8, 256], strides = [1, 1]} : vector<128x256xf32> to vector<8x256xf32>
    %44 = vector.extract_strided_slice %12 {offsets = [88, 0], sizes = [8, 256], strides = [1, 1]} : vector<128x256xf32> to vector<8x256xf32>
    %45 = arith.maximumf %43, %44 : vector<8x256xf32>
    %c7 = arith.constant 7 : index
    %c0_19 = arith.constant 0 : index
    %c0_20 = arith.constant 0 : index
    %46 = vector.load %arg17[%c7, %c0_19, %c0_20] : memref<16x8x264xf32, #tpu.memory_space<vmem>>, vector<1x8x256xf32>
    %47 = vector.shape_cast %46 : vector<1x8x256xf32> to vector<8x256xf32>
    %48 = vector.shape_cast %45 : vector<8x256xf32> to vector<1x8x256xf32>
    tpu.vector_store %arg17[%c7, %c0_19, %c0_20], %48 {strides = array<i32>} : memref<16x8x264xf32, #tpu.memory_space<vmem>>, vector<1x8x256xf32>,
    %49 = vector.extract_strided_slice %12 {offsets = [96, 0], sizes = [8, 256], strides = [1, 1]} : vector<128x256xf32> to vector<8x256xf32>
    %50 = vector.extract_strided_slice %12 {offsets = [104, 0], sizes = [8, 256], strides = [1, 1]} : vector<128x256xf32> to vector<8x256xf32>
    %51 = arith.maximumf %49, %50 : vector<8x256xf32>
    %c8 = arith.constant 8 : index
    %c0_21 = arith.constant 0 : index
    %c0_22 = arith.constant 0 : index
    %52 = vector.load %arg17[%c8, %c0_21, %c0_22] : memref<16x8x264xf32, #tpu.memory_space<vmem>>, vector<1x8x256xf32>
    %53 = vector.shape_cast %52 : vector<1x8x256xf32> to vector<8x256xf32>
    %54 = vector.shape_cast %51 : vector<8x256xf32> to vector<1x8x256xf32>
    tpu.vector_store %arg17[%c8, %c0_21, %c0_22], %54 {strides = array<i32>} : memref<16x8x264xf32, #tpu.memory_space<vmem>>, vector<1x8x256xf32>,
    %55 = vector.extract_strided_slice %12 {offsets = [112, 0], sizes = [8, 256], strides = [1, 1]} : vector<128x256xf32> to vector<8x256xf32>
    %56 = vector.extract_strided_slice %12 {offsets = [120, 0], sizes = [8, 256], strides = [1, 1]} : vector<128x256xf32> to vector<8x256xf32>
    %57 = arith.maximumf %55, %56 : vector<8x256xf32>
    %c9 = arith.constant 9 : index
    %c0_23 = arith.constant 0 : index
    %c0_24 = arith.constant 0 : index
    %58 = vector.load %arg17[%c9, %c0_23, %c0_24] : memref<16x8x264xf32, #tpu.memory_space<vmem>>, vector<1x8x256xf32>
    %59 = vector.shape_cast %58 : vector<1x8x256xf32> to vector<8x256xf32>
    %60 = vector.shape_cast %57 : vector<8x256xf32> to vector<1x8x256xf32>
    tpu.vector_store %arg17[%c9, %c0_23, %c0_24], %60 {strides = array<i32>} : memref<16x8x264xf32, #tpu.memory_space<vmem>>, vector<1x8x256xf32>,
    %c0_25 = arith.constant 0 : index
    %c16 = arith.constant 16 : index
    %c0_26 = arith.constant 0 : index
    %61 = vector.load %arg1[%c0_25, %c16, %c0_26] : memref<1x40x256xf32, #tpu.memory_space<vmem>>, vector<1x24x256xf32>
    %62 = vector.shape_cast %61 : vector<1x24x256xf32> to vector<24x256xf32>
    %63 = arith.truncf %62 : vector<24x256xf32> to vector<24x256xbf16>
    %cst_27 = arith.constant dense<0.000000e+00> : vector<128x256xf32>
    %64 = tpu.matmul %0, %63, %cst_27 {dimension_numbers = #tpu.dot_dimension_numbers<[1], [0], [0], [1], [0, 0, 1, 1], [], []>} : vector<128x24xbf16>, vector<24x256xbf16>, vector<128x256xf32> -> vector<128x256xf32>
    %65 = vector.broadcast %1 : vector<128x1xf32> to vector<128x256xf32>
    %66 = arith.mulf %64, %65 : vector<128x256xf32>
    %67 = vector.broadcast %2 : vector<128x1xf32> to vector<128x256xf32>
    %68 = arith.addf %66, %67 : vector<128x256xf32>
    %cst_28 = arith.constant 0.000000e+00 : f32
    %69 = vector.broadcast %cst_28 : f32 to vector<128x256xf32>
    %70 = arith.maximumf %68, %69 : vector<128x256xf32>
    %71 = vector.extract_strided_slice %70 {offsets = [0, 0], sizes = [8, 256], strides = [1, 1]} : vector<128x256xf32> to vector<8x256xf32>
    %72 = vector.extract_strided_slice %70 {offsets = [8, 0], sizes = [8, 256], strides = [1, 1]} : vector<128x256xf32> to vector<8x256xf32>
    %73 = arith.maximumf %71, %72 : vector<8x256xf32>
    %c10 = arith.constant 10 : index
    %c0_29 = arith.constant 0 : index
    %c0_30 = arith.constant 0 : index
    %74 = vector.load %arg17[%c10, %c0_29, %c0_30] : memref<16x8x264xf32, #tpu.memory_space<vmem>>, vector<1x8x256xf32>
    %75 = vector.shape_cast %74 : vector<1x8x256xf32> to vector<8x256xf32>
    %76 = vector.shape_cast %73 : vector<8x256xf32> to vector<1x8x256xf32>
    tpu.vector_store %arg17[%c10, %c0_29, %c0_30], %76 {strides = array<i32>} : memref<16x8x264xf32, #tpu.memory_space<vmem>>, vector<1x8x256xf32>,
    %77 = vector.extract_strided_slice %70 {offsets = [16, 0], sizes = [8, 256], strides = [1, 1]} : vector<128x256xf32> to vector<8x256xf32>
    %78 = vector.extract_strided_slice %70 {offsets = [24, 0], sizes = [8, 256], strides = [1, 1]} : vector<128x256xf32> to vector<8x256xf32>
    %79 = arith.maximumf %77, %78 : vector<8x256xf32>
    %c11 = arith.constant 11 : index
    %c0_31 = arith.constant 0 : index
    %c0_32 = arith.constant 0 : index
    %80 = vector.load %arg17[%c11, %c0_31, %c0_32] : memref<16x8x264xf32, #tpu.memory_space<vmem>>, vector<1x8x256xf32>
    %81 = vector.shape_cast %80 : vector<1x8x256xf32> to vector<8x256xf32>
    %82 = vector.shape_cast %79 : vector<8x256xf32> to vector<1x8x256xf32>
    tpu.vector_store %arg17[%c11, %c0_31, %c0_32], %82 {strides = array<i32>} : memref<16x8x264xf32, #tpu.memory_space<vmem>>, vector<1x8x256xf32>,
    %83 = vector.extract_strided_slice %70 {offsets = [32, 0], sizes = [8, 256], strides = [1, 1]} : vector<128x256xf32> to vector<8x256xf32>
    %84 = vector.extract_strided_slice %70 {offsets = [40, 0], sizes = [8, 256], strides = [1, 1]} : vector<128x256xf32> to vector<8x256xf32>
    %85 = arith.maximumf %83, %84 : vector<8x256xf32>
    %c12 = arith.constant 12 : index
    %c0_33 = arith.constant 0 : index
    %c0_34 = arith.constant 0 : index
    %86 = vector.load %arg17[%c12, %c0_33, %c0_34] : memref<16x8x264xf32, #tpu.memory_space<vmem>>, vector<1x8x256xf32>
    %87 = vector.shape_cast %86 : vector<1x8x256xf32> to vector<8x256xf32>
    %88 = vector.shape_cast %85 : vector<8x256xf32> to vector<1x8x256xf32>
    tpu.vector_store %arg17[%c12, %c0_33, %c0_34], %88 {strides = array<i32>} : memref<16x8x264xf32, #tpu.memory_space<vmem>>, vector<1x8x256xf32>,
    %89 = vector.extract_strided_slice %70 {offsets = [48, 0], sizes = [8, 256], strides = [1, 1]} : vector<128x256xf32> to vector<8x256xf32>
    %90 = vector.extract_strided_slice %70 {offsets = [56, 0], sizes = [8, 256], strides = [1, 1]} : vector<128x256xf32> to vector<8x256xf32>
    %91 = arith.maximumf %89, %90 : vector<8x256xf32>
    %c13 = arith.constant 13 : index
    %c0_35 = arith.constant 0 : index
    %c0_36 = arith.constant 0 : index
    %92 = vector.load %arg17[%c13, %c0_35, %c0_36] : memref<16x8x264xf32, #tpu.memory_space<vmem>>, vector<1x8x256xf32>
    %93 = vector.shape_cast %92 : vector<1x8x256xf32> to vector<8x256xf32>
    %94 = vector.shape_cast %91 : vector<8x256xf32> to vector<1x8x256xf32>
    tpu.vector_store %arg17[%c13, %c0_35, %c0_36], %94 {strides = array<i32>} : memref<16x8x264xf32, #tpu.memory_space<vmem>>, vector<1x8x256xf32>,
    %95 = vector.extract_strided_slice %70 {offsets = [64, 0], sizes = [8, 256], strides = [1, 1]} : vector<128x256xf32> to vector<8x256xf32>
    %96 = vector.extract_strided_slice %70 {offsets = [72, 0], sizes = [8, 256], strides = [1, 1]} : vector<128x256xf32> to vector<8x256xf32>
    %97 = arith.maximumf %95, %96 : vector<8x256xf32>
    %c14 = arith.constant 14 : index
    %c0_37 = arith.constant 0 : index
    %c0_38 = arith.constant 0 : index
    %98 = vector.load %arg17[%c14, %c0_37, %c0_38] : memref<16x8x264xf32, #tpu.memory_space<vmem>>, vector<1x8x256xf32>
    %99 = vector.shape_cast %98 : vector<1x8x256xf32> to vector<8x256xf32>
    %100 = vector.shape_cast %97 : vector<8x256xf32> to vector<1x8x256xf32>
    tpu.vector_store %arg17[%c14, %c0_37, %c0_38], %100 {strides = array<i32>} : memref<16x8x264xf32, #tpu.memory_space<vmem>>, vector<1x8x256xf32>,
    %101 = vector.extract_strided_slice %70 {offsets = [80, 0], sizes = [8, 256], strides = [1, 1]} : vector<128x256xf32> to vector<8x256xf32>
    %102 = vector.extract_strided_slice %70 {offsets = [88, 0], sizes = [8, 256], strides = [1, 1]} : vector<128x256xf32> to vector<8x256xf32>
    %103 = arith.maximumf %101, %102 : vector<8x256xf32>
    %c15 = arith.constant 15 : index
    %c0_39 = arith.constant 0 : index
    %c0_40 = arith.constant 0 : index
    %104 = vector.load %arg17[%c15, %c0_39, %c0_40] : memref<16x8x264xf32, #tpu.memory_space<vmem>>, vector<1x8x256xf32>
    %105 = vector.shape_cast %104 : vector<1x8x256xf32> to vector<8x256xf32>
    %106 = vector.shape_cast %103 : vector<8x256xf32> to vector<1x8x256xf32>
    tpu.vector_store %arg17[%c15, %c0_39, %c0_40], %106 {strides = array<i32>} : memref<16x8x264xf32, #tpu.memory_space<vmem>>, vector<1x8x256xf32>,
    %107 = vector.extract_strided_slice %70 {offsets = [96, 0], sizes = [8, 256], strides = [1, 1]} : vector<128x256xf32> to vector<8x256xf32>
    %108 = vector.extract_strided_slice %70 {offsets = [104, 0], sizes = [8, 256], strides = [1, 1]} : vector<128x256xf32> to vector<8x256xf32>
    %109 = arith.maximumf %107, %108 : vector<8x256xf32>
    %c0_41 = arith.constant 0 : index
    %c0_42 = arith.constant 0 : index
    %c1 = arith.constant 1 : index
    %110 = vector.load %arg17[%c0_41, %c0_42, %c1] : memref<16x8x264xf32, #tpu.memory_space<vmem>>, vector<1x8x256xf32>
    %111 = vector.shape_cast %110 : vector<1x8x256xf32> to vector<8x256xf32>
    %112 = vector.shape_cast %109 : vector<8x256xf32> to vector<1x8x256xf32>
    tpu.vector_store %arg17[%c0_41, %c0_42, %c1], %112 {strides = array<i32>} : memref<16x8x264xf32, #tpu.memory_space<vmem>>, vector<1x8x256xf32>,
    %113 = vector.extract_strided_slice %70 {offsets = [112, 0], sizes = [8, 256], strides = [1, 1]} : vector<128x256xf32> to vector<8x256xf32>
    %114 = vector.extract_strided_slice %70 {offsets = [120, 0], sizes = [8, 256], strides = [1, 1]} : vector<128x256xf32> to vector<8x256xf32>
    %115 = arith.maximumf %113, %114 : vector<8x256xf32>
    %c1_43 = arith.constant 1 : index
    %c0_44 = arith.constant 0 : index
    %c1_45 = arith.constant 1 : index
    %116 = vector.load %arg17[%c1_43, %c0_44, %c1_45] : memref<16x8x264xf32, #tpu.memory_space<vmem>>, vector<1x8x256xf32>
    %117 = vector.shape_cast %116 : vector<1x8x256xf32> to vector<8x256xf32>
    %118 = vector.shape_cast %115 : vector<8x256xf32> to vector<1x8x256xf32>
    tpu.vector_store %arg17[%c1_43, %c0_44, %c1_45], %118 {strides = array<i32>} : memref<16x8x264xf32, #tpu.memory_space<vmem>>, vector<1x8x256xf32>,
    %cst_46 = arith.constant 0.000000e+00 : f32
    %119 = vector.broadcast %cst_46 : f32 to vector<8x1xf32>
    %c0_47 = arith.constant 0 : index
    %c0_48 = arith.constant 0 : index
    %c0_49 = arith.constant 0 : index
    %120 = vector.load %arg17[%c0_47, %c0_48, %c0_49] : memref<16x8x264xf32, #tpu.memory_space<vmem>>, vector<1x8x1xf32>
    %121 = vector.shape_cast %120 : vector<1x8x1xf32> to vector<8x1xf32>
    %122 = vector.shape_cast %119 : vector<8x1xf32> to vector<1x8x1xf32>
    tpu.vector_store %arg17[%c0_47, %c0_48, %c0_49], %122 {strides = array<i32>} : memref<16x8x264xf32, #tpu.memory_space<vmem>>, vector<1x8x1xf32>,
    %c1_50 = arith.constant 1 : index
    %c0_51 = arith.constant 0 : index
    %c0_52 = arith.constant 0 : index
    %123 = vector.load %arg17[%c1_50, %c0_51, %c0_52] : memref<16x8x264xf32, #tpu.memory_space<vmem>>, vector<1x8x1xf32>
    %124 = vector.shape_cast %123 : vector<1x8x1xf32> to vector<8x1xf32>
    %125 = vector.shape_cast %119 : vector<8x1xf32> to vector<1x8x1xf32>
    tpu.vector_store %arg17[%c1_50, %c0_51, %c0_52], %125 {strides = array<i32>} : memref<16x8x264xf32, #tpu.memory_space<vmem>>, vector<1x8x1xf32>,
    %c1_53 = arith.constant 1 : index
    %c0_54 = arith.constant 0 : index
    %c256 = arith.constant 256 : index
    %126 = vector.load %arg17[%c1_53, %c0_54, %c256] : memref<16x8x264xf32, #tpu.memory_space<vmem>>, vector<1x8x1xf32>
    %127 = vector.shape_cast %126 : vector<1x8x1xf32> to vector<8x1xf32>
    %128 = vector.shape_cast %119 : vector<8x1xf32> to vector<1x8x1xf32>
    tpu.vector_store %arg17[%c1_53, %c0_54, %c256], %128 {strides = array<i32>} : memref<16x8x264xf32, #tpu.memory_space<vmem>>, vector<1x8x1xf32>,
    %c2_55 = arith.constant 2 : index
    %c0_56 = arith.constant 0 : index
    %c256_57 = arith.constant 256 : index
    %129 = vector.load %arg17[%c2_55, %c0_56, %c256_57] : memref<16x8x264xf32, #tpu.memory_space<vmem>>, vector<1x8x1xf32>
    %130 = vector.shape_cast %129 : vector<1x8x1xf32> to vector<8x1xf32>
    %131 = vector.shape_cast %119 : vector<8x1xf32> to vector<1x8x1xf32>
    tpu.vector_store %arg17[%c2_55, %c0_56, %c256_57], %131 {strides = array<i32>} : memref<16x8x264xf32, #tpu.memory_space<vmem>>, vector<1x8x1xf32>,
    %c0_58 = arith.constant 0 : index
    %c0_59 = arith.constant 0 : index
    %132 = vector.load %arg5[%c0_58, %c0_59] : memref<64x56xbf16, #tpu.memory_space<vmem>>, vector<64x56xbf16>
    %c0_60 = arith.constant 0 : index
    %c0_61 = arith.constant 0 : index
    %133 = vector.load %arg6[%c0_60, %c0_61] : memref<64x1xf32, #tpu.memory_space<vmem>>, vector<64x1xf32>
    %c0_62 = arith.constant 0 : index
    %c0_63 = arith.constant 0 : index
    %134 = vector.load %arg7[%c0_62, %c0_63] : memref<64x1xf32, #tpu.memory_space<vmem>>, vector<64x1xf32>
    %c0_64 = arith.constant 0 : index
    %c0_65 = arith.constant 0 : index
    %c0_66 = arith.constant 0 : index
    %135 = vector.load %arg17[%c0_64, %c0_65, %c0_66] : memref<16x8x264xf32, #tpu.memory_space<vmem>>, vector<1x8x256xf32>
    %136 = vector.shape_cast %135 : vector<1x8x256xf32> to vector<8x256xf32>
    %c1_67 = arith.constant 1 : index
    %c0_68 = arith.constant 0 : index
    %c0_69 = arith.constant 0 : index
    %137 = vector.load %arg17[%c1_67, %c0_68, %c0_69] : memref<16x8x264xf32, #tpu.memory_space<vmem>>, vector<1x8x256xf32>
    %138 = vector.shape_cast %137 : vector<1x8x256xf32> to vector<8x256xf32>
    %c2_70 = arith.constant 2 : index
    %c0_71 = arith.constant 0 : index
    %c0_72 = arith.constant 0 : index
    %139 = vector.load %arg17[%c2_70, %c0_71, %c0_72] : memref<16x8x264xf32, #tpu.memory_space<vmem>>, vector<1x8x256xf32>
    %140 = vector.shape_cast %139 : vector<1x8x256xf32> to vector<8x256xf32>
    %c3_73 = arith.constant 3 : index
    %c0_74 = arith.constant 0 : index
    %c0_75 = arith.constant 0 : index
    %141 = vector.load %arg17[%c3_73, %c0_74, %c0_75] : memref<16x8x264xf32, #tpu.memory_space<vmem>>, vector<1x8x256xf32>
    %142 = vector.shape_cast %141 : vector<1x8x256xf32> to vector<8x256xf32>
    %c4_76 = arith.constant 4 : index
    %c0_77 = arith.constant 0 : index
    %c0_78 = arith.constant 0 : index
    %143 = vector.load %arg17[%c4_76, %c0_77, %c0_78] : memref<16x8x264xf32, #tpu.memory_space<vmem>>, vector<1x8x256xf32>
    %144 = vector.shape_cast %143 : vector<1x8x256xf32> to vector<8x256xf32>
    %c5_79 = arith.constant 5 : index
    %c0_80 = arith.constant 0 : index
    %c0_81 = arith.constant 0 : index
    %145 = vector.load %arg17[%c5_79, %c0_80, %c0_81] : memref<16x8x264xf32, #tpu.memory_space<vmem>>, vector<1x8x256xf32>
    %146 = vector.shape_cast %145 : vector<1x8x256xf32> to vector<8x256xf32>
    %c6_82 = arith.constant 6 : index
    %c0_83 = arith.constant 0 : index
    %c0_84 = arith.constant 0 : index
    %147 = vector.load %arg17[%c6_82, %c0_83, %c0_84] : memref<16x8x264xf32, #tpu.memory_space<vmem>>, vector<1x8x256xf32>
    %148 = vector.shape_cast %147 : vector<1x8x256xf32> to vector<8x256xf32>
    %149 = tpu.concatenate %136, %138, %140, %142, %144, %146, %148 in 0 : vector<8x256xf32>, vector<8x256xf32>, vector<8x256xf32>, vector<8x256xf32>, vector<8x256xf32>, vector<8x256xf32>, vector<8x256xf32> -> vector<56x256xf32>
    %150 = arith.truncf %149 : vector<56x256xf32> to vector<56x256xbf16>
    %cst_85 = arith.constant dense<0.000000e+00> : vector<64x256xf32>
    %151 = tpu.matmul %132, %150, %cst_85 {dimension_numbers = #tpu.dot_dimension_numbers<[1], [0], [0], [1], [0, 0, 1, 1], [], []>} : vector<64x56xbf16>, vector<56x256xbf16>, vector<64x256xf32> -> vector<64x256xf32>
    %152 = vector.broadcast %133 : vector<64x1xf32> to vector<64x256xf32>
    %153 = arith.mulf %151, %152 : vector<64x256xf32>
    %154 = vector.broadcast %134 : vector<64x1xf32> to vector<64x256xf32>
    %155 = arith.addf %153, %154 : vector<64x256xf32>
    %cst_86 = arith.constant 0.000000e+00 : f32
    %156 = vector.broadcast %cst_86 : f32 to vector<64x256xf32>
    %157 = arith.maximumf %155, %156 : vector<64x256xf32>
    %158 = vector.extract_strided_slice %157 {offsets = [0, 0], sizes = [16, 256], strides = [1, 1]} : vector<64x256xf32> to vector<16x256xf32>
    %159 = vector.extract_strided_slice %157 {offsets = [16, 0], sizes = [16, 256], strides = [1, 1]} : vector<64x256xf32> to vector<16x256xf32>
    %160 = arith.maximumf %158, %159 : vector<16x256xf32>
    %c1_87 = arith.constant 1 : index
    %c0_88 = arith.constant 0 : index
    %c0_89 = arith.constant 0 : index
    %161 = vector.load %arg18[%c1_87, %c0_88, %c0_89] : memref<8x16x264xf32, #tpu.memory_space<vmem>>, vector<1x16x256xf32>
    %162 = vector.shape_cast %161 : vector<1x16x256xf32> to vector<16x256xf32>
    %163 = vector.shape_cast %160 : vector<16x256xf32> to vector<1x16x256xf32>
    tpu.vector_store %arg18[%c1_87, %c0_88, %c0_89], %163 {strides = array<i32>} : memref<8x16x264xf32, #tpu.memory_space<vmem>>, vector<1x16x256xf32>,
    %164 = vector.extract_strided_slice %157 {offsets = [32, 0], sizes = [16, 256], strides = [1, 1]} : vector<64x256xf32> to vector<16x256xf32>
    %165 = vector.extract_strided_slice %157 {offsets = [48, 0], sizes = [16, 256], strides = [1, 1]} : vector<64x256xf32> to vector<16x256xf32>
    %166 = arith.maximumf %164, %165 : vector<16x256xf32>
    %c2_90 = arith.constant 2 : index
    %c0_91 = arith.constant 0 : index
    %c0_92 = arith.constant 0 : index
    %167 = vector.load %arg18[%c2_90, %c0_91, %c0_92] : memref<8x16x264xf32, #tpu.memory_space<vmem>>, vector<1x16x256xf32>
    %168 = vector.shape_cast %167 : vector<1x16x256xf32> to vector<16x256xf32>
    %169 = vector.shape_cast %166 : vector<16x256xf32> to vector<1x16x256xf32>
    tpu.vector_store %arg18[%c2_90, %c0_91, %c0_92], %169 {strides = array<i32>} : memref<8x16x264xf32, #tpu.memory_space<vmem>>, vector<1x16x256xf32>,
    %c4_93 = arith.constant 4 : index
    %c0_94 = arith.constant 0 : index
    %c0_95 = arith.constant 0 : index
    %170 = vector.load %arg17[%c4_93, %c0_94, %c0_95] : memref<16x8x264xf32, #tpu.memory_space<vmem>>, vector<1x8x256xf32>
    %171 = vector.shape_cast %170 : vector<1x8x256xf32> to vector<8x256xf32>
    %c5_96 = arith.constant 5 : index
    %c0_97 = arith.constant 0 : index
    %c0_98 = arith.constant 0 : index
    %172 = vector.load %arg17[%c5_96, %c0_97, %c0_98] : memref<16x8x264xf32, #tpu.memory_space<vmem>>, vector<1x8x256xf32>
    %173 = vector.shape_cast %172 : vector<1x8x256xf32> to vector<8x256xf32>
    %c6_99 = arith.constant 6 : index
    %c0_100 = arith.constant 0 : index
    %c0_101 = arith.constant 0 : index
    %174 = vector.load %arg17[%c6_99, %c0_100, %c0_101] : memref<16x8x264xf32, #tpu.memory_space<vmem>>, vector<1x8x256xf32>
    %175 = vector.shape_cast %174 : vector<1x8x256xf32> to vector<8x256xf32>
    %c7_102 = arith.constant 7 : index
    %c0_103 = arith.constant 0 : index
    %c0_104 = arith.constant 0 : index
    %176 = vector.load %arg17[%c7_102, %c0_103, %c0_104] : memref<16x8x264xf32, #tpu.memory_space<vmem>>, vector<1x8x256xf32>
    %177 = vector.shape_cast %176 : vector<1x8x256xf32> to vector<8x256xf32>
    %c8_105 = arith.constant 8 : index
    %c0_106 = arith.constant 0 : index
    %c0_107 = arith.constant 0 : index
    %178 = vector.load %arg17[%c8_105, %c0_106, %c0_107] : memref<16x8x264xf32, #tpu.memory_space<vmem>>, vector<1x8x256xf32>
    %179 = vector.shape_cast %178 : vector<1x8x256xf32> to vector<8x256xf32>
    %c9_108 = arith.constant 9 : index
    %c0_109 = arith.constant 0 : index
    %c0_110 = arith.constant 0 : index
    %180 = vector.load %arg17[%c9_108, %c0_109, %c0_110] : memref<16x8x264xf32, #tpu.memory_space<vmem>>, vector<1x8x256xf32>
    %181 = vector.shape_cast %180 : vector<1x8x256xf32> to vector<8x256xf32>
    %c10_111 = arith.constant 10 : index
    %c0_112 = arith.constant 0 : index
    %c0_113 = arith.constant 0 : index
    %182 = vector.load %arg17[%c10_111, %c0_112, %c0_113] : memref<16x8x264xf32, #tpu.memory_space<vmem>>, vector<1x8x256xf32>
    %183 = vector.shape_cast %182 : vector<1x8x256xf32> to vector<8x256xf32>
    %184 = tpu.concatenate %171, %173, %175, %177, %179, %181, %183 in 0 : vector<8x256xf32>, vector<8x256xf32>, vector<8x256xf32>, vector<8x256xf32>, vector<8x256xf32>, vector<8x256xf32>, vector<8x256xf32> -> vector<56x256xf32>
    %185 = arith.truncf %184 : vector<56x256xf32> to vector<56x256xbf16>
    %cst_114 = arith.constant dense<0.000000e+00> : vector<64x256xf32>
    %186 = tpu.matmul %132, %185, %cst_114 {dimension_numbers = #tpu.dot_dimension_numbers<[1], [0], [0], [1], [0, 0, 1, 1], [], []>} : vector<64x56xbf16>, vector<56x256xbf16>, vector<64x256xf32> -> vector<64x256xf32>
    %187 = vector.broadcast %133 : vector<64x1xf32> to vector<64x256xf32>
    %188 = arith.mulf %186, %187 : vector<64x256xf32>
    %189 = vector.broadcast %134 : vector<64x1xf32> to vector<64x256xf32>
    %190 = arith.addf %188, %189 : vector<64x256xf32>
    %cst_115 = arith.constant 0.000000e+00 : f32
    %191 = vector.broadcast %cst_115 : f32 to vector<64x256xf32>
    %192 = arith.maximumf %190, %191 : vector<64x256xf32>
    %193 = vector.extract_strided_slice %192 {offsets = [0, 0], sizes = [16, 256], strides = [1, 1]} : vector<64x256xf32> to vector<16x256xf32>
    %194 = vector.extract_strided_slice %192 {offsets = [16, 0], sizes = [16, 256], strides = [1, 1]} : vector<64x256xf32> to vector<16x256xf32>
    %195 = arith.maximumf %193, %194 : vector<16x256xf32>
    %c3_116 = arith.constant 3 : index
    %c0_117 = arith.constant 0 : index
    %c0_118 = arith.constant 0 : index
    %196 = vector.load %arg18[%c3_116, %c0_117, %c0_118] : memref<8x16x264xf32, #tpu.memory_space<vmem>>, vector<1x16x256xf32>
    %197 = vector.shape_cast %196 : vector<1x16x256xf32> to vector<16x256xf32>
    %198 = vector.shape_cast %195 : vector<16x256xf32> to vector<1x16x256xf32>
    tpu.vector_store %arg18[%c3_116, %c0_117, %c0_118], %198 {strides = array<i32>} : memref<8x16x264xf32, #tpu.memory_space<vmem>>, vector<1x16x256xf32>,
    %199 = vector.extract_strided_slice %192 {offsets = [32, 0], sizes = [16, 256], strides = [1, 1]} : vector<64x256xf32> to vector<16x256xf32>
    %200 = vector.extract_strided_slice %192 {offsets = [48, 0], sizes = [16, 256], strides = [1, 1]} : vector<64x256xf32> to vector<16x256xf32>
    %201 = arith.maximumf %199, %200 : vector<16x256xf32>
    %c4_119 = arith.constant 4 : index
    %c0_120 = arith.constant 0 : index
    %c0_121 = arith.constant 0 : index
    %202 = vector.load %arg18[%c4_119, %c0_120, %c0_121] : memref<8x16x264xf32, #tpu.memory_space<vmem>>, vector<1x16x256xf32>
    %203 = vector.shape_cast %202 : vector<1x16x256xf32> to vector<16x256xf32>
    %204 = vector.shape_cast %201 : vector<16x256xf32> to vector<1x16x256xf32>
    tpu.vector_store %arg18[%c4_119, %c0_120, %c0_121], %204 {strides = array<i32>} : memref<8x16x264xf32, #tpu.memory_space<vmem>>, vector<1x16x256xf32>,
    %c8_122 = arith.constant 8 : index
    %c0_123 = arith.constant 0 : index
    %c0_124 = arith.constant 0 : index
    %205 = vector.load %arg17[%c8_122, %c0_123, %c0_124] : memref<16x8x264xf32, #tpu.memory_space<vmem>>, vector<1x8x256xf32>
    %206 = vector.shape_cast %205 : vector<1x8x256xf32> to vector<8x256xf32>
    %c9_125 = arith.constant 9 : index
    %c0_126 = arith.constant 0 : index
    %c0_127 = arith.constant 0 : index
    %207 = vector.load %arg17[%c9_125, %c0_126, %c0_127] : memref<16x8x264xf32, #tpu.memory_space<vmem>>, vector<1x8x256xf32>
    %208 = vector.shape_cast %207 : vector<1x8x256xf32> to vector<8x256xf32>
    %c10_128 = arith.constant 10 : index
    %c0_129 = arith.constant 0 : index
    %c0_130 = arith.constant 0 : index
    %209 = vector.load %arg17[%c10_128, %c0_129, %c0_130] : memref<16x8x264xf32, #tpu.memory_space<vmem>>, vector<1x8x256xf32>
    %210 = vector.shape_cast %209 : vector<1x8x256xf32> to vector<8x256xf32>
    %c11_131 = arith.constant 11 : index
    %c0_132 = arith.constant 0 : index
    %c0_133 = arith.constant 0 : index
    %211 = vector.load %arg17[%c11_131, %c0_132, %c0_133] : memref<16x8x264xf32, #tpu.memory_space<vmem>>, vector<1x8x256xf32>
    %212 = vector.shape_cast %211 : vector<1x8x256xf32> to vector<8x256xf32>
    %c12_134 = arith.constant 12 : index
    %c0_135 = arith.constant 0 : index
    %c0_136 = arith.constant 0 : index
    %213 = vector.load %arg17[%c12_134, %c0_135, %c0_136] : memref<16x8x264xf32, #tpu.memory_space<vmem>>, vector<1x8x256xf32>
    %214 = vector.shape_cast %213 : vector<1x8x256xf32> to vector<8x256xf32>
    %c13_137 = arith.constant 13 : index
    %c0_138 = arith.constant 0 : index
    %c0_139 = arith.constant 0 : index
    %215 = vector.load %arg17[%c13_137, %c0_138, %c0_139] : memref<16x8x264xf32, #tpu.memory_space<vmem>>, vector<1x8x256xf32>
    %216 = vector.shape_cast %215 : vector<1x8x256xf32> to vector<8x256xf32>
    %c14_140 = arith.constant 14 : index
    %c0_141 = arith.constant 0 : index
    %c0_142 = arith.constant 0 : index
    %217 = vector.load %arg17[%c14_140, %c0_141, %c0_142] : memref<16x8x264xf32, #tpu.memory_space<vmem>>, vector<1x8x256xf32>
    %218 = vector.shape_cast %217 : vector<1x8x256xf32> to vector<8x256xf32>
    %219 = tpu.concatenate %206, %208, %210, %212, %214, %216, %218 in 0 : vector<8x256xf32>, vector<8x256xf32>, vector<8x256xf32>, vector<8x256xf32>, vector<8x256xf32>, vector<8x256xf32>, vector<8x256xf32> -> vector<56x256xf32>
    %220 = arith.truncf %219 : vector<56x256xf32> to vector<56x256xbf16>
    %cst_143 = arith.constant dense<0.000000e+00> : vector<64x256xf32>
    %221 = tpu.matmul %132, %220, %cst_143 {dimension_numbers = #tpu.dot_dimension_numbers<[1], [0], [0], [1], [0, 0, 1, 1], [], []>} : vector<64x56xbf16>, vector<56x256xbf16>, vector<64x256xf32> -> vector<64x256xf32>
    %222 = vector.broadcast %133 : vector<64x1xf32> to vector<64x256xf32>
    %223 = arith.mulf %221, %222 : vector<64x256xf32>
    %224 = vector.broadcast %134 : vector<64x1xf32> to vector<64x256xf32>
    %225 = arith.addf %223, %224 : vector<64x256xf32>
    %cst_144 = arith.constant 0.000000e+00 : f32
    %226 = vector.broadcast %cst_144 : f32 to vector<64x256xf32>
    %227 = arith.maximumf %225, %226 : vector<64x256xf32>
    %228 = vector.extract_strided_slice %227 {offsets = [0, 0], sizes = [16, 256], strides = [1, 1]} : vector<64x256xf32> to vector<16x256xf32>
    %229 = vector.extract_strided_slice %227 {offsets = [16, 0], sizes = [16, 256], strides = [1, 1]} : vector<64x256xf32> to vector<16x256xf32>
    %230 = arith.maximumf %228, %229 : vector<16x256xf32>
    %c5_145 = arith.constant 5 : index
    %c0_146 = arith.constant 0 : index
    %c0_147 = arith.constant 0 : index
    %231 = vector.load %arg18[%c5_145, %c0_146, %c0_147] : memref<8x16x264xf32, #tpu.memory_space<vmem>>, vector<1x16x256xf32>
    %232 = vector.shape_cast %231 : vector<1x16x256xf32> to vector<16x256xf32>
    %233 = vector.shape_cast %230 : vector<16x256xf32> to vector<1x16x256xf32>
    tpu.vector_store %arg18[%c5_145, %c0_146, %c0_147], %233 {strides = array<i32>} : memref<8x16x264xf32, #tpu.memory_space<vmem>>, vector<1x16x256xf32>,
    %234 = vector.extract_strided_slice %227 {offsets = [32, 0], sizes = [16, 256], strides = [1, 1]} : vector<64x256xf32> to vector<16x256xf32>
    %235 = vector.extract_strided_slice %227 {offsets = [48, 0], sizes = [16, 256], strides = [1, 1]} : vector<64x256xf32> to vector<16x256xf32>
    %236 = arith.maximumf %234, %235 : vector<16x256xf32>
    %c6_148 = arith.constant 6 : index
    %c0_149 = arith.constant 0 : index
    %c0_150 = arith.constant 0 : index
    %237 = vector.load %arg18[%c6_148, %c0_149, %c0_150] : memref<8x16x264xf32, #tpu.memory_space<vmem>>, vector<1x16x256xf32>
    %238 = vector.shape_cast %237 : vector<1x16x256xf32> to vector<16x256xf32>
    %239 = vector.shape_cast %236 : vector<16x256xf32> to vector<1x16x256xf32>
    tpu.vector_store %arg18[%c6_148, %c0_149, %c0_150], %239 {strides = array<i32>} : memref<8x16x264xf32, #tpu.memory_space<vmem>>, vector<1x16x256xf32>,
    %c12_151 = arith.constant 12 : index
    %c0_152 = arith.constant 0 : index
    %c0_153 = arith.constant 0 : index
    %240 = vector.load %arg17[%c12_151, %c0_152, %c0_153] : memref<16x8x264xf32, #tpu.memory_space<vmem>>, vector<1x8x256xf32>
    %241 = vector.shape_cast %240 : vector<1x8x256xf32> to vector<8x256xf32>
    %c13_154 = arith.constant 13 : index
    %c0_155 = arith.constant 0 : index
    %c0_156 = arith.constant 0 : index
    %242 = vector.load %arg17[%c13_154, %c0_155, %c0_156] : memref<16x8x264xf32, #tpu.memory_space<vmem>>, vector<1x8x256xf32>
    %243 = vector.shape_cast %242 : vector<1x8x256xf32> to vector<8x256xf32>
    %c14_157 = arith.constant 14 : index
    %c0_158 = arith.constant 0 : index
    %c0_159 = arith.constant 0 : index
    %244 = vector.load %arg17[%c14_157, %c0_158, %c0_159] : memref<16x8x264xf32, #tpu.memory_space<vmem>>, vector<1x8x256xf32>
    %245 = vector.shape_cast %244 : vector<1x8x256xf32> to vector<8x256xf32>
    %c15_160 = arith.constant 15 : index
    %c0_161 = arith.constant 0 : index
    %c0_162 = arith.constant 0 : index
    %246 = vector.load %arg17[%c15_160, %c0_161, %c0_162] : memref<16x8x264xf32, #tpu.memory_space<vmem>>, vector<1x8x256xf32>
    %247 = vector.shape_cast %246 : vector<1x8x256xf32> to vector<8x256xf32>
    %c0_163 = arith.constant 0 : index
    %c0_164 = arith.constant 0 : index
    %c1_165 = arith.constant 1 : index
    %248 = vector.load %arg17[%c0_163, %c0_164, %c1_165] : memref<16x8x264xf32, #tpu.memory_space<vmem>>, vector<1x8x256xf32>
    %249 = vector.shape_cast %248 : vector<1x8x256xf32> to vector<8x256xf32>
    %c1_166 = arith.constant 1 : index
    %c0_167 = arith.constant 0 : index
    %c1_168 = arith.constant 1 : index
    %250 = vector.load %arg17[%c1_166, %c0_167, %c1_168] : memref<16x8x264xf32, #tpu.memory_space<vmem>>, vector<1x8x256xf32>
    %251 = vector.shape_cast %250 : vector<1x8x256xf32> to vector<8x256xf32>
    %c2_169 = arith.constant 2 : index
    %c0_170 = arith.constant 0 : index
    %c1_171 = arith.constant 1 : index
    %252 = vector.load %arg17[%c2_169, %c0_170, %c1_171] : memref<16x8x264xf32, #tpu.memory_space<vmem>>, vector<1x8x256xf32>
    %253 = vector.shape_cast %252 : vector<1x8x256xf32> to vector<8x256xf32>
    %254 = tpu.concatenate %241, %243, %245, %247, %249, %251, %253 in 0 : vector<8x256xf32>, vector<8x256xf32>, vector<8x256xf32>, vector<8x256xf32>, vector<8x256xf32>, vector<8x256xf32>, vector<8x256xf32> -> vector<56x256xf32>
    %255 = arith.truncf %254 : vector<56x256xf32> to vector<56x256xbf16>
    %cst_172 = arith.constant dense<0.000000e+00> : vector<64x256xf32>
    %256 = tpu.matmul %132, %255, %cst_172 {dimension_numbers = #tpu.dot_dimension_numbers<[1], [0], [0], [1], [0, 0, 1, 1], [], []>} : vector<64x56xbf16>, vector<56x256xbf16>, vector<64x256xf32> -> vector<64x256xf32>
    %257 = vector.broadcast %133 : vector<64x1xf32> to vector<64x256xf32>
    %258 = arith.mulf %256, %257 : vector<64x256xf32>
    %259 = vector.broadcast %134 : vector<64x1xf32> to vector<64x256xf32>
    %260 = arith.addf %258, %259 : vector<64x256xf32>
    %cst_173 = arith.constant 0.000000e+00 : f32
    %261 = vector.broadcast %cst_173 : f32 to vector<64x256xf32>
    %262 = arith.maximumf %260, %261 : vector<64x256xf32>
    %263 = vector.extract_strided_slice %262 {offsets = [0, 0], sizes = [16, 256], strides = [1, 1]} : vector<64x256xf32> to vector<16x256xf32>
    %264 = vector.extract_strided_slice %262 {offsets = [16, 0], sizes = [16, 256], strides = [1, 1]} : vector<64x256xf32> to vector<16x256xf32>
    %265 = arith.maximumf %263, %264 : vector<16x256xf32>
    %c7_174 = arith.constant 7 : index
    %c0_175 = arith.constant 0 : index
    %c0_176 = arith.constant 0 : index
    %266 = vector.load %arg18[%c7_174, %c0_175, %c0_176] : memref<8x16x264xf32, #tpu.memory_space<vmem>>, vector<1x16x256xf32>
    %267 = vector.shape_cast %266 : vector<1x16x256xf32> to vector<16x256xf32>
    %268 = vector.shape_cast %265 : vector<16x256xf32> to vector<1x16x256xf32>
    tpu.vector_store %arg18[%c7_174, %c0_175, %c0_176], %268 {strides = array<i32>} : memref<8x16x264xf32, #tpu.memory_space<vmem>>, vector<1x16x256xf32>,
    %269 = vector.extract_strided_slice %262 {offsets = [32, 0], sizes = [16, 256], strides = [1, 1]} : vector<64x256xf32> to vector<16x256xf32>
    %270 = vector.extract_strided_slice %262 {offsets = [48, 0], sizes = [16, 256], strides = [1, 1]} : vector<64x256xf32> to vector<16x256xf32>
    %271 = arith.maximumf %269, %270 : vector<16x256xf32>
    %c0_177 = arith.constant 0 : index
    %c0_178 = arith.constant 0 : index
    %c1_179 = arith.constant 1 : index
    %272 = vector.load %arg18[%c0_177, %c0_178, %c1_179] : memref<8x16x264xf32, #tpu.memory_space<vmem>>, vector<1x16x256xf32>
    %273 = vector.shape_cast %272 : vector<1x16x256xf32> to vector<16x256xf32>
    %274 = vector.shape_cast %271 : vector<16x256xf32> to vector<1x16x256xf32>
    tpu.vector_store %arg18[%c0_177, %c0_178, %c1_179], %274 {strides = array<i32>} : memref<8x16x264xf32, #tpu.memory_space<vmem>>, vector<1x16x256xf32>,
    %cst_180 = arith.constant 0.000000e+00 : f32
    %275 = vector.broadcast %cst_180 : f32 to vector<16x1xf32>
    %c0_181 = arith.constant 0 : index
    %c0_182 = arith.constant 0 : index
    %c0_183 = arith.constant 0 : index
    %276 = vector.load %arg18[%c0_181, %c0_182, %c0_183] : memref<8x16x264xf32, #tpu.memory_space<vmem>>, vector<1x16x1xf32>
    %277 = vector.shape_cast %276 : vector<1x16x1xf32> to vector<16x1xf32>
    %278 = vector.shape_cast %275 : vector<16x1xf32> to vector<1x16x1xf32>
    tpu.vector_store %arg18[%c0_181, %c0_182, %c0_183], %278 {strides = array<i32>} : memref<8x16x264xf32, #tpu.memory_space<vmem>>, vector<1x16x1xf32>,
    %c0_184 = arith.constant 0 : index
    %c0_185 = arith.constant 0 : index
    %279 = vector.load %arg8[%c0_184, %c0_185] : memref<128x80xbf16, #tpu.memory_space<vmem>>, vector<128x80xbf16>
    %c0_186 = arith.constant 0 : index
    %c0_187 = arith.constant 0 : index
    %280 = vector.load %arg9[%c0_186, %c0_187] : memref<128x1xf32, #tpu.memory_space<vmem>>, vector<128x1xf32>
    %c0_188 = arith.constant 0 : index
    %c0_189 = arith.constant 0 : index
    %281 = vector.load %arg10[%c0_188, %c0_189] : memref<128x1xf32, #tpu.memory_space<vmem>>, vector<128x1xf32>
    %c0_190 = arith.constant 0 : index
    %c0_191 = arith.constant 0 : index
    %c0_192 = arith.constant 0 : index
    %282 = vector.load %arg18[%c0_190, %c0_191, %c0_192] : memref<8x16x264xf32, #tpu.memory_space<vmem>>, vector<1x16x256xf32>
    %283 = vector.shape_cast %282 : vector<1x16x256xf32> to vector<16x256xf32>
    %c1_193 = arith.constant 1 : index
    %c0_194 = arith.constant 0 : index
    %c0_195 = arith.constant 0 : index
    %284 = vector.load %arg18[%c1_193, %c0_194, %c0_195] : memref<8x16x264xf32, #tpu.memory_space<vmem>>, vector<1x16x256xf32>
    %285 = vector.shape_cast %284 : vector<1x16x256xf32> to vector<16x256xf32>
    %c2_196 = arith.constant 2 : index
    %c0_197 = arith.constant 0 : index
    %c0_198 = arith.constant 0 : index
    %286 = vector.load %arg18[%c2_196, %c0_197, %c0_198] : memref<8x16x264xf32, #tpu.memory_space<vmem>>, vector<1x16x256xf32>
    %287 = vector.shape_cast %286 : vector<1x16x256xf32> to vector<16x256xf32>
    %c3_199 = arith.constant 3 : index
    %c0_200 = arith.constant 0 : index
    %c0_201 = arith.constant 0 : index
    %288 = vector.load %arg18[%c3_199, %c0_200, %c0_201] : memref<8x16x264xf32, #tpu.memory_space<vmem>>, vector<1x16x256xf32>
    %289 = vector.shape_cast %288 : vector<1x16x256xf32> to vector<16x256xf32>
    %c4_202 = arith.constant 4 : index
    %c0_203 = arith.constant 0 : index
    %c0_204 = arith.constant 0 : index
    %290 = vector.load %arg18[%c4_202, %c0_203, %c0_204] : memref<8x16x264xf32, #tpu.memory_space<vmem>>, vector<1x16x256xf32>
    %291 = vector.shape_cast %290 : vector<1x16x256xf32> to vector<16x256xf32>
    %292 = tpu.concatenate %283, %285, %287, %289, %291 in 0 : vector<16x256xf32>, vector<16x256xf32>, vector<16x256xf32>, vector<16x256xf32>, vector<16x256xf32> -> vector<80x256xf32>
    %293 = arith.truncf %292 : vector<80x256xf32> to vector<80x256xbf16>
    %cst_205 = arith.constant dense<0.000000e+00> : vector<128x256xf32>
    %294 = tpu.matmul %279, %293, %cst_205 {dimension_numbers = #tpu.dot_dimension_numbers<[1], [0], [0], [1], [0, 0, 1, 1], [], []>} : vector<128x80xbf16>, vector<80x256xbf16>, vector<128x256xf32> -> vector<128x256xf32>
    %295 = vector.broadcast %280 : vector<128x1xf32> to vector<128x256xf32>
    %296 = arith.mulf %294, %295 : vector<128x256xf32>
    %297 = vector.broadcast %281 : vector<128x1xf32> to vector<128x256xf32>
    %298 = arith.addf %296, %297 : vector<128x256xf32>
    %cst_206 = arith.constant 0.000000e+00 : f32
    %299 = vector.broadcast %cst_206 : f32 to vector<128x256xf32>
    %300 = arith.maximumf %298, %299 : vector<128x256xf32>
    %301 = vector.extract_strided_slice %300 {offsets = [0, 0], sizes = [32, 256], strides = [1, 1]} : vector<128x256xf32> to vector<32x256xf32>
    %302 = vector.extract_strided_slice %300 {offsets = [32, 0], sizes = [32, 256], strides = [1, 1]} : vector<128x256xf32> to vector<32x256xf32>
    %303 = arith.maximumf %301, %302 : vector<32x256xf32>
    %304 = vector.extract_strided_slice %300 {offsets = [64, 0], sizes = [32, 256], strides = [1, 1]} : vector<128x256xf32> to vector<32x256xf32>
    %305 = vector.extract_strided_slice %300 {offsets = [96, 0], sizes = [32, 256], strides = [1, 1]} : vector<128x256xf32> to vector<32x256xf32>
    %306 = arith.maximumf %304, %305 : vector<32x256xf32>
    %307 = arith.maximumf %303, %306 : vector<32x256xf32>
    %c4_207 = arith.constant 4 : index
    %c0_208 = arith.constant 0 : index
    %c0_209 = arith.constant 0 : index
    %308 = vector.load %arg18[%c4_207, %c0_208, %c0_209] : memref<8x16x264xf32, #tpu.memory_space<vmem>>, vector<1x16x256xf32>
    %309 = vector.shape_cast %308 : vector<1x16x256xf32> to vector<16x256xf32>
    %c5_210 = arith.constant 5 : index
    %c0_211 = arith.constant 0 : index
    %c0_212 = arith.constant 0 : index
    %310 = vector.load %arg18[%c5_210, %c0_211, %c0_212] : memref<8x16x264xf32, #tpu.memory_space<vmem>>, vector<1x16x256xf32>
    %311 = vector.shape_cast %310 : vector<1x16x256xf32> to vector<16x256xf32>
    %c6_213 = arith.constant 6 : index
    %c0_214 = arith.constant 0 : index
    %c0_215 = arith.constant 0 : index
    %312 = vector.load %arg18[%c6_213, %c0_214, %c0_215] : memref<8x16x264xf32, #tpu.memory_space<vmem>>, vector<1x16x256xf32>
    %313 = vector.shape_cast %312 : vector<1x16x256xf32> to vector<16x256xf32>
    %c7_216 = arith.constant 7 : index
    %c0_217 = arith.constant 0 : index
    %c0_218 = arith.constant 0 : index
    %314 = vector.load %arg18[%c7_216, %c0_217, %c0_218] : memref<8x16x264xf32, #tpu.memory_space<vmem>>, vector<1x16x256xf32>
    %315 = vector.shape_cast %314 : vector<1x16x256xf32> to vector<16x256xf32>
    %c0_219 = arith.constant 0 : index
    %c0_220 = arith.constant 0 : index
    %c1_221 = arith.constant 1 : index
    %316 = vector.load %arg18[%c0_219, %c0_220, %c1_221] : memref<8x16x264xf32, #tpu.memory_space<vmem>>, vector<1x16x256xf32>
    %317 = vector.shape_cast %316 : vector<1x16x256xf32> to vector<16x256xf32>
    %318 = tpu.concatenate %309, %311, %313, %315, %317 in 0 : vector<16x256xf32>, vector<16x256xf32>, vector<16x256xf32>, vector<16x256xf32>, vector<16x256xf32> -> vector<80x256xf32>
    %319 = arith.truncf %318 : vector<80x256xf32> to vector<80x256xbf16>
    %cst_222 = arith.constant dense<0.000000e+00> : vector<128x256xf32>
    %320 = tpu.matmul %279, %319, %cst_222 {dimension_numbers = #tpu.dot_dimension_numbers<[1], [0], [0], [1], [0, 0, 1, 1], [], []>} : vector<128x80xbf16>, vector<80x256xbf16>, vector<128x256xf32> -> vector<128x256xf32>
    %321 = vector.broadcast %280 : vector<128x1xf32> to vector<128x256xf32>
    %322 = arith.mulf %320, %321 : vector<128x256xf32>
    %323 = vector.broadcast %281 : vector<128x1xf32> to vector<128x256xf32>
    %324 = arith.addf %322, %323 : vector<128x256xf32>
    %cst_223 = arith.constant 0.000000e+00 : f32
    %325 = vector.broadcast %cst_223 : f32 to vector<128x256xf32>
    %326 = arith.maximumf %324, %325 : vector<128x256xf32>
    %327 = vector.extract_strided_slice %326 {offsets = [0, 0], sizes = [32, 256], strides = [1, 1]} : vector<128x256xf32> to vector<32x256xf32>
    %328 = vector.extract_strided_slice %326 {offsets = [32, 0], sizes = [32, 256], strides = [1, 1]} : vector<128x256xf32> to vector<32x256xf32>
    %329 = arith.maximumf %327, %328 : vector<32x256xf32>
    %330 = vector.extract_strided_slice %326 {offsets = [64, 0], sizes = [32, 256], strides = [1, 1]} : vector<128x256xf32> to vector<32x256xf32>
    %331 = vector.extract_strided_slice %326 {offsets = [96, 0], sizes = [32, 256], strides = [1, 1]} : vector<128x256xf32> to vector<32x256xf32>
    %332 = arith.maximumf %330, %331 : vector<32x256xf32>
    %333 = arith.maximumf %329, %332 : vector<32x256xf32>
    %334 = arith.maximumf %307, %333 : vector<32x256xf32>
    %cst_224 = arith.constant 0.000000e+00 : f32
    %335 = vector.broadcast %cst_224 : f32 to vector<64x256xf32>
    %c0_225 = arith.constant 0 : index
    %c0_226 = arith.constant 0 : index
    %c0_227 = arith.constant 0 : index
    %336 = vector.load %arg11[%c0_225, %c0_226, %c0_227] : memref<32x64x256xbf16, #tpu.memory_space<vmem>>, vector<1x64x256xbf16>
    %337 = vector.shape_cast %336 : vector<1x64x256xbf16> to vector<64x256xbf16>
    %338 = arith.extf %337 : vector<64x256xbf16> to vector<64x256xf32>
    %339 = vector.extract_strided_slice %334 {offsets = [0, 0], sizes = [1, 256], strides = [1, 1]} : vector<32x256xf32> to vector<1x256xf32>
    %340 = vector.broadcast %339 : vector<1x256xf32> to vector<64x256xf32>
    %341 = arith.mulf %338, %340 : vector<64x256xf32>
    %342 = arith.addf %335, %341 : vector<64x256xf32>
    %c1_228 = arith.constant 1 : index
    %c0_229 = arith.constant 0 : index
    %c0_230 = arith.constant 0 : index
    %343 = vector.load %arg11[%c1_228, %c0_229, %c0_230] : memref<32x64x256xbf16, #tpu.memory_space<vmem>>, vector<1x64x256xbf16>
    %344 = vector.shape_cast %343 : vector<1x64x256xbf16> to vector<64x256xbf16>
    %345 = arith.extf %344 : vector<64x256xbf16> to vector<64x256xf32>
    %346 = vector.extract_strided_slice %334 {offsets = [1, 0], sizes = [1, 256], strides = [1, 1]} : vector<32x256xf32> to vector<1x256xf32>
    %347 = vector.broadcast %346 : vector<1x256xf32> to vector<64x256xf32>
    %348 = arith.mulf %345, %347 : vector<64x256xf32>
    %349 = arith.addf %342, %348 : vector<64x256xf32>
    %c2_231 = arith.constant 2 : index
    %c0_232 = arith.constant 0 : index
    %c0_233 = arith.constant 0 : index
    %350 = vector.load %arg11[%c2_231, %c0_232, %c0_233] : memref<32x64x256xbf16, #tpu.memory_space<vmem>>, vector<1x64x256xbf16>
    %351 = vector.shape_cast %350 : vector<1x64x256xbf16> to vector<64x256xbf16>
    %352 = arith.extf %351 : vector<64x256xbf16> to vector<64x256xf32>
    %353 = vector.extract_strided_slice %334 {offsets = [2, 0], sizes = [1, 256], strides = [1, 1]} : vector<32x256xf32> to vector<1x256xf32>
    %354 = vector.broadcast %353 : vector<1x256xf32> to vector<64x256xf32>
    %355 = arith.mulf %352, %354 : vector<64x256xf32>
    %356 = arith.addf %349, %355 : vector<64x256xf32>
    %c3_234 = arith.constant 3 : index
    %c0_235 = arith.constant 0 : index
    %c0_236 = arith.constant 0 : index
    %357 = vector.load %arg11[%c3_234, %c0_235, %c0_236] : memref<32x64x256xbf16, #tpu.memory_space<vmem>>, vector<1x64x256xbf16>
    %358 = vector.shape_cast %357 : vector<1x64x256xbf16> to vector<64x256xbf16>
    %359 = arith.extf %358 : vector<64x256xbf16> to vector<64x256xf32>
    %360 = vector.extract_strided_slice %334 {offsets = [3, 0], sizes = [1, 256], strides = [1, 1]} : vector<32x256xf32> to vector<1x256xf32>
    %361 = vector.broadcast %360 : vector<1x256xf32> to vector<64x256xf32>
    %362 = arith.mulf %359, %361 : vector<64x256xf32>
    %363 = arith.addf %356, %362 : vector<64x256xf32>
    %c4_237 = arith.constant 4 : index
    %c0_238 = arith.constant 0 : index
    %c0_239 = arith.constant 0 : index
    %364 = vector.load %arg11[%c4_237, %c0_238, %c0_239] : memref<32x64x256xbf16, #tpu.memory_space<vmem>>, vector<1x64x256xbf16>
    %365 = vector.shape_cast %364 : vector<1x64x256xbf16> to vector<64x256xbf16>
    %366 = arith.extf %365 : vector<64x256xbf16> to vector<64x256xf32>
    %367 = vector.extract_strided_slice %334 {offsets = [4, 0], sizes = [1, 256], strides = [1, 1]} : vector<32x256xf32> to vector<1x256xf32>
    %368 = vector.broadcast %367 : vector<1x256xf32> to vector<64x256xf32>
    %369 = arith.mulf %366, %368 : vector<64x256xf32>
    %370 = arith.addf %363, %369 : vector<64x256xf32>
    %c5_240 = arith.constant 5 : index
    %c0_241 = arith.constant 0 : index
    %c0_242 = arith.constant 0 : index
    %371 = vector.load %arg11[%c5_240, %c0_241, %c0_242] : memref<32x64x256xbf16, #tpu.memory_space<vmem>>, vector<1x64x256xbf16>
    %372 = vector.shape_cast %371 : vector<1x64x256xbf16> to vector<64x256xbf16>
    %373 = arith.extf %372 : vector<64x256xbf16> to vector<64x256xf32>
    %374 = vector.extract_strided_slice %334 {offsets = [5, 0], sizes = [1, 256], strides = [1, 1]} : vector<32x256xf32> to vector<1x256xf32>
    %375 = vector.broadcast %374 : vector<1x256xf32> to vector<64x256xf32>
    %376 = arith.mulf %373, %375 : vector<64x256xf32>
    %377 = arith.addf %370, %376 : vector<64x256xf32>
    %c6_243 = arith.constant 6 : index
    %c0_244 = arith.constant 0 : index
    %c0_245 = arith.constant 0 : index
    %378 = vector.load %arg11[%c6_243, %c0_244, %c0_245] : memref<32x64x256xbf16, #tpu.memory_space<vmem>>, vector<1x64x256xbf16>
    %379 = vector.shape_cast %378 : vector<1x64x256xbf16> to vector<64x256xbf16>
    %380 = arith.extf %379 : vector<64x256xbf16> to vector<64x256xf32>
    %381 = vector.extract_strided_slice %334 {offsets = [6, 0], sizes = [1, 256], strides = [1, 1]} : vector<32x256xf32> to vector<1x256xf32>
    %382 = vector.broadcast %381 : vector<1x256xf32> to vector<64x256xf32>
    %383 = arith.mulf %380, %382 : vector<64x256xf32>
    %384 = arith.addf %377, %383 : vector<64x256xf32>
    %c7_246 = arith.constant 7 : index
    %c0_247 = arith.constant 0 : index
    %c0_248 = arith.constant 0 : index
    %385 = vector.load %arg11[%c7_246, %c0_247, %c0_248] : memref<32x64x256xbf16, #tpu.memory_space<vmem>>, vector<1x64x256xbf16>
    %386 = vector.shape_cast %385 : vector<1x64x256xbf16> to vector<64x256xbf16>
    %387 = arith.extf %386 : vector<64x256xbf16> to vector<64x256xf32>
    %388 = vector.extract_strided_slice %334 {offsets = [7, 0], sizes = [1, 256], strides = [1, 1]} : vector<32x256xf32> to vector<1x256xf32>
    %389 = vector.broadcast %388 : vector<1x256xf32> to vector<64x256xf32>
    %390 = arith.mulf %387, %389 : vector<64x256xf32>
    %391 = arith.addf %384, %390 : vector<64x256xf32>
    %c8_249 = arith.constant 8 : index
    %c0_250 = arith.constant 0 : index
    %c0_251 = arith.constant 0 : index
    %392 = vector.load %arg11[%c8_249, %c0_250, %c0_251] : memref<32x64x256xbf16, #tpu.memory_space<vmem>>, vector<1x64x256xbf16>
    %393 = vector.shape_cast %392 : vector<1x64x256xbf16> to vector<64x256xbf16>
    %394 = arith.extf %393 : vector<64x256xbf16> to vector<64x256xf32>
    %395 = vector.extract_strided_slice %334 {offsets = [8, 0], sizes = [1, 256], strides = [1, 1]} : vector<32x256xf32> to vector<1x256xf32>
    %396 = vector.broadcast %395 : vector<1x256xf32> to vector<64x256xf32>
    %397 = arith.mulf %394, %396 : vector<64x256xf32>
    %398 = arith.addf %391, %397 : vector<64x256xf32>
    %c9_252 = arith.constant 9 : index
    %c0_253 = arith.constant 0 : index
    %c0_254 = arith.constant 0 : index
    %399 = vector.load %arg11[%c9_252, %c0_253, %c0_254] : memref<32x64x256xbf16, #tpu.memory_space<vmem>>, vector<1x64x256xbf16>
    %400 = vector.shape_cast %399 : vector<1x64x256xbf16> to vector<64x256xbf16>
    %401 = arith.extf %400 : vector<64x256xbf16> to vector<64x256xf32>
    %402 = vector.extract_strided_slice %334 {offsets = [9, 0], sizes = [1, 256], strides = [1, 1]} : vector<32x256xf32> to vector<1x256xf32>
    %403 = vector.broadcast %402 : vector<1x256xf32> to vector<64x256xf32>
    %404 = arith.mulf %401, %403 : vector<64x256xf32>
    %405 = arith.addf %398, %404 : vector<64x256xf32>
    %c10_255 = arith.constant 10 : index
    %c0_256 = arith.constant 0 : index
    %c0_257 = arith.constant 0 : index
    %406 = vector.load %arg11[%c10_255, %c0_256, %c0_257] : memref<32x64x256xbf16, #tpu.memory_space<vmem>>, vector<1x64x256xbf16>
    %407 = vector.shape_cast %406 : vector<1x64x256xbf16> to vector<64x256xbf16>
    %408 = arith.extf %407 : vector<64x256xbf16> to vector<64x256xf32>
    %409 = vector.extract_strided_slice %334 {offsets = [10, 0], sizes = [1, 256], strides = [1, 1]} : vector<32x256xf32> to vector<1x256xf32>
    %410 = vector.broadcast %409 : vector<1x256xf32> to vector<64x256xf32>
    %411 = arith.mulf %408, %410 : vector<64x256xf32>
    %412 = arith.addf %405, %411 : vector<64x256xf32>
    %c11_258 = arith.constant 11 : index
    %c0_259 = arith.constant 0 : index
    %c0_260 = arith.constant 0 : index
    %413 = vector.load %arg11[%c11_258, %c0_259, %c0_260] : memref<32x64x256xbf16, #tpu.memory_space<vmem>>, vector<1x64x256xbf16>
    %414 = vector.shape_cast %413 : vector<1x64x256xbf16> to vector<64x256xbf16>
    %415 = arith.extf %414 : vector<64x256xbf16> to vector<64x256xf32>
    %416 = vector.extract_strided_slice %334 {offsets = [11, 0], sizes = [1, 256], strides = [1, 1]} : vector<32x256xf32> to vector<1x256xf32>
    %417 = vector.broadcast %416 : vector<1x256xf32> to vector<64x256xf32>
    %418 = arith.mulf %415, %417 : vector<64x256xf32>
    %419 = arith.addf %412, %418 : vector<64x256xf32>
    %c12_261 = arith.constant 12 : index
    %c0_262 = arith.constant 0 : index
    %c0_263 = arith.constant 0 : index
    %420 = vector.load %arg11[%c12_261, %c0_262, %c0_263] : memref<32x64x256xbf16, #tpu.memory_space<vmem>>, vector<1x64x256xbf16>
    %421 = vector.shape_cast %420 : vector<1x64x256xbf16> to vector<64x256xbf16>
    %422 = arith.extf %421 : vector<64x256xbf16> to vector<64x256xf32>
    %423 = vector.extract_strided_slice %334 {offsets = [12, 0], sizes = [1, 256], strides = [1, 1]} : vector<32x256xf32> to vector<1x256xf32>
    %424 = vector.broadcast %423 : vector<1x256xf32> to vector<64x256xf32>
    %425 = arith.mulf %422, %424 : vector<64x256xf32>
    %426 = arith.addf %419, %425 : vector<64x256xf32>
    %c13_264 = arith.constant 13 : index
    %c0_265 = arith.constant 0 : index
    %c0_266 = arith.constant 0 : index
    %427 = vector.load %arg11[%c13_264, %c0_265, %c0_266] : memref<32x64x256xbf16, #tpu.memory_space<vmem>>, vector<1x64x256xbf16>
    %428 = vector.shape_cast %427 : vector<1x64x256xbf16> to vector<64x256xbf16>
    %429 = arith.extf %428 : vector<64x256xbf16> to vector<64x256xf32>
    %430 = vector.extract_strided_slice %334 {offsets = [13, 0], sizes = [1, 256], strides = [1, 1]} : vector<32x256xf32> to vector<1x256xf32>
    %431 = vector.broadcast %430 : vector<1x256xf32> to vector<64x256xf32>
    %432 = arith.mulf %429, %431 : vector<64x256xf32>
    %433 = arith.addf %426, %432 : vector<64x256xf32>
    %c14_267 = arith.constant 14 : index
    %c0_268 = arith.constant 0 : index
    %c0_269 = arith.constant 0 : index
    %434 = vector.load %arg11[%c14_267, %c0_268, %c0_269] : memref<32x64x256xbf16, #tpu.memory_space<vmem>>, vector<1x64x256xbf16>
    %435 = vector.shape_cast %434 : vector<1x64x256xbf16> to vector<64x256xbf16>
    %436 = arith.extf %435 : vector<64x256xbf16> to vector<64x256xf32>
    %437 = vector.extract_strided_slice %334 {offsets = [14, 0], sizes = [1, 256], strides = [1, 1]} : vector<32x256xf32> to vector<1x256xf32>
    %438 = vector.broadcast %437 : vector<1x256xf32> to vector<64x256xf32>
    %439 = arith.mulf %436, %438 : vector<64x256xf32>
    %440 = arith.addf %433, %439 : vector<64x256xf32>
    %c15_270 = arith.constant 15 : index
    %c0_271 = arith.constant 0 : index
    %c0_272 = arith.constant 0 : index
    %441 = vector.load %arg11[%c15_270, %c0_271, %c0_272] : memref<32x64x256xbf16, #tpu.memory_space<vmem>>, vector<1x64x256xbf16>
    %442 = vector.shape_cast %441 : vector<1x64x256xbf16> to vector<64x256xbf16>
    %443 = arith.extf %442 : vector<64x256xbf16> to vector<64x256xf32>
    %444 = vector.extract_strided_slice %334 {offsets = [15, 0], sizes = [1, 256], strides = [1, 1]} : vector<32x256xf32> to vector<1x256xf32>
    %445 = vector.broadcast %444 : vector<1x256xf32> to vector<64x256xf32>
    %446 = arith.mulf %443, %445 : vector<64x256xf32>
    %447 = arith.addf %440, %446 : vector<64x256xf32>
    %c16_273 = arith.constant 16 : index
    %c0_274 = arith.constant 0 : index
    %c0_275 = arith.constant 0 : index
    %448 = vector.load %arg11[%c16_273, %c0_274, %c0_275] : memref<32x64x256xbf16, #tpu.memory_space<vmem>>, vector<1x64x256xbf16>
    %449 = vector.shape_cast %448 : vector<1x64x256xbf16> to vector<64x256xbf16>
    %450 = arith.extf %449 : vector<64x256xbf16> to vector<64x256xf32>
    %451 = vector.extract_strided_slice %334 {offsets = [16, 0], sizes = [1, 256], strides = [1, 1]} : vector<32x256xf32> to vector<1x256xf32>
    %452 = vector.broadcast %451 : vector<1x256xf32> to vector<64x256xf32>
    %453 = arith.mulf %450, %452 : vector<64x256xf32>
    %454 = arith.addf %447, %453 : vector<64x256xf32>
    %c17 = arith.constant 17 : index
    %c0_276 = arith.constant 0 : index
    %c0_277 = arith.constant 0 : index
    %455 = vector.load %arg11[%c17, %c0_276, %c0_277] : memref<32x64x256xbf16, #tpu.memory_space<vmem>>, vector<1x64x256xbf16>
    %456 = vector.shape_cast %455 : vector<1x64x256xbf16> to vector<64x256xbf16>
    %457 = arith.extf %456 : vector<64x256xbf16> to vector<64x256xf32>
    %458 = vector.extract_strided_slice %334 {offsets = [17, 0], sizes = [1, 256], strides = [1, 1]} : vector<32x256xf32> to vector<1x256xf32>
    %459 = vector.broadcast %458 : vector<1x256xf32> to vector<64x256xf32>
    %460 = arith.mulf %457, %459 : vector<64x256xf32>
    %461 = arith.addf %454, %460 : vector<64x256xf32>
    %c18 = arith.constant 18 : index
    %c0_278 = arith.constant 0 : index
    %c0_279 = arith.constant 0 : index
    %462 = vector.load %arg11[%c18, %c0_278, %c0_279] : memref<32x64x256xbf16, #tpu.memory_space<vmem>>, vector<1x64x256xbf16>
    %463 = vector.shape_cast %462 : vector<1x64x256xbf16> to vector<64x256xbf16>
    %464 = arith.extf %463 : vector<64x256xbf16> to vector<64x256xf32>
    %465 = vector.extract_strided_slice %334 {offsets = [18, 0], sizes = [1, 256], strides = [1, 1]} : vector<32x256xf32> to vector<1x256xf32>
    %466 = vector.broadcast %465 : vector<1x256xf32> to vector<64x256xf32>
    %467 = arith.mulf %464, %466 : vector<64x256xf32>
    %468 = arith.addf %461, %467 : vector<64x256xf32>
    %c19 = arith.constant 19 : index
    %c0_280 = arith.constant 0 : index
    %c0_281 = arith.constant 0 : index
    %469 = vector.load %arg11[%c19, %c0_280, %c0_281] : memref<32x64x256xbf16, #tpu.memory_space<vmem>>, vector<1x64x256xbf16>
    %470 = vector.shape_cast %469 : vector<1x64x256xbf16> to vector<64x256xbf16>
    %471 = arith.extf %470 : vector<64x256xbf16> to vector<64x256xf32>
    %472 = vector.extract_strided_slice %334 {offsets = [19, 0], sizes = [1, 256], strides = [1, 1]} : vector<32x256xf32> to vector<1x256xf32>
    %473 = vector.broadcast %472 : vector<1x256xf32> to vector<64x256xf32>
    %474 = arith.mulf %471, %473 : vector<64x256xf32>
    %475 = arith.addf %468, %474 : vector<64x256xf32>
    %c20 = arith.constant 20 : index
    %c0_282 = arith.constant 0 : index
    %c0_283 = arith.constant 0 : index
    %476 = vector.load %arg11[%c20, %c0_282, %c0_283] : memref<32x64x256xbf16, #tpu.memory_space<vmem>>, vector<1x64x256xbf16>
    %477 = vector.shape_cast %476 : vector<1x64x256xbf16> to vector<64x256xbf16>
    %478 = arith.extf %477 : vector<64x256xbf16> to vector<64x256xf32>
    %479 = vector.extract_strided_slice %334 {offsets = [20, 0], sizes = [1, 256], strides = [1, 1]} : vector<32x256xf32> to vector<1x256xf32>
    %480 = vector.broadcast %479 : vector<1x256xf32> to vector<64x256xf32>
    %481 = arith.mulf %478, %480 : vector<64x256xf32>
    %482 = arith.addf %475, %481 : vector<64x256xf32>
    %c21 = arith.constant 21 : index
    %c0_284 = arith.constant 0 : index
    %c0_285 = arith.constant 0 : index
    %483 = vector.load %arg11[%c21, %c0_284, %c0_285] : memref<32x64x256xbf16, #tpu.memory_space<vmem>>, vector<1x64x256xbf16>
    %484 = vector.shape_cast %483 : vector<1x64x256xbf16> to vector<64x256xbf16>
    %485 = arith.extf %484 : vector<64x256xbf16> to vector<64x256xf32>
    %486 = vector.extract_strided_slice %334 {offsets = [21, 0], sizes = [1, 256], strides = [1, 1]} : vector<32x256xf32> to vector<1x256xf32>
    %487 = vector.broadcast %486 : vector<1x256xf32> to vector<64x256xf32>
    %488 = arith.mulf %485, %487 : vector<64x256xf32>
    %489 = arith.addf %482, %488 : vector<64x256xf32>
    %c22 = arith.constant 22 : index
    %c0_286 = arith.constant 0 : index
    %c0_287 = arith.constant 0 : index
    %490 = vector.load %arg11[%c22, %c0_286, %c0_287] : memref<32x64x256xbf16, #tpu.memory_space<vmem>>, vector<1x64x256xbf16>
    %491 = vector.shape_cast %490 : vector<1x64x256xbf16> to vector<64x256xbf16>
    %492 = arith.extf %491 : vector<64x256xbf16> to vector<64x256xf32>
    %493 = vector.extract_strided_slice %334 {offsets = [22, 0], sizes = [1, 256], strides = [1, 1]} : vector<32x256xf32> to vector<1x256xf32>
    %494 = vector.broadcast %493 : vector<1x256xf32> to vector<64x256xf32>
    %495 = arith.mulf %492, %494 : vector<64x256xf32>
    %496 = arith.addf %489, %495 : vector<64x256xf32>
    %c23 = arith.constant 23 : index
    %c0_288 = arith.constant 0 : index
    %c0_289 = arith.constant 0 : index
    %497 = vector.load %arg11[%c23, %c0_288, %c0_289] : memref<32x64x256xbf16, #tpu.memory_space<vmem>>, vector<1x64x256xbf16>
    %498 = vector.shape_cast %497 : vector<1x64x256xbf16> to vector<64x256xbf16>
    %499 = arith.extf %498 : vector<64x256xbf16> to vector<64x256xf32>
    %500 = vector.extract_strided_slice %334 {offsets = [23, 0], sizes = [1, 256], strides = [1, 1]} : vector<32x256xf32> to vector<1x256xf32>
    %501 = vector.broadcast %500 : vector<1x256xf32> to vector<64x256xf32>
    %502 = arith.mulf %499, %501 : vector<64x256xf32>
    %503 = arith.addf %496, %502 : vector<64x256xf32>
    %c24 = arith.constant 24 : index
    %c0_290 = arith.constant 0 : index
    %c0_291 = arith.constant 0 : index
    %504 = vector.load %arg11[%c24, %c0_290, %c0_291] : memref<32x64x256xbf16, #tpu.memory_space<vmem>>, vector<1x64x256xbf16>
    %505 = vector.shape_cast %504 : vector<1x64x256xbf16> to vector<64x256xbf16>
    %506 = arith.extf %505 : vector<64x256xbf16> to vector<64x256xf32>
    %507 = vector.extract_strided_slice %334 {offsets = [24, 0], sizes = [1, 256], strides = [1, 1]} : vector<32x256xf32> to vector<1x256xf32>
    %508 = vector.broadcast %507 : vector<1x256xf32> to vector<64x256xf32>
    %509 = arith.mulf %506, %508 : vector<64x256xf32>
    %510 = arith.addf %503, %509 : vector<64x256xf32>
    %c25 = arith.constant 25 : index
    %c0_292 = arith.constant 0 : index
    %c0_293 = arith.constant 0 : index
    %511 = vector.load %arg11[%c25, %c0_292, %c0_293] : memref<32x64x256xbf16, #tpu.memory_space<vmem>>, vector<1x64x256xbf16>
    %512 = vector.shape_cast %511 : vector<1x64x256xbf16> to vector<64x256xbf16>
    %513 = arith.extf %512 : vector<64x256xbf16> to vector<64x256xf32>
    %514 = vector.extract_strided_slice %334 {offsets = [25, 0], sizes = [1, 256], strides = [1, 1]} : vector<32x256xf32> to vector<1x256xf32>
    %515 = vector.broadcast %514 : vector<1x256xf32> to vector<64x256xf32>
    %516 = arith.mulf %513, %515 : vector<64x256xf32>
    %517 = arith.addf %510, %516 : vector<64x256xf32>
    %c26 = arith.constant 26 : index
    %c0_294 = arith.constant 0 : index
    %c0_295 = arith.constant 0 : index
    %518 = vector.load %arg11[%c26, %c0_294, %c0_295] : memref<32x64x256xbf16, #tpu.memory_space<vmem>>, vector<1x64x256xbf16>
    %519 = vector.shape_cast %518 : vector<1x64x256xbf16> to vector<64x256xbf16>
    %520 = arith.extf %519 : vector<64x256xbf16> to vector<64x256xf32>
    %521 = vector.extract_strided_slice %334 {offsets = [26, 0], sizes = [1, 256], strides = [1, 1]} : vector<32x256xf32> to vector<1x256xf32>
    %522 = vector.broadcast %521 : vector<1x256xf32> to vector<64x256xf32>
    %523 = arith.mulf %520, %522 : vector<64x256xf32>
    %524 = arith.addf %517, %523 : vector<64x256xf32>
    %c27 = arith.constant 27 : index
    %c0_296 = arith.constant 0 : index
    %c0_297 = arith.constant 0 : index
    %525 = vector.load %arg11[%c27, %c0_296, %c0_297] : memref<32x64x256xbf16, #tpu.memory_space<vmem>>, vector<1x64x256xbf16>
    %526 = vector.shape_cast %525 : vector<1x64x256xbf16> to vector<64x256xbf16>
    %527 = arith.extf %526 : vector<64x256xbf16> to vector<64x256xf32>
    %528 = vector.extract_strided_slice %334 {offsets = [27, 0], sizes = [1, 256], strides = [1, 1]} : vector<32x256xf32> to vector<1x256xf32>
    %529 = vector.broadcast %528 : vector<1x256xf32> to vector<64x256xf32>
    %530 = arith.mulf %527, %529 : vector<64x256xf32>
    %531 = arith.addf %524, %530 : vector<64x256xf32>
    %c28 = arith.constant 28 : index
    %c0_298 = arith.constant 0 : index
    %c0_299 = arith.constant 0 : index
    %532 = vector.load %arg11[%c28, %c0_298, %c0_299] : memref<32x64x256xbf16, #tpu.memory_space<vmem>>, vector<1x64x256xbf16>
    %533 = vector.shape_cast %532 : vector<1x64x256xbf16> to vector<64x256xbf16>
    %534 = arith.extf %533 : vector<64x256xbf16> to vector<64x256xf32>
    %535 = vector.extract_strided_slice %334 {offsets = [28, 0], sizes = [1, 256], strides = [1, 1]} : vector<32x256xf32> to vector<1x256xf32>
    %536 = vector.broadcast %535 : vector<1x256xf32> to vector<64x256xf32>
    %537 = arith.mulf %534, %536 : vector<64x256xf32>
    %538 = arith.addf %531, %537 : vector<64x256xf32>
    %c29 = arith.constant 29 : index
    %c0_300 = arith.constant 0 : index
    %c0_301 = arith.constant 0 : index
    %539 = vector.load %arg11[%c29, %c0_300, %c0_301] : memref<32x64x256xbf16, #tpu.memory_space<vmem>>, vector<1x64x256xbf16>
    %540 = vector.shape_cast %539 : vector<1x64x256xbf16> to vector<64x256xbf16>
    %541 = arith.extf %540 : vector<64x256xbf16> to vector<64x256xf32>
    %542 = vector.extract_strided_slice %334 {offsets = [29, 0], sizes = [1, 256], strides = [1, 1]} : vector<32x256xf32> to vector<1x256xf32>
    %543 = vector.broadcast %542 : vector<1x256xf32> to vector<64x256xf32>
    %544 = arith.mulf %541, %543 : vector<64x256xf32>
    %545 = arith.addf %538, %544 : vector<64x256xf32>
    %c30 = arith.constant 30 : index
    %c0_302 = arith.constant 0 : index
    %c0_303 = arith.constant 0 : index
    %546 = vector.load %arg11[%c30, %c0_302, %c0_303] : memref<32x64x256xbf16, #tpu.memory_space<vmem>>, vector<1x64x256xbf16>
    %547 = vector.shape_cast %546 : vector<1x64x256xbf16> to vector<64x256xbf16>
    %548 = arith.extf %547 : vector<64x256xbf16> to vector<64x256xf32>
    %549 = vector.extract_strided_slice %334 {offsets = [30, 0], sizes = [1, 256], strides = [1, 1]} : vector<32x256xf32> to vector<1x256xf32>
    %550 = vector.broadcast %549 : vector<1x256xf32> to vector<64x256xf32>
    %551 = arith.mulf %548, %550 : vector<64x256xf32>
    %552 = arith.addf %545, %551 : vector<64x256xf32>
    %c31 = arith.constant 31 : index
    %c0_304 = arith.constant 0 : index
    %c0_305 = arith.constant 0 : index
    %553 = vector.load %arg11[%c31, %c0_304, %c0_305] : memref<32x64x256xbf16, #tpu.memory_space<vmem>>, vector<1x64x256xbf16>
    %554 = vector.shape_cast %553 : vector<1x64x256xbf16> to vector<64x256xbf16>
    %555 = arith.extf %554 : vector<64x256xbf16> to vector<64x256xf32>
    %556 = vector.extract_strided_slice %334 {offsets = [31, 0], sizes = [1, 256], strides = [1, 1]} : vector<32x256xf32> to vector<1x256xf32>
    %557 = vector.broadcast %556 : vector<1x256xf32> to vector<64x256xf32>
    %558 = arith.mulf %555, %557 : vector<64x256xf32>
    %559 = arith.addf %552, %558 : vector<64x256xf32>
    %cst_306 = arith.constant dense<0.000000e+00> : vector<64xf32>
    %560 = vector.multi_reduction <add>, %559, %cst_306 [1] : vector<64x256xf32> to vector<64xf32>
    %561 = vector.shape_cast %560 : vector<64xf32> to vector<64x1xf32>
    %c0_307 = arith.constant 0 : index
    %c0_308 = arith.constant 0 : index
    %562 = vector.load %arg12[%c0_307, %c0_308] : memref<64x1xf32, #tpu.memory_space<vmem>>, vector<64x1xf32>
    %563 = arith.mulf %561, %562 : vector<64x1xf32>
    %c0_309 = arith.constant 0 : index
    %c0_310 = arith.constant 0 : index
    %564 = vector.load %arg13[%c0_309, %c0_310] : memref<64x1xf32, #tpu.memory_space<vmem>>, vector<64x1xf32>
    %565 = arith.addf %563, %564 : vector<64x1xf32>
    %cst_311 = arith.constant 0.000000e+00 : f32
    %566 = vector.broadcast %cst_311 : f32 to vector<64x1xf32>
    %567 = arith.maximumf %565, %566 : vector<64x1xf32>
    %c0_312 = arith.constant 0 : index
    %c0_313 = arith.constant 0 : index
    %568 = vector.load %arg14[%c0_312, %c0_313] : memref<64x2xf32, #tpu.memory_space<vmem>>, vector<64x2xf32>
    %569 = vector.broadcast %567 : vector<64x1xf32> to vector<64x2xf32>
    %570 = arith.mulf %569, %568 : vector<64x2xf32>
    %cst_314 = arith.constant dense<0.000000e+00> : vector<2xf32>
    %571 = vector.multi_reduction <add>, %570, %cst_314 [0] : vector<64x2xf32> to vector<2xf32>
    %572 = vector.shape_cast %571 : vector<2xf32> to vector<1x2xf32>
    %c0_315 = arith.constant 0 : index
    %c0_316 = arith.constant 0 : index
    %573 = vector.load %arg15[%c0_315, %c0_316] : memref<1x2xf32, #tpu.memory_space<vmem>>, vector<1x2xf32>
    %574 = arith.addf %572, %573 : vector<1x2xf32>
    %c0_317 = arith.constant 0 : index
    %c0_318 = arith.constant 0 : index
    %c0_319 = arith.constant 0 : index
    %575 = vector.load %arg16[%c0_317, %c0_318, %c0_319] : memref<1x1x2xf32, #tpu.memory_space<vmem>>, vector<1x1x2xf32>
    %576 = vector.shape_cast %575 : vector<1x1x2xf32> to vector<1x2xf32>
    %577 = vector.shape_cast %574 : vector<1x2xf32> to vector<1x1x2xf32>
    tpu.vector_store %arg16[%c0_317, %c0_318, %c0_319], %577 {strides = array<i32>} : memref<1x1x2xf32, #tpu.memory_space<vmem>>, vector<1x1x2xf32>,
    return
  }
  func.func @transform_0(%arg0: i32) -> (i32, i32, i32) {
    %c0_i32 = arith.constant 0 : i32
    %c0_i32_0 = arith.constant 0 : i32
    %c0_i32_1 = arith.constant 0 : i32
    return %arg0, %c0_i32, %c0_i32_0 : i32, i32, i32
  }
  func.func @transform_1(%arg0: i32) -> (i32, i32) {
    %c0_i32 = arith.constant 0 : i32
    %c0_i32_0 = arith.constant 0 : i32
    %c0_i32_1 = arith.constant 0 : i32
    return %c0_i32, %c0_i32_0 : i32, i32
  }
  func.func @transform_2(%arg0: i32) -> (i32, i32) {
    %c0_i32 = arith.constant 0 : i32
    %c0_i32_0 = arith.constant 0 : i32
    %c0_i32_1 = arith.constant 0 : i32
    return %c0_i32, %c0_i32_0 : i32, i32
  }
  func.func @transform_3(%arg0: i32) -> (i32, i32) {
    %c0_i32 = arith.constant 0 : i32
    %c0_i32_0 = arith.constant 0 : i32
    %c0_i32_1 = arith.constant 0 : i32
    return %c0_i32, %c0_i32_0 : i32, i32
  }
  func.func @transform_4(%arg0: i32) -> (i32, i32) {
    %c0_i32 = arith.constant 0 : i32
    %c0_i32_0 = arith.constant 0 : i32
    %c0_i32_1 = arith.constant 0 : i32
    return %c0_i32, %c0_i32_0 : i32, i32
  }
  func.func @transform_5(%arg0: i32) -> (i32, i32) {
    %c0_i32 = arith.constant 0 : i32
    %c0_i32_0 = arith.constant 0 : i32
    %c0_i32_1 = arith.constant 0 : i32
    return %c0_i32, %c0_i32_0 : i32, i32
  }
  func.func @transform_6(%arg0: i32) -> (i32, i32) {
    %c0_i32 = arith.constant 0 : i32
    %c0_i32_0 = arith.constant 0 : i32
    %c0_i32_1 = arith.constant 0 : i32
    return %c0_i32, %c0_i32_0 : i32, i32
  }
  func.func @transform_7(%arg0: i32) -> (i32, i32) {
    %c0_i32 = arith.constant 0 : i32
    %c0_i32_0 = arith.constant 0 : i32
    %c0_i32_1 = arith.constant 0 : i32
    return %c0_i32, %c0_i32_0 : i32, i32
  }
  func.func @transform_8(%arg0: i32) -> (i32, i32) {
    %c0_i32 = arith.constant 0 : i32
    %c0_i32_0 = arith.constant 0 : i32
    %c0_i32_1 = arith.constant 0 : i32
    return %c0_i32, %c0_i32_0 : i32, i32
  }
  func.func @transform_9(%arg0: i32) -> (i32, i32) {
    %c0_i32 = arith.constant 0 : i32
    %c0_i32_0 = arith.constant 0 : i32
    %c0_i32_1 = arith.constant 0 : i32
    return %c0_i32, %c0_i32_0 : i32, i32
  }
  func.func @transform_10(%arg0: i32) -> (i32, i32, i32) {
    %c0_i32 = arith.constant 0 : i32
    %c0_i32_0 = arith.constant 0 : i32
    %c0_i32_1 = arith.constant 0 : i32
    %c0_i32_2 = arith.constant 0 : i32
    return %c0_i32, %c0_i32_0, %c0_i32_1 : i32, i32, i32
  }
  func.func @transform_11(%arg0: i32) -> (i32, i32) {
    %c0_i32 = arith.constant 0 : i32
    %c0_i32_0 = arith.constant 0 : i32
    %c0_i32_1 = arith.constant 0 : i32
    return %c0_i32, %c0_i32_0 : i32, i32
  }
  func.func @transform_12(%arg0: i32) -> (i32, i32) {
    %c0_i32 = arith.constant 0 : i32
    %c0_i32_0 = arith.constant 0 : i32
    %c0_i32_1 = arith.constant 0 : i32
    return %c0_i32, %c0_i32_0 : i32, i32
  }
  func.func @transform_13(%arg0: i32) -> (i32, i32) {
    %c0_i32 = arith.constant 0 : i32
    %c0_i32_0 = arith.constant 0 : i32
    %c0_i32_1 = arith.constant 0 : i32
    return %c0_i32, %c0_i32_0 : i32, i32
  }
  func.func @transform_14(%arg0: i32) -> (i32, i32) {
    %c0_i32 = arith.constant 0 : i32
    %c0_i32_0 = arith.constant 0 : i32
    %c0_i32_1 = arith.constant 0 : i32
    return %c0_i32, %c0_i32_0 : i32, i32
  }
  func.func @transform_15(%arg0: i32) -> (i32, i32, i32) {
    %c0_i32 = arith.constant 0 : i32
    %c0_i32_0 = arith.constant 0 : i32
    %c0_i32_1 = arith.constant 0 : i32
    return %arg0, %c0_i32, %c0_i32_0 : i32, i32, i32
  }
}

</mosaic_0001>

<llo_original>
// kernel: forward.1
$region0: #{forward.1}
  #allocation0 [shape = 'u32[]', space=smem, size = 0x4, offset = 0x4, fixed_abs, tag = 'smem constant byte address 0x4 - core index']
  #allocation1 [shape = 'u32[72,128]{1,0:T(1,128)}', space=vmem, size = 0x9000, scoped, tag = 'internal scratch']
  #allocation2 [shape = 'f32[16,8,264]{2,1,0:T(8,128)}', space=vmem, size = 0x30000, scoped, tag = 'scratch operand']
  #allocation3 [shape = 'f32[8,16,264]{2,1,0:T(8,128)}', space=vmem, size = 0x30000, scoped, tag = 'scratch operand']
  %s0 = inlined_call_operand.vmem [shape: f32[2,40,256], index: 0, kind: input, shape index: {}]
  %s1 = inlined_call_operand.hbm [shape: bf16[128,24], index: 1, kind: input, shape index: {}]
  %s2 = inlined_call_operand.hbm [shape: f32[128,1], index: 2, kind: input, shape index: {}]
  %s3 = inlined_call_operand.hbm [shape: f32[128,1], index: 3, kind: input, shape index: {}]
  %s4 = inlined_call_operand.vmem [shape: bf16[64,56], index: 4, kind: input, shape index: {}]
  %s5 = inlined_call_operand.hbm [shape: f32[64,1], index: 5, kind: input, shape index: {}]
  %s6 = inlined_call_operand.hbm [shape: f32[64,1], index: 6, kind: input, shape index: {}]
  %s7 = inlined_call_operand.hbm [shape: bf16[128,80], index: 7, kind: input, shape index: {}]
  %s8 = inlined_call_operand.hbm [shape: f32[128,1], index: 8, kind: input, shape index: {}]
  %s9 = inlined_call_operand.vmem [shape: f32[128,1], index: 9, kind: input, shape index: {}]
  %s10 = inlined_call_operand.vmem [shape: bf16[32,64,256], index: 10, kind: input, shape index: {}]
  %s11 = inlined_call_operand.hbm [shape: f32[64,1], index: 11, kind: input, shape index: {}]
  %s12 = inlined_call_operand.hbm [shape: f32[64,1], index: 12, kind: input, shape index: {}]
  %s13 = inlined_call_operand.vmem [shape: f32[64,2], index: 13, kind: input, shape index: {}]
  %s14 = inlined_call_operand.vmem [shape: f32[1,2], index: 14, kind: input, shape index: {}]
  %s15 = inlined_call_operand.hbm [shape: f32[2,1,2], index: 15, kind: output, shape index: {}]
  %s16 = sld [smem:[#allocation0]]
  $region129: #{forward.1} parent=0
    _
  %s18 = ssub.s32 1, %s16
  %s19 = scalar_select 0, %s18, %s16
  $region1: #{forward.1} parent=0
    #allocation4 [shape = 'u8[32768]{0}', space=vmem, size = 0x8000, scoped, tag = 'input window, operand 1, single buffered']
    #allocation5 [shape = 's32[2]{0}', space=sflag, size = 0x8, scoped, tag = 'scoped memory for forward.1']
    #allocation6 [shape = 's32[2]{0}', space=sflag, size = 0x8, scoped, tag = 'scoped memory for forward.1']
    #allocation7 [shape = 'u8[65536]{0}', space=vmem, size = 0x10000, scoped, tag = 'input window, operand 2, single buffered']
    #allocation8 [shape = 's32[1]{0}', space=sflag, size = 0x4, scoped, tag = 'scoped memory for forward.1']
    #allocation9 [shape = 'u8[65536]{0}', space=vmem, size = 0x10000, scoped, tag = 'input window, operand 3, single buffered']
    #allocation10 [shape = 'u8[32768]{0}', space=vmem, size = 0x8000, scoped, tag = 'input window, operand 5, single buffered']
    #allocation11 [shape = 's32[1]{0}', space=sflag, size = 0x4, scoped, tag = 'scoped memory for forward.1']
    #allocation12 [shape = 'u8[32768]{0}', space=vmem, size = 0x8000, scoped, tag = 'input window, operand 6, single buffered']
    #allocation13 [shape = 'u8[32768]{0}', space=vmem, size = 0x8000, scoped, tag = 'input window, operand 7, single buffered']
    #allocation14 [shape = 's32[1]{0}', space=sflag, size = 0x4, scoped, tag = 'scoped memory for forward.1']
    #allocation15 [shape = 'u8[65536]{0}', space=vmem, size = 0x10000, scoped, tag = 'input window, operand 8, single buffered']
    #allocation16 [shape = 'u8[32768]{0}', space=vmem, size = 0x8000, scoped, tag = 'input window, operand 11, single buffered']
    #allocation17 [shape = 's32[1]{0}', space=sflag, size = 0x4, scoped, tag = 'scoped memory for forward.1']
    #allocation18 [shape = 'u8[32768]{0}', space=vmem, size = 0x8000, scoped, tag = 'input window, operand 12, single buffered']
    #allocation19 [shape = 'u8[1024]{0}', space=vmem, size = 0x400, scoped, tag = 'output window, operand 0']
    %20 = vsyncpa [#allocation5], 0
    %21 = vsyncpa [#allocation8], 0
    %22 = vsyncpa [#allocation11], 0
    %23 = vsyncpa [#allocation14], 0
    %24 = vsyncpa [#allocation17], 0
    %25 = vsyncpa [#allocation6], 0
    %s26 = scalar_lea.sflag [#allocation6], 1
    %27 = vsyncpa %s26, 0
    loop: start=0, step=1, limit=4
    $region2: #{forward.1} parent=1 // loop_pre_header
      _
    $region3: #{forward.1} parent=1 // loop_header
      %s29 = sphi 0, %s33
      %p30 = scmp.ge.s32.totalorder %s29, 4
      %s39 = sphi 0, %s41
      %s42 = sphi 0, %s39
      %s43 = sphi 0, %s42
      %s59 = sphi 0, %s43
      %s63 = sphi 0, %s63
      %s65 = sphi 0, %s63
      %s66 = sphi 0, %s65
      %s80 = sphi 0, %s66
      %s84 = sphi 0, %s84
      %s86 = sphi 0, %s84
      %s87 = sphi 0, %s86
      %s101 = sphi 0, %s87
      %s105 = sphi 0, %s105
      %s107 = sphi 0, %s105
      %s108 = sphi 0, %s107
      %s122 = sphi 0, %s108
      %s126 = sphi 0, %s126
      %s128 = sphi 0, %s126
      %s129 = sphi 0, %s128
      %s143 = sphi 0, %s129
      %s147 = sphi 0, %s147
      %s149 = sphi 0, %s147
      %s150 = sphi 0, %s149
      %s164 = sphi 0, %s150
      %s168 = sphi 0, %s168
      %s170 = sphi 0, %s168
      %s171 = sphi 0, %s170
      %s185 = sphi 0, %s171
      %s189 = sphi 0, %s189
      %s191 = sphi 0, %s189
      %s192 = sphi 0, %s191
      %s206 = sphi 0, %s192
      %s210 = sphi 0, %s210
      %s212 = sphi 0, %s210
      %s213 = sphi 0, %s212
      %s227 = sphi 0, %s213
      %s231 = sphi 0, %s231
      %s233 = sphi 0, %s231
      %s234 = sphi 0, %s233
      %s248 = sphi 0, %s234
      %s252 = sphi 0, %s252
      %s254 = sphi 0, %s252
      %s255 = sphi 0, %s254
      %s269 = sphi 0, %s255
      %s273 = sphi 0, %s273
      %s275 = sphi 0, %s273
      %s276 = sphi 0, %s275
      %s290 = sphi 0, %s276
      %s294 = sphi 0, %s294
      %s296 = sphi 0, %s294
      %s297 = sphi 0, %s296
      %s311 = sphi 0, %s297
      %s315 = sphi 0, %s315
      %s317 = sphi 0, %s315
      %s318 = sphi 0, %s317
      %s332 = sphi 0, %s318
      %s336 = sphi 0, %s336
      %s338 = sphi 0, %s336
      %s339 = sphi 0, %s338
      %s353 = sphi 0, %s339
      %s359 = sphi 0, %s361
      %s362 = sphi 0, %s359
      %s363 = sphi 0, %s362
      %s379 = sphi 0, %s363
    $region4: #{forward.1} parent=1 // loop_header_branch
      %32 = sbr.rel (%p30) target = $region8
    $region5: #{forward.1} parent=1 // loop_body
      %s34 = ssub.s32 %s29, 1
      %s35 = ssub.s32 %s29, 2
      %s36 = sadd.s32 %s29, 1
      %s37 = ssub.s32 %s29, %s36
      %p38 = scmp.eq.s32.totalorder %s37, 0
      %s40 = sadd.s32 %s39, 1
      %s41 = scalar_select %p38, %s39, %s40
      %p44 = pneg %p38
      %p45 = scmp.eq.s32.totalorder %s29, 1
      %p46 = por %p44, %p45
      %p47 = scmp.ne.s32.totalorder %s39, %s42
      %p48 = scmp.eq.s32.totalorder %s29, 0
      %p49 = por %p47, %p48
      %p50 = scmp.ne.s32.totalorder %s39, %s42
      %p51 = scmp.eq.s32.totalorder %s34, 1
      %p52 = por %p50, %p51
      %p53 = scmp.ne.s32.totalorder %s42, %s43
      %p54 = scmp.eq.s32.totalorder %s34, 0
      %p55 = por %p53, %p54
      %p56 = scmp.ne.s32.totalorder %s42, %s43
      %p57 = scmp.eq.s32.totalorder %s35, 1
      %p58 = por %p56, %p57
      %p60 = scmp.ne.s32.totalorder %s43, %s59
      %p61 = scmp.eq.s32.totalorder %s35, 0
      %p62 = por %p60, %p61
      %s64 = sadd.s32 %s63, 1
      %p67 = scmp.eq.s32.totalorder %s29, 1
      %p68 = scmp.ne.s32.totalorder %s63, %s65
      %p69 = scmp.eq.s32.totalorder %s29, 0
      %p70 = por %p68, %p69
      %p71 = scmp.ne.s32.totalorder %s63, %s65
      %p72 = scmp.eq.s32.totalorder %s34, 1
      %p73 = por %p71, %p72
      %p74 = scmp.ne.s32.totalorder %s65, %s66
      %p75 = scmp.eq.s32.totalorder %s34, 0
      %p76 = por %p74, %p75
      %p77 = scmp.ne.s32.totalorder %s65, %s66
      %p78 = scmp.eq.s32.totalorder %s35, 1
      %p79 = por %p77, %p78
      %p81 = scmp.ne.s32.totalorder %s66, %s80
      %p82 = scmp.eq.s32.totalorder %s35, 0
      %p83 = por %p81, %p82
      %s85 = sadd.s32 %s84, 1
      %p88 = scmp.eq.s32.totalorder %s29, 1
      %p89 = scmp.ne.s32.totalorder %s84, %s86
      %p90 = scmp.eq.s32.totalorder %s29, 0
      %p91 = por %p89, %p90
      %p92 = scmp.ne.s32.totalorder %s84, %s86
      %p93 = scmp.eq.s32.totalorder %s34, 1
      %p94 = por %p92, %p93
      %p95 = scmp.ne.s32.totalorder %s86, %s87
      %p96 = scmp.eq.s32.totalorder %s34, 0
      %p97 = por %p95, %p96
      %p98 = scmp.ne.s32.totalorder %s86, %s87
      %p99 = scmp.eq.s32.totalorder %s35, 1
      %p100 = por %p98, %p99
      %p102 = scmp.ne.s32.totalorder %s87, %s101
      %p103 = scmp.eq.s32.totalorder %s35, 0
      %p104 = por %p102, %p103
      %s106 = sadd.s32 %s105, 1
      %p109 = scmp.eq.s32.totalorder %s29, 1
      %p110 = scmp.ne.s32.totalorder %s105, %s107
      %p111 = scmp.eq.s32.totalorder %s29, 0
      %p112 = por %p110, %p111
      %p113 = scmp.ne.s32.totalorder %s105, %s107
      %p114 = scmp.eq.s32.totalorder %s34, 1
      %p115 = por %p113, %p114
      %p116 = scmp.ne.s32.totalorder %s107, %s108
      %p117 = scmp.eq.s32.totalorder %s34, 0
      %p118 = por %p116, %p117
      %p119 = scmp.ne.s32.totalorder %s107, %s108
      %p120 = scmp.eq.s32.totalorder %s35, 1
      %p121 = por %p119, %p120
      %p123 = scmp.ne.s32.totalorder %s108, %s122
      %p124 = scmp.eq.s32.totalorder %s35, 0
      %p125 = por %p123, %p124
      %s127 = sadd.s32 %s126, 1
      %p130 = scmp.eq.s32.totalorder %s29, 1
      %p131 = scmp.ne.s32.totalorder %s126, %s128
      %p132 = scmp.eq.s32.totalorder %s29, 0
      %p133 = por %p131, %p132
      %p134 = scmp.ne.s32.totalorder %s126, %s128
      %p135 = scmp.eq.s32.totalorder %s34, 1
      %p136 = por %p134, %p135
      %p137 = scmp.ne.s32.totalorder %s128, %s129
      %p138 = scmp.eq.s32.totalorder %s34, 0
      %p139 = por %p137, %p138
      %p140 = scmp.ne.s32.totalorder %s128, %s129
      %p141 = scmp.eq.s32.totalorder %s35, 1
      %p142 = por %p140, %p141
      %p144 = scmp.ne.s32.totalorder %s129, %s143
      %p145 = scmp.eq.s32.totalorder %s35, 0
      %p146 = por %p144, %p145
      %s148 = sadd.s32 %s147, 1
      %p151 = scmp.eq.s32.totalorder %s29, 1
      %p152 = scmp.ne.s32.totalorder %s147, %s149
      %p153 = scmp.eq.s32.totalorder %s29, 0
      %p154 = por %p152, %p153
      %p155 = scmp.ne.s32.totalorder %s147, %s149
      %p156 = scmp.eq.s32.totalorder %s34, 1
      %p157 = por %p155, %p156
      %p158 = scmp.ne.s32.totalorder %s149, %s150
      %p159 = scmp.eq.s32.totalorder %s34, 0
      %p160 = por %p158, %p159
      %p161 = scmp.ne.s32.totalorder %s149, %s150
      %p162 = scmp.eq.s32.totalorder %s35, 1
      %p163 = por %p161, %p162
      %p165 = scmp.ne.s32.totalorder %s150, %s164
      %p166 = scmp.eq.s32.totalorder %s35, 0
      %p167 = por %p165, %p166
      %s169 = sadd.s32 %s168, 1
      %p172 = scmp.eq.s32.totalorder %s29, 1
      %p173 = scmp.ne.s32.totalorder %s168, %s170
      %p174 = scmp.eq.s32.totalorder %s29, 0
      %p175 = por %p173, %p174
      %p176 = scmp.ne.s32.totalorder %s168, %s170
      %p177 = scmp.eq.s32.totalorder %s34, 1
      %p178 = por %p176, %p177
      %p179 = scmp.ne.s32.totalorder %s170, %s171
      %p180 = scmp.eq.s32.totalorder %s34, 0
      %p181 = por %p179, %p180
      %p182 = scmp.ne.s32.totalorder %s170, %s171
      %p183 = scmp.eq.s32.totalorder %s35, 1
      %p184 = por %p182, %p183
      %p186 = scmp.ne.s32.totalorder %s171, %s185
      %p187 = scmp.eq.s32.totalorder %s35, 0
      %p188 = por %p186, %p187
      %s190 = sadd.s32 %s189, 1
      %p193 = scmp.eq.s32.totalorder %s29, 1
      %p194 = scmp.ne.s32.totalorder %s189, %s191
      %p195 = scmp.eq.s32.totalorder %s29, 0
      %p196 = por %p194, %p195
      %p197 = scmp.ne.s32.totalorder %s189, %s191
      %p198 = scmp.eq.s32.totalorder %s34, 1
      %p199 = por %p197, %p198
      %p200 = scmp.ne.s32.totalorder %s191, %s192
      %p201 = scmp.eq.s32.totalorder %s34, 0
      %p202 = por %p200, %p201
      %p203 = scmp.ne.s32.totalorder %s191, %s192
      %p204 = scmp.eq.s32.totalorder %s35, 1
      %p205 = por %p203, %p204
      %p207 = scmp.ne.s32.totalorder %s192, %s206
      %p208 = scmp.eq.s32.totalorder %s35, 0
      %p209 = por %p207, %p208
      %s211 = sadd.s32 %s210, 1
      %p214 = scmp.eq.s32.totalorder %s29, 1
      %p215 = scmp.ne.s32.totalorder %s210, %s212
      %p216 = scmp.eq.s32.totalorder %s29, 0
      %p217 = por %p215, %p216
      %p218 = scmp.ne.s32.totalorder %s210, %s212
      %p219 = scmp.eq.s32.totalorder %s34, 1
      %p220 = por %p218, %p219
      %p221 = scmp.ne.s32.totalorder %s212, %s213
      %p222 = scmp.eq.s32.totalorder %s34, 0
      %p223 = por %p221, %p222
      %p224 = scmp.ne.s32.totalorder %s212, %s213
      %p225 = scmp.eq.s32.totalorder %s35, 1
      %p226 = por %p224, %p225
      %p228 = scmp.ne.s32.totalorder %s213, %s227
      %p229 = scmp.eq.s32.totalorder %s35, 0
      %p230 = por %p228, %p229
      %s232 = sadd.s32 %s231, 1
      %p235 = scmp.eq.s32.totalorder %s29, 1
      %p236 = scmp.ne.s32.totalorder %s231, %s233
      %p237 = scmp.eq.s32.totalorder %s29, 0
      %p238 = por %p236, %p237
      %p239 = scmp.ne.s32.totalorder %s231, %s233
      %p240 = scmp.eq.s32.totalorder %s34, 1
      %p241 = por %p239, %p240
      %p242 = scmp.ne.s32.totalorder %s233, %s234
      %p243 = scmp.eq.s32.totalorder %s34, 0
      %p244 = por %p242, %p243
      %p245 = scmp.ne.s32.totalorder %s233, %s234
      %p246 = scmp.eq.s32.totalorder %s35, 1
      %p247 = por %p245, %p246
      %p249 = scmp.ne.s32.totalorder %s234, %s248
      %p250 = scmp.eq.s32.totalorder %s35, 0
      %p251 = por %p249, %p250
      %s253 = sadd.s32 %s252, 1
      %p256 = scmp.eq.s32.totalorder %s29, 1
      %p257 = scmp.ne.s32.totalorder %s252, %s254
      %p258 = scmp.eq.s32.totalorder %s29, 0
      %p259 = por %p257, %p258
      %p260 = scmp.ne.s32.totalorder %s252, %s254
      %p261 = scmp.eq.s32.totalorder %s34, 1
      %p262 = por %p260, %p261
      %p263 = scmp.ne.s32.totalorder %s254, %s255
      %p264 = scmp.eq.s32.totalorder %s34, 0
      %p265 = por %p263, %p264
      %p266 = scmp.ne.s32.totalorder %s254, %s255
      %p267 = scmp.eq.s32.totalorder %s35, 1
      %p268 = por %p266, %p267
      %p270 = scmp.ne.s32.totalorder %s255, %s269
      %p271 = scmp.eq.s32.totalorder %s35, 0
      %p272 = por %p270, %p271
      %s274 = sadd.s32 %s273, 1
      %p277 = scmp.eq.s32.totalorder %s29, 1
      %p278 = scmp.ne.s32.totalorder %s273, %s275
      %p279 = scmp.eq.s32.totalorder %s29, 0
      %p280 = por %p278, %p279
      %p281 = scmp.ne.s32.totalorder %s273, %s275
      %p282 = scmp.eq.s32.totalorder %s34, 1
      %p283 = por %p281, %p282
      %p284 = scmp.ne.s32.totalorder %s275, %s276
      %p285 = scmp.eq.s32.totalorder %s34, 0
      %p286 = por %p284, %p285
      %p287 = scmp.ne.s32.totalorder %s275, %s276
      %p288 = scmp.eq.s32.totalorder %s35, 1
      %p289 = por %p287, %p288
      %p291 = scmp.ne.s32.totalorder %s276, %s290
      %p292 = scmp.eq.s32.totalorder %s35, 0
      %p293 = por %p291, %p292
      %s295 = sadd.s32 %s294, 1
      %p298 = scmp.eq.s32.totalorder %s29, 1
      %p299 = scmp.ne.s32.totalorder %s294, %s296
      %p300 = scmp.eq.s32.totalorder %s29, 0
      %p301 = por %p299, %p300
      %p302 = scmp.ne.s32.totalorder %s294, %s296
      %p303 = scmp.eq.s32.totalorder %s34, 1
      %p304 = por %p302, %p303
      %p305 = scmp.ne.s32.totalorder %s296, %s297
      %p306 = scmp.eq.s32.totalorder %s34, 0
      %p307 = por %p305, %p306
      %p308 = scmp.ne.s32.totalorder %s296, %s297
      %p309 = scmp.eq.s32.totalorder %s35, 1
      %p310 = por %p308, %p309
      %p312 = scmp.ne.s32.totalorder %s297, %s311
      %p313 = scmp.eq.s32.totalorder %s35, 0
      %p314 = por %p312, %p313
      %s316 = sadd.s32 %s315, 1
      %p319 = scmp.eq.s32.totalorder %s29, 1
      %p320 = scmp.ne.s32.totalorder %s315, %s317
      %p321 = scmp.eq.s32.totalorder %s29, 0
      %p322 = por %p320, %p321
      %p323 = scmp.ne.s32.totalorder %s315, %s317
      %p324 = scmp.eq.s32.totalorder %s34, 1
      %p325 = por %p323, %p324
      %p326 = scmp.ne.s32.totalorder %s317, %s318
      %p327 = scmp.eq.s32.totalorder %s34, 0
      %p328 = por %p326, %p327
      %p329 = scmp.ne.s32.totalorder %s317, %s318
      %p330 = scmp.eq.s32.totalorder %s35, 1
      %p331 = por %p329, %p330
      %p333 = scmp.ne.s32.totalorder %s318, %s332
      %p334 = scmp.eq.s32.totalorder %s35, 0
      %p335 = por %p333, %p334
      %s337 = sadd.s32 %s336, 1
      %p340 = scmp.eq.s32.totalorder %s29, 1
      %p341 = scmp.ne.s32.totalorder %s336, %s338
      %p342 = scmp.eq.s32.totalorder %s29, 0
      %p343 = por %p341, %p342
      %p344 = scmp.ne.s32.totalorder %s336, %s338
      %p345 = scmp.eq.s32.totalorder %s34, 1
      %p346 = por %p344, %p345
      %p347 = scmp.ne.s32.totalorder %s338, %s339
      %p348 = scmp.eq.s32.totalorder %s34, 0
      %p349 = por %p347, %p348
      %p350 = scmp.ne.s32.totalorder %s338, %s339
      %p351 = scmp.eq.s32.totalorder %s35, 1
      %p352 = por %p350, %p351
      %p354 = scmp.ne.s32.totalorder %s339, %s353
      %p355 = scmp.eq.s32.totalorder %s35, 0
      %p356 = por %p354, %p355
      %s357 = ssub.s32 %s29, %s36
      %p358 = scmp.eq.s32.totalorder %s357, 0
      %s360 = sadd.s32 %s359, 1
      %s361 = scalar_select %p358, %s359, %s360
      %p364 = pneg %p358
      %p365 = scmp.eq.s32.totalorder %s29, 1
      %p366 = por %p364, %p365
      %p367 = scmp.ne.s32.totalorder %s359, %s362
      %p368 = scmp.eq.s32.totalorder %s29, 0
      %p369 = por %p367, %p368
      %p370 = scmp.ne.s32.totalorder %s359, %s362
      %p371 = scmp.eq.s32.totalorder %s34, 1
      %p372 = por %p370, %p371
      %p373 = scmp.ne.s32.totalorder %s362, %s363
      %p374 = scmp.eq.s32.totalorder %s34, 0
      %p375 = por %p373, %p374
      %p376 = scmp.ne.s32.totalorder %s362, %s363
      %p377 = scmp.eq.s32.totalorder %s35, 1
      %p378 = por %p376, %p377
      %p380 = scmp.ne.s32.totalorder %s363, %s379
      %p381 = scmp.eq.s32.totalorder %s35, 0
      %p382 = por %p380, %p381
      %p383 = scmp.le.s32.totalorder 1, %s29
      %p384 = scmp.lt.s32.totalorder %s29, 3
      %p385 = pnand %p383, %p384
      %p386 = pneg %p385
      // Predicated region
      $region9: #{forward.1} parent=5 // pred_check
        _
      $region10: #{forward.1} parent=5 // pred_check_branch
        %388 = sbr.rel (%p385) target = $region12
      $region11: #{forward.1} parent=5 // pred_region
        %s389 = ssub.s32 %s29, 1
        // Predicated region
        $region13: #{forward.1} parent=11 // pred_check
          %p390 = pneg %p76
        $region14: #{forward.1} parent=11 // pred_check_branch
          %392 = sbr.rel (%p390) target = $region16
        $region15: #{forward.1} parent=11 // pred_region
          %394 = vsyncadd [#allocation5], 0
          %s395 = sshll.u32 %s1, 4
          %s396 = int_to_ptr.hbm [resolvable:$true] %s395
          %s397 = sshll.u32 [#allocation4], 4
          %s398 = int_to_ptr.vmem [resolvable:$true] %s397
          %403 = dma.hbm_to_vmem [thread:$0]  %s396, 1024, %s398, [#allocation5], 64, 64, 4
        $region16: #{forward.1} parent=11 // pred_fallthru
          _
        // Predicated region
        $region17: #{forward.1} parent=11 // pred_check
          %p404 = pneg %p97
        $region18: #{forward.1} parent=11 // pred_check_branch
          %406 = sbr.rel (%p404) target = $region20
        $region19: #{forward.1} parent=11 // pred_region
          %408 = vsyncadd [#allocation8], 0
          %s409 = sshll.u32 %s2, 4
          %s410 = int_to_ptr.hbm [resolvable:$true] %s409
          %s411 = sshll.u32 [#allocation7], 4
          %s412 = int_to_ptr.vmem [resolvable:$true] %s411
          %417 = dma.hbm_to_vmem [thread:$0]  %s410, 2048, %s412, [#allocation8], 128, 128, 8
        $region20: #{forward.1} parent=11 // pred_fallthru
          _
        // Predicated region
        $region21: #{forward.1} parent=11 // pred_check
          %p418 = pneg %p118
        $region22: #{forward.1} parent=11 // pred_check_branch
          %420 = sbr.rel (%p418) target = $region24
        $region23: #{forward.1} parent=11 // pred_region
          %422 = vsyncadd [#allocation8], 0
          %s423 = sshll.u32 %s3, 4
          %s424 = int_to_ptr.hbm [resolvable:$true] %s423
          %s425 = sshll.u32 [#allocation9], 4
          %s426 = int_to_ptr.vmem [resolvable:$true] %s425
          %431 = dma.hbm_to_vmem [thread:$0]  %s424, 2048, %s426, [#allocation8], 128, 128, 8
        $region24: #{forward.1} parent=11 // pred_fallthru
          _
        // Predicated region
        $region25: #{forward.1} parent=11 // pred_check
          %p432 = pneg %p139
        $region26: #{forward.1} parent=11 // pred_check_branch
          %434 = sbr.rel (%p432) target = $region28
        $region27: #{forward.1} parent=11 // pred_region
          _
        $region28: #{forward.1} parent=11 // pred_fallthru
          _
        // Predicated region
        $region29: #{forward.1} parent=11 // pred_check
          %p435 = pneg %p160
        $region30: #{forward.1} parent=11 // pred_check_branch
          %437 = sbr.rel (%p435) target = $region32
        $region31: #{forward.1} parent=11 // pred_region
          %439 = vsyncadd [#allocation11], 0
          %s440 = sshll.u32 %s5, 4
          %s441 = int_to_ptr.hbm [resolvable:$true] %s440
          %s442 = sshll.u32 [#allocation10], 4
          %s443 = int_to_ptr.vmem [resolvable:$true] %s442
          %448 = dma.hbm_to_vmem [thread:$0]  %s441, 1024, %s443, [#allocation11], 128, 128, 8
        $region32: #{forward.1} parent=11 // pred_fallthru
          _
        // Predicated region
        $region33: #{forward.1} parent=11 // pred_check
          %p449 = pneg %p181
        $region34: #{forward.1} parent=11 // pred_check_branch
          %451 = sbr.rel (%p449) target = $region36
        $region35: #{forward.1} parent=11 // pred_region
          %453 = vsyncadd [#allocation11], 0
          %s454 = sshll.u32 %s6, 4
          %s455 = int_to_ptr.hbm [resolvable:$true] %s454
          %s456 = sshll.u32 [#allocation12], 4
          %s457 = int_to_ptr.vmem [resolvable:$true] %s456
          %462 = dma.hbm_to_vmem [thread:$0]  %s455, 1024, %s457, [#allocation11], 128, 128, 8
        $region36: #{forward.1} parent=11 // pred_fallthru
          _
        // Predicated region
        $region37: #{forward.1} parent=11 // pred_check
          %p463 = pneg %p202
        $region38: #{forward.1} parent=11 // pred_check_branch
          %465 = sbr.rel (%p463) target = $region40
        $region39: #{forward.1} parent=11 // pred_region
          %467 = vsyncadd [#allocation14], 0
          %s468 = sshll.u32 %s7, 4
          %s469 = int_to_ptr.hbm [resolvable:$true] %s468
          %s470 = sshll.u32 [#allocation13], 4
          %s471 = int_to_ptr.vmem [resolvable:$true] %s470
          %476 = dma.hbm_to_vmem [thread:$0]  %s469, 1024, %s471, [#allocation14], 64, 64, 4
        $region40: #{forward.1} parent=11 // pred_fallthru
          _
        // Predicated region
        $region41: #{forward.1} parent=11 // pred_check
          %p477 = pneg %p223
        $region42: #{forward.1} parent=11 // pred_check_branch
          %479 = sbr.rel (%p477) target = $region44
        $region43: #{forward.1} parent=11 // pred_region
          %481 = vsyncadd [#allocation14], 0
          %s482 = sshll.u32 %s8, 4
          %s483 = int_to_ptr.hbm [resolvable:$true] %s482
          %s484 = sshll.u32 [#allocation15], 4
          %s485 = int_to_ptr.vmem [resolvable:$true] %s484
          %490 = dma.hbm_to_vmem [thread:$0]  %s483, 2048, %s485, [#allocation14], 128, 128, 8
        $region44: #{forward.1} parent=11 // pred_fallthru
          _
        // Predicated region
        $region45: #{forward.1} parent=11 // pred_check
          %p491 = pneg %p244
        $region46: #{forward.1} parent=11 // pred_check_branch
          %493 = sbr.rel (%p491) target = $region48
        $region47: #{forward.1} parent=11 // pred_region
          _
        $region48: #{forward.1} parent=11 // pred_fallthru
          _
        // Predicated region
        $region49: #{forward.1} parent=11 // pred_check
          %p494 = pneg %p265
        $region50: #{forward.1} parent=11 // pred_check_branch
          %496 = sbr.rel (%p494) target = $region52
        $region51: #{forward.1} parent=11 // pred_region
          _
        $region52: #{forward.1} parent=11 // pred_fallthru
          _
        // Predicated region
        $region53: #{forward.1} parent=11 // pred_check
          %p497 = pneg %p286
        $region54: #{forward.1} parent=11 // pred_check_branch
          %499 = sbr.rel (%p497) target = $region56
        $region55: #{forward.1} parent=11 // pred_region
          %501 = vsyncadd [#allocation17], 0
          %s502 = sshll.u32 %s11, 4
          %s503 = int_to_ptr.hbm [resolvable:$true] %s502
          %s504 = sshll.u32 [#allocation16], 4
          %s505 = int_to_ptr.vmem [resolvable:$true] %s504
          %510 = dma.hbm_to_vmem [thread:$0]  %s503, 1024, %s505, [#allocation17], 128, 128, 8
        $region56: #{forward.1} parent=11 // pred_fallthru
          _
        // Predicated region
        $region57: #{forward.1} parent=11 // pred_check
          %p511 = pneg %p307
        $region58: #{forward.1} parent=11 // pred_check_branch
          %513 = sbr.rel (%p511) target = $region60
        $region59: #{forward.1} parent=11 // pred_region
          %515 = vsyncadd [#allocation17], 0
          %s516 = sshll.u32 %s12, 4
          %s517 = int_to_ptr.hbm [resolvable:$true] %s516
          %s518 = sshll.u32 [#allocation18], 4
          %s519 = int_to_ptr.vmem [resolvable:$true] %s518
          %524 = dma.hbm_to_vmem [thread:$0]  %s517, 1024, %s519, [#allocation17], 128, 128, 8
        $region60: #{forward.1} parent=11 // pred_fallthru
          _
        // Predicated region
        $region61: #{forward.1} parent=11 // pred_check
          %p525 = pneg %p328
        $region62: #{forward.1} parent=11 // pred_check_branch
          %527 = sbr.rel (%p525) target = $region64
        $region63: #{forward.1} parent=11 // pred_region
          _
        $region64: #{forward.1} parent=11 // pred_fallthru
          _
        // Predicated region
        $region65: #{forward.1} parent=11 // pred_check
          %p528 = pneg %p349
        $region66: #{forward.1} parent=11 // pred_check_branch
          %530 = sbr.rel (%p528) target = $region68
        $region67: #{forward.1} parent=11 // pred_region
          _
        $region68: #{forward.1} parent=11 // pred_fallthru
          _
      $region12: #{forward.1} parent=5 // pred_fallthru
        _
      %p531 = scmp.lt.s32.totalorder %s29, 2
      // Predicated region
      $region69: #{forward.1} parent=5 // pred_check
        %p532 = pneg %p531
      $region70: #{forward.1} parent=5 // pred_check_branch
        %534 = sbr.rel (%p532) target = $region72
      $region71: #{forward.1} parent=5 // pred_region
        // Predicated region
        $region73: #{forward.1} parent=71 // pred_check
          %p535 = pneg %p49
        $region74: #{forward.1} parent=71 // pred_check_branch
          %537 = sbr.rel (%p535) target = $region76
        $region75: #{forward.1} parent=71 // pred_region
          %p538 = scmp.lt.s32.totalorder %s29, 1
          %s539 = scalar_select %p538, %s29, 1
          %s540 = smul.addr %s539, 10
          %s541 = smul.addr %s540, 8
          %s542 = scalar_lea.vmem %s0, %s541
        $region76: #{forward.1} parent=71 // pred_fallthru
          _
      $region72: #{forward.1} parent=5 // pred_fallthru
        _
      %p543 = scmp.le.s32.totalorder 1, %s29
      %p544 = scmp.lt.s32.totalorder %s29, 3
      %p545 = pnand %p543, %p544
      %p546 = pneg %p545
      // Predicated region
      $region77: #{forward.1} parent=5 // pred_check
        _
      $region78: #{forward.1} parent=5 // pred_check_branch
        %548 = sbr.rel (%p545) target = $region80
      $region79: #{forward.1} parent=5 // pred_region
        %s549 = ssub.s32 %s29, 1
        // Predicated region
        $region81: #{forward.1} parent=79 // pred_check
          %p550 = pneg %p76
        $region82: #{forward.1} parent=79 // pred_check_branch
          %552 = sbr.rel (%p550) target = $region84
        $region83: #{forward.1} parent=79 // pred_region
          %554 = dma.done [#allocation5], 1024
        $region84: #{forward.1} parent=79 // pred_fallthru
          _
        // Predicated region
        $region85: #{forward.1} parent=79 // pred_check
          %p555 = pneg %p97
        $region86: #{forward.1} parent=79 // pred_check_branch
          %557 = sbr.rel (%p555) target = $region88
        $region87: #{forward.1} parent=79 // pred_region
          %559 = dma.done [#allocation8], 2048
        $region88: #{forward.1} parent=79 // pred_fallthru
          _
        // Predicated region
        $region89: #{forward.1} parent=79 // pred_check
          %p560 = pneg %p118
        $region90: #{forward.1} parent=79 // pred_check_branch
          %562 = sbr.rel (%p560) target = $region92
        $region91: #{forward.1} parent=79 // pred_region
          %564 = dma.done [#allocation8], 2048
        $region92: #{forward.1} parent=79 // pred_fallthru
          _
        // Predicated region
        $region93: #{forward.1} parent=79 // pred_check
          %p565 = pneg %p160
        $region94: #{forward.1} parent=79 // pred_check_branch
          %567 = sbr.rel (%p565) target = $region96
        $region95: #{forward.1} parent=79 // pred_region
          %569 = dma.done [#allocation11], 1024
        $region96: #{forward.1} parent=79 // pred_fallthru
          _
        // Predicated region
        $region97: #{forward.1} parent=79 // pred_check
          %p570 = pneg %p181
        $region98: #{forward.1} parent=79 // pred_check_branch
          %572 = sbr.rel (%p570) target = $region100
        $region99: #{forward.1} parent=79 // pred_region
          %574 = dma.done [#allocation11], 1024
        $region100: #{forward.1} parent=79 // pred_fallthru
          _
        // Predicated region
        $region101: #{forward.1} parent=79 // pred_check
          %p575 = pneg %p202
        $region102: #{forward.1} parent=79 // pred_check_branch
          %577 = sbr.rel (%p575) target = $region104
        $region103: #{forward.1} parent=79 // pred_region
          %579 = dma.done [#allocation14], 1024
        $region104: #{forward.1} parent=79 // pred_fallthru
          _
        // Predicated region
        $region105: #{forward.1} parent=79 // pred_check
          %p580 = pneg %p223
        $region106: #{forward.1} parent=79 // pred_check_branch
          %582 = sbr.rel (%p580) target = $region108
        $region107: #{forward.1} parent=79 // pred_region
          %584 = dma.done [#allocation14], 2048
        $region108: #{forward.1} parent=79 // pred_fallthru
          _
        // Predicated region
        $region109: #{forward.1} parent=79 // pred_check
          %p585 = pneg %p286
        $region110: #{forward.1} parent=79 // pred_check_branch
          %587 = sbr.rel (%p585) target = $region112
        $region111: #{forward.1} parent=79 // pred_region
          %589 = dma.done [#allocation17], 1024
        $region112: #{forward.1} parent=79 // pred_fallthru
          _
        // Predicated region
        $region113: #{forward.1} parent=79 // pred_check
          %p590 = pneg %p307
        $region114: #{forward.1} parent=79 // pred_check_branch
          %592 = sbr.rel (%p590) target = $region116
        $region115: #{forward.1} parent=79 // pred_region
          %594 = dma.done [#allocation17], 1024
        $region116: #{forward.1} parent=79 // pred_fallthru
          _
        %p595 = scmp.lt.s32.totalorder %s34, 1
        %s596 = scalar_select %p595, %s34, 1
        %s597 = smul.addr %s596, 10
        %s598 = smul.addr %s597, 8
        %s599 = scalar_lea.vmem %s0, %s598
        %p600 = pneg %p55
        %p601 = pneg %p52
        %p602 = pneg %p76
        %p603 = pneg %p73
        %p604 = pneg %p97
        %p605 = pneg %p94
        %p606 = pneg %p118
        %p607 = pneg %p115
        %p608 = pneg %p139
        %p609 = pneg %p136
        %p610 = pneg %p160
        %p611 = pneg %p157
        %p612 = pneg %p181
        %p613 = pneg %p178
        %p614 = pneg %p202
        %p615 = pneg %p199
        %p616 = pneg %p223
        %p617 = pneg %p220
        %p618 = pneg %p244
        %p619 = pneg %p241
        %p620 = pneg %p265
        %p621 = pneg %p262
        %p622 = pneg %p286
        %p623 = pneg %p283
        %p624 = pneg %p307
        %p625 = pneg %p304
        %p626 = pneg %p328
        %p627 = pneg %p325
        %p628 = pneg %p349
        %p629 = pneg %p346
        %p630 = pneg %p375
        %p631 = pneg %p372
        %s632 = sand.u32 %s362, 1
        %s633 = scalar_lea.sflag [#allocation6], %s632
        %s634 = sand.u32 %s362, 1
        %s635 = scalar_lea.vmem [#allocation19], %s634
        %p636 = scmp.lt.s32.totalorder %s34, 1
        %s637 = scalar_select %p636, %s34, 1
        %s638 = smul.addr %s637, 10
        %s639 = smul.addr %s638, 8
        %s640 = scalar_lea.vmem %s0, %s639
        %v642 = vld [vmem:[#allocation4] sm:$0xf]
        %v643 = vld [vmem:[#allocation4 + $0x4] sm:$0xf]
        %v644 = vld [vmem:[#allocation4 + $0x8] sm:$0xf]
        %v645 = vld [vmem:[#allocation4 + $0xc] sm:$0xf]
        %v646 = vld [vmem:[#allocation4 + $0x10] sm:$0xf]
        %v647 = vld [vmem:[#allocation4 + $0x14] sm:$0xf]
        %v648 = vld [vmem:[#allocation4 + $0x18] sm:$0xf]
        %v649 = vld [vmem:[#allocation4 + $0x1c] sm:$0xf]
        %v650 = vld [vmem:[#allocation4 + $0x20] sm:$0xf]
        %v651 = vld [vmem:[#allocation4 + $0x24] sm:$0xf]
        %v652 = vld [vmem:[#allocation4 + $0x28] sm:$0xf]
        %v653 = vld [vmem:[#allocation4 + $0x2c] sm:$0xf]
        %v654 = vld [vmem:[#allocation4 + $0x30] sm:$0xf]
        %v655 = vld [vmem:[#allocation4 + $0x34] sm:$0xf]
        %v656 = vld [vmem:[#allocation4 + $0x38] sm:$0xf]
        %v657 = vld [vmem:[#allocation4 + $0x3c] sm:$0xf]
        %v658 = vld [vmem:[#allocation7] sm:$0xff]
        %v659 = vld [vmem:[#allocation7 + $0x8] sm:$0xff]
        %v660 = vld [vmem:[#allocation7 + $0x10] sm:$0xff]
        %v661 = vld [vmem:[#allocation7 + $0x18] sm:$0xff]
        %v662 = vld [vmem:[#allocation7 + $0x20] sm:$0xff]
        %v663 = vld [vmem:[#allocation7 + $0x28] sm:$0xff]
        %v664 = vld [vmem:[#allocation7 + $0x30] sm:$0xff]
        %v665 = vld [vmem:[#allocation7 + $0x38] sm:$0xff]
        %v666 = vld [vmem:[#allocation7 + $0x40] sm:$0xff]
        %v667 = vld [vmem:[#allocation7 + $0x48] sm:$0xff]
        %v668 = vld [vmem:[#allocation7 + $0x50] sm:$0xff]
        %v669 = vld [vmem:[#allocation7 + $0x58] sm:$0xff]
        %v670 = vld [vmem:[#allocation7 + $0x60] sm:$0xff]
        %v671 = vld [vmem:[#allocation7 + $0x68] sm:$0xff]
        %v672 = vld [vmem:[#allocation7 + $0x70] sm:$0xff]
        %v673 = vld [vmem:[#allocation7 + $0x78] sm:$0xff]
        %v674 = vld [vmem:[#allocation9] sm:$0xff]
        %v675 = vld [vmem:[#allocation9 + $0x8] sm:$0xff]
        %v676 = vld [vmem:[#allocation9 + $0x10] sm:$0xff]
        %v677 = vld [vmem:[#allocation9 + $0x18] sm:$0xff]
        %v678 = vld [vmem:[#allocation9 + $0x20] sm:$0xff]
        %v679 = vld [vmem:[#allocation9 + $0x28] sm:$0xff]
        %v680 = vld [vmem:[#allocation9 + $0x30] sm:$0xff]
        %v681 = vld [vmem:[#allocation9 + $0x38] sm:$0xff]
        %v682 = vld [vmem:[#allocation9 + $0x40] sm:$0xff]
        %v683 = vld [vmem:[#allocation9 + $0x48] sm:$0xff]
        %v684 = vld [vmem:[#allocation9 + $0x50] sm:$0xff]
        %v685 = vld [vmem:[#allocation9 + $0x58] sm:$0xff]
        %v686 = vld [vmem:[#allocation9 + $0x60] sm:$0xff]
        %v687 = vld [vmem:[#allocation9 + $0x68] sm:$0xff]
        %v688 = vld [vmem:[#allocation9 + $0x70] sm:$0xff]
        %v689 = vld [vmem:[#allocation9 + $0x78] sm:$0xff]
        %v690 = vld [vmem:[%s640] sm:$0xff]
        %v691 = vld [vmem:[%s640 + $0x8] sm:$0xff]
        %v692 = vld [vmem:[%s640 + $0x10] sm:$0xff]
        %v693 = vld [vmem:[%s640 + $0x18] sm:$0xff]
        %v694 = vld [vmem:[%s640 + $0x20] sm:$0xff]
        %v695 = vld [vmem:[%s640 + $0x28] sm:$0xff]
        %v696 = vpack.c.bf16 %v692, %v690
        %v697 = vpack.c.bf16 %v693, %v691
        %v698 = vpack.c.bf16 %v694, %v694
        %v699 = vpack.c.bf16 %v695, %v695
        %v716 = vunpack.c.l.b16 %v642
        %v717 = vunpack.c.l.b16 %v643
        %v718 = vunpack.c.l.b16 %v644
        %v719 = vunpack.c.l.b16 %v645
        %v720 = vunpack.c.l.b16 %v646
        %v721 = vunpack.c.l.b16 %v647
        %v722 = vunpack.c.l.b16 %v648
        %v723 = vunpack.c.l.b16 %v649
        %v724 = vunpack.c.l.b16 %v650
        %v725 = vunpack.c.l.b16 %v651
        %v726 = vunpack.c.l.b16 %v652
        %v727 = vunpack.c.l.b16 %v653
        %v728 = vunpack.c.l.b16 %v654
        %v729 = vunpack.c.l.b16 %v655
        %v730 = vunpack.c.l.b16 %v656
        %v731 = vunpack.c.l.b16 %v657
        %v732 = vpack.c.b16 %v717, %v716
        %v733 = vpack.c.b16 %v719, %v718
        %v734 = vpack.c.b16 %v721, %v720
        %v735 = vpack.c.b16 %v723, %v722
        %v736 = vpack.c.b16 %v725, %v724
        %v737 = vpack.c.b16 %v727, %v726
        %v738 = vpack.c.b16 %v729, %v728
        %v739 = vpack.c.b16 %v731, %v730
        %vm740 = vcmask 195584
        %v742 = vsel %vm740, %v732, 0
        %v745 = vsel %vm740, %v733, 0
        %v748 = vsel %vm740, %v734, 0
        %v751 = vsel %vm740, %v735, 0
        %v754 = vsel %vm740, %v736, 0
        %v757 = vsel %vm740, %v737, 0
        %v760 = vsel %vm740, %v738, 0
        %v763 = vsel %vm740, %v739, 0
        %vm765 = vcmask 1043456
        %v767 = vsel %vm765, %v698, 0
        %v770 = vsel %vm765, %v699, 0
        %772 = vmatpush.bf16.msra.mxu0 0
        %773 = vmatpush.bf16.msra.mxu0 0
        %774 = vmatpush.bf16.msra.mxu0 0
        %775 = vmatpush.bf16.msra.mxu0 0
        %776 = vmatpush.bf16.msra.mxu0 0
        %777 = vmatpush.bf16.msra.mxu0 0
        %778 = vmatpush.bf16.msra.mxu0 %v767
        %779 = vmatpush.bf16.msra.mxu0 %v696
        %780 = vmatmul.bf16.gmra.mxu0 %v742
        %v781 = vpop.f32.mrf.mxu0
        %v782 = vadd.f32 0.0, %v781
        %v783 = vpop.f32.mrf.mxu0
        %v784 = vadd.f32 0.0, %v783
        %785 = vmatmul.bf16.gmra.mxu0 %v745
        %v786 = vpop.f32.mrf.mxu0
        %v787 = vadd.f32 0.0, %v786
        %v788 = vpop.f32.mrf.mxu0
        %v789 = vadd.f32 0.0, %v788
        %790 = vmatmul.bf16.gmra.mxu0 %v748
        %v791 = vpop.f32.mrf.mxu0
        %v792 = vadd.f32 0.0, %v791
        %v793 = vpop.f32.mrf.mxu0
        %v794 = vadd.f32 0.0, %v793
        %795 = vmatmul.bf16.gmra.mxu0 %v751
        %v796 = vpop.f32.mrf.mxu0
        %v797 = vadd.f32 0.0, %v796
        %v798 = vpop.f32.mrf.mxu0
        %v799 = vadd.f32 0.0, %v798
        %800 = vmatmul.bf16.gmra.mxu0 %v754
        %v801 = vpop.f32.mrf.mxu0
        %v802 = vadd.f32 0.0, %v801
        %v803 = vpop.f32.mrf.mxu0
        %v804 = vadd.f32 0.0, %v803
        %805 = vmatmul.bf16.gmra.mxu0 %v757
        %v806 = vpop.f32.mrf.mxu0
        %v807 = vadd.f32 0.0, %v806
        %v808 = vpop.f32.mrf.mxu0
        %v809 = vadd.f32 0.0, %v808
        %810 = vmatmul.bf16.gmra.mxu0 %v760
        %v811 = vpop.f32.mrf.mxu0
        %v812 = vadd.f32 0.0, %v811
        %v813 = vpop.f32.mrf.mxu0
        %v814 = vadd.f32 0.0, %v813
        %815 = vmatmul.bf16.gmra.mxu0 %v763
        %v816 = vpop.f32.mrf.mxu0
        %v817 = vadd.f32 0.0, %v816
        %v818 = vpop.f32.mrf.mxu0
        %v819 = vadd.f32 0.0, %v818
        %820 = vdwg.mxu0
        %821 = vmatpush.bf16.msra.mxu0 0
        %822 = vmatpush.bf16.msra.mxu0 0
        %823 = vmatpush.bf16.msra.mxu0 0
        %824 = vmatpush.bf16.msra.mxu0 0
        %825 = vmatpush.bf16.msra.mxu0 0
        %826 = vmatpush.bf16.msra.mxu0 0
        %827 = vmatpush.bf16.msra.mxu0 %v770
        %828 = vmatpush.bf16.msra.mxu0 %v697
        %829 = vmatmul.bf16.gmra.mxu0 %v742
        %v830 = vpop.f32.mrf.mxu0
        %v831 = vadd.f32 0.0, %v830
        %v832 = vpop.f32.mrf.mxu0
        %v833 = vadd.f32 0.0, %v832
        %834 = vmatmul.bf16.gmra.mxu0 %v745
        %v835 = vpop.f32.mrf.mxu0
        %v836 = vadd.f32 0.0, %v835
        %v837 = vpop.f32.mrf.mxu0
        %v838 = vadd.f32 0.0, %v837
        %839 = vmatmul.bf16.gmra.mxu0 %v748
        %v840 = vpop.f32.mrf.mxu0
        %v841 = vadd.f32 0.0, %v840
        %v842 = vpop.f32.mrf.mxu0
        %v843 = vadd.f32 0.0, %v842
        %844 = vmatmul.bf16.gmra.mxu0 %v751
        %v845 = vpop.f32.mrf.mxu0
        %v846 = vadd.f32 0.0, %v845
        %v847 = vpop.f32.mrf.mxu0
        %v848 = vadd.f32 0.0, %v847
        %849 = vmatmul.bf16.gmra.mxu0 %v754
        %v850 = vpop.f32.mrf.mxu0
        %v851 = vadd.f32 0.0, %v850
        %v852 = vpop.f32.mrf.mxu0
        %v853 = vadd.f32 0.0, %v852
        %854 = vmatmul.bf16.gmra.mxu0 %v757
        %v855 = vpop.f32.mrf.mxu0
        %v856 = vadd.f32 0.0, %v855
        %v857 = vpop.f32.mrf.mxu0
        %v858 = vadd.f32 0.0, %v857
        %859 = vmatmul.bf16.gmra.mxu0 %v760
        %v860 = vpop.f32.mrf.mxu0
        %v861 = vadd.f32 0.0, %v860
        %v862 = vpop.f32.mrf.mxu0
        %v863 = vadd.f32 0.0, %v862
        %864 = vmatmul.bf16.gmra.mxu0 %v763
        %v865 = vpop.f32.mrf.mxu0
        %v866 = vadd.f32 0.0, %v865
        %v867 = vpop.f32.mrf.mxu0
        %v868 = vadd.f32 0.0, %v867
        %869 = vdwg.mxu0
        %871 = vset.pattern.permute.xlu0 0
        %872 = vperm.xlu0 %871, %v658
        %v873 = vpop.permute.xlu0 %872
        %876 = vset.pattern.permute.xlu0 0
        %877 = vperm.xlu0 %876, %v659
        %v878 = vpop.permute.xlu0 %877
        %881 = vset.pattern.permute.xlu0 0
        %882 = vperm.xlu0 %881, %v660
        %v883 = vpop.permute.xlu0 %882
        %886 = vset.pattern.permute.xlu0 0
        %887 = vperm.xlu0 %886, %v661
        %v888 = vpop.permute.xlu0 %887
        %891 = vset.pattern.permute.xlu0 0
        %892 = vperm.xlu0 %891, %v662
        %v893 = vpop.permute.xlu0 %892
        %896 = vset.pattern.permute.xlu0 0
        %897 = vperm.xlu0 %896, %v663
        %v898 = vpop.permute.xlu0 %897
        %901 = vset.pattern.permute.xlu0 0
        %902 = vperm.xlu0 %901, %v664
        %v903 = vpop.permute.xlu0 %902
        %906 = vset.pattern.permute.xlu0 0
        %907 = vperm.xlu0 %906, %v665
        %v908 = vpop.permute.xlu0 %907
        %911 = vset.pattern.permute.xlu0 0
        %912 = vperm.xlu0 %911, %v666
        %v913 = vpop.permute.xlu0 %912
        %916 = vset.pattern.permute.xlu0 0
        %917 = vperm.xlu0 %916, %v667
        %v918 = vpop.permute.xlu0 %917
        %921 = vset.pattern.permute.xlu0 0
        %922 = vperm.xlu0 %921, %v668
        %v923 = vpop.permute.xlu0 %922
        %926 = vset.pattern.permute.xlu0 0
        %927 = vperm.xlu0 %926, %v669
        %v928 = vpop.permute.xlu0 %927
        %931 = vset.pattern.permute.xlu0 0
        %932 = vperm.xlu0 %931, %v670
        %v933 = vpop.permute.xlu0 %932
        %936 = vset.pattern.permute.xlu0 0
        %937 = vperm.xlu0 %936, %v671
        %v938 = vpop.permute.xlu0 %937
        %941 = vset.pattern.permute.xlu0 0
        %942 = vperm.xlu0 %941, %v672
        %v943 = vpop.permute.xlu0 %942
        %946 = vset.pattern.permute.xlu0 0
        %947 = vperm.xlu0 %946, %v673
        %v948 = vpop.permute.xlu0 %947
        %v950 = vmul.f32 %v782, %v873
        %v951 = vmul.f32 %v831, %v873
        %v952 = vmul.f32 %v784, %v878
        %v953 = vmul.f32 %v833, %v878
        %v954 = vmul.f32 %v787, %v883
        %v955 = vmul.f32 %v836, %v883
        %v956 = vmul.f32 %v789, %v888
        %v957 = vmul.f32 %v838, %v888
        %v958 = vmul.f32 %v792, %v893
        %v959 = vmul.f32 %v841, %v893
        %v960 = vmul.f32 %v794, %v898
        %v961 = vmul.f32 %v843, %v898
        %v962 = vmul.f32 %v797, %v903
        %v963 = vmul.f32 %v846, %v903
        %v964 = vmul.f32 %v799, %v908
        %v965 = vmul.f32 %v848, %v908
        %v966 = vmul.f32 %v802, %v913
        %v967 = vmul.f32 %v851, %v913
        %v968 = vmul.f32 %v804, %v918
        %v969 = vmul.f32 %v853, %v918
        %v970 = vmul.f32 %v807, %v923
        %v971 = vmul.f32 %v856, %v923
        %v972 = vmul.f32 %v809, %v928
        %v973 = vmul.f32 %v858, %v928
        %v974 = vmul.f32 %v812, %v933
        %v975 = vmul.f32 %v861, %v933
        %v976 = vmul.f32 %v814, %v938
        %v977 = vmul.f32 %v863, %v938
        %v978 = vmul.f32 %v817, %v943
        %v979 = vmul.f32 %v866, %v943
        %v980 = vmul.f32 %v819, %v948
        %v981 = vmul.f32 %v868, %v948
        %983 = vset.pattern.permute.xlu0 0
        %984 = vperm.xlu0 %983, %v674
        %v985 = vpop.permute.xlu0 %984
        %988 = vset.pattern.permute.xlu0 0
        %989 = vperm.xlu0 %988, %v675
        %v990 = vpop.permute.xlu0 %989
        %993 = vset.pattern.permute.xlu0 0
        %994 = vperm.xlu0 %993, %v676
        %v995 = vpop.permute.xlu0 %994
        %998 = vset.pattern.permute.xlu0 0
        %999 = vperm.xlu0 %998, %v677
        %v1000 = vpop.permute.xlu0 %999
        %1003 = vset.pattern.permute.xlu0 0
        %1004 = vperm.xlu0 %1003, %v678
        %v1005 = vpop.permute.xlu0 %1004
        %1008 = vset.pattern.permute.xlu0 0
        %1009 = vperm.xlu0 %1008, %v679
        %v1010 = vpop.permute.xlu0 %1009
        %1013 = vset.pattern.permute.xlu0 0
        %1014 = vperm.xlu0 %1013, %v680
        %v1015 = vpop.permute.xlu0 %1014
        %1018 = vset.pattern.permute.xlu0 0
        %1019 = vperm.xlu0 %1018, %v681
        %v1020 = vpop.permute.xlu0 %1019
        %1023 = vset.pattern.permute.xlu0 0
        %1024 = vperm.xlu0 %1023, %v682
        %v1025 = vpop.permute.xlu0 %1024
        %1028 = vset.pattern.permute.xlu0 0
        %1029 = vperm.xlu0 %1028, %v683
        %v1030 = vpop.permute.xlu0 %1029
        %1033 = vset.pattern.permute.xlu0 0
        %1034 = vperm.xlu0 %1033, %v684
        %v1035 = vpop.permute.xlu0 %1034
        %1038 = vset.pattern.permute.xlu0 0
        %1039 = vperm.xlu0 %1038, %v685
        %v1040 = vpop.permute.xlu0 %1039
        %1043 = vset.pattern.permute.xlu0 0
        %1044 = vperm.xlu0 %1043, %v686
        %v1045 = vpop.permute.xlu0 %1044
        %1048 = vset.pattern.permute.xlu0 0
        %1049 = vperm.xlu0 %1048, %v687
        %v1050 = vpop.permute.xlu0 %1049
        %1053 = vset.pattern.permute.xlu0 0
        %1054 = vperm.xlu0 %1053, %v688
        %v1055 = vpop.permute.xlu0 %1054
        %1058 = vset.pattern.permute.xlu0 0
        %1059 = vperm.xlu0 %1058, %v689
        %v1060 = vpop.permute.xlu0 %1059
        %v1062 = vadd.f32 %v950, %v985
        %v1063 = vadd.f32 %v951, %v985
        %v1064 = vadd.f32 %v952, %v990
        %v1065 = vadd.f32 %v953, %v990
        %v1066 = vadd.f32 %v954, %v995
        %v1067 = vadd.f32 %v955, %v995
        %v1068 = vadd.f32 %v956, %v1000
        %v1069 = vadd.f32 %v957, %v1000
        %v1070 = vadd.f32 %v958, %v1005
        %v1071 = vadd.f32 %v959, %v1005
        %v1072 = vadd.f32 %v960, %v1010
        %v1073 = vadd.f32 %v961, %v1010
        %v1074 = vadd.f32 %v962, %v1015
        %v1075 = vadd.f32 %v963, %v1015
        %v1076 = vadd.f32 %v964, %v1020
        %v1077 = vadd.f32 %v965, %v1020
        %v1078 = vadd.f32 %v966, %v1025
        %v1079 = vadd.f32 %v967, %v1025
        %v1080 = vadd.f32 %v968, %v1030
        %v1081 = vadd.f32 %v969, %v1030
        %v1082 = vadd.f32 %v970, %v1035
        %v1083 = vadd.f32 %v971, %v1035
        %v1084 = vadd.f32 %v972, %v1040
        %v1085 = vadd.f32 %v973, %v1040
        %v1086 = vadd.f32 %v974, %v1045
        %v1087 = vadd.f32 %v975, %v1045
        %v1088 = vadd.f32 %v976, %v1050
        %v1089 = vadd.f32 %v977, %v1050
        %v1090 = vadd.f32 %v978, %v1055
        %v1091 = vadd.f32 %v979, %v1055
        %v1092 = vadd.f32 %v980, %v1060
        %v1093 = vadd.f32 %v981, %v1060
        %v1094 = vmax.f32 %v1062, 0.0
        %v1095 = vmax.f32 %v1063, 0.0
        %v1096 = vmax.f32 %v1064, 0.0
        %v1097 = vmax.f32 %v1065, 0.0
        %v1098 = vmax.f32 %v1066, 0.0
        %v1099 = vmax.f32 %v1067, 0.0
        %v1100 = vmax.f32 %v1068, 0.0
        %v1101 = vmax.f32 %v1069, 0.0
        %v1102 = vmax.f32 %v1070, 0.0
        %v1103 = vmax.f32 %v1071, 0.0
        %v1104 = vmax.f32 %v1072, 0.0
        %v1105 = vmax.f32 %v1073, 0.0
        %v1106 = vmax.f32 %v1074, 0.0
        %v1107 = vmax.f32 %v1075, 0.0
        %v1108 = vmax.f32 %v1076, 0.0
        %v1109 = vmax.f32 %v1077, 0.0
        %v1110 = vmax.f32 %v1078, 0.0
        %v1111 = vmax.f32 %v1079, 0.0
        %v1112 = vmax.f32 %v1080, 0.0
        %v1113 = vmax.f32 %v1081, 0.0
        %v1114 = vmax.f32 %v1082, 0.0
        %v1115 = vmax.f32 %v1083, 0.0
        %v1116 = vmax.f32 %v1084, 0.0
        %v1117 = vmax.f32 %v1085, 0.0
        %v1118 = vmax.f32 %v1086, 0.0
        %v1119 = vmax.f32 %v1087, 0.0
        %v1120 = vmax.f32 %v1088, 0.0
        %v1121 = vmax.f32 %v1089, 0.0
        %v1122 = vmax.f32 %v1090, 0.0
        %v1123 = vmax.f32 %v1091, 0.0
        %v1124 = vmax.f32 %v1092, 0.0
        %v1125 = vmax.f32 %v1093, 0.0
        %v1126 = vmax.f32 %v1094, %v1096
        %v1127 = vmax.f32 %v1095, %v1097
        %s1128 = scalar_lea.vmem [#allocation2], 48
        %1129 = vst [vmem:[%s1128] sm:$0xff] %v1126
        %1130 = vst [vmem:[%s1128 + $0x8] sm:$0xff] %v1127
        %v1131 = vmax.f32 %v1098, %v1100
        %v1132 = vmax.f32 %v1099, %v1101
        %s1133 = scalar_lea.vmem [#allocation2], 72
        %1134 = vst [vmem:[%s1133] sm:$0xff] %v1131
        %1135 = vst [vmem:[%s1133 + $0x8] sm:$0xff] %v1132
        %v1136 = vmax.f32 %v1102, %v1104
        %v1137 = vmax.f32 %v1103, %v1105
        %s1138 = scalar_lea.vmem [#allocation2], 96
        %1139 = vst [vmem:[%s1138] sm:$0xff] %v1136
        %1140 = vst [vmem:[%s1138 + $0x8] sm:$0xff] %v1137
        %v1141 = vmax.f32 %v1106, %v1108
        %v1142 = vmax.f32 %v1107, %v1109
        %s1143 = scalar_lea.vmem [#allocation2], 120
        %1144 = vst [vmem:[%s1143] sm:$0xff] %v1141
        %1145 = vst [vmem:[%s1143 + $0x8] sm:$0xff] %v1142
        %v1146 = vmax.f32 %v1110, %v1112
        %v1147 = vmax.f32 %v1111, %v1113
        %s1148 = scalar_lea.vmem [#allocation2], 144
        %1149 = vst [vmem:[%s1148] sm:$0xff] %v1146
        %1150 = vst [vmem:[%s1148 + $0x8] sm:$0xff] %v1147
        %v1151 = vmax.f32 %v1114, %v1116
        %v1152 = vmax.f32 %v1115, %v1117
        %s1153 = scalar_lea.vmem [#allocation2], 168
        %1154 = vst [vmem:[%s1153] sm:$0xff] %v1151
        %1155 = vst [vmem:[%s1153 + $0x8] sm:$0xff] %v1152
        %v1156 = vmax.f32 %v1118, %v1120
        %v1157 = vmax.f32 %v1119, %v1121
        %s1158 = scalar_lea.vmem [#allocation2], 192
        %1159 = vst [vmem:[%s1158] sm:$0xff] %v1156
        %1160 = vst [vmem:[%s1158 + $0x8] sm:$0xff] %v1157
        %v1161 = vmax.f32 %v1122, %v1124
        %v1162 = vmax.f32 %v1123, %v1125
        %s1163 = scalar_lea.vmem [#allocation2], 216
        %1164 = vst [vmem:[%s1163] sm:$0xff] %v1161
        %1165 = vst [vmem:[%s1163 + $0x8] sm:$0xff] %v1162
        %v1166 = vld [vmem:[%s640 + $0x20] sm:$0xff]
        %v1167 = vld [vmem:[%s640 + $0x28] sm:$0xff]
        %v1168 = vld [vmem:[%s640 + $0x30] sm:$0xff]
        %v1169 = vld [vmem:[%s640 + $0x38] sm:$0xff]
        %v1170 = vld [vmem:[%s640 + $0x40] sm:$0xff]
        %v1171 = vld [vmem:[%s640 + $0x48] sm:$0xff]
        %v1172 = vpack.c.bf16 %v1168, %v1166
        %v1173 = vpack.c.bf16 %v1169, %v1167
        %v1174 = vpack.c.bf16 %v1170, %v1170
        %v1175 = vpack.c.bf16 %v1171, %v1171
        %v1177 = vsel %vm765, %v1174, 0
        %v1180 = vsel %vm765, %v1175, 0
        %1182 = vmatpush.bf16.msra.mxu0 0
        %1183 = vmatpush.bf16.msra.mxu0 0
        %1184 = vmatpush.bf16.msra.mxu0 0
        %1185 = vmatpush.bf16.msra.mxu0 0
        %1186 = vmatpush.bf16.msra.mxu0 0
        %1187 = vmatpush.bf16.msra.mxu0 0
        %1188 = vmatpush.bf16.msra.mxu0 %v1177
        %1189 = vmatpush.bf16.msra.mxu0 %v1172
        %1190 = vmatmul.bf16.gmra.mxu0 %v742
        %v1191 = vpop.f32.mrf.mxu0
        %v1192 = vadd.f32 0.0, %v1191
        %v1193 = vpop.f32.mrf.mxu0
        %v1194 = vadd.f32 0.0, %v1193
        %1195 = vmatmul.bf16.gmra.mxu0 %v745
        %v1196 = vpop.f32.mrf.mxu0
        %v1197 = vadd.f32 0.0, %v1196
        %v1198 = vpop.f32.mrf.mxu0
        %v1199 = vadd.f32 0.0, %v1198
        %1200 = vmatmul.bf16.gmra.mxu0 %v748
        %v1201 = vpop.f32.mrf.mxu0
        %v1202 = vadd.f32 0.0, %v1201
        %v1203 = vpop.f32.mrf.mxu0
        %v1204 = vadd.f32 0.0, %v1203
        %1205 = vmatmul.bf16.gmra.mxu0 %v751
        %v1206 = vpop.f32.mrf.mxu0
        %v1207 = vadd.f32 0.0, %v1206
        %v1208 = vpop.f32.mrf.mxu0
        %v1209 = vadd.f32 0.0, %v1208
        %1210 = vmatmul.bf16.gmra.mxu0 %v754
        %v1211 = vpop.f32.mrf.mxu0
        %v1212 = vadd.f32 0.0, %v1211
        %v1213 = vpop.f32.mrf.mxu0
        %v1214 = vadd.f32 0.0, %v1213
        %1215 = vmatmul.bf16.gmra.mxu0 %v757
        %v1216 = vpop.f32.mrf.mxu0
        %v1217 = vadd.f32 0.0, %v1216
        %v1218 = vpop.f32.mrf.mxu0
        %v1219 = vadd.f32 0.0, %v1218
        %1220 = vmatmul.bf16.gmra.mxu0 %v760
        %v1221 = vpop.f32.mrf.mxu0
        %v1222 = vadd.f32 0.0, %v1221
        %v1223 = vpop.f32.mrf.mxu0
        %v1224 = vadd.f32 0.0, %v1223
        %1225 = vmatmul.bf16.gmra.mxu0 %v763
        %v1226 = vpop.f32.mrf.mxu0
        %v1227 = vadd.f32 0.0, %v1226
        %v1228 = vpop.f32.mrf.mxu0
        %v1229 = vadd.f32 0.0, %v1228
        %1230 = vdwg.mxu0
        %1231 = vmatpush.bf16.msra.mxu0 0
        %1232 = vmatpush.bf16.msra.mxu0 0
        %1233 = vmatpush.bf16.msra.mxu0 0
        %1234 = vmatpush.bf16.msra.mxu0 0
        %1235 = vmatpush.bf16.msra.mxu0 0
        %1236 = vmatpush.bf16.msra.mxu0 0
        %1237 = vmatpush.bf16.msra.mxu0 %v1180
        %1238 = vmatpush.bf16.msra.mxu0 %v1173
        %1239 = vmatmul.bf16.gmra.mxu0 %v742
        %v1240 = vpop.f32.mrf.mxu0
        %v1241 = vadd.f32 0.0, %v1240
        %v1242 = vpop.f32.mrf.mxu0
        %v1243 = vadd.f32 0.0, %v1242
        %1244 = vmatmul.bf16.gmra.mxu0 %v745
        %v1245 = vpop.f32.mrf.mxu0
        %v1246 = vadd.f32 0.0, %v1245
        %v1247 = vpop.f32.mrf.mxu0
        %v1248 = vadd.f32 0.0, %v1247
        %1249 = vmatmul.bf16.gmra.mxu0 %v748
        %v1250 = vpop.f32.mrf.mxu0
        %v1251 = vadd.f32 0.0, %v1250
        %v1252 = vpop.f32.mrf.mxu0
        %v1253 = vadd.f32 0.0, %v1252
        %1254 = vmatmul.bf16.gmra.mxu0 %v751
        %v1255 = vpop.f32.mrf.mxu0
        %v1256 = vadd.f32 0.0, %v1255
        %v1257 = vpop.f32.mrf.mxu0
        %v1258 = vadd.f32 0.0, %v1257
        %1259 = vmatmul.bf16.gmra.mxu0 %v754
        %v1260 = vpop.f32.mrf.mxu0
        %v1261 = vadd.f32 0.0, %v1260
        %v1262 = vpop.f32.mrf.mxu0
        %v1263 = vadd.f32 0.0, %v1262
        %1264 = vmatmul.bf16.gmra.mxu0 %v757
        %v1265 = vpop.f32.mrf.mxu0
        %v1266 = vadd.f32 0.0, %v1265
        %v1267 = vpop.f32.mrf.mxu0
        %v1268 = vadd.f32 0.0, %v1267
        %1269 = vmatmul.bf16.gmra.mxu0 %v760
        %v1270 = vpop.f32.mrf.mxu0
        %v1271 = vadd.f32 0.0, %v1270
        %v1272 = vpop.f32.mrf.mxu0
        %v1273 = vadd.f32 0.0, %v1272
        %1274 = vmatmul.bf16.gmra.mxu0 %v763
        %v1275 = vpop.f32.mrf.mxu0
        %v1276 = vadd.f32 0.0, %v1275
        %v1277 = vpop.f32.mrf.mxu0
        %v1278 = vadd.f32 0.0, %v1277
        %1279 = vdwg.mxu0
        %v1280 = vmul.f32 %v1192, %v873
        %v1281 = vmul.f32 %v1241, %v873
        %v1282 = vmul.f32 %v1194, %v878
        %v1283 = vmul.f32 %v1243, %v878
        %v1284 = vmul.f32 %v1197, %v883
        %v1285 = vmul.f32 %v1246, %v883
        %v1286 = vmul.f32 %v1199, %v888
        %v1287 = vmul.f32 %v1248, %v888
        %v1288 = vmul.f32 %v1202, %v893
        %v1289 = vmul.f32 %v1251, %v893
        %v1290 = vmul.f32 %v1204, %v898
        %v1291 = vmul.f32 %v1253, %v898
        %v1292 = vmul.f32 %v1207, %v903
        %v1293 = vmul.f32 %v1256, %v903
        %v1294 = vmul.f32 %v1209, %v908
        %v1295 = vmul.f32 %v1258, %v908
        %v1296 = vmul.f32 %v1212, %v913
        %v1297 = vmul.f32 %v1261, %v913
        %v1298 = vmul.f32 %v1214, %v918
        %v1299 = vmul.f32 %v1263, %v918
        %v1300 = vmul.f32 %v1217, %v923
        %v1301 = vmul.f32 %v1266, %v923
        %v1302 = vmul.f32 %v1219, %v928
        %v1303 = vmul.f32 %v1268, %v928
        %v1304 = vmul.f32 %v1222, %v933
        %v1305 = vmul.f32 %v1271, %v933
        %v1306 = vmul.f32 %v1224, %v938
        %v1307 = vmul.f32 %v1273, %v938
        %v1308 = vmul.f32 %v1227, %v943
        %v1309 = vmul.f32 %v1276, %v943
        %v1310 = vmul.f32 %v1229, %v948
        %v1311 = vmul.f32 %v1278, %v948
        %v1312 = vadd.f32 %v1280, %v985
        %v1313 = vadd.f32 %v1281, %v985
        %v1314 = vadd.f32 %v1282, %v990
        %v1315 = vadd.f32 %v1283, %v990
        %v1316 = vadd.f32 %v1284, %v995
        %v1317 = vadd.f32 %v1285, %v995
        %v1318 = vadd.f32 %v1286, %v1000
        %v1319 = vadd.f32 %v1287, %v1000
        %v1320 = vadd.f32 %v1288, %v1005
        %v1321 = vadd.f32 %v1289, %v1005
        %v1322 = vadd.f32 %v1290, %v1010
        %v1323 = vadd.f32 %v1291, %v1010
        %v1324 = vadd.f32 %v1292, %v1015
        %v1325 = vadd.f32 %v1293, %v1015
        %v1326 = vadd.f32 %v1294, %v1020
        %v1327 = vadd.f32 %v1295, %v1020
        %v1328 = vadd.f32 %v1296, %v1025
        %v1329 = vadd.f32 %v1297, %v1025
        %v1330 = vadd.f32 %v1298, %v1030
        %v1331 = vadd.f32 %v1299, %v1030
        %v1332 = vadd.f32 %v1300, %v1035
        %v1333 = vadd.f32 %v1301, %v1035
        %v1334 = vadd.f32 %v1302, %v1040
        %v1335 = vadd.f32 %v1303, %v1040
        %v1336 = vadd.f32 %v1304, %v1045
        %v1337 = vadd.f32 %v1305, %v1045
        %v1338 = vadd.f32 %v1306, %v1050
        %v1339 = vadd.f32 %v1307, %v1050
        %v1340 = vadd.f32 %v1308, %v1055
        %v1341 = vadd.f32 %v1309, %v1055
        %v1342 = vadd.f32 %v1310, %v1060
        %v1343 = vadd.f32 %v1311, %v1060
        %v1344 = vmax.f32 %v1312, 0.0
        %v1345 = vmax.f32 %v1313, 0.0
        %v1346 = vmax.f32 %v1314, 0.0
        %v1347 = vmax.f32 %v1315, 0.0
        %v1348 = vmax.f32 %v1316, 0.0
        %v1349 = vmax.f32 %v1317, 0.0
        %v1350 = vmax.f32 %v1318, 0.0
        %v1351 = vmax.f32 %v1319, 0.0
        %v1352 = vmax.f32 %v1320, 0.0
        %v1353 = vmax.f32 %v1321, 0.0
        %v1354 = vmax.f32 %v1322, 0.0
        %v1355 = vmax.f32 %v1323, 0.0
        %v1356 = vmax.f32 %v1324, 0.0
        %v1357 = vmax.f32 %v1325, 0.0
        %v1358 = vmax.f32 %v1326, 0.0
        %v1359 = vmax.f32 %v1327, 0.0
        %v1360 = vmax.f32 %v1328, 0.0
        %v1361 = vmax.f32 %v1329, 0.0
        %v1362 = vmax.f32 %v1330, 0.0
        %v1363 = vmax.f32 %v1331, 0.0
        %v1364 = vmax.f32 %v1332, 0.0
        %v1365 = vmax.f32 %v1333, 0.0
        %v1366 = vmax.f32 %v1334, 0.0
        %v1367 = vmax.f32 %v1335, 0.0
        %v1368 = vmax.f32 %v1336, 0.0
        %v1369 = vmax.f32 %v1337, 0.0
        %v1370 = vmax.f32 %v1338, 0.0
        %v1371 = vmax.f32 %v1339, 0.0
        %v1372 = vmax.f32 %v1340, 0.0
        %v1373 = vmax.f32 %v1341, 0.0
        %v1374 = vmax.f32 %v1342, 0.0
        %v1375 = vmax.f32 %v1343, 0.0
        %v1376 = vmax.f32 %v1344, %v1346
        %v1377 = vmax.f32 %v1345, %v1347
        %s1378 = scalar_lea.vmem [#allocation2], 240
        %1379 = vst [vmem:[%s1378] sm:$0xff] %v1376
        %1380 = vst [vmem:[%s1378 + $0x8] sm:$0xff] %v1377
        %v1381 = vmax.f32 %v1348, %v1350
        %v1382 = vmax.f32 %v1349, %v1351
        %s1383 = scalar_lea.vmem [#allocation2], 264
        %1384 = vst [vmem:[%s1383] sm:$0xff] %v1381
        %1385 = vst [vmem:[%s1383 + $0x8] sm:$0xff] %v1382
        %v1386 = vmax.f32 %v1352, %v1354
        %v1387 = vmax.f32 %v1353, %v1355
        %s1388 = scalar_lea.vmem [#allocation2], 288
        %1389 = vst [vmem:[%s1388] sm:$0xff] %v1386
        %1390 = vst [vmem:[%s1388 + $0x8] sm:$0xff] %v1387
        %v1391 = vmax.f32 %v1356, %v1358
        %v1392 = vmax.f32 %v1357, %v1359
        %s1393 = scalar_lea.vmem [#allocation2], 312
        %1394 = vst [vmem:[%s1393] sm:$0xff] %v1391
        %1395 = vst [vmem:[%s1393 + $0x8] sm:$0xff] %v1392
        %v1396 = vmax.f32 %v1360, %v1362
        %v1397 = vmax.f32 %v1361, %v1363
        %s1398 = scalar_lea.vmem [#allocation2], 336
        %1399 = vst [vmem:[%s1398] sm:$0xff] %v1396
        %1400 = vst [vmem:[%s1398 + $0x8] sm:$0xff] %v1397
        %v1401 = vmax.f32 %v1364, %v1366
        %v1402 = vmax.f32 %v1365, %v1367
        %s1403 = scalar_lea.vmem [#allocation2], 360
        %1404 = vst [vmem:[%s1403] sm:$0xff] %v1401
        %1405 = vst [vmem:[%s1403 + $0x8] sm:$0xff] %v1402
        %v1406 = vmax.f32 %v1368, %v1370
        %v1407 = vmax.f32 %v1369, %v1371
        %1410 = vrot.lane.b32.xlu0 %v1406, 1
        %v1411 = vpop.permute.xlu0 %1410
        %1412 = vrot.lane.b32.xlu0 %v1407, 1
        %v1413 = vpop.permute.xlu0 %1412
        %vm1414 = vcmask 7168
        %v1415 = vsel %vm1414, %v1411, %v1413
        %vm1419 = vcmask 1047560
        %1420 = vst.msk [vmem:[#allocation2] sm:$0xff] %vm1419, %v1411
        %1421 = vst [vmem:[#allocation2 + $0x8] sm:$0xff] %v1415
        %1422 = vst.msk [vmem:[#allocation2 + $0x10] sm:$0xff] %vm1414, %v1413
        %v1423 = vmax.f32 %v1372, %v1374
        %v1424 = vmax.f32 %v1373, %v1375
        %1427 = vrot.lane.b32.xlu0 %v1423, 1
        %v1428 = vpop.permute.xlu0 %1427
        %1429 = vrot.lane.b32.xlu0 %v1424, 1
        %v1430 = vpop.permute.xlu0 %1429
        %v1431 = vsel %vm1414, %v1428, %v1430
        %s1435 = scalar_lea.vmem [#allocation2], 24
        %1436 = vst.msk [vmem:[%s1435] sm:$0xff] %vm1419, %v1428
        %1437 = vst [vmem:[%s1435 + $0x8] sm:$0xff] %v1431
        %1438 = vst.msk [vmem:[%s1435 + $0x10] sm:$0xff] %vm1414, %v1430
        %1439 = vst.msk [vmem:[#allocation2] sm:$0xff] %vm1414, 0.0
        %1440 = vst.msk [vmem:[%s1435] sm:$0xff] %vm1414, 0.0
        %1441 = vst.msk [vmem:[%s1435 + $0x10] sm:$0xff] %vm1414, 0.0
        %1442 = vst.msk [vmem:[%s1128 + $0x10] sm:$0xff] %vm1414, 0.0
        %v1443 = vld [vmem:[%s4] sm:$0xf]
        %v1444 = vld [vmem:[%s4 + $0x4] sm:$0xf]
        %v1445 = vld [vmem:[%s4 + $0x8] sm:$0xf]
        %v1446 = vld [vmem:[%s4 + $0xc] sm:$0xf]
        %v1447 = vld [vmem:[%s4 + $0x10] sm:$0xf]
        %v1448 = vld [vmem:[%s4 + $0x14] sm:$0xf]
        %v1449 = vld [vmem:[%s4 + $0x18] sm:$0xf]
        %v1450 = vld [vmem:[%s4 + $0x1c] sm:$0xf]
        %v1451 = vld [vmem:[#allocation10] sm:$0xff]
        %v1452 = vld [vmem:[#allocation10 + $0x8] sm:$0xff]
        %v1453 = vld [vmem:[#allocation10 + $0x10] sm:$0xff]
        %v1454 = vld [vmem:[#allocation10 + $0x18] sm:$0xff]
        %v1455 = vld [vmem:[#allocation10 + $0x20] sm:$0xff]
        %v1456 = vld [vmem:[#allocation10 + $0x28] sm:$0xff]
        %v1457 = vld [vmem:[#allocation10 + $0x30] sm:$0xff]
        %v1458 = vld [vmem:[#allocation10 + $0x38] sm:$0xff]
        %v1459 = vld [vmem:[#allocation12] sm:$0xff]
        %v1460 = vld [vmem:[#allocation12 + $0x8] sm:$0xff]
        %v1461 = vld [vmem:[#allocation12 + $0x10] sm:$0xff]
        %v1462 = vld [vmem:[#allocation12 + $0x18] sm:$0xff]
        %v1463 = vld [vmem:[#allocation12 + $0x20] sm:$0xff]
        %v1464 = vld [vmem:[#allocation12 + $0x28] sm:$0xff]
        %v1465 = vld [vmem:[#allocation12 + $0x30] sm:$0xff]
        %v1466 = vld [vmem:[#allocation12 + $0x38] sm:$0xff]
        %v1467 = vld [vmem:[#allocation2] sm:$0xff]
        %v1468 = vld [vmem:[#allocation2 + $0x8] sm:$0xff]
        %v1469 = vld [vmem:[%s1435] sm:$0xff]
        %v1470 = vld [vmem:[%s1435 + $0x8] sm:$0xff]
        %v1471 = vld [vmem:[%s1128] sm:$0xff]
        %v1472 = vld [vmem:[%s1128 + $0x8] sm:$0xff]
        %v1473 = vld [vmem:[%s1133] sm:$0xff]
        %v1474 = vld [vmem:[%s1133 + $0x8] sm:$0xff]
        %v1475 = vld [vmem:[%s1138] sm:$0xff]
        %v1476 = vld [vmem:[%s1138 + $0x8] sm:$0xff]
        %v1477 = vld [vmem:[%s1143] sm:$0xff]
        %v1478 = vld [vmem:[%s1143 + $0x8] sm:$0xff]
        %v1479 = vld [vmem:[%s1148] sm:$0xff]
        %v1480 = vld [vmem:[%s1148 + $0x8] sm:$0xff]
        %v1481 = vpack.c.bf16 %v1469, %v1467
        %v1482 = vpack.c.bf16 %v1470, %v1468
        %v1483 = vpack.c.bf16 %v1473, %v1471
        %v1484 = vpack.c.bf16 %v1474, %v1472
        %v1485 = vpack.c.bf16 %v1477, %v1475
        %v1486 = vpack.c.bf16 %v1478, %v1476
        %v1487 = vpack.c.bf16 %v1479, %v1479
        %v1488 = vpack.c.bf16 %v1480, %v1480
        %v1497 = vunpack.c.l.b16 %v1443
        %v1498 = vunpack.c.l.b16 %v1444
        %v1499 = vunpack.c.l.b16 %v1445
        %v1500 = vunpack.c.l.b16 %v1446
        %v1501 = vunpack.c.l.b16 %v1447
        %v1502 = vunpack.c.l.b16 %v1448
        %v1503 = vunpack.c.l.b16 %v1449
        %v1504 = vunpack.c.l.b16 %v1450
        %v1505 = vpack.c.b16 %v1498, %v1497
        %v1506 = vpack.c.b16 %v1500, %v1499
        %v1507 = vpack.c.b16 %v1502, %v1501
        %v1508 = vpack.c.b16 %v1504, %v1503
        %vm1509 = vcmask 457728
        %v1511 = vsel %vm1509, %v1505, 0
        %v1514 = vsel %vm1509, %v1506, 0
        %v1517 = vsel %vm1509, %v1507, 0
        %v1520 = vsel %vm1509, %v1508, 0
        %v1523 = vsel %vm765, %v1487, 0
        %v1526 = vsel %vm765, %v1488, 0
        %1528 = vmatpush.bf16.msra.mxu0 0
        %1529 = vmatpush.bf16.msra.mxu0 0
        %1530 = vmatpush.bf16.msra.mxu0 0
        %1531 = vmatpush.bf16.msra.mxu0 0
        %1532 = vmatpush.bf16.msra.mxu0 %v1523
        %1533 = vmatpush.bf16.msra.mxu0 %v1485
        %1534 = vmatpush.bf16.msra.mxu0 %v1483
        %1535 = vmatpush.bf16.msra.mxu0 %v1481
        %1536 = vmatmul.bf16.gmra.mxu0 %v1511
        %v1537 = vpop.f32.mrf.mxu0
        %v1538 = vadd.f32 0.0, %v1537
        %v1539 = vpop.f32.mrf.mxu0
        %v1540 = vadd.f32 0.0, %v1539
        %1541 = vmatmul.bf16.gmra.mxu0 %v1514
        %v1542 = vpop.f32.mrf.mxu0
        %v1543 = vadd.f32 0.0, %v1542
        %v1544 = vpop.f32.mrf.mxu0
        %v1545 = vadd.f32 0.0, %v1544
        %1546 = vmatmul.bf16.gmra.mxu0 %v1517
        %v1547 = vpop.f32.mrf.mxu0
        %v1548 = vadd.f32 0.0, %v1547
        %v1549 = vpop.f32.mrf.mxu0
        %v1550 = vadd.f32 0.0, %v1549
        %1551 = vmatmul.bf16.gmra.mxu0 %v1520
        %v1552 = vpop.f32.mrf.mxu0
        %v1553 = vadd.f32 0.0, %v1552
        %v1554 = vpop.f32.mrf.mxu0
        %v1555 = vadd.f32 0.0, %v1554
        %1556 = vdwg.mxu0
        %1557 = vmatpush.bf16.msra.mxu0 0
        %1558 = vmatpush.bf16.msra.mxu0 0
        %1559 = vmatpush.bf16.msra.mxu0 0
        %1560 = vmatpush.bf16.msra.mxu0 0
        %1561 = vmatpush.bf16.msra.mxu0 %v1526
        %1562 = vmatpush.bf16.msra.mxu0 %v1486
        %1563 = vmatpush.bf16.msra.mxu0 %v1484
        %1564 = vmatpush.bf16.msra.mxu0 %v1482
        %1565 = vmatmul.bf16.gmra.mxu0 %v1511
        %v1566 = vpop.f32.mrf.mxu0
        %v1567 = vadd.f32 0.0, %v1566
        %v1568 = vpop.f32.mrf.mxu0
        %v1569 = vadd.f32 0.0, %v1568
        %1570 = vmatmul.bf16.gmra.mxu0 %v1514
        %v1571 = vpop.f32.mrf.mxu0
        %v1572 = vadd.f32 0.0, %v1571
        %v1573 = vpop.f32.mrf.mxu0
        %v1574 = vadd.f32 0.0, %v1573
        %1575 = vmatmul.bf16.gmra.mxu0 %v1517
        %v1576 = vpop.f32.mrf.mxu0
        %v1577 = vadd.f32 0.0, %v1576
        %v1578 = vpop.f32.mrf.mxu0
        %v1579 = vadd.f32 0.0, %v1578
        %1580 = vmatmul.bf16.gmra.mxu0 %v1520
        %v1581 = vpop.f32.mrf.mxu0
        %v1582 = vadd.f32 0.0, %v1581
        %v1583 = vpop.f32.mrf.mxu0
        %v1584 = vadd.f32 0.0, %v1583
        %1585 = vdwg.mxu0
        %1587 = vset.pattern.permute.xlu0 0
        %1588 = vperm.xlu0 %1587, %v1451
        %v1589 = vpop.permute.xlu0 %1588
        %1592 = vset.pattern.permute.xlu0 0
        %1593 = vperm.xlu0 %1592, %v1452
        %v1594 = vpop.permute.xlu0 %1593
        %1597 = vset.pattern.permute.xlu0 0
        %1598 = vperm.xlu0 %1597, %v1453
        %v1599 = vpop.permute.xlu0 %1598
        %1602 = vset.pattern.permute.xlu0 0
        %1603 = vperm.xlu0 %1602, %v1454
        %v1604 = vpop.permute.xlu0 %1603
        %1607 = vset.pattern.permute.xlu0 0
        %1608 = vperm.xlu0 %1607, %v1455
        %v1609 = vpop.permute.xlu0 %1608
        %1612 = vset.pattern.permute.xlu0 0
        %1613 = vperm.xlu0 %1612, %v1456
        %v1614 = vpop.permute.xlu0 %1613
        %1617 = vset.pattern.permute.xlu0 0
        %1618 = vperm.xlu0 %1617, %v1457
        %v1619 = vpop.permute.xlu0 %1618
        %1622 = vset.pattern.permute.xlu0 0
        %1623 = vperm.xlu0 %1622, %v1458
        %v1624 = vpop.permute.xlu0 %1623
        %v1626 = vmul.f32 %v1538, %v1589
        %v1627 = vmul.f32 %v1567, %v1589
        %v1628 = vmul.f32 %v1540, %v1594
        %v1629 = vmul.f32 %v1569, %v1594
        %v1630 = vmul.f32 %v1543, %v1599
        %v1631 = vmul.f32 %v1572, %v1599
        %v1632 = vmul.f32 %v1545, %v1604
        %v1633 = vmul.f32 %v1574, %v1604
        %v1634 = vmul.f32 %v1548, %v1609
        %v1635 = vmul.f32 %v1577, %v1609
        %v1636 = vmul.f32 %v1550, %v1614
        %v1637 = vmul.f32 %v1579, %v1614
        %v1638 = vmul.f32 %v1553, %v1619
        %v1639 = vmul.f32 %v1582, %v1619
        %v1640 = vmul.f32 %v1555, %v1624
        %v1641 = vmul.f32 %v1584, %v1624
        %1643 = vset.pattern.permute.xlu0 0
        %1644 = vperm.xlu0 %1643, %v1459
        %v1645 = vpop.permute.xlu0 %1644
        %1648 = vset.pattern.permute.xlu0 0
        %1649 = vperm.xlu0 %1648, %v1460
        %v1650 = vpop.permute.xlu0 %1649
        %1653 = vset.pattern.permute.xlu0 0
        %1654 = vperm.xlu0 %1653, %v1461
        %v1655 = vpop.permute.xlu0 %1654
        %1658 = vset.pattern.permute.xlu0 0
        %1659 = vperm.xlu0 %1658, %v1462
        %v1660 = vpop.permute.xlu0 %1659
        %1663 = vset.pattern.permute.xlu0 0
        %1664 = vperm.xlu0 %1663, %v1463
        %v1665 = vpop.permute.xlu0 %1664
        %1668 = vset.pattern.permute.xlu0 0
        %1669 = vperm.xlu0 %1668, %v1464
        %v1670 = vpop.permute.xlu0 %1669
        %1673 = vset.pattern.permute.xlu0 0
        %1674 = vperm.xlu0 %1673, %v1465
        %v1675 = vpop.permute.xlu0 %1674
        %1678 = vset.pattern.permute.xlu0 0
        %1679 = vperm.xlu0 %1678, %v1466
        %v1680 = vpop.permute.xlu0 %1679
        %v1682 = vadd.f32 %v1626, %v1645
        %v1683 = vadd.f32 %v1627, %v1645
        %v1684 = vadd.f32 %v1628, %v1650
        %v1685 = vadd.f32 %v1629, %v1650
        %v1686 = vadd.f32 %v1630, %v1655
        %v1687 = vadd.f32 %v1631, %v1655
        %v1688 = vadd.f32 %v1632, %v1660
        %v1689 = vadd.f32 %v1633, %v1660
        %v1690 = vadd.f32 %v1634, %v1665
        %v1691 = vadd.f32 %v1635, %v1665
        %v1692 = vadd.f32 %v1636, %v1670
        %v1693 = vadd.f32 %v1637, %v1670
        %v1694 = vadd.f32 %v1638, %v1675
        %v1695 = vadd.f32 %v1639, %v1675
        %v1696 = vadd.f32 %v1640, %v1680
        %v1697 = vadd.f32 %v1641, %v1680
        %v1698 = vmax.f32 %v1682, 0.0
        %v1699 = vmax.f32 %v1683, 0.0
        %v1700 = vmax.f32 %v1684, 0.0
        %v1701 = vmax.f32 %v1685, 0.0
        %v1702 = vmax.f32 %v1686, 0.0
        %v1703 = vmax.f32 %v1687, 0.0
        %v1704 = vmax.f32 %v1688, 0.0
        %v1705 = vmax.f32 %v1689, 0.0
        %v1706 = vmax.f32 %v1690, 0.0
        %v1707 = vmax.f32 %v1691, 0.0
        %v1708 = vmax.f32 %v1692, 0.0
        %v1709 = vmax.f32 %v1693, 0.0
        %v1710 = vmax.f32 %v1694, 0.0
        %v1711 = vmax.f32 %v1695, 0.0
        %v1712 = vmax.f32 %v1696, 0.0
        %v1713 = vmax.f32 %v1697, 0.0
        %v1714 = vmax.f32 %v1698, %v1702
        %v1715 = vmax.f32 %v1699, %v1703
        %v1716 = vmax.f32 %v1700, %v1704
        %v1717 = vmax.f32 %v1701, %v1705
        %s1718 = scalar_lea.vmem [#allocation3], 48
        %1719 = vst [vmem:[%s1718] sm:$0xff] %v1714
        %1720 = vst [vmem:[%s1718 + $0x8] sm:$0xff] %v1715
        %1721 = vst [vmem:[%s1718 + $0x18] sm:$0xff] %v1716
        %1722 = vst [vmem:[%s1718 + $0x20] sm:$0xff] %v1717
        %v1723 = vmax.f32 %v1706, %v1710
        %v1724 = vmax.f32 %v1707, %v1711
        %v1725 = vmax.f32 %v1708, %v1712
        %v1726 = vmax.f32 %v1709, %v1713
        %s1727 = scalar_lea.vmem [#allocation3], 96
        %1728 = vst [vmem:[%s1727] sm:$0xff] %v1723
        %1729 = vst [vmem:[%s1727 + $0x8] sm:$0xff] %v1724
        %1730 = vst [vmem:[%s1727 + $0x18] sm:$0xff] %v1725
        %1731 = vst [vmem:[%s1727 + $0x20] sm:$0xff] %v1726
        %v1732 = vld [vmem:[%s1138] sm:$0xff]
        %v1733 = vld [vmem:[%s1138 + $0x8] sm:$0xff]
        %v1734 = vld [vmem:[%s1143] sm:$0xff]
        %v1735 = vld [vmem:[%s1143 + $0x8] sm:$0xff]
        %v1736 = vld [vmem:[%s1148] sm:$0xff]
        %v1737 = vld [vmem:[%s1148 + $0x8] sm:$0xff]
        %v1738 = vld [vmem:[%s1153] sm:$0xff]
        %v1739 = vld [vmem:[%s1153 + $0x8] sm:$0xff]
        %v1740 = vld [vmem:[%s1158] sm:$0xff]
        %v1741 = vld [vmem:[%s1158 + $0x8] sm:$0xff]
        %v1742 = vld [vmem:[%s1163] sm:$0xff]
        %v1743 = vld [vmem:[%s1163 + $0x8] sm:$0xff]
        %v1744 = vld [vmem:[%s1378] sm:$0xff]
        %v1745 = vld [vmem:[%s1378 + $0x8] sm:$0xff]
        %v1746 = vpack.c.bf16 %v1734, %v1732
        %v1747 = vpack.c.bf16 %v1735, %v1733
        %v1748 = vpack.c.bf16 %v1738, %v1736
        %v1749 = vpack.c.bf16 %v1739, %v1737
        %v1750 = vpack.c.bf16 %v1742, %v1740
        %v1751 = vpack.c.bf16 %v1743, %v1741
        %v1752 = vpack.c.bf16 %v1744, %v1744
        %v1753 = vpack.c.bf16 %v1745, %v1745
        %v1755 = vsel %vm765, %v1752, 0
        %v1758 = vsel %vm765, %v1753, 0
        %1760 = vmatpush.bf16.msra.mxu0 0
        %1761 = vmatpush.bf16.msra.mxu0 0
        %1762 = vmatpush.bf16.msra.mxu0 0
        %1763 = vmatpush.bf16.msra.mxu0 0
        %1764 = vmatpush.bf16.msra.mxu0 %v1755
        %1765 = vmatpush.bf16.msra.mxu0 %v1750
        %1766 = vmatpush.bf16.msra.mxu0 %v1748
        %1767 = vmatpush.bf16.msra.mxu0 %v1746
        %1768 = vmatmul.bf16.gmra.mxu0 %v1511
        %v1769 = vpop.f32.mrf.mxu0
        %v1770 = vadd.f32 0.0, %v1769
        %v1771 = vpop.f32.mrf.mxu0
        %v1772 = vadd.f32 0.0, %v1771
        %1773 = vmatmul.bf16.gmra.mxu0 %v1514
        %v1774 = vpop.f32.mrf.mxu0
        %v1775 = vadd.f32 0.0, %v1774
        %v1776 = vpop.f32.mrf.mxu0
        %v1777 = vadd.f32 0.0, %v1776
        %1778 = vmatmul.bf16.gmra.mxu0 %v1517
        %v1779 = vpop.f32.mrf.mxu0
        %v1780 = vadd.f32 0.0, %v1779
        %v1781 = vpop.f32.mrf.mxu0
        %v1782 = vadd.f32 0.0, %v1781
        %1783 = vmatmul.bf16.gmra.mxu0 %v1520
        %v1784 = vpop.f32.mrf.mxu0
        %v1785 = vadd.f32 0.0, %v1784
        %v1786 = vpop.f32.mrf.mxu0
        %v1787 = vadd.f32 0.0, %v1786
        %1788 = vdwg.mxu0
        %1789 = vmatpush.bf16.msra.mxu0 0
        %1790 = vmatpush.bf16.msra.mxu0 0
        %1791 = vmatpush.bf16.msra.mxu0 0
        %1792 = vmatpush.bf16.msra.mxu0 0
        %1793 = vmatpush.bf16.msra.mxu0 %v1758
        %1794 = vmatpush.bf16.msra.mxu0 %v1751
        %1795 = vmatpush.bf16.msra.mxu0 %v1749
        %1796 = vmatpush.bf16.msra.mxu0 %v1747
        %1797 = vmatmul.bf16.gmra.mxu0 %v1511
        %v1798 = vpop.f32.mrf.mxu0
        %v1799 = vadd.f32 0.0, %v1798
        %v1800 = vpop.f32.mrf.mxu0
        %v1801 = vadd.f32 0.0, %v1800
        %1802 = vmatmul.bf16.gmra.mxu0 %v1514
        %v1803 = vpop.f32.mrf.mxu0
        %v1804 = vadd.f32 0.0, %v1803
        %v1805 = vpop.f32.mrf.mxu0
        %v1806 = vadd.f32 0.0, %v1805
        %1807 = vmatmul.bf16.gmra.mxu0 %v1517
        %v1808 = vpop.f32.mrf.mxu0
        %v1809 = vadd.f32 0.0, %v1808
        %v1810 = vpop.f32.mrf.mxu0
        %v1811 = vadd.f32 0.0, %v1810
        %1812 = vmatmul.bf16.gmra.mxu0 %v1520
        %v1813 = vpop.f32.mrf.mxu0
        %v1814 = vadd.f32 0.0, %v1813
        %v1815 = vpop.f32.mrf.mxu0
        %v1816 = vadd.f32 0.0, %v1815
        %1817 = vdwg.mxu0
        %v1818 = vmul.f32 %v1770, %v1589
        %v1819 = vmul.f32 %v1799, %v1589
        %v1820 = vmul.f32 %v1772, %v1594
        %v1821 = vmul.f32 %v1801, %v1594
        %v1822 = vmul.f32 %v1775, %v1599
        %v1823 = vmul.f32 %v1804, %v1599
        %v1824 = vmul.f32 %v1777, %v1604
        %v1825 = vmul.f32 %v1806, %v1604
        %v1826 = vmul.f32 %v1780, %v1609
        %v1827 = vmul.f32 %v1809, %v1609
        %v1828 = vmul.f32 %v1782, %v1614
        %v1829 = vmul.f32 %v1811, %v1614
        %v1830 = vmul.f32 %v1785, %v1619
        %v1831 = vmul.f32 %v1814, %v1619
        %v1832 = vmul.f32 %v1787, %v1624
        %v1833 = vmul.f32 %v1816, %v1624
        %v1834 = vadd.f32 %v1818, %v1645
        %v1835 = vadd.f32 %v1819, %v1645
        %v1836 = vadd.f32 %v1820, %v1650
        %v1837 = vadd.f32 %v1821, %v1650
        %v1838 = vadd.f32 %v1822, %v1655
        %v1839 = vadd.f32 %v1823, %v1655
        %v1840 = vadd.f32 %v1824, %v1660
        %v1841 = vadd.f32 %v1825, %v1660
        %v1842 = vadd.f32 %v1826, %v1665
        %v1843 = vadd.f32 %v1827, %v1665
        %v1844 = vadd.f32 %v1828, %v1670
        %v1845 = vadd.f32 %v1829, %v1670
        %v1846 = vadd.f32 %v1830, %v1675
        %v1847 = vadd.f32 %v1831, %v1675
        %v1848 = vadd.f32 %v1832, %v1680
        %v1849 = vadd.f32 %v1833, %v1680
        %v1850 = vmax.f32 %v1834, 0.0
        %v1851 = vmax.f32 %v1835, 0.0
        %v1852 = vmax.f32 %v1836, 0.0
        %v1853 = vmax.f32 %v1837, 0.0
        %v1854 = vmax.f32 %v1838, 0.0
        %v1855 = vmax.f32 %v1839, 0.0
        %v1856 = vmax.f32 %v1840, 0.0
        %v1857 = vmax.f32 %v1841, 0.0
        %v1858 = vmax.f32 %v1842, 0.0
        %v1859 = vmax.f32 %v1843, 0.0
        %v1860 = vmax.f32 %v1844, 0.0
        %v1861 = vmax.f32 %v1845, 0.0
        %v1862 = vmax.f32 %v1846, 0.0
        %v1863 = vmax.f32 %v1847, 0.0
        %v1864 = vmax.f32 %v1848, 0.0
        %v1865 = vmax.f32 %v1849, 0.0
        %v1866 = vmax.f32 %v1850, %v1854
        %v1867 = vmax.f32 %v1851, %v1855
        %v1868 = vmax.f32 %v1852, %v1856
        %v1869 = vmax.f32 %v1853, %v1857
        %s1870 = scalar_lea.vmem [#allocation3], 144
        %1871 = vst [vmem:[%s1870] sm:$0xff] %v1866
        %1872 = vst [vmem:[%s1870 + $0x8] sm:$0xff] %v1867
        %1873 = vst [vmem:[%s1870 + $0x18] sm:$0xff] %v1868
        %1874 = vst [vmem:[%s1870 + $0x20] sm:$0xff] %v1869
        %v1875 = vmax.f32 %v1858, %v1862
        %v1876 = vmax.f32 %v1859, %v1863
        %v1877 = vmax.f32 %v1860, %v1864
        %v1878 = vmax.f32 %v1861, %v1865
        %s1879 = scalar_lea.vmem [#allocation3], 192
        %1880 = vst [vmem:[%s1879] sm:$0xff] %v1875
        %1881 = vst [vmem:[%s1879 + $0x8] sm:$0xff] %v1876
        %1882 = vst [vmem:[%s1879 + $0x18] sm:$0xff] %v1877
        %1883 = vst [vmem:[%s1879 + $0x20] sm:$0xff] %v1878
        %v1884 = vld [vmem:[%s1158] sm:$0xff]
        %v1885 = vld [vmem:[%s1158 + $0x8] sm:$0xff]
        %v1886 = vld [vmem:[%s1163] sm:$0xff]
        %v1887 = vld [vmem:[%s1163 + $0x8] sm:$0xff]
        %v1888 = vld [vmem:[%s1378] sm:$0xff]
        %v1889 = vld [vmem:[%s1378 + $0x8] sm:$0xff]
        %v1890 = vld [vmem:[%s1383] sm:$0xff]
        %v1891 = vld [vmem:[%s1383 + $0x8] sm:$0xff]
        %v1892 = vld [vmem:[%s1388] sm:$0xff]
        %v1893 = vld [vmem:[%s1388 + $0x8] sm:$0xff]
        %v1894 = vld [vmem:[%s1393] sm:$0xff]
        %v1895 = vld [vmem:[%s1393 + $0x8] sm:$0xff]
        %v1896 = vld [vmem:[%s1398] sm:$0xff]
        %v1897 = vld [vmem:[%s1398 + $0x8] sm:$0xff]
        %v1898 = vpack.c.bf16 %v1886, %v1884
        %v1899 = vpack.c.bf16 %v1887, %v1885
        %v1900 = vpack.c.bf16 %v1890, %v1888
        %v1901 = vpack.c.bf16 %v1891, %v1889
        %v1902 = vpack.c.bf16 %v1894, %v1892
        %v1903 = vpack.c.bf16 %v1895, %v1893
        %v1904 = vpack.c.bf16 %v1896, %v1896
        %v1905 = vpack.c.bf16 %v1897, %v1897
        %v1907 = vsel %vm765, %v1904, 0
        %v1910 = vsel %vm765, %v1905, 0
        %1912 = vmatpush.bf16.msra.mxu0 0
        %1913 = vmatpush.bf16.msra.mxu0 0
        %1914 = vmatpush.bf16.msra.mxu0 0
        %1915 = vmatpush.bf16.msra.mxu0 0
        %1916 = vmatpush.bf16.msra.mxu0 %v1907
        %1917 = vmatpush.bf16.msra.mxu0 %v1902
        %1918 = vmatpush.bf16.msra.mxu0 %v1900
        %1919 = vmatpush.bf16.msra.mxu0 %v1898
        %1920 = vmatmul.bf16.gmra.mxu0 %v1511
        %v1921 = vpop.f32.mrf.mxu0
        %v1922 = vadd.f32 0.0, %v1921
        %v1923 = vpop.f32.mrf.mxu0
        %v1924 = vadd.f32 0.0, %v1923
        %1925 = vmatmul.bf16.gmra.mxu0 %v1514
        %v1926 = vpop.f32.mrf.mxu0
        %v1927 = vadd.f32 0.0, %v1926
        %v1928 = vpop.f32.mrf.mxu0
        %v1929 = vadd.f32 0.0, %v1928
        %1930 = vmatmul.bf16.gmra.mxu0 %v1517
        %v1931 = vpop.f32.mrf.mxu0
        %v1932 = vadd.f32 0.0, %v1931
        %v1933 = vpop.f32.mrf.mxu0
        %v1934 = vadd.f32 0.0, %v1933
        %1935 = vmatmul.bf16.gmra.mxu0 %v1520
        %v1936 = vpop.f32.mrf.mxu0
        %v1937 = vadd.f32 0.0, %v1936
        %v1938 = vpop.f32.mrf.mxu0
        %v1939 = vadd.f32 0.0, %v1938
        %1940 = vdwg.mxu0
        %1941 = vmatpush.bf16.msra.mxu0 0
        %1942 = vmatpush.bf16.msra.mxu0 0
        %1943 = vmatpush.bf16.msra.mxu0 0
        %1944 = vmatpush.bf16.msra.mxu0 0
        %1945 = vmatpush.bf16.msra.mxu0 %v1910
        %1946 = vmatpush.bf16.msra.mxu0 %v1903
        %1947 = vmatpush.bf16.msra.mxu0 %v1901
        %1948 = vmatpush.bf16.msra.mxu0 %v1899
        %1949 = vmatmul.bf16.gmra.mxu0 %v1511
        %v1950 = vpop.f32.mrf.mxu0
        %v1951 = vadd.f32 0.0, %v1950
        %v1952 = vpop.f32.mrf.mxu0
        %v1953 = vadd.f32 0.0, %v1952
        %1954 = vmatmul.bf16.gmra.mxu0 %v1514
        %v1955 = vpop.f32.mrf.mxu0
        %v1956 = vadd.f32 0.0, %v1955
        %v1957 = vpop.f32.mrf.mxu0
        %v1958 = vadd.f32 0.0, %v1957
        %1959 = vmatmul.bf16.gmra.mxu0 %v1517
        %v1960 = vpop.f32.mrf.mxu0
        %v1961 = vadd.f32 0.0, %v1960
        %v1962 = vpop.f32.mrf.mxu0
        %v1963 = vadd.f32 0.0, %v1962
        %1964 = vmatmul.bf16.gmra.mxu0 %v1520
        %v1965 = vpop.f32.mrf.mxu0
        %v1966 = vadd.f32 0.0, %v1965
        %v1967 = vpop.f32.mrf.mxu0
        %v1968 = vadd.f32 0.0, %v1967
        %1969 = vdwg.mxu0
        %v1970 = vmul.f32 %v1922, %v1589
        %v1971 = vmul.f32 %v1951, %v1589
        %v1972 = vmul.f32 %v1924, %v1594
        %v1973 = vmul.f32 %v1953, %v1594
        %v1974 = vmul.f32 %v1927, %v1599
        %v1975 = vmul.f32 %v1956, %v1599
        %v1976 = vmul.f32 %v1929, %v1604
        %v1977 = vmul.f32 %v1958, %v1604
        %v1978 = vmul.f32 %v1932, %v1609
        %v1979 = vmul.f32 %v1961, %v1609
        %v1980 = vmul.f32 %v1934, %v1614
        %v1981 = vmul.f32 %v1963, %v1614
        %v1982 = vmul.f32 %v1937, %v1619
        %v1983 = vmul.f32 %v1966, %v1619
        %v1984 = vmul.f32 %v1939, %v1624
        %v1985 = vmul.f32 %v1968, %v1624
        %v1986 = vadd.f32 %v1970, %v1645
        %v1987 = vadd.f32 %v1971, %v1645
        %v1988 = vadd.f32 %v1972, %v1650
        %v1989 = vadd.f32 %v1973, %v1650
        %v1990 = vadd.f32 %v1974, %v1655
        %v1991 = vadd.f32 %v1975, %v1655
        %v1992 = vadd.f32 %v1976, %v1660
        %v1993 = vadd.f32 %v1977, %v1660
        %v1994 = vadd.f32 %v1978, %v1665
        %v1995 = vadd.f32 %v1979, %v1665
        %v1996 = vadd.f32 %v1980, %v1670
        %v1997 = vadd.f32 %v1981, %v1670
        %v1998 = vadd.f32 %v1982, %v1675
        %v1999 = vadd.f32 %v1983, %v1675
        %v2000 = vadd.f32 %v1984, %v1680
        %v2001 = vadd.f32 %v1985, %v1680
        %v2002 = vmax.f32 %v1986, 0.0
        %v2003 = vmax.f32 %v1987, 0.0
        %v2004 = vmax.f32 %v1988, 0.0
        %v2005 = vmax.f32 %v1989, 0.0
        %v2006 = vmax.f32 %v1990, 0.0
        %v2007 = vmax.f32 %v1991, 0.0
        %v2008 = vmax.f32 %v1992, 0.0
        %v2009 = vmax.f32 %v1993, 0.0
        %v2010 = vmax.f32 %v1994, 0.0
        %v2011 = vmax.f32 %v1995, 0.0
        %v2012 = vmax.f32 %v1996, 0.0
        %v2013 = vmax.f32 %v1997, 0.0
        %v2014 = vmax.f32 %v1998, 0.0
        %v2015 = vmax.f32 %v1999, 0.0
        %v2016 = vmax.f32 %v2000, 0.0
        %v2017 = vmax.f32 %v2001, 0.0
        %v2018 = vmax.f32 %v2002, %v2006
        %v2019 = vmax.f32 %v2003, %v2007
        %v2020 = vmax.f32 %v2004, %v2008
        %v2021 = vmax.f32 %v2005, %v2009
        %s2022 = scalar_lea.vmem [#allocation3], 240
        %2023 = vst [vmem:[%s2022] sm:$0xff] %v2018
        %2024 = vst [vmem:[%s2022 + $0x8] sm:$0xff] %v2019
        %2025 = vst [vmem:[%s2022 + $0x18] sm:$0xff] %v2020
        %2026 = vst [vmem:[%s2022 + $0x20] sm:$0xff] %v2021
        %v2027 = vmax.f32 %v2010, %v2014
        %v2028 = vmax.f32 %v2011, %v2015
        %v2029 = vmax.f32 %v2012, %v2016
        %v2030 = vmax.f32 %v2013, %v2017
        %s2031 = scalar_lea.vmem [#allocation3], 288
        %2032 = vst [vmem:[%s2031] sm:$0xff] %v2027
        %2033 = vst [vmem:[%s2031 + $0x8] sm:$0xff] %v2028
        %2034 = vst [vmem:[%s2031 + $0x18] sm:$0xff] %v2029
        %2035 = vst [vmem:[%s2031 + $0x20] sm:$0xff] %v2030
        %v2036 = vld [vmem:[%s1388] sm:$0xff]
        %v2037 = vld [vmem:[%s1388 + $0x8] sm:$0xff]
        %v2038 = vld [vmem:[%s1393] sm:$0xff]
        %v2039 = vld [vmem:[%s1393 + $0x8] sm:$0xff]
        %v2040 = vld [vmem:[%s1398] sm:$0xff]
        %v2041 = vld [vmem:[%s1398 + $0x8] sm:$0xff]
        %v2042 = vld [vmem:[%s1403] sm:$0xff]
        %v2043 = vld [vmem:[%s1403 + $0x8] sm:$0xff]
        %v2044 = vld [vmem:[#allocation2] sm:$0xff]
        %v2045 = vld [vmem:[#allocation2 + $0x8] sm:$0xff]
        %v2046 = vld [vmem:[#allocation2 + $0x10] sm:$0xff]
        %v2047 = vld [vmem:[%s1435] sm:$0xff]
        %v2048 = vld [vmem:[%s1435 + $0x8] sm:$0xff]
        %v2049 = vld [vmem:[%s1435 + $0x10] sm:$0xff]
        %v2050 = vld [vmem:[%s1128] sm:$0xff]
        %v2051 = vld [vmem:[%s1128 + $0x8] sm:$0xff]
        %v2052 = vld [vmem:[%s1128 + $0x10] sm:$0xff]
        %2056 = vrot.lane.b32.xlu0 %v2044, 127
        %v2057 = vpop.permute.xlu0 %2056
        %2058 = vrot.lane.b32.xlu0 %v2045, 127
        %v2059 = vpop.permute.xlu0 %2058
        %2060 = vrot.lane.b32.xlu0 %v2046, 127
        %v2061 = vpop.permute.xlu0 %2060
        %vm2062 = vcmask 1039360
        %v2063 = vsel %vm2062, %v2057, %v2059
        %v2064 = vsel %vm2062, %v2059, %v2061
        %2070 = vrot.lane.b32.xlu0 %v2047, 127
        %v2071 = vpop.permute.xlu0 %2070
        %2072 = vrot.lane.b32.xlu0 %v2048, 127
        %v2073 = vpop.permute.xlu0 %2072
        %2074 = vrot.lane.b32.xlu0 %v2049, 127
        %v2075 = vpop.permute.xlu0 %2074
        %v2076 = vsel %vm2062, %v2071, %v2073
        %v2077 = vsel %vm2062, %v2073, %v2075
        %2083 = vrot.lane.b32.xlu0 %v2050, 127
        %v2084 = vpop.permute.xlu0 %2083
        %2085 = vrot.lane.b32.xlu0 %v2051, 127
        %v2086 = vpop.permute.xlu0 %2085
        %2087 = vrot.lane.b32.xlu0 %v2052, 127
        %v2088 = vpop.permute.xlu0 %2087
        %v2089 = vsel %vm2062, %v2084, %v2086
        %v2090 = vsel %vm2062, %v2086, %v2088
        %v2093 = vpack.c.bf16 %v2038, %v2036
        %v2094 = vpack.c.bf16 %v2039, %v2037
        %v2095 = vpack.c.bf16 %v2042, %v2040
        %v2096 = vpack.c.bf16 %v2043, %v2041
        %v2097 = vpack.c.bf16 %v2076, %v2063
        %v2098 = vpack.c.bf16 %v2077, %v2064
        %v2099 = vpack.c.bf16 %v2089, %v2089
        %v2100 = vpack.c.bf16 %v2090, %v2090
        %v2102 = vsel %vm765, %v2099, 0
        %v2105 = vsel %vm765, %v2100, 0
        %2107 = vmatpush.bf16.msra.mxu0 0
        %2108 = vmatpush.bf16.msra.mxu0 0
        %2109 = vmatpush.bf16.msra.mxu0 0
        %2110 = vmatpush.bf16.msra.mxu0 0
        %2111 = vmatpush.bf16.msra.mxu0 %v2102
        %2112 = vmatpush.bf16.msra.mxu0 %v2097
        %2113 = vmatpush.bf16.msra.mxu0 %v2095
        %2114 = vmatpush.bf16.msra.mxu0 %v2093
        %2115 = vmatmul.bf16.gmra.mxu0 %v1511
        %v2116 = vpop.f32.mrf.mxu0
        %v2117 = vadd.f32 0.0, %v2116
        %v2118 = vpop.f32.mrf.mxu0
        %v2119 = vadd.f32 0.0, %v2118
        %2120 = vmatmul.bf16.gmra.mxu0 %v1514
        %v2121 = vpop.f32.mrf.mxu0
        %v2122 = vadd.f32 0.0, %v2121
        %v2123 = vpop.f32.mrf.mxu0
        %v2124 = vadd.f32 0.0, %v2123
        %2125 = vmatmul.bf16.gmra.mxu0 %v1517
        %v2126 = vpop.f32.mrf.mxu0
        %v2127 = vadd.f32 0.0, %v2126
        %v2128 = vpop.f32.mrf.mxu0
        %v2129 = vadd.f32 0.0, %v2128
        %2130 = vmatmul.bf16.gmra.mxu0 %v1520
        %v2131 = vpop.f32.mrf.mxu0
        %v2132 = vadd.f32 0.0, %v2131
        %v2133 = vpop.f32.mrf.mxu0
        %v2134 = vadd.f32 0.0, %v2133
        %2135 = vdwg.mxu0
        %2136 = vmatpush.bf16.msra.mxu0 0
        %2137 = vmatpush.bf16.msra.mxu0 0
        %2138 = vmatpush.bf16.msra.mxu0 0
        %2139 = vmatpush.bf16.msra.mxu0 0
        %2140 = vmatpush.bf16.msra.mxu0 %v2105
        %2141 = vmatpush.bf16.msra.mxu0 %v2098
        %2142 = vmatpush.bf16.msra.mxu0 %v2096
        %2143 = vmatpush.bf16.msra.mxu0 %v2094
        %2144 = vmatmul.bf16.gmra.mxu0 %v1511
        %v2145 = vpop.f32.mrf.mxu0
        %v2146 = vadd.f32 0.0, %v2145
        %v2147 = vpop.f32.mrf.mxu0
        %v2148 = vadd.f32 0.0, %v2147
        %2149 = vmatmul.bf16.gmra.mxu0 %v1514
        %v2150 = vpop.f32.mrf.mxu0
        %v2151 = vadd.f32 0.0, %v2150
        %v2152 = vpop.f32.mrf.mxu0
        %v2153 = vadd.f32 0.0, %v2152
        %2154 = vmatmul.bf16.gmra.mxu0 %v1517
        %v2155 = vpop.f32.mrf.mxu0
        %v2156 = vadd.f32 0.0, %v2155
        %v2157 = vpop.f32.mrf.mxu0
        %v2158 = vadd.f32 0.0, %v2157
        %2159 = vmatmul.bf16.gmra.mxu0 %v1520
        %v2160 = vpop.f32.mrf.mxu0
        %v2161 = vadd.f32 0.0, %v2160
        %v2162 = vpop.f32.mrf.mxu0
        %v2163 = vadd.f32 0.0, %v2162
        %2164 = vdwg.mxu0
        %v2165 = vmul.f32 %v2117, %v1589
        %v2166 = vmul.f32 %v2146, %v1589
        %v2167 = vmul.f32 %v2119, %v1594
        %v2168 = vmul.f32 %v2148, %v1594
        %v2169 = vmul.f32 %v2122, %v1599
        %v2170 = vmul.f32 %v2151, %v1599
        %v2171 = vmul.f32 %v2124, %v1604
        %v2172 = vmul.f32 %v2153, %v1604
        %v2173 = vmul.f32 %v2127, %v1609
        %v2174 = vmul.f32 %v2156, %v1609
        %v2175 = vmul.f32 %v2129, %v1614
        %v2176 = vmul.f32 %v2158, %v1614
        %v2177 = vmul.f32 %v2132, %v1619
        %v2178 = vmul.f32 %v2161, %v1619
        %v2179 = vmul.f32 %v2134, %v1624
        %v2180 = vmul.f32 %v2163, %v1624
        %v2181 = vadd.f32 %v2165, %v1645
        %v2182 = vadd.f32 %v2166, %v1645
        %v2183 = vadd.f32 %v2167, %v1650
        %v2184 = vadd.f32 %v2168, %v1650
        %v2185 = vadd.f32 %v2169, %v1655
        %v2186 = vadd.f32 %v2170, %v1655
        %v2187 = vadd.f32 %v2171, %v1660
        %v2188 = vadd.f32 %v2172, %v1660
        %v2189 = vadd.f32 %v2173, %v1665
        %v2190 = vadd.f32 %v2174, %v1665
        %v2191 = vadd.f32 %v2175, %v1670
        %v2192 = vadd.f32 %v2176, %v1670
        %v2193 = vadd.f32 %v2177, %v1675
        %v2194 = vadd.f32 %v2178, %v1675
        %v2195 = vadd.f32 %v2179, %v1680
        %v2196 = vadd.f32 %v2180, %v1680
        %v2197 = vmax.f32 %v2181, 0.0
        %v2198 = vmax.f32 %v2182, 0.0
        %v2199 = vmax.f32 %v2183, 0.0
        %v2200 = vmax.f32 %v2184, 0.0
        %v2201 = vmax.f32 %v2185, 0.0
        %v2202 = vmax.f32 %v2186, 0.0
        %v2203 = vmax.f32 %v2187, 0.0
        %v2204 = vmax.f32 %v2188, 0.0
        %v2205 = vmax.f32 %v2189, 0.0
        %v2206 = vmax.f32 %v2190, 0.0
        %v2207 = vmax.f32 %v2191, 0.0
        %v2208 = vmax.f32 %v2192, 0.0
        %v2209 = vmax.f32 %v2193, 0.0
        %v2210 = vmax.f32 %v2194, 0.0
        %v2211 = vmax.f32 %v2195, 0.0
        %v2212 = vmax.f32 %v2196, 0.0
        %v2213 = vmax.f32 %v2197, %v2201
        %v2214 = vmax.f32 %v2198, %v2202
        %v2215 = vmax.f32 %v2199, %v2203
        %v2216 = vmax.f32 %v2200, %v2204
        %s2217 = scalar_lea.vmem [#allocation3], 336
        %2218 = vst [vmem:[%s2217] sm:$0xff] %v2213
        %2219 = vst [vmem:[%s2217 + $0x8] sm:$0xff] %v2214
        %2220 = vst [vmem:[%s2217 + $0x18] sm:$0xff] %v2215
        %2221 = vst [vmem:[%s2217 + $0x20] sm:$0xff] %v2216
        %v2222 = vmax.f32 %v2205, %v2209
        %v2223 = vmax.f32 %v2206, %v2210
        %v2224 = vmax.f32 %v2207, %v2211
        %v2225 = vmax.f32 %v2208, %v2212
        %2230 = vrot.lane.b32.xlu0 %v2222, 1
        %v2231 = vpop.permute.xlu0 %2230
        %2232 = vrot.lane.b32.xlu0 %v2223, 1
        %v2233 = vpop.permute.xlu0 %2232
        %2234 = vrot.lane.b32.xlu0 %v2224, 1
        %v2235 = vpop.permute.xlu0 %2234
        %2236 = vrot.lane.b32.xlu0 %v2225, 1
        %v2237 = vpop.permute.xlu0 %2236
        %v2238 = vsel %vm1414, %v2231, %v2233
        %v2239 = vsel %vm1414, %v2235, %v2237
        %2246 = vst.msk [vmem:[#allocation3] sm:$0xff] %vm1419, %v2231
        %2247 = vst [vmem:[#allocation3 + $0x8] sm:$0xff] %v2238
        %2248 = vst.msk [vmem:[#allocation3 + $0x10] sm:$0xff] %vm1414, %v2233
        %2249 = vst.msk [vmem:[#allocation3 + $0x18] sm:$0xff] %vm1419, %v2235
        %2250 = vst [vmem:[#allocation3 + $0x20] sm:$0xff] %v2239
        %2251 = vst.msk [vmem:[#allocation3 + $0x28] sm:$0xff] %vm1414, %v2237
        %2252 = vst.msk [vmem:[#allocation3] sm:$0xff] %vm1414, 0.0
        %2253 = vst.msk [vmem:[#allocation3 + $0x18] sm:$0xff] %vm1414, 0.0
        %v2254 = vld [vmem:[#allocation13] sm:$0xf]
        %v2255 = vld [vmem:[#allocation13 + $0x4] sm:$0xf]
        %v2256 = vld [vmem:[#allocation13 + $0x8] sm:$0xf]
        %v2257 = vld [vmem:[#allocation13 + $0xc] sm:$0xf]
        %v2258 = vld [vmem:[#allocation13 + $0x10] sm:$0xf]
        %v2259 = vld [vmem:[#allocation13 + $0x14] sm:$0xf]
        %v2260 = vld [vmem:[#allocation13 + $0x18] sm:$0xf]
        %v2261 = vld [vmem:[#allocation13 + $0x1c] sm:$0xf]
        %v2262 = vld [vmem:[#allocation13 + $0x20] sm:$0xf]
        %v2263 = vld [vmem:[#allocation13 + $0x24] sm:$0xf]
        %v2264 = vld [vmem:[#allocation13 + $0x28] sm:$0xf]
        %v2265 = vld [vmem:[#allocation13 + $0x2c] sm:$0xf]
        %v2266 = vld [vmem:[#allocation13 + $0x30] sm:$0xf]
        %v2267 = vld [vmem:[#allocation13 + $0x34] sm:$0xf]
        %v2268 = vld [vmem:[#allocation13 + $0x38] sm:$0xf]
        %v2269 = vld [vmem:[#allocation13 + $0x3c] sm:$0xf]
        %v2270 = vld [vmem:[#allocation15] sm:$0xff]
        %v2271 = vld [vmem:[#allocation15 + $0x8] sm:$0xff]
        %v2272 = vld [vmem:[#allocation15 + $0x10] sm:$0xff]
        %v2273 = vld [vmem:[#allocation15 + $0x18] sm:$0xff]
        %v2274 = vld [vmem:[#allocation15 + $0x20] sm:$0xff]
        %v2275 = vld [vmem:[#allocation15 + $0x28] sm:$0xff]
        %v2276 = vld [vmem:[#allocation15 + $0x30] sm:$0xff]
        %v2277 = vld [vmem:[#allocation15 + $0x38] sm:$0xff]
        %v2278 = vld [vmem:[#allocation15 + $0x40] sm:$0xff]
        %v2279 = vld [vmem:[#allocation15 + $0x48] sm:$0xff]
        %v2280 = vld [vmem:[#allocation15 + $0x50] sm:$0xff]
        %v2281 = vld [vmem:[#allocation15 + $0x58] sm:$0xff]
        %v2282 = vld [vmem:[#allocation15 + $0x60] sm:$0xff]
        %v2283 = vld [vmem:[#allocation15 + $0x68] sm:$0xff]
        %v2284 = vld [vmem:[#allocation15 + $0x70] sm:$0xff]
        %v2285 = vld [vmem:[#allocation15 + $0x78] sm:$0xff]
        %v2286 = vld [vmem:[%s9] sm:$0xff]
        %v2287 = vld [vmem:[%s9 + $0x8] sm:$0xff]
        %v2288 = vld [vmem:[%s9 + $0x10] sm:$0xff]
        %v2289 = vld [vmem:[%s9 + $0x18] sm:$0xff]
        %v2290 = vld [vmem:[%s9 + $0x20] sm:$0xff]
        %v2291 = vld [vmem:[%s9 + $0x28] sm:$0xff]
        %v2292 = vld [vmem:[%s9 + $0x30] sm:$0xff]
        %v2293 = vld [vmem:[%s9 + $0x38] sm:$0xff]
        %v2294 = vld [vmem:[%s9 + $0x40] sm:$0xff]
        %v2295 = vld [vmem:[%s9 + $0x48] sm:$0xff]
        %v2296 = vld [vmem:[%s9 + $0x50] sm:$0xff]
        %v2297 = vld [vmem:[%s9 + $0x58] sm:$0xff]
        %v2298 = vld [vmem:[%s9 + $0x60] sm:$0xff]
        %v2299 = vld [vmem:[%s9 + $0x68] sm:$0xff]
        %v2300 = vld [vmem:[%s9 + $0x70] sm:$0xff]
        %v2301 = vld [vmem:[%s9 + $0x78] sm:$0xff]
        %v2302 = vld [vmem:[#allocation3] sm:$0xff]
        %v2303 = vld [vmem:[#allocation3 + $0x8] sm:$0xff]
        %v2304 = vld [vmem:[#allocation3 + $0x18] sm:$0xff]
        %v2305 = vld [vmem:[#allocation3 + $0x20] sm:$0xff]
        %v2306 = vld [vmem:[%s1718] sm:$0xff]
        %v2307 = vld [vmem:[%s1718 + $0x8] sm:$0xff]
        %v2308 = vld [vmem:[%s1718 + $0x18] sm:$0xff]
        %v2309 = vld [vmem:[%s1718 + $0x20] sm:$0xff]
        %v2310 = vld [vmem:[%s1727] sm:$0xff]
        %v2311 = vld [vmem:[%s1727 + $0x8] sm:$0xff]
        %v2312 = vld [vmem:[%s1727 + $0x18] sm:$0xff]
        %v2313 = vld [vmem:[%s1727 + $0x20] sm:$0xff]
        %v2314 = vld [vmem:[%s1870] sm:$0xff]
        %v2315 = vld [vmem:[%s1870 + $0x8] sm:$0xff]
        %v2316 = vld [vmem:[%s1870 + $0x18] sm:$0xff]
        %v2317 = vld [vmem:[%s1870 + $0x20] sm:$0xff]
        %v2318 = vld [vmem:[%s1879] sm:$0xff]
        %v2319 = vld [vmem:[%s1879 + $0x8] sm:$0xff]
        %v2320 = vld [vmem:[%s1879 + $0x18] sm:$0xff]
        %v2321 = vld [vmem:[%s1879 + $0x20] sm:$0xff]
        %v2322 = vpack.c.bf16 %v2304, %v2302
        %v2323 = vpack.c.bf16 %v2305, %v2303
        %v2324 = vpack.c.bf16 %v2308, %v2306
        %v2325 = vpack.c.bf16 %v2309, %v2307
        %v2326 = vpack.c.bf16 %v2312, %v2310
        %v2327 = vpack.c.bf16 %v2313, %v2311
        %v2328 = vpack.c.bf16 %v2316, %v2314
        %v2329 = vpack.c.bf16 %v2317, %v2315
        %v2330 = vpack.c.bf16 %v2320, %v2318
        %v2331 = vpack.c.bf16 %v2321, %v2319
        %v2348 = vunpack.c.l.b16 %v2254
        %v2349 = vunpack.c.l.b16 %v2255
        %v2350 = vunpack.c.l.b16 %v2256
        %v2351 = vunpack.c.l.b16 %v2257
        %v2352 = vunpack.c.l.b16 %v2258
        %v2353 = vunpack.c.l.b16 %v2259
        %v2354 = vunpack.c.l.b16 %v2260
        %v2355 = vunpack.c.l.b16 %v2261
        %v2356 = vunpack.c.l.b16 %v2262
        %v2357 = vunpack.c.l.b16 %v2263
        %v2358 = vunpack.c.l.b16 %v2264
        %v2359 = vunpack.c.l.b16 %v2265
        %v2360 = vunpack.c.l.b16 %v2266
        %v2361 = vunpack.c.l.b16 %v2267
        %v2362 = vunpack.c.l.b16 %v2268
        %v2363 = vunpack.c.l.b16 %v2269
        %v2364 = vpack.c.b16 %v2349, %v2348
        %v2365 = vpack.c.b16 %v2351, %v2350
        %v2366 = vpack.c.b16 %v2353, %v2352
        %v2367 = vpack.c.b16 %v2355, %v2354
        %v2368 = vpack.c.b16 %v2357, %v2356
        %v2369 = vpack.c.b16 %v2359, %v2358
        %v2370 = vpack.c.b16 %v2361, %v2360
        %v2371 = vpack.c.b16 %v2363, %v2362
        %vm2372 = vcmask 654336
        %v2374 = vsel %vm2372, %v2364, 0
        %v2377 = vsel %vm2372, %v2365, 0
        %v2380 = vsel %vm2372, %v2366, 0
        %v2383 = vsel %vm2372, %v2367, 0
        %v2386 = vsel %vm2372, %v2368, 0
        %v2389 = vsel %vm2372, %v2369, 0
        %v2392 = vsel %vm2372, %v2370, 0
        %v2395 = vsel %vm2372, %v2371, 0
        %2397 = vmatpush.bf16.msra.mxu0 0
        %2398 = vmatpush.bf16.msra.mxu0 0
        %2399 = vmatpush.bf16.msra.mxu0 0
        %2400 = vmatpush.bf16.msra.mxu0 %v2330
        %2401 = vmatpush.bf16.msra.mxu0 %v2328
        %2402 = vmatpush.bf16.msra.mxu0 %v2326
        %2403 = vmatpush.bf16.msra.mxu0 %v2324
        %2404 = vmatpush.bf16.msra.mxu0 %v2322
        %2405 = vmatmul.bf16.gmra.mxu0 %v2374
        %v2406 = vpop.f32.mrf.mxu0
        %v2407 = vadd.f32 0.0, %v2406
        %v2408 = vpop.f32.mrf.mxu0
        %v2409 = vadd.f32 0.0, %v2408
        %2410 = vmatmul.bf16.gmra.mxu0 %v2377
        %v2411 = vpop.f32.mrf.mxu0
        %v2412 = vadd.f32 0.0, %v2411
        %v2413 = vpop.f32.mrf.mxu0
        %v2414 = vadd.f32 0.0, %v2413
        %2415 = vmatmul.bf16.gmra.mxu0 %v2380
        %v2416 = vpop.f32.mrf.mxu0
        %v2417 = vadd.f32 0.0, %v2416
        %v2418 = vpop.f32.mrf.mxu0
        %v2419 = vadd.f32 0.0, %v2418
        %2420 = vmatmul.bf16.gmra.mxu0 %v2383
        %v2421 = vpop.f32.mrf.mxu0
        %v2422 = vadd.f32 0.0, %v2421
        %v2423 = vpop.f32.mrf.mxu0
        %v2424 = vadd.f32 0.0, %v2423
        %2425 = vmatmul.bf16.gmra.mxu0 %v2386
        %v2426 = vpop.f32.mrf.mxu0
        %v2427 = vadd.f32 0.0, %v2426
        %v2428 = vpop.f32.mrf.mxu0
        %v2429 = vadd.f32 0.0, %v2428
        %2430 = vmatmul.bf16.gmra.mxu0 %v2389
        %v2431 = vpop.f32.mrf.mxu0
        %v2432 = vadd.f32 0.0, %v2431
        %v2433 = vpop.f32.mrf.mxu0
        %v2434 = vadd.f32 0.0, %v2433
        %2435 = vmatmul.bf16.gmra.mxu0 %v2392
        %v2436 = vpop.f32.mrf.mxu0
        %v2437 = vadd.f32 0.0, %v2436
        %v2438 = vpop.f32.mrf.mxu0
        %v2439 = vadd.f32 0.0, %v2438
        %2440 = vmatmul.bf16.gmra.mxu0 %v2395
        %v2441 = vpop.f32.mrf.mxu0
        %v2442 = vadd.f32 0.0, %v2441
        %v2443 = vpop.f32.mrf.mxu0
        %v2444 = vadd.f32 0.0, %v2443
        %2445 = vdwg.mxu0
        %2446 = vmatpush.bf16.msra.mxu0 0
        %2447 = vmatpush.bf16.msra.mxu0 0
        %2448 = vmatpush.bf16.msra.mxu0 0
        %2449 = vmatpush.bf16.msra.mxu0 %v2331
        %2450 = vmatpush.bf16.msra.mxu0 %v2329
        %2451 = vmatpush.bf16.msra.mxu0 %v2327
        %2452 = vmatpush.bf16.msra.mxu0 %v2325
        %2453 = vmatpush.bf16.msra.mxu0 %v2323
        %2454 = vmatmul.bf16.gmra.mxu0 %v2374
        %v2455 = vpop.f32.mrf.mxu0
        %v2456 = vadd.f32 0.0, %v2455
        %v2457 = vpop.f32.mrf.mxu0
        %v2458 = vadd.f32 0.0, %v2457
        %2459 = vmatmul.bf16.gmra.mxu0 %v2377
        %v2460 = vpop.f32.mrf.mxu0
        %v2461 = vadd.f32 0.0, %v2460
        %v2462 = vpop.f32.mrf.mxu0
        %v2463 = vadd.f32 0.0, %v2462
        %2464 = vmatmul.bf16.gmra.mxu0 %v2380
        %v2465 = vpop.f32.mrf.mxu0
        %v2466 = vadd.f32 0.0, %v2465
        %v2467 = vpop.f32.mrf.mxu0
        %v2468 = vadd.f32 0.0, %v2467
        %2469 = vmatmul.bf16.gmra.mxu0 %v2383
        %v2470 = vpop.f32.mrf.mxu0
        %v2471 = vadd.f32 0.0, %v2470
        %v2472 = vpop.f32.mrf.mxu0
        %v2473 = vadd.f32 0.0, %v2472
        %2474 = vmatmul.bf16.gmra.mxu0 %v2386
        %v2475 = vpop.f32.mrf.mxu0
        %v2476 = vadd.f32 0.0, %v2475
        %v2477 = vpop.f32.mrf.mxu0
        %v2478 = vadd.f32 0.0, %v2477
        %2479 = vmatmul.bf16.gmra.mxu0 %v2389
        %v2480 = vpop.f32.mrf.mxu0
        %v2481 = vadd.f32 0.0, %v2480
        %v2482 = vpop.f32.mrf.mxu0
        %v2483 = vadd.f32 0.0, %v2482
        %2484 = vmatmul.bf16.gmra.mxu0 %v2392
        %v2485 = vpop.f32.mrf.mxu0
        %v2486 = vadd.f32 0.0, %v2485
        %v2487 = vpop.f32.mrf.mxu0
        %v2488 = vadd.f32 0.0, %v2487
        %2489 = vmatmul.bf16.gmra.mxu0 %v2395
        %v2490 = vpop.f32.mrf.mxu0
        %v2491 = vadd.f32 0.0, %v2490
        %v2492 = vpop.f32.mrf.mxu0
        %v2493 = vadd.f32 0.0, %v2492
        %2494 = vdwg.mxu0
        %2496 = vset.pattern.permute.xlu0 0
        %2497 = vperm.xlu0 %2496, %v2270
        %v2498 = vpop.permute.xlu0 %2497
        %2501 = vset.pattern.permute.xlu0 0
        %2502 = vperm.xlu0 %2501, %v2271
        %v2503 = vpop.permute.xlu0 %2502
        %2506 = vset.pattern.permute.xlu0 0
        %2507 = vperm.xlu0 %2506, %v2272
        %v2508 = vpop.permute.xlu0 %2507
        %2511 = vset.pattern.permute.xlu0 0
        %2512 = vperm.xlu0 %2511, %v2273
        %v2513 = vpop.permute.xlu0 %2512
        %2516 = vset.pattern.permute.xlu0 0
        %2517 = vperm.xlu0 %2516, %v2274
        %v2518 = vpop.permute.xlu0 %2517
        %2521 = vset.pattern.permute.xlu0 0
        %2522 = vperm.xlu0 %2521, %v2275
        %v2523 = vpop.permute.xlu0 %2522
        %2526 = vset.pattern.permute.xlu0 0
        %2527 = vperm.xlu0 %2526, %v2276
        %v2528 = vpop.permute.xlu0 %2527
        %2531 = vset.pattern.permute.xlu0 0
        %2532 = vperm.xlu0 %2531, %v2277
        %v2533 = vpop.permute.xlu0 %2532
        %2536 = vset.pattern.permute.xlu0 0
        %2537 = vperm.xlu0 %2536, %v2278
        %v2538 = vpop.permute.xlu0 %2537
        %2541 = vset.pattern.permute.xlu0 0
        %2542 = vperm.xlu0 %2541, %v2279
        %v2543 = vpop.permute.xlu0 %2542
        %2546 = vset.pattern.permute.xlu0 0
        %2547 = vperm.xlu0 %2546, %v2280
        %v2548 = vpop.permute.xlu0 %2547
        %2551 = vset.pattern.permute.xlu0 0
        %2552 = vperm.xlu0 %2551, %v2281
        %v2553 = vpop.permute.xlu0 %2552
        %2556 = vset.pattern.permute.xlu0 0
        %2557 = vperm.xlu0 %2556, %v2282
        %v2558 = vpop.permute.xlu0 %2557
        %2561 = vset.pattern.permute.xlu0 0
        %2562 = vperm.xlu0 %2561, %v2283
        %v2563 = vpop.permute.xlu0 %2562
        %2566 = vset.pattern.permute.xlu0 0
        %2567 = vperm.xlu0 %2566, %v2284
        %v2568 = vpop.permute.xlu0 %2567
        %2571 = vset.pattern.permute.xlu0 0
        %2572 = vperm.xlu0 %2571, %v2285
        %v2573 = vpop.permute.xlu0 %2572
        %v2575 = vmul.f32 %v2407, %v2498
        %v2576 = vmul.f32 %v2456, %v2498
        %v2577 = vmul.f32 %v2409, %v2503
        %v2578 = vmul.f32 %v2458, %v2503
        %v2579 = vmul.f32 %v2412, %v2508
        %v2580 = vmul.f32 %v2461, %v2508
        %v2581 = vmul.f32 %v2414, %v2513
        %v2582 = vmul.f32 %v2463, %v2513
        %v2583 = vmul.f32 %v2417, %v2518
        %v2584 = vmul.f32 %v2466, %v2518
        %v2585 = vmul.f32 %v2419, %v2523
        %v2586 = vmul.f32 %v2468, %v2523
        %v2587 = vmul.f32 %v2422, %v2528
        %v2588 = vmul.f32 %v2471, %v2528
        %v2589 = vmul.f32 %v2424, %v2533
        %v2590 = vmul.f32 %v2473, %v2533
        %v2591 = vmul.f32 %v2427, %v2538
        %v2592 = vmul.f32 %v2476, %v2538
        %v2593 = vmul.f32 %v2429, %v2543
        %v2594 = vmul.f32 %v2478, %v2543
        %v2595 = vmul.f32 %v2432, %v2548
        %v2596 = vmul.f32 %v2481, %v2548
        %v2597 = vmul.f32 %v2434, %v2553
        %v2598 = vmul.f32 %v2483, %v2553
        %v2599 = vmul.f32 %v2437, %v2558
        %v2600 = vmul.f32 %v2486, %v2558
        %v2601 = vmul.f32 %v2439, %v2563
        %v2602 = vmul.f32 %v2488, %v2563
        %v2603 = vmul.f32 %v2442, %v2568
        %v2604 = vmul.f32 %v2491, %v2568
        %v2605 = vmul.f32 %v2444, %v2573
        %v2606 = vmul.f32 %v2493, %v2573
        %2608 = vset.pattern.permute.xlu0 0
        %2609 = vperm.xlu0 %2608, %v2286
        %v2610 = vpop.permute.xlu0 %2609
        %2613 = vset.pattern.permute.xlu0 0
        %2614 = vperm.xlu0 %2613, %v2287
        %v2615 = vpop.permute.xlu0 %2614
        %2618 = vset.pattern.permute.xlu0 0
        %2619 = vperm.xlu0 %2618, %v2288
        %v2620 = vpop.permute.xlu0 %2619
        %2623 = vset.pattern.permute.xlu0 0
        %2624 = vperm.xlu0 %2623, %v2289
        %v2625 = vpop.permute.xlu0 %2624
        %2628 = vset.pattern.permute.xlu0 0
        %2629 = vperm.xlu0 %2628, %v2290
        %v2630 = vpop.permute.xlu0 %2629
        %2633 = vset.pattern.permute.xlu0 0
        %2634 = vperm.xlu0 %2633, %v2291
        %v2635 = vpop.permute.xlu0 %2634
        %2638 = vset.pattern.permute.xlu0 0
        %2639 = vperm.xlu0 %2638, %v2292
        %v2640 = vpop.permute.xlu0 %2639
        %2643 = vset.pattern.permute.xlu0 0
        %2644 = vperm.xlu0 %2643, %v2293
        %v2645 = vpop.permute.xlu0 %2644
        %2648 = vset.pattern.permute.xlu0 0
        %2649 = vperm.xlu0 %2648, %v2294
        %v2650 = vpop.permute.xlu0 %2649
        %2653 = vset.pattern.permute.xlu0 0
        %2654 = vperm.xlu0 %2653, %v2295
        %v2655 = vpop.permute.xlu0 %2654
        %2658 = vset.pattern.permute.xlu0 0
        %2659 = vperm.xlu0 %2658, %v2296
        %v2660 = vpop.permute.xlu0 %2659
        %2663 = vset.pattern.permute.xlu0 0
        %2664 = vperm.xlu0 %2663, %v2297
        %v2665 = vpop.permute.xlu0 %2664
        %2668 = vset.pattern.permute.xlu0 0
        %2669 = vperm.xlu0 %2668, %v2298
        %v2670 = vpop.permute.xlu0 %2669
        %2673 = vset.pattern.permute.xlu0 0
        %2674 = vperm.xlu0 %2673, %v2299
        %v2675 = vpop.permute.xlu0 %2674
        %2678 = vset.pattern.permute.xlu0 0
        %2679 = vperm.xlu0 %2678, %v2300
        %v2680 = vpop.permute.xlu0 %2679
        %2683 = vset.pattern.permute.xlu0 0
        %2684 = vperm.xlu0 %2683, %v2301
        %v2685 = vpop.permute.xlu0 %2684
        %v2687 = vadd.f32 %v2575, %v2610
        %v2688 = vadd.f32 %v2576, %v2610
        %v2689 = vadd.f32 %v2577, %v2615
        %v2690 = vadd.f32 %v2578, %v2615
        %v2691 = vadd.f32 %v2579, %v2620
        %v2692 = vadd.f32 %v2580, %v2620
        %v2693 = vadd.f32 %v2581, %v2625
        %v2694 = vadd.f32 %v2582, %v2625
        %v2695 = vadd.f32 %v2583, %v2630
        %v2696 = vadd.f32 %v2584, %v2630
        %v2697 = vadd.f32 %v2585, %v2635
        %v2698 = vadd.f32 %v2586, %v2635
        %v2699 = vadd.f32 %v2587, %v2640
        %v2700 = vadd.f32 %v2588, %v2640
        %v2701 = vadd.f32 %v2589, %v2645
        %v2702 = vadd.f32 %v2590, %v2645
        %v2703 = vadd.f32 %v2591, %v2650
        %v2704 = vadd.f32 %v2592, %v2650
        %v2705 = vadd.f32 %v2593, %v2655
        %v2706 = vadd.f32 %v2594, %v2655
        %v2707 = vadd.f32 %v2595, %v2660
        %v2708 = vadd.f32 %v2596, %v2660
        %v2709 = vadd.f32 %v2597, %v2665
        %v2710 = vadd.f32 %v2598, %v2665
        %v2711 = vadd.f32 %v2599, %v2670
        %v2712 = vadd.f32 %v2600, %v2670
        %v2713 = vadd.f32 %v2601, %v2675
        %v2714 = vadd.f32 %v2602, %v2675
        %v2715 = vadd.f32 %v2603, %v2680
        %v2716 = vadd.f32 %v2604, %v2680
        %v2717 = vadd.f32 %v2605, %v2685
        %v2718 = vadd.f32 %v2606, %v2685
        %v2719 = vmax.f32 %v2687, 0.0
        %v2720 = vmax.f32 %v2688, 0.0
        %v2721 = vmax.f32 %v2689, 0.0
        %v2722 = vmax.f32 %v2690, 0.0
        %v2723 = vmax.f32 %v2691, 0.0
        %v2724 = vmax.f32 %v2692, 0.0
        %v2725 = vmax.f32 %v2693, 0.0
        %v2726 = vmax.f32 %v2694, 0.0
        %v2727 = vmax.f32 %v2695, 0.0
        %v2728 = vmax.f32 %v2696, 0.0
        %v2729 = vmax.f32 %v2697, 0.0
        %v2730 = vmax.f32 %v2698, 0.0
        %v2731 = vmax.f32 %v2699, 0.0
        %v2732 = vmax.f32 %v2700, 0.0
        %v2733 = vmax.f32 %v2701, 0.0
        %v2734 = vmax.f32 %v2702, 0.0
        %v2735 = vmax.f32 %v2703, 0.0
        %v2736 = vmax.f32 %v2704, 0.0
        %v2737 = vmax.f32 %v2705, 0.0
        %v2738 = vmax.f32 %v2706, 0.0
        %v2739 = vmax.f32 %v2707, 0.0
        %v2740 = vmax.f32 %v2708, 0.0
        %v2741 = vmax.f32 %v2709, 0.0
        %v2742 = vmax.f32 %v2710, 0.0
        %v2743 = vmax.f32 %v2711, 0.0
        %v2744 = vmax.f32 %v2712, 0.0
        %v2745 = vmax.f32 %v2713, 0.0
        %v2746 = vmax.f32 %v2714, 0.0
        %v2747 = vmax.f32 %v2715, 0.0
        %v2748 = vmax.f32 %v2716, 0.0
        %v2749 = vmax.f32 %v2717, 0.0
        %v2750 = vmax.f32 %v2718, 0.0
        %v2751 = vmax.f32 %v2719, %v2727
        %v2752 = vmax.f32 %v2720, %v2728
        %v2753 = vmax.f32 %v2721, %v2729
        %v2754 = vmax.f32 %v2722, %v2730
        %v2755 = vmax.f32 %v2723, %v2731
        %v2756 = vmax.f32 %v2724, %v2732
        %v2757 = vmax.f32 %v2725, %v2733
        %v2758 = vmax.f32 %v2726, %v2734
        %v2759 = vmax.f32 %v2735, %v2743
        %v2760 = vmax.f32 %v2736, %v2744
        %v2761 = vmax.f32 %v2737, %v2745
        %v2762 = vmax.f32 %v2738, %v2746
        %v2763 = vmax.f32 %v2739, %v2747
        %v2764 = vmax.f32 %v2740, %v2748
        %v2765 = vmax.f32 %v2741, %v2749
        %v2766 = vmax.f32 %v2742, %v2750
        %v2767 = vmax.f32 %v2751, %v2759
        %v2768 = vmax.f32 %v2752, %v2760
        %v2769 = vmax.f32 %v2753, %v2761
        %v2770 = vmax.f32 %v2754, %v2762
        %v2771 = vmax.f32 %v2755, %v2763
        %v2772 = vmax.f32 %v2756, %v2764
        %v2773 = vmax.f32 %v2757, %v2765
        %v2774 = vmax.f32 %v2758, %v2766
        %v2775 = vld [vmem:[%s2022] sm:$0xff]
        %v2776 = vld [vmem:[%s2022 + $0x8] sm:$0xff]
        %v2777 = vld [vmem:[%s2022 + $0x18] sm:$0xff]
        %v2778 = vld [vmem:[%s2022 + $0x20] sm:$0xff]
        %v2779 = vld [vmem:[%s2031] sm:$0xff]
        %v2780 = vld [vmem:[%s2031 + $0x8] sm:$0xff]
        %v2781 = vld [vmem:[%s2031 + $0x18] sm:$0xff]
        %v2782 = vld [vmem:[%s2031 + $0x20] sm:$0xff]
        %v2783 = vld [vmem:[%s2217] sm:$0xff]
        %v2784 = vld [vmem:[%s2217 + $0x8] sm:$0xff]
        %v2785 = vld [vmem:[%s2217 + $0x18] sm:$0xff]
        %v2786 = vld [vmem:[%s2217 + $0x20] sm:$0xff]
        %v2787 = vld [vmem:[#allocation3] sm:$0xff]
        %v2788 = vld [vmem:[#allocation3 + $0x8] sm:$0xff]
        %v2789 = vld [vmem:[#allocation3 + $0x10] sm:$0xff]
        %v2790 = vld [vmem:[#allocation3 + $0x18] sm:$0xff]
        %v2791 = vld [vmem:[#allocation3 + $0x20] sm:$0xff]
        %v2792 = vld [vmem:[#allocation3 + $0x28] sm:$0xff]
        %2799 = vrot.lane.b32.xlu0 %v2787, 127
        %v2800 = vpop.permute.xlu0 %2799
        %2801 = vrot.lane.b32.xlu0 %v2788, 127
        %v2802 = vpop.permute.xlu0 %2801
        %2803 = vrot.lane.b32.xlu0 %v2789, 127
        %v2804 = vpop.permute.xlu0 %2803
        %2805 = vrot.lane.b32.xlu0 %v2790, 127
        %v2806 = vpop.permute.xlu0 %2805
        %2807 = vrot.lane.b32.xlu0 %v2791, 127
        %v2808 = vpop.permute.xlu0 %2807
        %2809 = vrot.lane.b32.xlu0 %v2792, 127
        %v2810 = vpop.permute.xlu0 %2809
        %v2811 = vsel %vm2062, %v2800, %v2802
        %v2812 = vsel %vm2062, %v2802, %v2804
        %v2813 = vsel %vm2062, %v2806, %v2808
        %v2814 = vsel %vm2062, %v2808, %v2810
        %v2819 = vpack.c.bf16 %v2777, %v2775
        %v2820 = vpack.c.bf16 %v2778, %v2776
        %v2821 = vpack.c.bf16 %v2781, %v2779
        %v2822 = vpack.c.bf16 %v2782, %v2780
        %v2823 = vpack.c.bf16 %v2785, %v2783
        %v2824 = vpack.c.bf16 %v2786, %v2784
        %v2825 = vpack.c.bf16 %v2813, %v2811
        %v2826 = vpack.c.bf16 %v2814, %v2812
        %2827 = vmatpush.bf16.msra.mxu0 0
        %2828 = vmatpush.bf16.msra.mxu0 0
        %2829 = vmatpush.bf16.msra.mxu0 0
        %2830 = vmatpush.bf16.msra.mxu0 %v2825
        %2831 = vmatpush.bf16.msra.mxu0 %v2823
        %2832 = vmatpush.bf16.msra.mxu0 %v2821
        %2833 = vmatpush.bf16.msra.mxu0 %v2819
        %2834 = vmatpush.bf16.msra.mxu0 %v2330
        %2835 = vmatmul.bf16.gmra.mxu0 %v2374
        %v2836 = vpop.f32.mrf.mxu0
        %v2837 = vadd.f32 0.0, %v2836
        %v2838 = vpop.f32.mrf.mxu0
        %v2839 = vadd.f32 0.0, %v2838
        %2840 = vmatmul.bf16.gmra.mxu0 %v2377
        %v2841 = vpop.f32.mrf.mxu0
        %v2842 = vadd.f32 0.0, %v2841
        %v2843 = vpop.f32.mrf.mxu0
        %v2844 = vadd.f32 0.0, %v2843
        %2845 = vmatmul.bf16.gmra.mxu0 %v2380
        %v2846 = vpop.f32.mrf.mxu0
        %v2847 = vadd.f32 0.0, %v2846
        %v2848 = vpop.f32.mrf.mxu0
        %v2849 = vadd.f32 0.0, %v2848
        %2850 = vmatmul.bf16.gmra.mxu0 %v2383
        %v2851 = vpop.f32.mrf.mxu0
        %v2852 = vadd.f32 0.0, %v2851
        %v2853 = vpop.f32.mrf.mxu0
        %v2854 = vadd.f32 0.0, %v2853
        %2855 = vmatmul.bf16.gmra.mxu0 %v2386
        %v2856 = vpop.f32.mrf.mxu0
        %v2857 = vadd.f32 0.0, %v2856
        %v2858 = vpop.f32.mrf.mxu0
        %v2859 = vadd.f32 0.0, %v2858
        %2860 = vmatmul.bf16.gmra.mxu0 %v2389
        %v2861 = vpop.f32.mrf.mxu0
        %v2862 = vadd.f32 0.0, %v2861
        %v2863 = vpop.f32.mrf.mxu0
        %v2864 = vadd.f32 0.0, %v2863
        %2865 = vmatmul.bf16.gmra.mxu0 %v2392
        %v2866 = vpop.f32.mrf.mxu0
        %v2867 = vadd.f32 0.0, %v2866
        %v2868 = vpop.f32.mrf.mxu0
        %v2869 = vadd.f32 0.0, %v2868
        %2870 = vmatmul.bf16.gmra.mxu0 %v2395
        %v2871 = vpop.f32.mrf.mxu0
        %v2872 = vadd.f32 0.0, %v2871
        %v2873 = vpop.f32.mrf.mxu0
        %v2874 = vadd.f32 0.0, %v2873
        %2875 = vdwg.mxu0
        %2876 = vmatpush.bf16.msra.mxu0 0
        %2877 = vmatpush.bf16.msra.mxu0 0
        %2878 = vmatpush.bf16.msra.mxu0 0
        %2879 = vmatpush.bf16.msra.mxu0 %v2826
        %2880 = vmatpush.bf16.msra.mxu0 %v2824
        %2881 = vmatpush.bf16.msra.mxu0 %v2822
        %2882 = vmatpush.bf16.msra.mxu0 %v2820
        %2883 = vmatpush.bf16.msra.mxu0 %v2331
        %2884 = vmatmul.bf16.gmra.mxu0 %v2374
        %v2885 = vpop.f32.mrf.mxu0
        %v2886 = vadd.f32 0.0, %v2885
        %v2887 = vpop.f32.mrf.mxu0
        %v2888 = vadd.f32 0.0, %v2887
        %2889 = vmatmul.bf16.gmra.mxu0 %v2377
        %v2890 = vpop.f32.mrf.mxu0
        %v2891 = vadd.f32 0.0, %v2890
        %v2892 = vpop.f32.mrf.mxu0
        %v2893 = vadd.f32 0.0, %v2892
        %2894 = vmatmul.bf16.gmra.mxu0 %v2380
        %v2895 = vpop.f32.mrf.mxu0
        %v2896 = vadd.f32 0.0, %v2895
        %v2897 = vpop.f32.mrf.mxu0
        %v2898 = vadd.f32 0.0, %v2897
        %2899 = vmatmul.bf16.gmra.mxu0 %v2383
        %v2900 = vpop.f32.mrf.mxu0
        %v2901 = vadd.f32 0.0, %v2900
        %v2902 = vpop.f32.mrf.mxu0
        %v2903 = vadd.f32 0.0, %v2902
        %2904 = vmatmul.bf16.gmra.mxu0 %v2386
        %v2905 = vpop.f32.mrf.mxu0
        %v2906 = vadd.f32 0.0, %v2905
        %v2907 = vpop.f32.mrf.mxu0
        %v2908 = vadd.f32 0.0, %v2907
        %2909 = vmatmul.bf16.gmra.mxu0 %v2389
        %v2910 = vpop.f32.mrf.mxu0
        %v2911 = vadd.f32 0.0, %v2910
        %v2912 = vpop.f32.mrf.mxu0
        %v2913 = vadd.f32 0.0, %v2912
        %2914 = vmatmul.bf16.gmra.mxu0 %v2392
        %v2915 = vpop.f32.mrf.mxu0
        %v2916 = vadd.f32 0.0, %v2915
        %v2917 = vpop.f32.mrf.mxu0
        %v2918 = vadd.f32 0.0, %v2917
        %2919 = vmatmul.bf16.gmra.mxu0 %v2395
        %v2920 = vpop.f32.mrf.mxu0
        %v2921 = vadd.f32 0.0, %v2920
        %v2922 = vpop.f32.mrf.mxu0
        %v2923 = vadd.f32 0.0, %v2922
        %2924 = vdwg.mxu0
        %v2925 = vmul.f32 %v2837, %v2498
        %v2926 = vmul.f32 %v2886, %v2498
        %v2927 = vmul.f32 %v2839, %v2503
        %v2928 = vmul.f32 %v2888, %v2503
        %v2929 = vmul.f32 %v2842, %v2508
        %v2930 = vmul.f32 %v2891, %v2508
        %v2931 = vmul.f32 %v2844, %v2513
        %v2932 = vmul.f32 %v2893, %v2513
        %v2933 = vmul.f32 %v2847, %v2518
        %v2934 = vmul.f32 %v2896, %v2518
        %v2935 = vmul.f32 %v2849, %v2523
        %v2936 = vmul.f32 %v2898, %v2523
        %v2937 = vmul.f32 %v2852, %v2528
        %v2938 = vmul.f32 %v2901, %v2528
        %v2939 = vmul.f32 %v2854, %v2533
        %v2940 = vmul.f32 %v2903, %v2533
        %v2941 = vmul.f32 %v2857, %v2538
        %v2942 = vmul.f32 %v2906, %v2538
        %v2943 = vmul.f32 %v2859, %v2543
        %v2944 = vmul.f32 %v2908, %v2543
        %v2945 = vmul.f32 %v2862, %v2548
        %v2946 = vmul.f32 %v2911, %v2548
        %v2947 = vmul.f32 %v2864, %v2553
        %v2948 = vmul.f32 %v2913, %v2553
        %v2949 = vmul.f32 %v2867, %v2558
        %v2950 = vmul.f32 %v2916, %v2558
        %v2951 = vmul.f32 %v2869, %v2563
        %v2952 = vmul.f32 %v2918, %v2563
        %v2953 = vmul.f32 %v2872, %v2568
        %v2954 = vmul.f32 %v2921, %v2568
        %v2955 = vmul.f32 %v2874, %v2573
        %v2956 = vmul.f32 %v2923, %v2573
        %v2957 = vadd.f32 %v2925, %v2610
        %v2958 = vadd.f32 %v2926, %v2610
        %v2959 = vadd.f32 %v2927, %v2615
        %v2960 = vadd.f32 %v2928, %v2615
        %v2961 = vadd.f32 %v2929, %v2620
        %v2962 = vadd.f32 %v2930, %v2620
        %v2963 = vadd.f32 %v2931, %v2625
        %v2964 = vadd.f32 %v2932, %v2625
        %v2965 = vadd.f32 %v2933, %v2630
        %v2966 = vadd.f32 %v2934, %v2630
        %v2967 = vadd.f32 %v2935, %v2635
        %v2968 = vadd.f32 %v2936, %v2635
        %v2969 = vadd.f32 %v2937, %v2640
        %v2970 = vadd.f32 %v2938, %v2640
        %v2971 = vadd.f32 %v2939, %v2645
        %v2972 = vadd.f32 %v2940, %v2645
        %v2973 = vadd.f32 %v2941, %v2650
        %v2974 = vadd.f32 %v2942, %v2650
        %v2975 = vadd.f32 %v2943, %v2655
        %v2976 = vadd.f32 %v2944, %v2655
        %v2977 = vadd.f32 %v2945, %v2660
        %v2978 = vadd.f32 %v2946, %v2660
        %v2979 = vadd.f32 %v2947, %v2665
        %v2980 = vadd.f32 %v2948, %v2665
        %v2981 = vadd.f32 %v2949, %v2670
        %v2982 = vadd.f32 %v2950, %v2670
        %v2983 = vadd.f32 %v2951, %v2675
        %v2984 = vadd.f32 %v2952, %v2675
        %v2985 = vadd.f32 %v2953, %v2680
        %v2986 = vadd.f32 %v2954, %v2680
        %v2987 = vadd.f32 %v2955, %v2685
        %v2988 = vadd.f32 %v2956, %v2685
        %v2989 = vmax.f32 %v2957, 0.0
        %v2990 = vmax.f32 %v2958, 0.0
        %v2991 = vmax.f32 %v2959, 0.0
        %v2992 = vmax.f32 %v2960, 0.0
        %v2993 = vmax.f32 %v2961, 0.0
        %v2994 = vmax.f32 %v2962, 0.0
        %v2995 = vmax.f32 %v2963, 0.0
        %v2996 = vmax.f32 %v2964, 0.0
        %v2997 = vmax.f32 %v2965, 0.0
        %v2998 = vmax.f32 %v2966, 0.0
        %v2999 = vmax.f32 %v2967, 0.0
        %v3000 = vmax.f32 %v2968, 0.0
        %v3001 = vmax.f32 %v2969, 0.0
        %v3002 = vmax.f32 %v2970, 0.0
        %v3003 = vmax.f32 %v2971, 0.0
        %v3004 = vmax.f32 %v2972, 0.0
        %v3005 = vmax.f32 %v2973, 0.0
        %v3006 = vmax.f32 %v2974, 0.0
        %v3007 = vmax.f32 %v2975, 0.0
        %v3008 = vmax.f32 %v2976, 0.0
        %v3009 = vmax.f32 %v2977, 0.0
        %v3010 = vmax.f32 %v2978, 0.0
        %v3011 = vmax.f32 %v2979, 0.0
        %v3012 = vmax.f32 %v2980, 0.0
        %v3013 = vmax.f32 %v2981, 0.0
        %v3014 = vmax.f32 %v2982, 0.0
        %v3015 = vmax.f32 %v2983, 0.0
        %v3016 = vmax.f32 %v2984, 0.0
        %v3017 = vmax.f32 %v2985, 0.0
        %v3018 = vmax.f32 %v2986, 0.0
        %v3019 = vmax.f32 %v2987, 0.0
        %v3020 = vmax.f32 %v2988, 0.0
        %v3021 = vmax.f32 %v2989, %v2997
        %v3022 = vmax.f32 %v2990, %v2998
        %v3023 = vmax.f32 %v2991, %v2999
        %v3024 = vmax.f32 %v2992, %v3000
        %v3025 = vmax.f32 %v2993, %v3001
        %v3026 = vmax.f32 %v2994, %v3002
        %v3027 = vmax.f32 %v2995, %v3003
        %v3028 = vmax.f32 %v2996, %v3004
        %v3029 = vmax.f32 %v3005, %v3013
        %v3030 = vmax.f32 %v3006, %v3014
        %v3031 = vmax.f32 %v3007, %v3015
        %v3032 = vmax.f32 %v3008, %v3016
        %v3033 = vmax.f32 %v3009, %v3017
        %v3034 = vmax.f32 %v3010, %v3018
        %v3035 = vmax.f32 %v3011, %v3019
        %v3036 = vmax.f32 %v3012, %v3020
        %v3037 = vmax.f32 %v3021, %v3029
        %v3038 = vmax.f32 %v3022, %v3030
        %v3039 = vmax.f32 %v3023, %v3031
        %v3040 = vmax.f32 %v3024, %v3032
        %v3041 = vmax.f32 %v3025, %v3033
        %v3042 = vmax.f32 %v3026, %v3034
        %v3043 = vmax.f32 %v3027, %v3035
        %v3044 = vmax.f32 %v3028, %v3036
        %v3045 = vmax.f32 %v2767, %v3037
        %v3046 = vmax.f32 %v2768, %v3038
        %v3047 = vmax.f32 %v2769, %v3039
        %v3048 = vmax.f32 %v2770, %v3040
        %v3049 = vmax.f32 %v2771, %v3041
        %v3050 = vmax.f32 %v2772, %v3042
        %v3051 = vmax.f32 %v2773, %v3043
        %v3052 = vmax.f32 %v2774, %v3044
        %v3053 = vld [vmem:[%s10] sm:$0xff]
        %v3054 = vld [vmem:[%s10 + $0x8] sm:$0xff]
        %v3055 = vld [vmem:[%s10 + $0x10] sm:$0xff]
        %v3056 = vld [vmem:[%s10 + $0x18] sm:$0xff]
        %v3057 = vld [vmem:[%s10 + $0x20] sm:$0xff]
        %v3058 = vld [vmem:[%s10 + $0x28] sm:$0xff]
        %v3059 = vld [vmem:[%s10 + $0x30] sm:$0xff]
        %v3060 = vld [vmem:[%s10 + $0x38] sm:$0xff]
        %v3061 = vunpack.c.l.bf16 %v3053
        %v3062 = vunpack.c.h.bf16 %v3053
        %v3063 = vunpack.c.l.bf16 %v3054
        %v3064 = vunpack.c.h.bf16 %v3054
        %v3065 = vunpack.c.l.bf16 %v3055
        %v3066 = vunpack.c.h.bf16 %v3055
        %v3067 = vunpack.c.l.bf16 %v3056
        %v3068 = vunpack.c.h.bf16 %v3056
        %v3069 = vunpack.c.l.bf16 %v3057
        %v3070 = vunpack.c.h.bf16 %v3057
        %v3071 = vunpack.c.l.bf16 %v3058
        %v3072 = vunpack.c.h.bf16 %v3058
        %v3073 = vunpack.c.l.bf16 %v3059
        %v3074 = vunpack.c.h.bf16 %v3059
        %v3075 = vunpack.c.l.bf16 %v3060
        %v3076 = vunpack.c.h.bf16 %v3060
        %v3077 = vperm.slane %v3045, 0
        %v3078 = vperm.slane %v3046, 0
        %v3079 = vmul.f32 %v3061, %v3077
        %v3080 = vmul.f32 %v3062, %v3078
        %v3081 = vmul.f32 %v3063, %v3077
        %v3082 = vmul.f32 %v3064, %v3078
        %v3083 = vmul.f32 %v3065, %v3077
        %v3084 = vmul.f32 %v3066, %v3078
        %v3085 = vmul.f32 %v3067, %v3077
        %v3086 = vmul.f32 %v3068, %v3078
        %v3087 = vmul.f32 %v3069, %v3077
        %v3088 = vmul.f32 %v3070, %v3078
        %v3089 = vmul.f32 %v3071, %v3077
        %v3090 = vmul.f32 %v3072, %v3078
        %v3091 = vmul.f32 %v3073, %v3077
        %v3092 = vmul.f32 %v3074, %v3078
        %v3093 = vmul.f32 %v3075, %v3077
        %v3094 = vmul.f32 %v3076, %v3078
        %v3095 = vadd.f32 %v3079, 0.0
        %v3096 = vadd.f32 %v3080, 0.0
        %v3097 = vadd.f32 %v3081, 0.0
        %v3098 = vadd.f32 %v3082, 0.0
        %v3099 = vadd.f32 %v3083, 0.0
        %v3100 = vadd.f32 %v3084, 0.0
        %v3101 = vadd.f32 %v3085, 0.0
        %v3102 = vadd.f32 %v3086, 0.0
        %v3103 = vadd.f32 %v3087, 0.0
        %v3104 = vadd.f32 %v3088, 0.0
        %v3105 = vadd.f32 %v3089, 0.0
        %v3106 = vadd.f32 %v3090, 0.0
        %v3107 = vadd.f32 %v3091, 0.0
        %v3108 = vadd.f32 %v3092, 0.0
        %v3109 = vadd.f32 %v3093, 0.0
        %v3110 = vadd.f32 %v3094, 0.0
        %s3111 = scalar_lea.vmem %s10, 64
        %v3112 = vld [vmem:[%s3111] sm:$0xff]
        %v3113 = vld [vmem:[%s3111 + $0x8] sm:$0xff]
        %v3114 = vld [vmem:[%s3111 + $0x10] sm:$0xff]
        %v3115 = vld [vmem:[%s3111 + $0x18] sm:$0xff]
        %v3116 = vld [vmem:[%s3111 + $0x20] sm:$0xff]
        %v3117 = vld [vmem:[%s3111 + $0x28] sm:$0xff]
        %v3118 = vld [vmem:[%s3111 + $0x30] sm:$0xff]
        %v3119 = vld [vmem:[%s3111 + $0x38] sm:$0xff]
        %v3120 = vunpack.c.l.bf16 %v3112
        %v3121 = vunpack.c.h.bf16 %v3112
        %v3122 = vunpack.c.l.bf16 %v3113
        %v3123 = vunpack.c.h.bf16 %v3113
        %v3124 = vunpack.c.l.bf16 %v3114
        %v3125 = vunpack.c.h.bf16 %v3114
        %v3126 = vunpack.c.l.bf16 %v3115
        %v3127 = vunpack.c.h.bf16 %v3115
        %v3128 = vunpack.c.l.bf16 %v3116
        %v3129 = vunpack.c.h.bf16 %v3116
        %v3130 = vunpack.c.l.bf16 %v3117
        %v3131 = vunpack.c.h.bf16 %v3117
        %v3132 = vunpack.c.l.bf16 %v3118
        %v3133 = vunpack.c.h.bf16 %v3118
        %v3134 = vunpack.c.l.bf16 %v3119
        %v3135 = vunpack.c.h.bf16 %v3119
        %v3136 = vperm.slane %v3045, 1
        %v3137 = vperm.slane %v3046, 1
        %v3138 = vmul.f32 %v3120, %v3136
        %v3139 = vmul.f32 %v3121, %v3137
        %v3140 = vmul.f32 %v3122, %v3136
        %v3141 = vmul.f32 %v3123, %v3137
        %v3142 = vmul.f32 %v3124, %v3136
        %v3143 = vmul.f32 %v3125, %v3137
        %v3144 = vmul.f32 %v3126, %v3136
        %v3145 = vmul.f32 %v3127, %v3137
        %v3146 = vmul.f32 %v3128, %v3136
        %v3147 = vmul.f32 %v3129, %v3137
        %v3148 = vmul.f32 %v3130, %v3136
        %v3149 = vmul.f32 %v3131, %v3137
        %v3150 = vmul.f32 %v3132, %v3136
        %v3151 = vmul.f32 %v3133, %v3137
        %v3152 = vmul.f32 %v3134, %v3136
        %v3153 = vmul.f32 %v3135, %v3137
        %v3154 = vadd.f32 %v3095, %v3138
        %v3155 = vadd.f32 %v3096, %v3139
        %v3156 = vadd.f32 %v3097, %v3140
        %v3157 = vadd.f32 %v3098, %v3141
        %v3158 = vadd.f32 %v3099, %v3142
        %v3159 = vadd.f32 %v3100, %v3143
        %v3160 = vadd.f32 %v3101, %v3144
        %v3161 = vadd.f32 %v3102, %v3145
        %v3162 = vadd.f32 %v3103, %v3146
        %v3163 = vadd.f32 %v3104, %v3147
        %v3164 = vadd.f32 %v3105, %v3148
        %v3165 = vadd.f32 %v3106, %v3149
        %v3166 = vadd.f32 %v3107, %v3150
        %v3167 = vadd.f32 %v3108, %v3151
        %v3168 = vadd.f32 %v3109, %v3152
        %v3169 = vadd.f32 %v3110, %v3153
        %s3170 = scalar_lea.vmem %s10, 128
        %v3171 = vld [vmem:[%s3170] sm:$0xff]
        %v3172 = vld [vmem:[%s3170 + $0x8] sm:$0xff]
        %v3173 = vld [vmem:[%s3170 + $0x10] sm:$0xff]
        %v3174 = vld [vmem:[%s3170 + $0x18] sm:$0xff]
        %v3175 = vld [vmem:[%s3170 + $0x20] sm:$0xff]
        %v3176 = vld [vmem:[%s3170 + $0x28] sm:$0xff]
        %v3177 = vld [vmem:[%s3170 + $0x30] sm:$0xff]
        %v3178 = vld [vmem:[%s3170 + $0x38] sm:$0xff]
        %v3179 = vunpack.c.l.bf16 %v3171
        %v3180 = vunpack.c.h.bf16 %v3171
        %v3181 = vunpack.c.l.bf16 %v3172
        %v3182 = vunpack.c.h.bf16 %v3172
        %v3183 = vunpack.c.l.bf16 %v3173
        %v3184 = vunpack.c.h.bf16 %v3173
        %v3185 = vunpack.c.l.bf16 %v3174
        %v3186 = vunpack.c.h.bf16 %v3174
        %v3187 = vunpack.c.l.bf16 %v3175
        %v3188 = vunpack.c.h.bf16 %v3175
        %v3189 = vunpack.c.l.bf16 %v3176
        %v3190 = vunpack.c.h.bf16 %v3176
        %v3191 = vunpack.c.l.bf16 %v3177
        %v3192 = vunpack.c.h.bf16 %v3177
        %v3193 = vunpack.c.l.bf16 %v3178
        %v3194 = vunpack.c.h.bf16 %v3178
        %v3195 = vperm.slane %v3045, 2
        %v3196 = vperm.slane %v3046, 2
        %v3197 = vmul.f32 %v3179, %v3195
        %v3198 = vmul.f32 %v3180, %v3196
        %v3199 = vmul.f32 %v3181, %v3195
        %v3200 = vmul.f32 %v3182, %v3196
        %v3201 = vmul.f32 %v3183, %v3195
        %v3202 = vmul.f32 %v3184, %v3196
        %v3203 = vmul.f32 %v3185, %v3195
        %v3204 = vmul.f32 %v3186, %v3196
        %v3205 = vmul.f32 %v3187, %v3195
        %v3206 = vmul.f32 %v3188, %v3196
        %v3207 = vmul.f32 %v3189, %v3195
        %v3208 = vmul.f32 %v3190, %v3196
        %v3209 = vmul.f32 %v3191, %v3195
        %v3210 = vmul.f32 %v3192, %v3196
        %v3211 = vmul.f32 %v3193, %v3195
        %v3212 = vmul.f32 %v3194, %v3196
        %v3213 = vadd.f32 %v3154, %v3197
        %v3214 = vadd.f32 %v3155, %v3198
        %v3215 = vadd.f32 %v3156, %v3199
        %v3216 = vadd.f32 %v3157, %v3200
        %v3217 = vadd.f32 %v3158, %v3201
        %v3218 = vadd.f32 %v3159, %v3202
        %v3219 = vadd.f32 %v3160, %v3203
        %v3220 = vadd.f32 %v3161, %v3204
        %v3221 = vadd.f32 %v3162, %v3205
        %v3222 = vadd.f32 %v3163, %v3206
        %v3223 = vadd.f32 %v3164, %v3207
        %v3224 = vadd.f32 %v3165, %v3208
        %v3225 = vadd.f32 %v3166, %v3209
        %v3226 = vadd.f32 %v3167, %v3210
        %v3227 = vadd.f32 %v3168, %v3211
        %v3228 = vadd.f32 %v3169, %v3212
        %s3229 = scalar_lea.vmem %s10, 192
        %v3230 = vld [vmem:[%s3229] sm:$0xff]
        %v3231 = vld [vmem:[%s3229 + $0x8] sm:$0xff]
        %v3232 = vld [vmem:[%s3229 + $0x10] sm:$0xff]
        %v3233 = vld [vmem:[%s3229 + $0x18] sm:$0xff]
        %v3234 = vld [vmem:[%s3229 + $0x20] sm:$0xff]
        %v3235 = vld [vmem:[%s3229 + $0x28] sm:$0xff]
        %v3236 = vld [vmem:[%s3229 + $0x30] sm:$0xff]
        %v3237 = vld [vmem:[%s3229 + $0x38] sm:$0xff]
        %v3238 = vunpack.c.l.bf16 %v3230
        %v3239 = vunpack.c.h.bf16 %v3230
        %v3240 = vunpack.c.l.bf16 %v3231
        %v3241 = vunpack.c.h.bf16 %v3231
        %v3242 = vunpack.c.l.bf16 %v3232
        %v3243 = vunpack.c.h.bf16 %v3232
        %v3244 = vunpack.c.l.bf16 %v3233
        %v3245 = vunpack.c.h.bf16 %v3233
        %v3246 = vunpack.c.l.bf16 %v3234
        %v3247 = vunpack.c.h.bf16 %v3234
        %v3248 = vunpack.c.l.bf16 %v3235
        %v3249 = vunpack.c.h.bf16 %v3235
        %v3250 = vunpack.c.l.bf16 %v3236
        %v3251 = vunpack.c.h.bf16 %v3236
        %v3252 = vunpack.c.l.bf16 %v3237
        %v3253 = vunpack.c.h.bf16 %v3237
        %v3254 = vperm.slane %v3045, 3
        %v3255 = vperm.slane %v3046, 3
        %v3256 = vmul.f32 %v3238, %v3254
        %v3257 = vmul.f32 %v3239, %v3255
        %v3258 = vmul.f32 %v3240, %v3254
        %v3259 = vmul.f32 %v3241, %v3255
        %v3260 = vmul.f32 %v3242, %v3254
        %v3261 = vmul.f32 %v3243, %v3255
        %v3262 = vmul.f32 %v3244, %v3254
        %v3263 = vmul.f32 %v3245, %v3255
        %v3264 = vmul.f32 %v3246, %v3254
        %v3265 = vmul.f32 %v3247, %v3255
        %v3266 = vmul.f32 %v3248, %v3254
        %v3267 = vmul.f32 %v3249, %v3255
        %v3268 = vmul.f32 %v3250, %v3254
        %v3269 = vmul.f32 %v3251, %v3255
        %v3270 = vmul.f32 %v3252, %v3254
        %v3271 = vmul.f32 %v3253, %v3255
        %v3272 = vadd.f32 %v3213, %v3256
        %v3273 = vadd.f32 %v3214, %v3257
        %v3274 = vadd.f32 %v3215, %v3258
        %v3275 = vadd.f32 %v3216, %v3259
        %v3276 = vadd.f32 %v3217, %v3260
        %v3277 = vadd.f32 %v3218, %v3261
        %v3278 = vadd.f32 %v3219, %v3262
        %v3279 = vadd.f32 %v3220, %v3263
        %v3280 = vadd.f32 %v3221, %v3264
        %v3281 = vadd.f32 %v3222, %v3265
        %v3282 = vadd.f32 %v3223, %v3266
        %v3283 = vadd.f32 %v3224, %v3267
        %v3284 = vadd.f32 %v3225, %v3268
        %v3285 = vadd.f32 %v3226, %v3269
        %v3286 = vadd.f32 %v3227, %v3270
        %v3287 = vadd.f32 %v3228, %v3271
        %s3288 = scalar_lea.vmem %s10, 256
        %v3289 = vld [vmem:[%s3288] sm:$0xff]
        %v3290 = vld [vmem:[%s3288 + $0x8] sm:$0xff]
        %v3291 = vld [vmem:[%s3288 + $0x10] sm:$0xff]
        %v3292 = vld [vmem:[%s3288 + $0x18] sm:$0xff]
        %v3293 = vld [vmem:[%s3288 + $0x20] sm:$0xff]
        %v3294 = vld [vmem:[%s3288 + $0x28] sm:$0xff]
        %v3295 = vld [vmem:[%s3288 + $0x30] sm:$0xff]
        %v3296 = vld [vmem:[%s3288 + $0x38] sm:$0xff]
        %v3297 = vunpack.c.l.bf16 %v3289
        %v3298 = vunpack.c.h.bf16 %v3289
        %v3299 = vunpack.c.l.bf16 %v3290
        %v3300 = vunpack.c.h.bf16 %v3290
        %v3301 = vunpack.c.l.bf16 %v3291
        %v3302 = vunpack.c.h.bf16 %v3291
        %v3303 = vunpack.c.l.bf16 %v3292
        %v3304 = vunpack.c.h.bf16 %v3292
        %v3305 = vunpack.c.l.bf16 %v3293
        %v3306 = vunpack.c.h.bf16 %v3293
        %v3307 = vunpack.c.l.bf16 %v3294
        %v3308 = vunpack.c.h.bf16 %v3294
        %v3309 = vunpack.c.l.bf16 %v3295
        %v3310 = vunpack.c.h.bf16 %v3295
        %v3311 = vunpack.c.l.bf16 %v3296
        %v3312 = vunpack.c.h.bf16 %v3296
        %v3313 = vperm.slane %v3045, 4
        %v3314 = vperm.slane %v3046, 4
        %v3315 = vmul.f32 %v3297, %v3313
        %v3316 = vmul.f32 %v3298, %v3314
        %v3317 = vmul.f32 %v3299, %v3313
        %v3318 = vmul.f32 %v3300, %v3314
        %v3319 = vmul.f32 %v3301, %v3313
        %v3320 = vmul.f32 %v3302, %v3314
        %v3321 = vmul.f32 %v3303, %v3313
        %v3322 = vmul.f32 %v3304, %v3314
        %v3323 = vmul.f32 %v3305, %v3313
        %v3324 = vmul.f32 %v3306, %v3314
        %v3325 = vmul.f32 %v3307, %v3313
        %v3326 = vmul.f32 %v3308, %v3314
        %v3327 = vmul.f32 %v3309, %v3313
        %v3328 = vmul.f32 %v3310, %v3314
        %v3329 = vmul.f32 %v3311, %v3313
        %v3330 = vmul.f32 %v3312, %v3314
        %v3331 = vadd.f32 %v3272, %v3315
        %v3332 = vadd.f32 %v3273, %v3316
        %v3333 = vadd.f32 %v3274, %v3317
        %v3334 = vadd.f32 %v3275, %v3318
        %v3335 = vadd.f32 %v3276, %v3319
        %v3336 = vadd.f32 %v3277, %v3320
        %v3337 = vadd.f32 %v3278, %v3321
        %v3338 = vadd.f32 %v3279, %v3322
        %v3339 = vadd.f32 %v3280, %v3323
        %v3340 = vadd.f32 %v3281, %v3324
        %v3341 = vadd.f32 %v3282, %v3325
        %v3342 = vadd.f32 %v3283, %v3326
        %v3343 = vadd.f32 %v3284, %v3327
        %v3344 = vadd.f32 %v3285, %v3328
        %v3345 = vadd.f32 %v3286, %v3329
        %v3346 = vadd.f32 %v3287, %v3330
        %s3347 = scalar_lea.vmem %s10, 320
        %v3348 = vld [vmem:[%s3347] sm:$0xff]
        %v3349 = vld [vmem:[%s3347 + $0x8] sm:$0xff]
        %v3350 = vld [vmem:[%s3347 + $0x10] sm:$0xff]
        %v3351 = vld [vmem:[%s3347 + $0x18] sm:$0xff]
        %v3352 = vld [vmem:[%s3347 + $0x20] sm:$0xff]
        %v3353 = vld [vmem:[%s3347 + $0x28] sm:$0xff]
        %v3354 = vld [vmem:[%s3347 + $0x30] sm:$0xff]
        %v3355 = vld [vmem:[%s3347 + $0x38] sm:$0xff]
        %v3356 = vunpack.c.l.bf16 %v3348
        %v3357 = vunpack.c.h.bf16 %v3348
        %v3358 = vunpack.c.l.bf16 %v3349
        %v3359 = vunpack.c.h.bf16 %v3349
        %v3360 = vunpack.c.l.bf16 %v3350
        %v3361 = vunpack.c.h.bf16 %v3350
        %v3362 = vunpack.c.l.bf16 %v3351
        %v3363 = vunpack.c.h.bf16 %v3351
        %v3364 = vunpack.c.l.bf16 %v3352
        %v3365 = vunpack.c.h.bf16 %v3352
        %v3366 = vunpack.c.l.bf16 %v3353
        %v3367 = vunpack.c.h.bf16 %v3353
        %v3368 = vunpack.c.l.bf16 %v3354
        %v3369 = vunpack.c.h.bf16 %v3354
        %v3370 = vunpack.c.l.bf16 %v3355
        %v3371 = vunpack.c.h.bf16 %v3355
        %v3372 = vperm.slane %v3045, 5
        %v3373 = vperm.slane %v3046, 5
        %v3374 = vmul.f32 %v3356, %v3372
        %v3375 = vmul.f32 %v3357, %v3373
        %v3376 = vmul.f32 %v3358, %v3372
        %v3377 = vmul.f32 %v3359, %v3373
        %v3378 = vmul.f32 %v3360, %v3372
        %v3379 = vmul.f32 %v3361, %v3373
        %v3380 = vmul.f32 %v3362, %v3372
        %v3381 = vmul.f32 %v3363, %v3373
        %v3382 = vmul.f32 %v3364, %v3372
        %v3383 = vmul.f32 %v3365, %v3373
        %v3384 = vmul.f32 %v3366, %v3372
        %v3385 = vmul.f32 %v3367, %v3373
        %v3386 = vmul.f32 %v3368, %v3372
        %v3387 = vmul.f32 %v3369, %v3373
        %v3388 = vmul.f32 %v3370, %v3372
        %v3389 = vmul.f32 %v3371, %v3373
        %v3390 = vadd.f32 %v3331, %v3374
        %v3391 = vadd.f32 %v3332, %v3375
        %v3392 = vadd.f32 %v3333, %v3376
        %v3393 = vadd.f32 %v3334, %v3377
        %v3394 = vadd.f32 %v3335, %v3378
        %v3395 = vadd.f32 %v3336, %v3379
        %v3396 = vadd.f32 %v3337, %v3380
        %v3397 = vadd.f32 %v3338, %v3381
        %v3398 = vadd.f32 %v3339, %v3382
        %v3399 = vadd.f32 %v3340, %v3383
        %v3400 = vadd.f32 %v3341, %v3384
        %v3401 = vadd.f32 %v3342, %v3385
        %v3402 = vadd.f32 %v3343, %v3386
        %v3403 = vadd.f32 %v3344, %v3387
        %v3404 = vadd.f32 %v3345, %v3388
        %v3405 = vadd.f32 %v3346, %v3389
        %s3406 = scalar_lea.vmem %s10, 384
        %v3407 = vld [vmem:[%s3406] sm:$0xff]
        %v3408 = vld [vmem:[%s3406 + $0x8] sm:$0xff]
        %v3409 = vld [vmem:[%s3406 + $0x10] sm:$0xff]
        %v3410 = vld [vmem:[%s3406 + $0x18] sm:$0xff]
        %v3411 = vld [vmem:[%s3406 + $0x20] sm:$0xff]
        %v3412 = vld [vmem:[%s3406 + $0x28] sm:$0xff]
        %v3413 = vld [vmem:[%s3406 + $0x30] sm:$0xff]
        %v3414 = vld [vmem:[%s3406 + $0x38] sm:$0xff]
        %v3415 = vunpack.c.l.bf16 %v3407
        %v3416 = vunpack.c.h.bf16 %v3407
        %v3417 = vunpack.c.l.bf16 %v3408
        %v3418 = vunpack.c.h.bf16 %v3408
        %v3419 = vunpack.c.l.bf16 %v3409
        %v3420 = vunpack.c.h.bf16 %v3409
        %v3421 = vunpack.c.l.bf16 %v3410
        %v3422 = vunpack.c.h.bf16 %v3410
        %v3423 = vunpack.c.l.bf16 %v3411
        %v3424 = vunpack.c.h.bf16 %v3411
        %v3425 = vunpack.c.l.bf16 %v3412
        %v3426 = vunpack.c.h.bf16 %v3412
        %v3427 = vunpack.c.l.bf16 %v3413
        %v3428 = vunpack.c.h.bf16 %v3413
        %v3429 = vunpack.c.l.bf16 %v3414
        %v3430 = vunpack.c.h.bf16 %v3414
        %v3431 = vperm.slane %v3045, 6
        %v3432 = vperm.slane %v3046, 6
        %v3433 = vmul.f32 %v3415, %v3431
        %v3434 = vmul.f32 %v3416, %v3432
        %v3435 = vmul.f32 %v3417, %v3431
        %v3436 = vmul.f32 %v3418, %v3432
        %v3437 = vmul.f32 %v3419, %v3431
        %v3438 = vmul.f32 %v3420, %v3432
        %v3439 = vmul.f32 %v3421, %v3431
        %v3440 = vmul.f32 %v3422, %v3432
        %v3441 = vmul.f32 %v3423, %v3431
        %v3442 = vmul.f32 %v3424, %v3432
        %v3443 = vmul.f32 %v3425, %v3431
        %v3444 = vmul.f32 %v3426, %v3432
        %v3445 = vmul.f32 %v3427, %v3431
        %v3446 = vmul.f32 %v3428, %v3432
        %v3447 = vmul.f32 %v3429, %v3431
        %v3448 = vmul.f32 %v3430, %v3432
        %v3449 = vadd.f32 %v3390, %v3433
        %v3450 = vadd.f32 %v3391, %v3434
        %v3451 = vadd.f32 %v3392, %v3435
        %v3452 = vadd.f32 %v3393, %v3436
        %v3453 = vadd.f32 %v3394, %v3437
        %v3454 = vadd.f32 %v3395, %v3438
        %v3455 = vadd.f32 %v3396, %v3439
        %v3456 = vadd.f32 %v3397, %v3440
        %v3457 = vadd.f32 %v3398, %v3441
        %v3458 = vadd.f32 %v3399, %v3442
        %v3459 = vadd.f32 %v3400, %v3443
        %v3460 = vadd.f32 %v3401, %v3444
        %v3461 = vadd.f32 %v3402, %v3445
        %v3462 = vadd.f32 %v3403, %v3446
        %v3463 = vadd.f32 %v3404, %v3447
        %v3464 = vadd.f32 %v3405, %v3448
        %s3465 = scalar_lea.vmem %s10, 448
        %v3466 = vld [vmem:[%s3465] sm:$0xff]
        %v3467 = vld [vmem:[%s3465 + $0x8] sm:$0xff]
        %v3468 = vld [vmem:[%s3465 + $0x10] sm:$0xff]
        %v3469 = vld [vmem:[%s3465 + $0x18] sm:$0xff]
        %v3470 = vld [vmem:[%s3465 + $0x20] sm:$0xff]
        %v3471 = vld [vmem:[%s3465 + $0x28] sm:$0xff]
        %v3472 = vld [vmem:[%s3465 + $0x30] sm:$0xff]
        %v3473 = vld [vmem:[%s3465 + $0x38] sm:$0xff]
        %v3474 = vunpack.c.l.bf16 %v3466
        %v3475 = vunpack.c.h.bf16 %v3466
        %v3476 = vunpack.c.l.bf16 %v3467
        %v3477 = vunpack.c.h.bf16 %v3467
        %v3478 = vunpack.c.l.bf16 %v3468
        %v3479 = vunpack.c.h.bf16 %v3468
        %v3480 = vunpack.c.l.bf16 %v3469
        %v3481 = vunpack.c.h.bf16 %v3469
        %v3482 = vunpack.c.l.bf16 %v3470
        %v3483 = vunpack.c.h.bf16 %v3470
        %v3484 = vunpack.c.l.bf16 %v3471
        %v3485 = vunpack.c.h.bf16 %v3471
        %v3486 = vunpack.c.l.bf16 %v3472
        %v3487 = vunpack.c.h.bf16 %v3472
        %v3488 = vunpack.c.l.bf16 %v3473
        %v3489 = vunpack.c.h.bf16 %v3473
        %v3490 = vperm.slane %v3045, 7
        %v3491 = vperm.slane %v3046, 7
        %v3492 = vmul.f32 %v3474, %v3490
        %v3493 = vmul.f32 %v3475, %v3491
        %v3494 = vmul.f32 %v3476, %v3490
        %v3495 = vmul.f32 %v3477, %v3491
        %v3496 = vmul.f32 %v3478, %v3490
        %v3497 = vmul.f32 %v3479, %v3491
        %v3498 = vmul.f32 %v3480, %v3490
        %v3499 = vmul.f32 %v3481, %v3491
        %v3500 = vmul.f32 %v3482, %v3490
        %v3501 = vmul.f32 %v3483, %v3491
        %v3502 = vmul.f32 %v3484, %v3490
        %v3503 = vmul.f32 %v3485, %v3491
        %v3504 = vmul.f32 %v3486, %v3490
        %v3505 = vmul.f32 %v3487, %v3491
        %v3506 = vmul.f32 %v3488, %v3490
        %v3507 = vmul.f32 %v3489, %v3491
        %v3508 = vadd.f32 %v3449, %v3492
        %v3509 = vadd.f32 %v3450, %v3493
        %v3510 = vadd.f32 %v3451, %v3494
        %v3511 = vadd.f32 %v3452, %v3495
        %v3512 = vadd.f32 %v3453, %v3496
        %v3513 = vadd.f32 %v3454, %v3497
        %v3514 = vadd.f32 %v3455, %v3498
        %v3515 = vadd.f32 %v3456, %v3499
        %v3516 = vadd.f32 %v3457, %v3500
        %v3517 = vadd.f32 %v3458, %v3501
        %v3518 = vadd.f32 %v3459, %v3502
        %v3519 = vadd.f32 %v3460, %v3503
        %v3520 = vadd.f32 %v3461, %v3504
        %v3521 = vadd.f32 %v3462, %v3505
        %v3522 = vadd.f32 %v3463, %v3506
        %v3523 = vadd.f32 %v3464, %v3507
        %s3524 = scalar_lea.vmem %s10, 512
        %v3525 = vld [vmem:[%s3524] sm:$0xff]
        %v3526 = vld [vmem:[%s3524 + $0x8] sm:$0xff]
        %v3527 = vld [vmem:[%s3524 + $0x10] sm:$0xff]
        %v3528 = vld [vmem:[%s3524 + $0x18] sm:$0xff]
        %v3529 = vld [vmem:[%s3524 + $0x20] sm:$0xff]
        %v3530 = vld [vmem:[%s3524 + $0x28] sm:$0xff]
        %v3531 = vld [vmem:[%s3524 + $0x30] sm:$0xff]
        %v3532 = vld [vmem:[%s3524 + $0x38] sm:$0xff]
        %v3533 = vunpack.c.l.bf16 %v3525
        %v3534 = vunpack.c.h.bf16 %v3525
        %v3535 = vunpack.c.l.bf16 %v3526
        %v3536 = vunpack.c.h.bf16 %v3526
        %v3537 = vunpack.c.l.bf16 %v3527
        %v3538 = vunpack.c.h.bf16 %v3527
        %v3539 = vunpack.c.l.bf16 %v3528
        %v3540 = vunpack.c.h.bf16 %v3528
        %v3541 = vunpack.c.l.bf16 %v3529
        %v3542 = vunpack.c.h.bf16 %v3529
        %v3543 = vunpack.c.l.bf16 %v3530
        %v3544 = vunpack.c.h.bf16 %v3530
        %v3545 = vunpack.c.l.bf16 %v3531
        %v3546 = vunpack.c.h.bf16 %v3531
        %v3547 = vunpack.c.l.bf16 %v3532
        %v3548 = vunpack.c.h.bf16 %v3532
        %v3549 = vperm.slane %v3047, 0
        %v3550 = vperm.slane %v3048, 0
        %v3551 = vmul.f32 %v3533, %v3549
        %v3552 = vmul.f32 %v3534, %v3550
        %v3553 = vmul.f32 %v3535, %v3549
        %v3554 = vmul.f32 %v3536, %v3550
        %v3555 = vmul.f32 %v3537, %v3549
        %v3556 = vmul.f32 %v3538, %v3550
        %v3557 = vmul.f32 %v3539, %v3549
        %v3558 = vmul.f32 %v3540, %v3550
        %v3559 = vmul.f32 %v3541, %v3549
        %v3560 = vmul.f32 %v3542, %v3550
        %v3561 = vmul.f32 %v3543, %v3549
        %v3562 = vmul.f32 %v3544, %v3550
        %v3563 = vmul.f32 %v3545, %v3549
        %v3564 = vmul.f32 %v3546, %v3550
        %v3565 = vmul.f32 %v3547, %v3549
        %v3566 = vmul.f32 %v3548, %v3550
        %v3567 = vadd.f32 %v3508, %v3551
        %v3568 = vadd.f32 %v3509, %v3552
        %v3569 = vadd.f32 %v3510, %v3553
        %v3570 = vadd.f32 %v3511, %v3554
        %v3571 = vadd.f32 %v3512, %v3555
        %v3572 = vadd.f32 %v3513, %v3556
        %v3573 = vadd.f32 %v3514, %v3557
        %v3574 = vadd.f32 %v3515, %v3558
        %v3575 = vadd.f32 %v3516, %v3559
        %v3576 = vadd.f32 %v3517, %v3560
        %v3577 = vadd.f32 %v3518, %v3561
        %v3578 = vadd.f32 %v3519, %v3562
        %v3579 = vadd.f32 %v3520, %v3563
        %v3580 = vadd.f32 %v3521, %v3564
        %v3581 = vadd.f32 %v3522, %v3565
        %v3582 = vadd.f32 %v3523, %v3566
        %s3583 = scalar_lea.vmem %s10, 576
        %v3584 = vld [vmem:[%s3583] sm:$0xff]
        %v3585 = vld [vmem:[%s3583 + $0x8] sm:$0xff]
        %v3586 = vld [vmem:[%s3583 + $0x10] sm:$0xff]
        %v3587 = vld [vmem:[%s3583 + $0x18] sm:$0xff]
        %v3588 = vld [vmem:[%s3583 + $0x20] sm:$0xff]
        %v3589 = vld [vmem:[%s3583 + $0x28] sm:$0xff]
        %v3590 = vld [vmem:[%s3583 + $0x30] sm:$0xff]
        %v3591 = vld [vmem:[%s3583 + $0x38] sm:$0xff]
        %v3592 = vunpack.c.l.bf16 %v3584
        %v3593 = vunpack.c.h.bf16 %v3584
        %v3594 = vunpack.c.l.bf16 %v3585
        %v3595 = vunpack.c.h.bf16 %v3585
        %v3596 = vunpack.c.l.bf16 %v3586
        %v3597 = vunpack.c.h.bf16 %v3586
        %v3598 = vunpack.c.l.bf16 %v3587
        %v3599 = vunpack.c.h.bf16 %v3587
        %v3600 = vunpack.c.l.bf16 %v3588
        %v3601 = vunpack.c.h.bf16 %v3588
        %v3602 = vunpack.c.l.bf16 %v3589
        %v3603 = vunpack.c.h.bf16 %v3589
        %v3604 = vunpack.c.l.bf16 %v3590
        %v3605 = vunpack.c.h.bf16 %v3590
        %v3606 = vunpack.c.l.bf16 %v3591
        %v3607 = vunpack.c.h.bf16 %v3591
        %v3608 = vperm.slane %v3047, 1
        %v3609 = vperm.slane %v3048, 1
        %v3610 = vmul.f32 %v3592, %v3608
        %v3611 = vmul.f32 %v3593, %v3609
        %v3612 = vmul.f32 %v3594, %v3608
        %v3613 = vmul.f32 %v3595, %v3609
        %v3614 = vmul.f32 %v3596, %v3608
        %v3615 = vmul.f32 %v3597, %v3609
        %v3616 = vmul.f32 %v3598, %v3608
        %v3617 = vmul.f32 %v3599, %v3609
        %v3618 = vmul.f32 %v3600, %v3608
        %v3619 = vmul.f32 %v3601, %v3609
        %v3620 = vmul.f32 %v3602, %v3608
        %v3621 = vmul.f32 %v3603, %v3609
        %v3622 = vmul.f32 %v3604, %v3608
        %v3623 = vmul.f32 %v3605, %v3609
        %v3624 = vmul.f32 %v3606, %v3608
        %v3625 = vmul.f32 %v3607, %v3609
        %v3626 = vadd.f32 %v3567, %v3610
        %v3627 = vadd.f32 %v3568, %v3611
        %v3628 = vadd.f32 %v3569, %v3612
        %v3629 = vadd.f32 %v3570, %v3613
        %v3630 = vadd.f32 %v3571, %v3614
        %v3631 = vadd.f32 %v3572, %v3615
        %v3632 = vadd.f32 %v3573, %v3616
        %v3633 = vadd.f32 %v3574, %v3617
        %v3634 = vadd.f32 %v3575, %v3618
        %v3635 = vadd.f32 %v3576, %v3619
        %v3636 = vadd.f32 %v3577, %v3620
        %v3637 = vadd.f32 %v3578, %v3621
        %v3638 = vadd.f32 %v3579, %v3622
        %v3639 = vadd.f32 %v3580, %v3623
        %v3640 = vadd.f32 %v3581, %v3624
        %v3641 = vadd.f32 %v3582, %v3625
        %s3642 = scalar_lea.vmem %s10, 640
        %v3643 = vld [vmem:[%s3642] sm:$0xff]
        %v3644 = vld [vmem:[%s3642 + $0x8] sm:$0xff]
        %v3645 = vld [vmem:[%s3642 + $0x10] sm:$0xff]
        %v3646 = vld [vmem:[%s3642 + $0x18] sm:$0xff]
        %v3647 = vld [vmem:[%s3642 + $0x20] sm:$0xff]
        %v3648 = vld [vmem:[%s3642 + $0x28] sm:$0xff]
        %v3649 = vld [vmem:[%s3642 + $0x30] sm:$0xff]
        %v3650 = vld [vmem:[%s3642 + $0x38] sm:$0xff]
        %v3651 = vunpack.c.l.bf16 %v3643
        %v3652 = vunpack.c.h.bf16 %v3643
        %v3653 = vunpack.c.l.bf16 %v3644
        %v3654 = vunpack.c.h.bf16 %v3644
        %v3655 = vunpack.c.l.bf16 %v3645
        %v3656 = vunpack.c.h.bf16 %v3645
        %v3657 = vunpack.c.l.bf16 %v3646
        %v3658 = vunpack.c.h.bf16 %v3646
        %v3659 = vunpack.c.l.bf16 %v3647
        %v3660 = vunpack.c.h.bf16 %v3647
        %v3661 = vunpack.c.l.bf16 %v3648
        %v3662 = vunpack.c.h.bf16 %v3648
        %v3663 = vunpack.c.l.bf16 %v3649
        %v3664 = vunpack.c.h.bf16 %v3649
        %v3665 = vunpack.c.l.bf16 %v3650
        %v3666 = vunpack.c.h.bf16 %v3650
        %v3667 = vperm.slane %v3047, 2
        %v3668 = vperm.slane %v3048, 2
        %v3669 = vmul.f32 %v3651, %v3667
        %v3670 = vmul.f32 %v3652, %v3668
        %v3671 = vmul.f32 %v3653, %v3667
        %v3672 = vmul.f32 %v3654, %v3668
        %v3673 = vmul.f32 %v3655, %v3667
        %v3674 = vmul.f32 %v3656, %v3668
        %v3675 = vmul.f32 %v3657, %v3667
        %v3676 = vmul.f32 %v3658, %v3668
        %v3677 = vmul.f32 %v3659, %v3667
        %v3678 = vmul.f32 %v3660, %v3668
        %v3679 = vmul.f32 %v3661, %v3667
        %v3680 = vmul.f32 %v3662, %v3668
        %v3681 = vmul.f32 %v3663, %v3667
        %v3682 = vmul.f32 %v3664, %v3668
        %v3683 = vmul.f32 %v3665, %v3667
        %v3684 = vmul.f32 %v3666, %v3668
        %v3685 = vadd.f32 %v3626, %v3669
        %v3686 = vadd.f32 %v3627, %v3670
        %v3687 = vadd.f32 %v3628, %v3671
        %v3688 = vadd.f32 %v3629, %v3672
        %v3689 = vadd.f32 %v3630, %v3673
        %v3690 = vadd.f32 %v3631, %v3674
        %v3691 = vadd.f32 %v3632, %v3675
        %v3692 = vadd.f32 %v3633, %v3676
        %v3693 = vadd.f32 %v3634, %v3677
        %v3694 = vadd.f32 %v3635, %v3678
        %v3695 = vadd.f32 %v3636, %v3679
        %v3696 = vadd.f32 %v3637, %v3680
        %v3697 = vadd.f32 %v3638, %v3681
        %v3698 = vadd.f32 %v3639, %v3682
        %v3699 = vadd.f32 %v3640, %v3683
        %v3700 = vadd.f32 %v3641, %v3684
        %s3701 = scalar_lea.vmem %s10, 704
        %v3702 = vld [vmem:[%s3701] sm:$0xff]
        %v3703 = vld [vmem:[%s3701 + $0x8] sm:$0xff]
        %v3704 = vld [vmem:[%s3701 + $0x10] sm:$0xff]
        %v3705 = vld [vmem:[%s3701 + $0x18] sm:$0xff]
        %v3706 = vld [vmem:[%s3701 + $0x20] sm:$0xff]
        %v3707 = vld [vmem:[%s3701 + $0x28] sm:$0xff]
        %v3708 = vld [vmem:[%s3701 + $0x30] sm:$0xff]
        %v3709 = vld [vmem:[%s3701 + $0x38] sm:$0xff]
        %v3710 = vunpack.c.l.bf16 %v3702
        %v3711 = vunpack.c.h.bf16 %v3702
        %v3712 = vunpack.c.l.bf16 %v3703
        %v3713 = vunpack.c.h.bf16 %v3703
        %v3714 = vunpack.c.l.bf16 %v3704
        %v3715 = vunpack.c.h.bf16 %v3704
        %v3716 = vunpack.c.l.bf16 %v3705
        %v3717 = vunpack.c.h.bf16 %v3705
        %v3718 = vunpack.c.l.bf16 %v3706
        %v3719 = vunpack.c.h.bf16 %v3706
        %v3720 = vunpack.c.l.bf16 %v3707
        %v3721 = vunpack.c.h.bf16 %v3707
        %v3722 = vunpack.c.l.bf16 %v3708
        %v3723 = vunpack.c.h.bf16 %v3708
        %v3724 = vunpack.c.l.bf16 %v3709
        %v3725 = vunpack.c.h.bf16 %v3709
        %v3726 = vperm.slane %v3047, 3
        %v3727 = vperm.slane %v3048, 3
        %v3728 = vmul.f32 %v3710, %v3726
        %v3729 = vmul.f32 %v3711, %v3727
        %v3730 = vmul.f32 %v3712, %v3726
        %v3731 = vmul.f32 %v3713, %v3727
        %v3732 = vmul.f32 %v3714, %v3726
        %v3733 = vmul.f32 %v3715, %v3727
        %v3734 = vmul.f32 %v3716, %v3726
        %v3735 = vmul.f32 %v3717, %v3727
        %v3736 = vmul.f32 %v3718, %v3726
        %v3737 = vmul.f32 %v3719, %v3727
        %v3738 = vmul.f32 %v3720, %v3726
        %v3739 = vmul.f32 %v3721, %v3727
        %v3740 = vmul.f32 %v3722, %v3726
        %v3741 = vmul.f32 %v3723, %v3727
        %v3742 = vmul.f32 %v3724, %v3726
        %v3743 = vmul.f32 %v3725, %v3727
        %v3744 = vadd.f32 %v3685, %v3728
        %v3745 = vadd.f32 %v3686, %v3729
        %v3746 = vadd.f32 %v3687, %v3730
        %v3747 = vadd.f32 %v3688, %v3731
        %v3748 = vadd.f32 %v3689, %v3732
        %v3749 = vadd.f32 %v3690, %v3733
        %v3750 = vadd.f32 %v3691, %v3734
        %v3751 = vadd.f32 %v3692, %v3735
        %v3752 = vadd.f32 %v3693, %v3736
        %v3753 = vadd.f32 %v3694, %v3737
        %v3754 = vadd.f32 %v3695, %v3738
        %v3755 = vadd.f32 %v3696, %v3739
        %v3756 = vadd.f32 %v3697, %v3740
        %v3757 = vadd.f32 %v3698, %v3741
        %v3758 = vadd.f32 %v3699, %v3742
        %v3759 = vadd.f32 %v3700, %v3743
        %s3760 = scalar_lea.vmem %s10, 768
        %v3761 = vld [vmem:[%s3760] sm:$0xff]
        %v3762 = vld [vmem:[%s3760 + $0x8] sm:$0xff]
        %v3763 = vld [vmem:[%s3760 + $0x10] sm:$0xff]
        %v3764 = vld [vmem:[%s3760 + $0x18] sm:$0xff]
        %v3765 = vld [vmem:[%s3760 + $0x20] sm:$0xff]
        %v3766 = vld [vmem:[%s3760 + $0x28] sm:$0xff]
        %v3767 = vld [vmem:[%s3760 + $0x30] sm:$0xff]
        %v3768 = vld [vmem:[%s3760 + $0x38] sm:$0xff]
        %v3769 = vunpack.c.l.bf16 %v3761
        %v3770 = vunpack.c.h.bf16 %v3761
        %v3771 = vunpack.c.l.bf16 %v3762
        %v3772 = vunpack.c.h.bf16 %v3762
        %v3773 = vunpack.c.l.bf16 %v3763
        %v3774 = vunpack.c.h.bf16 %v3763
        %v3775 = vunpack.c.l.bf16 %v3764
        %v3776 = vunpack.c.h.bf16 %v3764
        %v3777 = vunpack.c.l.bf16 %v3765
        %v3778 = vunpack.c.h.bf16 %v3765
        %v3779 = vunpack.c.l.bf16 %v3766
        %v3780 = vunpack.c.h.bf16 %v3766
        %v3781 = vunpack.c.l.bf16 %v3767
        %v3782 = vunpack.c.h.bf16 %v3767
        %v3783 = vunpack.c.l.bf16 %v3768
        %v3784 = vunpack.c.h.bf16 %v3768
        %v3785 = vperm.slane %v3047, 4
        %v3786 = vperm.slane %v3048, 4
        %v3787 = vmul.f32 %v3769, %v3785
        %v3788 = vmul.f32 %v3770, %v3786
        %v3789 = vmul.f32 %v3771, %v3785
        %v3790 = vmul.f32 %v3772, %v3786
        %v3791 = vmul.f32 %v3773, %v3785
        %v3792 = vmul.f32 %v3774, %v3786
        %v3793 = vmul.f32 %v3775, %v3785
        %v3794 = vmul.f32 %v3776, %v3786
        %v3795 = vmul.f32 %v3777, %v3785
        %v3796 = vmul.f32 %v3778, %v3786
        %v3797 = vmul.f32 %v3779, %v3785
        %v3798 = vmul.f32 %v3780, %v3786
        %v3799 = vmul.f32 %v3781, %v3785
        %v3800 = vmul.f32 %v3782, %v3786
        %v3801 = vmul.f32 %v3783, %v3785
        %v3802 = vmul.f32 %v3784, %v3786
        %v3803 = vadd.f32 %v3744, %v3787
        %v3804 = vadd.f32 %v3745, %v3788
        %v3805 = vadd.f32 %v3746, %v3789
        %v3806 = vadd.f32 %v3747, %v3790
        %v3807 = vadd.f32 %v3748, %v3791
        %v3808 = vadd.f32 %v3749, %v3792
        %v3809 = vadd.f32 %v3750, %v3793
        %v3810 = vadd.f32 %v3751, %v3794
        %v3811 = vadd.f32 %v3752, %v3795
        %v3812 = vadd.f32 %v3753, %v3796
        %v3813 = vadd.f32 %v3754, %v3797
        %v3814 = vadd.f32 %v3755, %v3798
        %v3815 = vadd.f32 %v3756, %v3799
        %v3816 = vadd.f32 %v3757, %v3800
        %v3817 = vadd.f32 %v3758, %v3801
        %v3818 = vadd.f32 %v3759, %v3802
        %s3819 = scalar_lea.vmem %s10, 832
        %v3820 = vld [vmem:[%s3819] sm:$0xff]
        %v3821 = vld [vmem:[%s3819 + $0x8] sm:$0xff]
        %v3822 = vld [vmem:[%s3819 + $0x10] sm:$0xff]
        %v3823 = vld [vmem:[%s3819 + $0x18] sm:$0xff]
        %v3824 = vld [vmem:[%s3819 + $0x20] sm:$0xff]
        %v3825 = vld [vmem:[%s3819 + $0x28] sm:$0xff]
        %v3826 = vld [vmem:[%s3819 + $0x30] sm:$0xff]
        %v3827 = vld [vmem:[%s3819 + $0x38] sm:$0xff]
        %v3828 = vunpack.c.l.bf16 %v3820
        %v3829 = vunpack.c.h.bf16 %v3820
        %v3830 = vunpack.c.l.bf16 %v3821
        %v3831 = vunpack.c.h.bf16 %v3821
        %v3832 = vunpack.c.l.bf16 %v3822
        %v3833 = vunpack.c.h.bf16 %v3822
        %v3834 = vunpack.c.l.bf16 %v3823
        %v3835 = vunpack.c.h.bf16 %v3823
        %v3836 = vunpack.c.l.bf16 %v3824
        %v3837 = vunpack.c.h.bf16 %v3824
        %v3838 = vunpack.c.l.bf16 %v3825
        %v3839 = vunpack.c.h.bf16 %v3825
        %v3840 = vunpack.c.l.bf16 %v3826
        %v3841 = vunpack.c.h.bf16 %v3826
        %v3842 = vunpack.c.l.bf16 %v3827
        %v3843 = vunpack.c.h.bf16 %v3827
        %v3844 = vperm.slane %v3047, 5
        %v3845 = vperm.slane %v3048, 5
        %v3846 = vmul.f32 %v3828, %v3844
        %v3847 = vmul.f32 %v3829, %v3845
        %v3848 = vmul.f32 %v3830, %v3844
        %v3849 = vmul.f32 %v3831, %v3845
        %v3850 = vmul.f32 %v3832, %v3844
        %v3851 = vmul.f32 %v3833, %v3845
        %v3852 = vmul.f32 %v3834, %v3844
        %v3853 = vmul.f32 %v3835, %v3845
        %v3854 = vmul.f32 %v3836, %v3844
        %v3855 = vmul.f32 %v3837, %v3845
        %v3856 = vmul.f32 %v3838, %v3844
        %v3857 = vmul.f32 %v3839, %v3845
        %v3858 = vmul.f32 %v3840, %v3844
        %v3859 = vmul.f32 %v3841, %v3845
        %v3860 = vmul.f32 %v3842, %v3844
        %v3861 = vmul.f32 %v3843, %v3845
        %v3862 = vadd.f32 %v3803, %v3846
        %v3863 = vadd.f32 %v3804, %v3847
        %v3864 = vadd.f32 %v3805, %v3848
        %v3865 = vadd.f32 %v3806, %v3849
        %v3866 = vadd.f32 %v3807, %v3850
        %v3867 = vadd.f32 %v3808, %v3851
        %v3868 = vadd.f32 %v3809, %v3852
        %v3869 = vadd.f32 %v3810, %v3853
        %v3870 = vadd.f32 %v3811, %v3854
        %v3871 = vadd.f32 %v3812, %v3855
        %v3872 = vadd.f32 %v3813, %v3856
        %v3873 = vadd.f32 %v3814, %v3857
        %v3874 = vadd.f32 %v3815, %v3858
        %v3875 = vadd.f32 %v3816, %v3859
        %v3876 = vadd.f32 %v3817, %v3860
        %v3877 = vadd.f32 %v3818, %v3861
        %s3878 = scalar_lea.vmem %s10, 896
        %v3879 = vld [vmem:[%s3878] sm:$0xff]
        %v3880 = vld [vmem:[%s3878 + $0x8] sm:$0xff]
        %v3881 = vld [vmem:[%s3878 + $0x10] sm:$0xff]
        %v3882 = vld [vmem:[%s3878 + $0x18] sm:$0xff]
        %v3883 = vld [vmem:[%s3878 + $0x20] sm:$0xff]
        %v3884 = vld [vmem:[%s3878 + $0x28] sm:$0xff]
        %v3885 = vld [vmem:[%s3878 + $0x30] sm:$0xff]
        %v3886 = vld [vmem:[%s3878 + $0x38] sm:$0xff]
        %v3887 = vunpack.c.l.bf16 %v3879
        %v3888 = vunpack.c.h.bf16 %v3879
        %v3889 = vunpack.c.l.bf16 %v3880
        %v3890 = vunpack.c.h.bf16 %v3880
        %v3891 = vunpack.c.l.bf16 %v3881
        %v3892 = vunpack.c.h.bf16 %v3881
        %v3893 = vunpack.c.l.bf16 %v3882
        %v3894 = vunpack.c.h.bf16 %v3882
        %v3895 = vunpack.c.l.bf16 %v3883
        %v3896 = vunpack.c.h.bf16 %v3883
        %v3897 = vunpack.c.l.bf16 %v3884
        %v3898 = vunpack.c.h.bf16 %v3884
        %v3899 = vunpack.c.l.bf16 %v3885
        %v3900 = vunpack.c.h.bf16 %v3885
        %v3901 = vunpack.c.l.bf16 %v3886
        %v3902 = vunpack.c.h.bf16 %v3886
        %v3903 = vperm.slane %v3047, 6
        %v3904 = vperm.slane %v3048, 6
        %v3905 = vmul.f32 %v3887, %v3903
        %v3906 = vmul.f32 %v3888, %v3904
        %v3907 = vmul.f32 %v3889, %v3903
        %v3908 = vmul.f32 %v3890, %v3904
        %v3909 = vmul.f32 %v3891, %v3903
        %v3910 = vmul.f32 %v3892, %v3904
        %v3911 = vmul.f32 %v3893, %v3903
        %v3912 = vmul.f32 %v3894, %v3904
        %v3913 = vmul.f32 %v3895, %v3903
        %v3914 = vmul.f32 %v3896, %v3904
        %v3915 = vmul.f32 %v3897, %v3903
        %v3916 = vmul.f32 %v3898, %v3904
        %v3917 = vmul.f32 %v3899, %v3903
        %v3918 = vmul.f32 %v3900, %v3904
        %v3919 = vmul.f32 %v3901, %v3903
        %v3920 = vmul.f32 %v3902, %v3904
        %v3921 = vadd.f32 %v3862, %v3905
        %v3922 = vadd.f32 %v3863, %v3906
        %v3923 = vadd.f32 %v3864, %v3907
        %v3924 = vadd.f32 %v3865, %v3908
        %v3925 = vadd.f32 %v3866, %v3909
        %v3926 = vadd.f32 %v3867, %v3910
        %v3927 = vadd.f32 %v3868, %v3911
        %v3928 = vadd.f32 %v3869, %v3912
        %v3929 = vadd.f32 %v3870, %v3913
        %v3930 = vadd.f32 %v3871, %v3914
        %v3931 = vadd.f32 %v3872, %v3915
        %v3932 = vadd.f32 %v3873, %v3916
        %v3933 = vadd.f32 %v3874, %v3917
        %v3934 = vadd.f32 %v3875, %v3918
        %v3935 = vadd.f32 %v3876, %v3919
        %v3936 = vadd.f32 %v3877, %v3920
        %s3937 = scalar_lea.vmem %s10, 960
        %v3938 = vld [vmem:[%s3937] sm:$0xff]
        %v3939 = vld [vmem:[%s3937 + $0x8] sm:$0xff]
        %v3940 = vld [vmem:[%s3937 + $0x10] sm:$0xff]
        %v3941 = vld [vmem:[%s3937 + $0x18] sm:$0xff]
        %v3942 = vld [vmem:[%s3937 + $0x20] sm:$0xff]
        %v3943 = vld [vmem:[%s3937 + $0x28] sm:$0xff]
        %v3944 = vld [vmem:[%s3937 + $0x30] sm:$0xff]
        %v3945 = vld [vmem:[%s3937 + $0x38] sm:$0xff]
        %v3946 = vunpack.c.l.bf16 %v3938
        %v3947 = vunpack.c.h.bf16 %v3938
        %v3948 = vunpack.c.l.bf16 %v3939
        %v3949 = vunpack.c.h.bf16 %v3939
        %v3950 = vunpack.c.l.bf16 %v3940
        %v3951 = vunpack.c.h.bf16 %v3940
        %v3952 = vunpack.c.l.bf16 %v3941
        %v3953 = vunpack.c.h.bf16 %v3941
        %v3954 = vunpack.c.l.bf16 %v3942
        %v3955 = vunpack.c.h.bf16 %v3942
        %v3956 = vunpack.c.l.bf16 %v3943
        %v3957 = vunpack.c.h.bf16 %v3943
        %v3958 = vunpack.c.l.bf16 %v3944
        %v3959 = vunpack.c.h.bf16 %v3944
        %v3960 = vunpack.c.l.bf16 %v3945
        %v3961 = vunpack.c.h.bf16 %v3945
        %v3962 = vperm.slane %v3047, 7
        %v3963 = vperm.slane %v3048, 7
        %v3964 = vmul.f32 %v3946, %v3962
        %v3965 = vmul.f32 %v3947, %v3963
        %v3966 = vmul.f32 %v3948, %v3962
        %v3967 = vmul.f32 %v3949, %v3963
        %v3968 = vmul.f32 %v3950, %v3962
        %v3969 = vmul.f32 %v3951, %v3963
        %v3970 = vmul.f32 %v3952, %v3962
        %v3971 = vmul.f32 %v3953, %v3963
        %v3972 = vmul.f32 %v3954, %v3962
        %v3973 = vmul.f32 %v3955, %v3963
        %v3974 = vmul.f32 %v3956, %v3962
        %v3975 = vmul.f32 %v3957, %v3963
        %v3976 = vmul.f32 %v3958, %v3962
        %v3977 = vmul.f32 %v3959, %v3963
        %v3978 = vmul.f32 %v3960, %v3962
        %v3979 = vmul.f32 %v3961, %v3963
        %v3980 = vadd.f32 %v3921, %v3964
        %v3981 = vadd.f32 %v3922, %v3965
        %v3982 = vadd.f32 %v3923, %v3966
        %v3983 = vadd.f32 %v3924, %v3967
        %v3984 = vadd.f32 %v3925, %v3968
        %v3985 = vadd.f32 %v3926, %v3969
        %v3986 = vadd.f32 %v3927, %v3970
        %v3987 = vadd.f32 %v3928, %v3971
        %v3988 = vadd.f32 %v3929, %v3972
        %v3989 = vadd.f32 %v3930, %v3973
        %v3990 = vadd.f32 %v3931, %v3974
        %v3991 = vadd.f32 %v3932, %v3975
        %v3992 = vadd.f32 %v3933, %v3976
        %v3993 = vadd.f32 %v3934, %v3977
        %v3994 = vadd.f32 %v3935, %v3978
        %v3995 = vadd.f32 %v3936, %v3979
        %s3996 = scalar_lea.vmem %s10, 1024
        %v3997 = vld [vmem:[%s3996] sm:$0xff]
        %v3998 = vld [vmem:[%s3996 + $0x8] sm:$0xff]
        %v3999 = vld [vmem:[%s3996 + $0x10] sm:$0xff]
        %v4000 = vld [vmem:[%s3996 + $0x18] sm:$0xff]
        %v4001 = vld [vmem:[%s3996 + $0x20] sm:$0xff]
        %v4002 = vld [vmem:[%s3996 + $0x28] sm:$0xff]
        %v4003 = vld [vmem:[%s3996 + $0x30] sm:$0xff]
        %v4004 = vld [vmem:[%s3996 + $0x38] sm:$0xff]
        %v4005 = vunpack.c.l.bf16 %v3997
        %v4006 = vunpack.c.h.bf16 %v3997
        %v4007 = vunpack.c.l.bf16 %v3998
        %v4008 = vunpack.c.h.bf16 %v3998
        %v4009 = vunpack.c.l.bf16 %v3999
        %v4010 = vunpack.c.h.bf16 %v3999
        %v4011 = vunpack.c.l.bf16 %v4000
        %v4012 = vunpack.c.h.bf16 %v4000
        %v4013 = vunpack.c.l.bf16 %v4001
        %v4014 = vunpack.c.h.bf16 %v4001
        %v4015 = vunpack.c.l.bf16 %v4002
        %v4016 = vunpack.c.h.bf16 %v4002
        %v4017 = vunpack.c.l.bf16 %v4003
        %v4018 = vunpack.c.h.bf16 %v4003
        %v4019 = vunpack.c.l.bf16 %v4004
        %v4020 = vunpack.c.h.bf16 %v4004
        %v4021 = vperm.slane %v3049, 0
        %v4022 = vperm.slane %v3050, 0
        %v4023 = vmul.f32 %v4005, %v4021
        %v4024 = vmul.f32 %v4006, %v4022
        %v4025 = vmul.f32 %v4007, %v4021
        %v4026 = vmul.f32 %v4008, %v4022
        %v4027 = vmul.f32 %v4009, %v4021
        %v4028 = vmul.f32 %v4010, %v4022
        %v4029 = vmul.f32 %v4011, %v4021
        %v4030 = vmul.f32 %v4012, %v4022
        %v4031 = vmul.f32 %v4013, %v4021
        %v4032 = vmul.f32 %v4014, %v4022
        %v4033 = vmul.f32 %v4015, %v4021
        %v4034 = vmul.f32 %v4016, %v4022
        %v4035 = vmul.f32 %v4017, %v4021
        %v4036 = vmul.f32 %v4018, %v4022
        %v4037 = vmul.f32 %v4019, %v4021
        %v4038 = vmul.f32 %v4020, %v4022
        %v4039 = vadd.f32 %v3980, %v4023
        %v4040 = vadd.f32 %v3981, %v4024
        %v4041 = vadd.f32 %v3982, %v4025
        %v4042 = vadd.f32 %v3983, %v4026
        %v4043 = vadd.f32 %v3984, %v4027
        %v4044 = vadd.f32 %v3985, %v4028
        %v4045 = vadd.f32 %v3986, %v4029
        %v4046 = vadd.f32 %v3987, %v4030
        %v4047 = vadd.f32 %v3988, %v4031
        %v4048 = vadd.f32 %v3989, %v4032
        %v4049 = vadd.f32 %v3990, %v4033
        %v4050 = vadd.f32 %v3991, %v4034
        %v4051 = vadd.f32 %v3992, %v4035
        %v4052 = vadd.f32 %v3993, %v4036
        %v4053 = vadd.f32 %v3994, %v4037
        %v4054 = vadd.f32 %v3995, %v4038
        %s4055 = scalar_lea.vmem %s10, 1088
        %v4056 = vld [vmem:[%s4055] sm:$0xff]
        %v4057 = vld [vmem:[%s4055 + $0x8] sm:$0xff]
        %v4058 = vld [vmem:[%s4055 + $0x10] sm:$0xff]
        %v4059 = vld [vmem:[%s4055 + $0x18] sm:$0xff]
        %v4060 = vld [vmem:[%s4055 + $0x20] sm:$0xff]
        %v4061 = vld [vmem:[%s4055 + $0x28] sm:$0xff]
        %v4062 = vld [vmem:[%s4055 + $0x30] sm:$0xff]
        %v4063 = vld [vmem:[%s4055 + $0x38] sm:$0xff]
        %v4064 = vunpack.c.l.bf16 %v4056
        %v4065 = vunpack.c.h.bf16 %v4056
        %v4066 = vunpack.c.l.bf16 %v4057
        %v4067 = vunpack.c.h.bf16 %v4057
        %v4068 = vunpack.c.l.bf16 %v4058
        %v4069 = vunpack.c.h.bf16 %v4058
        %v4070 = vunpack.c.l.bf16 %v4059
        %v4071 = vunpack.c.h.bf16 %v4059
        %v4072 = vunpack.c.l.bf16 %v4060
        %v4073 = vunpack.c.h.bf16 %v4060
        %v4074 = vunpack.c.l.bf16 %v4061
        %v4075 = vunpack.c.h.bf16 %v4061
        %v4076 = vunpack.c.l.bf16 %v4062
        %v4077 = vunpack.c.h.bf16 %v4062
        %v4078 = vunpack.c.l.bf16 %v4063
        %v4079 = vunpack.c.h.bf16 %v4063
        %v4080 = vperm.slane %v3049, 1
        %v4081 = vperm.slane %v3050, 1
        %v4082 = vmul.f32 %v4064, %v4080
        %v4083 = vmul.f32 %v4065, %v4081
        %v4084 = vmul.f32 %v4066, %v4080
        %v4085 = vmul.f32 %v4067, %v4081
        %v4086 = vmul.f32 %v4068, %v4080
        %v4087 = vmul.f32 %v4069, %v4081
        %v4088 = vmul.f32 %v4070, %v4080
        %v4089 = vmul.f32 %v4071, %v4081
        %v4090 = vmul.f32 %v4072, %v4080
        %v4091 = vmul.f32 %v4073, %v4081
        %v4092 = vmul.f32 %v4074, %v4080
        %v4093 = vmul.f32 %v4075, %v4081
        %v4094 = vmul.f32 %v4076, %v4080
        %v4095 = vmul.f32 %v4077, %v4081
        %v4096 = vmul.f32 %v4078, %v4080
        %v4097 = vmul.f32 %v4079, %v4081
        %v4098 = vadd.f32 %v4039, %v4082
        %v4099 = vadd.f32 %v4040, %v4083
        %v4100 = vadd.f32 %v4041, %v4084
        %v4101 = vadd.f32 %v4042, %v4085
        %v4102 = vadd.f32 %v4043, %v4086
        %v4103 = vadd.f32 %v4044, %v4087
        %v4104 = vadd.f32 %v4045, %v4088
        %v4105 = vadd.f32 %v4046, %v4089
        %v4106 = vadd.f32 %v4047, %v4090
        %v4107 = vadd.f32 %v4048, %v4091
        %v4108 = vadd.f32 %v4049, %v4092
        %v4109 = vadd.f32 %v4050, %v4093
        %v4110 = vadd.f32 %v4051, %v4094
        %v4111 = vadd.f32 %v4052, %v4095
        %v4112 = vadd.f32 %v4053, %v4096
        %v4113 = vadd.f32 %v4054, %v4097
        %s4114 = scalar_lea.vmem %s10, 1152
        %v4115 = vld [vmem:[%s4114] sm:$0xff]
        %v4116 = vld [vmem:[%s4114 + $0x8] sm:$0xff]
        %v4117 = vld [vmem:[%s4114 + $0x10] sm:$0xff]
        %v4118 = vld [vmem:[%s4114 + $0x18] sm:$0xff]
        %v4119 = vld [vmem:[%s4114 + $0x20] sm:$0xff]
        %v4120 = vld [vmem:[%s4114 + $0x28] sm:$0xff]
        %v4121 = vld [vmem:[%s4114 + $0x30] sm:$0xff]
        %v4122 = vld [vmem:[%s4114 + $0x38] sm:$0xff]
        %v4123 = vunpack.c.l.bf16 %v4115
        %v4124 = vunpack.c.h.bf16 %v4115
        %v4125 = vunpack.c.l.bf16 %v4116
        %v4126 = vunpack.c.h.bf16 %v4116
        %v4127 = vunpack.c.l.bf16 %v4117
        %v4128 = vunpack.c.h.bf16 %v4117
        %v4129 = vunpack.c.l.bf16 %v4118
        %v4130 = vunpack.c.h.bf16 %v4118
        %v4131 = vunpack.c.l.bf16 %v4119
        %v4132 = vunpack.c.h.bf16 %v4119
        %v4133 = vunpack.c.l.bf16 %v4120
        %v4134 = vunpack.c.h.bf16 %v4120
        %v4135 = vunpack.c.l.bf16 %v4121
        %v4136 = vunpack.c.h.bf16 %v4121
        %v4137 = vunpack.c.l.bf16 %v4122
        %v4138 = vunpack.c.h.bf16 %v4122
        %v4139 = vperm.slane %v3049, 2
        %v4140 = vperm.slane %v3050, 2
        %v4141 = vmul.f32 %v4123, %v4139
        %v4142 = vmul.f32 %v4124, %v4140
        %v4143 = vmul.f32 %v4125, %v4139
        %v4144 = vmul.f32 %v4126, %v4140
        %v4145 = vmul.f32 %v4127, %v4139
        %v4146 = vmul.f32 %v4128, %v4140
        %v4147 = vmul.f32 %v4129, %v4139
        %v4148 = vmul.f32 %v4130, %v4140
        %v4149 = vmul.f32 %v4131, %v4139
        %v4150 = vmul.f32 %v4132, %v4140
        %v4151 = vmul.f32 %v4133, %v4139
        %v4152 = vmul.f32 %v4134, %v4140
        %v4153 = vmul.f32 %v4135, %v4139
        %v4154 = vmul.f32 %v4136, %v4140
        %v4155 = vmul.f32 %v4137, %v4139
        %v4156 = vmul.f32 %v4138, %v4140
        %v4157 = vadd.f32 %v4098, %v4141
        %v4158 = vadd.f32 %v4099, %v4142
        %v4159 = vadd.f32 %v4100, %v4143
        %v4160 = vadd.f32 %v4101, %v4144
        %v4161 = vadd.f32 %v4102, %v4145
        %v4162 = vadd.f32 %v4103, %v4146
        %v4163 = vadd.f32 %v4104, %v4147
        %v4164 = vadd.f32 %v4105, %v4148
        %v4165 = vadd.f32 %v4106, %v4149
        %v4166 = vadd.f32 %v4107, %v4150
        %v4167 = vadd.f32 %v4108, %v4151
        %v4168 = vadd.f32 %v4109, %v4152
        %v4169 = vadd.f32 %v4110, %v4153
        %v4170 = vadd.f32 %v4111, %v4154
        %v4171 = vadd.f32 %v4112, %v4155
        %v4172 = vadd.f32 %v4113, %v4156
        %s4173 = scalar_lea.vmem %s10, 1216
        %v4174 = vld [vmem:[%s4173] sm:$0xff]
        %v4175 = vld [vmem:[%s4173 + $0x8] sm:$0xff]
        %v4176 = vld [vmem:[%s4173 + $0x10] sm:$0xff]
        %v4177 = vld [vmem:[%s4173 + $0x18] sm:$0xff]
        %v4178 = vld [vmem:[%s4173 + $0x20] sm:$0xff]
        %v4179 = vld [vmem:[%s4173 + $0x28] sm:$0xff]
        %v4180 = vld [vmem:[%s4173 + $0x30] sm:$0xff]
        %v4181 = vld [vmem:[%s4173 + $0x38] sm:$0xff]
        %v4182 = vunpack.c.l.bf16 %v4174
        %v4183 = vunpack.c.h.bf16 %v4174
        %v4184 = vunpack.c.l.bf16 %v4175
        %v4185 = vunpack.c.h.bf16 %v4175
        %v4186 = vunpack.c.l.bf16 %v4176
        %v4187 = vunpack.c.h.bf16 %v4176
        %v4188 = vunpack.c.l.bf16 %v4177
        %v4189 = vunpack.c.h.bf16 %v4177
        %v4190 = vunpack.c.l.bf16 %v4178
        %v4191 = vunpack.c.h.bf16 %v4178
        %v4192 = vunpack.c.l.bf16 %v4179
        %v4193 = vunpack.c.h.bf16 %v4179
        %v4194 = vunpack.c.l.bf16 %v4180
        %v4195 = vunpack.c.h.bf16 %v4180
        %v4196 = vunpack.c.l.bf16 %v4181
        %v4197 = vunpack.c.h.bf16 %v4181
        %v4198 = vperm.slane %v3049, 3
        %v4199 = vperm.slane %v3050, 3
        %v4200 = vmul.f32 %v4182, %v4198
        %v4201 = vmul.f32 %v4183, %v4199
        %v4202 = vmul.f32 %v4184, %v4198
        %v4203 = vmul.f32 %v4185, %v4199
        %v4204 = vmul.f32 %v4186, %v4198
        %v4205 = vmul.f32 %v4187, %v4199
        %v4206 = vmul.f32 %v4188, %v4198
        %v4207 = vmul.f32 %v4189, %v4199
        %v4208 = vmul.f32 %v4190, %v4198
        %v4209 = vmul.f32 %v4191, %v4199
        %v4210 = vmul.f32 %v4192, %v4198
        %v4211 = vmul.f32 %v4193, %v4199
        %v4212 = vmul.f32 %v4194, %v4198
        %v4213 = vmul.f32 %v4195, %v4199
        %v4214 = vmul.f32 %v4196, %v4198
        %v4215 = vmul.f32 %v4197, %v4199
        %v4216 = vadd.f32 %v4157, %v4200
        %v4217 = vadd.f32 %v4158, %v4201
        %v4218 = vadd.f32 %v4159, %v4202
        %v4219 = vadd.f32 %v4160, %v4203
        %v4220 = vadd.f32 %v4161, %v4204
        %v4221 = vadd.f32 %v4162, %v4205
        %v4222 = vadd.f32 %v4163, %v4206
        %v4223 = vadd.f32 %v4164, %v4207
        %v4224 = vadd.f32 %v4165, %v4208
        %v4225 = vadd.f32 %v4166, %v4209
        %v4226 = vadd.f32 %v4167, %v4210
        %v4227 = vadd.f32 %v4168, %v4211
        %v4228 = vadd.f32 %v4169, %v4212
        %v4229 = vadd.f32 %v4170, %v4213
        %v4230 = vadd.f32 %v4171, %v4214
        %v4231 = vadd.f32 %v4172, %v4215
        %s4232 = scalar_lea.vmem %s10, 1280
        %v4233 = vld [vmem:[%s4232] sm:$0xff]
        %v4234 = vld [vmem:[%s4232 + $0x8] sm:$0xff]
        %v4235 = vld [vmem:[%s4232 + $0x10] sm:$0xff]
        %v4236 = vld [vmem:[%s4232 + $0x18] sm:$0xff]
        %v4237 = vld [vmem:[%s4232 + $0x20] sm:$0xff]
        %v4238 = vld [vmem:[%s4232 + $0x28] sm:$0xff]
        %v4239 = vld [vmem:[%s4232 + $0x30] sm:$0xff]
        %v4240 = vld [vmem:[%s4232 + $0x38] sm:$0xff]
        %v4241 = vunpack.c.l.bf16 %v4233
        %v4242 = vunpack.c.h.bf16 %v4233
        %v4243 = vunpack.c.l.bf16 %v4234
        %v4244 = vunpack.c.h.bf16 %v4234
        %v4245 = vunpack.c.l.bf16 %v4235
        %v4246 = vunpack.c.h.bf16 %v4235
        %v4247 = vunpack.c.l.bf16 %v4236
        %v4248 = vunpack.c.h.bf16 %v4236
        %v4249 = vunpack.c.l.bf16 %v4237
        %v4250 = vunpack.c.h.bf16 %v4237
        %v4251 = vunpack.c.l.bf16 %v4238
        %v4252 = vunpack.c.h.bf16 %v4238
        %v4253 = vunpack.c.l.bf16 %v4239
        %v4254 = vunpack.c.h.bf16 %v4239
        %v4255 = vunpack.c.l.bf16 %v4240
        %v4256 = vunpack.c.h.bf16 %v4240
        %v4257 = vperm.slane %v3049, 4
        %v4258 = vperm.slane %v3050, 4
        %v4259 = vmul.f32 %v4241, %v4257
        %v4260 = vmul.f32 %v4242, %v4258
        %v4261 = vmul.f32 %v4243, %v4257
        %v4262 = vmul.f32 %v4244, %v4258
        %v4263 = vmul.f32 %v4245, %v4257
        %v4264 = vmul.f32 %v4246, %v4258
        %v4265 = vmul.f32 %v4247, %v4257
        %v4266 = vmul.f32 %v4248, %v4258
        %v4267 = vmul.f32 %v4249, %v4257
        %v4268 = vmul.f32 %v4250, %v4258
        %v4269 = vmul.f32 %v4251, %v4257
        %v4270 = vmul.f32 %v4252, %v4258
        %v4271 = vmul.f32 %v4253, %v4257
        %v4272 = vmul.f32 %v4254, %v4258
        %v4273 = vmul.f32 %v4255, %v4257
        %v4274 = vmul.f32 %v4256, %v4258
        %v4275 = vadd.f32 %v4216, %v4259
        %v4276 = vadd.f32 %v4217, %v4260
        %v4277 = vadd.f32 %v4218, %v4261
        %v4278 = vadd.f32 %v4219, %v4262
        %v4279 = vadd.f32 %v4220, %v4263
        %v4280 = vadd.f32 %v4221, %v4264
        %v4281 = vadd.f32 %v4222, %v4265
        %v4282 = vadd.f32 %v4223, %v4266
        %v4283 = vadd.f32 %v4224, %v4267
        %v4284 = vadd.f32 %v4225, %v4268
        %v4285 = vadd.f32 %v4226, %v4269
        %v4286 = vadd.f32 %v4227, %v4270
        %v4287 = vadd.f32 %v4228, %v4271
        %v4288 = vadd.f32 %v4229, %v4272
        %v4289 = vadd.f32 %v4230, %v4273
        %v4290 = vadd.f32 %v4231, %v4274
        %s4291 = scalar_lea.vmem %s10, 1344
        %v4292 = vld [vmem:[%s4291] sm:$0xff]
        %v4293 = vld [vmem:[%s4291 + $0x8] sm:$0xff]
        %v4294 = vld [vmem:[%s4291 + $0x10] sm:$0xff]
        %v4295 = vld [vmem:[%s4291 + $0x18] sm:$0xff]
        %v4296 = vld [vmem:[%s4291 + $0x20] sm:$0xff]
        %v4297 = vld [vmem:[%s4291 + $0x28] sm:$0xff]
        %v4298 = vld [vmem:[%s4291 + $0x30] sm:$0xff]
        %v4299 = vld [vmem:[%s4291 + $0x38] sm:$0xff]
        %v4300 = vunpack.c.l.bf16 %v4292
        %v4301 = vunpack.c.h.bf16 %v4292
        %v4302 = vunpack.c.l.bf16 %v4293
        %v4303 = vunpack.c.h.bf16 %v4293
        %v4304 = vunpack.c.l.bf16 %v4294
        %v4305 = vunpack.c.h.bf16 %v4294
        %v4306 = vunpack.c.l.bf16 %v4295
        %v4307 = vunpack.c.h.bf16 %v4295
        %v4308 = vunpack.c.l.bf16 %v4296
        %v4309 = vunpack.c.h.bf16 %v4296
        %v4310 = vunpack.c.l.bf16 %v4297
        %v4311 = vunpack.c.h.bf16 %v4297
        %v4312 = vunpack.c.l.bf16 %v4298
        %v4313 = vunpack.c.h.bf16 %v4298
        %v4314 = vunpack.c.l.bf16 %v4299
        %v4315 = vunpack.c.h.bf16 %v4299
        %v4316 = vperm.slane %v3049, 5
        %v4317 = vperm.slane %v3050, 5
        %v4318 = vmul.f32 %v4300, %v4316
        %v4319 = vmul.f32 %v4301, %v4317
        %v4320 = vmul.f32 %v4302, %v4316
        %v4321 = vmul.f32 %v4303, %v4317
        %v4322 = vmul.f32 %v4304, %v4316
        %v4323 = vmul.f32 %v4305, %v4317
        %v4324 = vmul.f32 %v4306, %v4316
        %v4325 = vmul.f32 %v4307, %v4317
        %v4326 = vmul.f32 %v4308, %v4316
        %v4327 = vmul.f32 %v4309, %v4317
        %v4328 = vmul.f32 %v4310, %v4316
        %v4329 = vmul.f32 %v4311, %v4317
        %v4330 = vmul.f32 %v4312, %v4316
        %v4331 = vmul.f32 %v4313, %v4317
        %v4332 = vmul.f32 %v4314, %v4316
        %v4333 = vmul.f32 %v4315, %v4317
        %v4334 = vadd.f32 %v4275, %v4318
        %v4335 = vadd.f32 %v4276, %v4319
        %v4336 = vadd.f32 %v4277, %v4320
        %v4337 = vadd.f32 %v4278, %v4321
        %v4338 = vadd.f32 %v4279, %v4322
        %v4339 = vadd.f32 %v4280, %v4323
        %v4340 = vadd.f32 %v4281, %v4324
        %v4341 = vadd.f32 %v4282, %v4325
        %v4342 = vadd.f32 %v4283, %v4326
        %v4343 = vadd.f32 %v4284, %v4327
        %v4344 = vadd.f32 %v4285, %v4328
        %v4345 = vadd.f32 %v4286, %v4329
        %v4346 = vadd.f32 %v4287, %v4330
        %v4347 = vadd.f32 %v4288, %v4331
        %v4348 = vadd.f32 %v4289, %v4332
        %v4349 = vadd.f32 %v4290, %v4333
        %s4350 = scalar_lea.vmem %s10, 1408
        %v4351 = vld [vmem:[%s4350] sm:$0xff]
        %v4352 = vld [vmem:[%s4350 + $0x8] sm:$0xff]
        %v4353 = vld [vmem:[%s4350 + $0x10] sm:$0xff]
        %v4354 = vld [vmem:[%s4350 + $0x18] sm:$0xff]
        %v4355 = vld [vmem:[%s4350 + $0x20] sm:$0xff]
        %v4356 = vld [vmem:[%s4350 + $0x28] sm:$0xff]
        %v4357 = vld [vmem:[%s4350 + $0x30] sm:$0xff]
        %v4358 = vld [vmem:[%s4350 + $0x38] sm:$0xff]
        %v4359 = vunpack.c.l.bf16 %v4351
        %v4360 = vunpack.c.h.bf16 %v4351
        %v4361 = vunpack.c.l.bf16 %v4352
        %v4362 = vunpack.c.h.bf16 %v4352
        %v4363 = vunpack.c.l.bf16 %v4353
        %v4364 = vunpack.c.h.bf16 %v4353
        %v4365 = vunpack.c.l.bf16 %v4354
        %v4366 = vunpack.c.h.bf16 %v4354
        %v4367 = vunpack.c.l.bf16 %v4355
        %v4368 = vunpack.c.h.bf16 %v4355
        %v4369 = vunpack.c.l.bf16 %v4356
        %v4370 = vunpack.c.h.bf16 %v4356
        %v4371 = vunpack.c.l.bf16 %v4357
        %v4372 = vunpack.c.h.bf16 %v4357
        %v4373 = vunpack.c.l.bf16 %v4358
        %v4374 = vunpack.c.h.bf16 %v4358
        %v4375 = vperm.slane %v3049, 6
        %v4376 = vperm.slane %v3050, 6
        %v4377 = vmul.f32 %v4359, %v4375
        %v4378 = vmul.f32 %v4360, %v4376
        %v4379 = vmul.f32 %v4361, %v4375
        %v4380 = vmul.f32 %v4362, %v4376
        %v4381 = vmul.f32 %v4363, %v4375
        %v4382 = vmul.f32 %v4364, %v4376
        %v4383 = vmul.f32 %v4365, %v4375
        %v4384 = vmul.f32 %v4366, %v4376
        %v4385 = vmul.f32 %v4367, %v4375
        %v4386 = vmul.f32 %v4368, %v4376
        %v4387 = vmul.f32 %v4369, %v4375
        %v4388 = vmul.f32 %v4370, %v4376
        %v4389 = vmul.f32 %v4371, %v4375
        %v4390 = vmul.f32 %v4372, %v4376
        %v4391 = vmul.f32 %v4373, %v4375
        %v4392 = vmul.f32 %v4374, %v4376
        %v4393 = vadd.f32 %v4334, %v4377
        %v4394 = vadd.f32 %v4335, %v4378
        %v4395 = vadd.f32 %v4336, %v4379
        %v4396 = vadd.f32 %v4337, %v4380
        %v4397 = vadd.f32 %v4338, %v4381
        %v4398 = vadd.f32 %v4339, %v4382
        %v4399 = vadd.f32 %v4340, %v4383
        %v4400 = vadd.f32 %v4341, %v4384
        %v4401 = vadd.f32 %v4342, %v4385
        %v4402 = vadd.f32 %v4343, %v4386
        %v4403 = vadd.f32 %v4344, %v4387
        %v4404 = vadd.f32 %v4345, %v4388
        %v4405 = vadd.f32 %v4346, %v4389
        %v4406 = vadd.f32 %v4347, %v4390
        %v4407 = vadd.f32 %v4348, %v4391
        %v4408 = vadd.f32 %v4349, %v4392
        %s4409 = scalar_lea.vmem %s10, 1472
        %v4410 = vld [vmem:[%s4409] sm:$0xff]
        %v4411 = vld [vmem:[%s4409 + $0x8] sm:$0xff]
        %v4412 = vld [vmem:[%s4409 + $0x10] sm:$0xff]
        %v4413 = vld [vmem:[%s4409 + $0x18] sm:$0xff]
        %v4414 = vld [vmem:[%s4409 + $0x20] sm:$0xff]
        %v4415 = vld [vmem:[%s4409 + $0x28] sm:$0xff]
        %v4416 = vld [vmem:[%s4409 + $0x30] sm:$0xff]
        %v4417 = vld [vmem:[%s4409 + $0x38] sm:$0xff]
        %v4418 = vunpack.c.l.bf16 %v4410
        %v4419 = vunpack.c.h.bf16 %v4410
        %v4420 = vunpack.c.l.bf16 %v4411
        %v4421 = vunpack.c.h.bf16 %v4411
        %v4422 = vunpack.c.l.bf16 %v4412
        %v4423 = vunpack.c.h.bf16 %v4412
        %v4424 = vunpack.c.l.bf16 %v4413
        %v4425 = vunpack.c.h.bf16 %v4413
        %v4426 = vunpack.c.l.bf16 %v4414
        %v4427 = vunpack.c.h.bf16 %v4414
        %v4428 = vunpack.c.l.bf16 %v4415
        %v4429 = vunpack.c.h.bf16 %v4415
        %v4430 = vunpack.c.l.bf16 %v4416
        %v4431 = vunpack.c.h.bf16 %v4416
        %v4432 = vunpack.c.l.bf16 %v4417
        %v4433 = vunpack.c.h.bf16 %v4417
        %v4434 = vperm.slane %v3049, 7
        %v4435 = vperm.slane %v3050, 7
        %v4436 = vmul.f32 %v4418, %v4434
        %v4437 = vmul.f32 %v4419, %v4435
        %v4438 = vmul.f32 %v4420, %v4434
        %v4439 = vmul.f32 %v4421, %v4435
        %v4440 = vmul.f32 %v4422, %v4434
        %v4441 = vmul.f32 %v4423, %v4435
        %v4442 = vmul.f32 %v4424, %v4434
        %v4443 = vmul.f32 %v4425, %v4435
        %v4444 = vmul.f32 %v4426, %v4434
        %v4445 = vmul.f32 %v4427, %v4435
        %v4446 = vmul.f32 %v4428, %v4434
        %v4447 = vmul.f32 %v4429, %v4435
        %v4448 = vmul.f32 %v4430, %v4434
        %v4449 = vmul.f32 %v4431, %v4435
        %v4450 = vmul.f32 %v4432, %v4434
        %v4451 = vmul.f32 %v4433, %v4435
        %v4452 = vadd.f32 %v4393, %v4436
        %v4453 = vadd.f32 %v4394, %v4437
        %v4454 = vadd.f32 %v4395, %v4438
        %v4455 = vadd.f32 %v4396, %v4439
        %v4456 = vadd.f32 %v4397, %v4440
        %v4457 = vadd.f32 %v4398, %v4441
        %v4458 = vadd.f32 %v4399, %v4442
        %v4459 = vadd.f32 %v4400, %v4443
        %v4460 = vadd.f32 %v4401, %v4444
        %v4461 = vadd.f32 %v4402, %v4445
        %v4462 = vadd.f32 %v4403, %v4446
        %v4463 = vadd.f32 %v4404, %v4447
        %v4464 = vadd.f32 %v4405, %v4448
        %v4465 = vadd.f32 %v4406, %v4449
        %v4466 = vadd.f32 %v4407, %v4450
        %v4467 = vadd.f32 %v4408, %v4451
        %s4468 = scalar_lea.vmem %s10, 1536
        %v4469 = vld [vmem:[%s4468] sm:$0xff]
        %v4470 = vld [vmem:[%s4468 + $0x8] sm:$0xff]
        %v4471 = vld [vmem:[%s4468 + $0x10] sm:$0xff]
        %v4472 = vld [vmem:[%s4468 + $0x18] sm:$0xff]
        %v4473 = vld [vmem:[%s4468 + $0x20] sm:$0xff]
        %v4474 = vld [vmem:[%s4468 + $0x28] sm:$0xff]
        %v4475 = vld [vmem:[%s4468 + $0x30] sm:$0xff]
        %v4476 = vld [vmem:[%s4468 + $0x38] sm:$0xff]
        %v4477 = vunpack.c.l.bf16 %v4469
        %v4478 = vunpack.c.h.bf16 %v4469
        %v4479 = vunpack.c.l.bf16 %v4470
        %v4480 = vunpack.c.h.bf16 %v4470
        %v4481 = vunpack.c.l.bf16 %v4471
        %v4482 = vunpack.c.h.bf16 %v4471
        %v4483 = vunpack.c.l.bf16 %v4472
        %v4484 = vunpack.c.h.bf16 %v4472
        %v4485 = vunpack.c.l.bf16 %v4473
        %v4486 = vunpack.c.h.bf16 %v4473
        %v4487 = vunpack.c.l.bf16 %v4474
        %v4488 = vunpack.c.h.bf16 %v4474
        %v4489 = vunpack.c.l.bf16 %v4475
        %v4490 = vunpack.c.h.bf16 %v4475
        %v4491 = vunpack.c.l.bf16 %v4476
        %v4492 = vunpack.c.h.bf16 %v4476
        %v4493 = vperm.slane %v3051, 0
        %v4494 = vperm.slane %v3052, 0
        %v4495 = vmul.f32 %v4477, %v4493
        %v4496 = vmul.f32 %v4478, %v4494
        %v4497 = vmul.f32 %v4479, %v4493
        %v4498 = vmul.f32 %v4480, %v4494
        %v4499 = vmul.f32 %v4481, %v4493
        %v4500 = vmul.f32 %v4482, %v4494
        %v4501 = vmul.f32 %v4483, %v4493
        %v4502 = vmul.f32 %v4484, %v4494
        %v4503 = vmul.f32 %v4485, %v4493
        %v4504 = vmul.f32 %v4486, %v4494
        %v4505 = vmul.f32 %v4487, %v4493
        %v4506 = vmul.f32 %v4488, %v4494
        %v4507 = vmul.f32 %v4489, %v4493
        %v4508 = vmul.f32 %v4490, %v4494
        %v4509 = vmul.f32 %v4491, %v4493
        %v4510 = vmul.f32 %v4492, %v4494
        %v4511 = vadd.f32 %v4452, %v4495
        %v4512 = vadd.f32 %v4453, %v4496
        %v4513 = vadd.f32 %v4454, %v4497
        %v4514 = vadd.f32 %v4455, %v4498
        %v4515 = vadd.f32 %v4456, %v4499
        %v4516 = vadd.f32 %v4457, %v4500
        %v4517 = vadd.f32 %v4458, %v4501
        %v4518 = vadd.f32 %v4459, %v4502
        %v4519 = vadd.f32 %v4460, %v4503
        %v4520 = vadd.f32 %v4461, %v4504
        %v4521 = vadd.f32 %v4462, %v4505
        %v4522 = vadd.f32 %v4463, %v4506
        %v4523 = vadd.f32 %v4464, %v4507
        %v4524 = vadd.f32 %v4465, %v4508
        %v4525 = vadd.f32 %v4466, %v4509
        %v4526 = vadd.f32 %v4467, %v4510
        %s4527 = scalar_lea.vmem %s10, 1600
        %v4528 = vld [vmem:[%s4527] sm:$0xff]
        %v4529 = vld [vmem:[%s4527 + $0x8] sm:$0xff]
        %v4530 = vld [vmem:[%s4527 + $0x10] sm:$0xff]
        %v4531 = vld [vmem:[%s4527 + $0x18] sm:$0xff]
        %v4532 = vld [vmem:[%s4527 + $0x20] sm:$0xff]
        %v4533 = vld [vmem:[%s4527 + $0x28] sm:$0xff]
        %v4534 = vld [vmem:[%s4527 + $0x30] sm:$0xff]
        %v4535 = vld [vmem:[%s4527 + $0x38] sm:$0xff]
        %v4536 = vunpack.c.l.bf16 %v4528
        %v4537 = vunpack.c.h.bf16 %v4528
        %v4538 = vunpack.c.l.bf16 %v4529
        %v4539 = vunpack.c.h.bf16 %v4529
        %v4540 = vunpack.c.l.bf16 %v4530
        %v4541 = vunpack.c.h.bf16 %v4530
        %v4542 = vunpack.c.l.bf16 %v4531
        %v4543 = vunpack.c.h.bf16 %v4531
        %v4544 = vunpack.c.l.bf16 %v4532
        %v4545 = vunpack.c.h.bf16 %v4532
        %v4546 = vunpack.c.l.bf16 %v4533
        %v4547 = vunpack.c.h.bf16 %v4533
        %v4548 = vunpack.c.l.bf16 %v4534
        %v4549 = vunpack.c.h.bf16 %v4534
        %v4550 = vunpack.c.l.bf16 %v4535
        %v4551 = vunpack.c.h.bf16 %v4535
        %v4552 = vperm.slane %v3051, 1
        %v4553 = vperm.slane %v3052, 1
        %v4554 = vmul.f32 %v4536, %v4552
        %v4555 = vmul.f32 %v4537, %v4553
        %v4556 = vmul.f32 %v4538, %v4552
        %v4557 = vmul.f32 %v4539, %v4553
        %v4558 = vmul.f32 %v4540, %v4552
        %v4559 = vmul.f32 %v4541, %v4553
        %v4560 = vmul.f32 %v4542, %v4552
        %v4561 = vmul.f32 %v4543, %v4553
        %v4562 = vmul.f32 %v4544, %v4552
        %v4563 = vmul.f32 %v4545, %v4553
        %v4564 = vmul.f32 %v4546, %v4552
        %v4565 = vmul.f32 %v4547, %v4553
        %v4566 = vmul.f32 %v4548, %v4552
        %v4567 = vmul.f32 %v4549, %v4553
        %v4568 = vmul.f32 %v4550, %v4552
        %v4569 = vmul.f32 %v4551, %v4553
        %v4570 = vadd.f32 %v4511, %v4554
        %v4571 = vadd.f32 %v4512, %v4555
        %v4572 = vadd.f32 %v4513, %v4556
        %v4573 = vadd.f32 %v4514, %v4557
        %v4574 = vadd.f32 %v4515, %v4558
        %v4575 = vadd.f32 %v4516, %v4559
        %v4576 = vadd.f32 %v4517, %v4560
        %v4577 = vadd.f32 %v4518, %v4561
        %v4578 = vadd.f32 %v4519, %v4562
        %v4579 = vadd.f32 %v4520, %v4563
        %v4580 = vadd.f32 %v4521, %v4564
        %v4581 = vadd.f32 %v4522, %v4565
        %v4582 = vadd.f32 %v4523, %v4566
        %v4583 = vadd.f32 %v4524, %v4567
        %v4584 = vadd.f32 %v4525, %v4568
        %v4585 = vadd.f32 %v4526, %v4569
        %s4586 = scalar_lea.vmem %s10, 1664
        %v4587 = vld [vmem:[%s4586] sm:$0xff]
        %v4588 = vld [vmem:[%s4586 + $0x8] sm:$0xff]
        %v4589 = vld [vmem:[%s4586 + $0x10] sm:$0xff]
        %v4590 = vld [vmem:[%s4586 + $0x18] sm:$0xff]
        %v4591 = vld [vmem:[%s4586 + $0x20] sm:$0xff]
        %v4592 = vld [vmem:[%s4586 + $0x28] sm:$0xff]
        %v4593 = vld [vmem:[%s4586 + $0x30] sm:$0xff]
        %v4594 = vld [vmem:[%s4586 + $0x38] sm:$0xff]
        %v4595 = vunpack.c.l.bf16 %v4587
        %v4596 = vunpack.c.h.bf16 %v4587
        %v4597 = vunpack.c.l.bf16 %v4588
        %v4598 = vunpack.c.h.bf16 %v4588
        %v4599 = vunpack.c.l.bf16 %v4589
        %v4600 = vunpack.c.h.bf16 %v4589
        %v4601 = vunpack.c.l.bf16 %v4590
        %v4602 = vunpack.c.h.bf16 %v4590
        %v4603 = vunpack.c.l.bf16 %v4591
        %v4604 = vunpack.c.h.bf16 %v4591
        %v4605 = vunpack.c.l.bf16 %v4592
        %v4606 = vunpack.c.h.bf16 %v4592
        %v4607 = vunpack.c.l.bf16 %v4593
        %v4608 = vunpack.c.h.bf16 %v4593
        %v4609 = vunpack.c.l.bf16 %v4594
        %v4610 = vunpack.c.h.bf16 %v4594
        %v4611 = vperm.slane %v3051, 2
        %v4612 = vperm.slane %v3052, 2
        %v4613 = vmul.f32 %v4595, %v4611
        %v4614 = vmul.f32 %v4596, %v4612
        %v4615 = vmul.f32 %v4597, %v4611
        %v4616 = vmul.f32 %v4598, %v4612
        %v4617 = vmul.f32 %v4599, %v4611
        %v4618 = vmul.f32 %v4600, %v4612
        %v4619 = vmul.f32 %v4601, %v4611
        %v4620 = vmul.f32 %v4602, %v4612
        %v4621 = vmul.f32 %v4603, %v4611
        %v4622 = vmul.f32 %v4604, %v4612
        %v4623 = vmul.f32 %v4605, %v4611
        %v4624 = vmul.f32 %v4606, %v4612
        %v4625 = vmul.f32 %v4607, %v4611
        %v4626 = vmul.f32 %v4608, %v4612
        %v4627 = vmul.f32 %v4609, %v4611
        %v4628 = vmul.f32 %v4610, %v4612
        %v4629 = vadd.f32 %v4570, %v4613
        %v4630 = vadd.f32 %v4571, %v4614
        %v4631 = vadd.f32 %v4572, %v4615
        %v4632 = vadd.f32 %v4573, %v4616
        %v4633 = vadd.f32 %v4574, %v4617
        %v4634 = vadd.f32 %v4575, %v4618
        %v4635 = vadd.f32 %v4576, %v4619
        %v4636 = vadd.f32 %v4577, %v4620
        %v4637 = vadd.f32 %v4578, %v4621
        %v4638 = vadd.f32 %v4579, %v4622
        %v4639 = vadd.f32 %v4580, %v4623
        %v4640 = vadd.f32 %v4581, %v4624
        %v4641 = vadd.f32 %v4582, %v4625
        %v4642 = vadd.f32 %v4583, %v4626
        %v4643 = vadd.f32 %v4584, %v4627
        %v4644 = vadd.f32 %v4585, %v4628
        %s4645 = scalar_lea.vmem %s10, 1728
        %v4646 = vld [vmem:[%s4645] sm:$0xff]
        %v4647 = vld [vmem:[%s4645 + $0x8] sm:$0xff]
        %v4648 = vld [vmem:[%s4645 + $0x10] sm:$0xff]
        %v4649 = vld [vmem:[%s4645 + $0x18] sm:$0xff]
        %v4650 = vld [vmem:[%s4645 + $0x20] sm:$0xff]
        %v4651 = vld [vmem:[%s4645 + $0x28] sm:$0xff]
        %v4652 = vld [vmem:[%s4645 + $0x30] sm:$0xff]
        %v4653 = vld [vmem:[%s4645 + $0x38] sm:$0xff]
        %v4654 = vunpack.c.l.bf16 %v4646
        %v4655 = vunpack.c.h.bf16 %v4646
        %v4656 = vunpack.c.l.bf16 %v4647
        %v4657 = vunpack.c.h.bf16 %v4647
        %v4658 = vunpack.c.l.bf16 %v4648
        %v4659 = vunpack.c.h.bf16 %v4648
        %v4660 = vunpack.c.l.bf16 %v4649
        %v4661 = vunpack.c.h.bf16 %v4649
        %v4662 = vunpack.c.l.bf16 %v4650
        %v4663 = vunpack.c.h.bf16 %v4650
        %v4664 = vunpack.c.l.bf16 %v4651
        %v4665 = vunpack.c.h.bf16 %v4651
        %v4666 = vunpack.c.l.bf16 %v4652
        %v4667 = vunpack.c.h.bf16 %v4652
        %v4668 = vunpack.c.l.bf16 %v4653
        %v4669 = vunpack.c.h.bf16 %v4653
        %v4670 = vperm.slane %v3051, 3
        %v4671 = vperm.slane %v3052, 3
        %v4672 = vmul.f32 %v4654, %v4670
        %v4673 = vmul.f32 %v4655, %v4671
        %v4674 = vmul.f32 %v4656, %v4670
        %v4675 = vmul.f32 %v4657, %v4671
        %v4676 = vmul.f32 %v4658, %v4670
        %v4677 = vmul.f32 %v4659, %v4671
        %v4678 = vmul.f32 %v4660, %v4670
        %v4679 = vmul.f32 %v4661, %v4671
        %v4680 = vmul.f32 %v4662, %v4670
        %v4681 = vmul.f32 %v4663, %v4671
        %v4682 = vmul.f32 %v4664, %v4670
        %v4683 = vmul.f32 %v4665, %v4671
        %v4684 = vmul.f32 %v4666, %v4670
        %v4685 = vmul.f32 %v4667, %v4671
        %v4686 = vmul.f32 %v4668, %v4670
        %v4687 = vmul.f32 %v4669, %v4671
        %v4688 = vadd.f32 %v4629, %v4672
        %v4689 = vadd.f32 %v4630, %v4673
        %v4690 = vadd.f32 %v4631, %v4674
        %v4691 = vadd.f32 %v4632, %v4675
        %v4692 = vadd.f32 %v4633, %v4676
        %v4693 = vadd.f32 %v4634, %v4677
        %v4694 = vadd.f32 %v4635, %v4678
        %v4695 = vadd.f32 %v4636, %v4679
        %v4696 = vadd.f32 %v4637, %v4680
        %v4697 = vadd.f32 %v4638, %v4681
        %v4698 = vadd.f32 %v4639, %v4682
        %v4699 = vadd.f32 %v4640, %v4683
        %v4700 = vadd.f32 %v4641, %v4684
        %v4701 = vadd.f32 %v4642, %v4685
        %v4702 = vadd.f32 %v4643, %v4686
        %v4703 = vadd.f32 %v4644, %v4687
        %s4704 = scalar_lea.vmem %s10, 1792
        %v4705 = vld [vmem:[%s4704] sm:$0xff]
        %v4706 = vld [vmem:[%s4704 + $0x8] sm:$0xff]
        %v4707 = vld [vmem:[%s4704 + $0x10] sm:$0xff]
        %v4708 = vld [vmem:[%s4704 + $0x18] sm:$0xff]
        %v4709 = vld [vmem:[%s4704 + $0x20] sm:$0xff]
        %v4710 = vld [vmem:[%s4704 + $0x28] sm:$0xff]
        %v4711 = vld [vmem:[%s4704 + $0x30] sm:$0xff]
        %v4712 = vld [vmem:[%s4704 + $0x38] sm:$0xff]
        %v4713 = vunpack.c.l.bf16 %v4705
        %v4714 = vunpack.c.h.bf16 %v4705
        %v4715 = vunpack.c.l.bf16 %v4706
        %v4716 = vunpack.c.h.bf16 %v4706
        %v4717 = vunpack.c.l.bf16 %v4707
        %v4718 = vunpack.c.h.bf16 %v4707
        %v4719 = vunpack.c.l.bf16 %v4708
        %v4720 = vunpack.c.h.bf16 %v4708
        %v4721 = vunpack.c.l.bf16 %v4709
        %v4722 = vunpack.c.h.bf16 %v4709
        %v4723 = vunpack.c.l.bf16 %v4710
        %v4724 = vunpack.c.h.bf16 %v4710
        %v4725 = vunpack.c.l.bf16 %v4711
        %v4726 = vunpack.c.h.bf16 %v4711
        %v4727 = vunpack.c.l.bf16 %v4712
        %v4728 = vunpack.c.h.bf16 %v4712
        %v4729 = vperm.slane %v3051, 4
        %v4730 = vperm.slane %v3052, 4
        %v4731 = vmul.f32 %v4713, %v4729
        %v4732 = vmul.f32 %v4714, %v4730
        %v4733 = vmul.f32 %v4715, %v4729
        %v4734 = vmul.f32 %v4716, %v4730
        %v4735 = vmul.f32 %v4717, %v4729
        %v4736 = vmul.f32 %v4718, %v4730
        %v4737 = vmul.f32 %v4719, %v4729
        %v4738 = vmul.f32 %v4720, %v4730
        %v4739 = vmul.f32 %v4721, %v4729
        %v4740 = vmul.f32 %v4722, %v4730
        %v4741 = vmul.f32 %v4723, %v4729
        %v4742 = vmul.f32 %v4724, %v4730
        %v4743 = vmul.f32 %v4725, %v4729
        %v4744 = vmul.f32 %v4726, %v4730
        %v4745 = vmul.f32 %v4727, %v4729
        %v4746 = vmul.f32 %v4728, %v4730
        %v4747 = vadd.f32 %v4688, %v4731
        %v4748 = vadd.f32 %v4689, %v4732
        %v4749 = vadd.f32 %v4690, %v4733
        %v4750 = vadd.f32 %v4691, %v4734
        %v4751 = vadd.f32 %v4692, %v4735
        %v4752 = vadd.f32 %v4693, %v4736
        %v4753 = vadd.f32 %v4694, %v4737
        %v4754 = vadd.f32 %v4695, %v4738
        %v4755 = vadd.f32 %v4696, %v4739
        %v4756 = vadd.f32 %v4697, %v4740
        %v4757 = vadd.f32 %v4698, %v4741
        %v4758 = vadd.f32 %v4699, %v4742
        %v4759 = vadd.f32 %v4700, %v4743
        %v4760 = vadd.f32 %v4701, %v4744
        %v4761 = vadd.f32 %v4702, %v4745
        %v4762 = vadd.f32 %v4703, %v4746
        %s4763 = scalar_lea.vmem %s10, 1856
        %v4764 = vld [vmem:[%s4763] sm:$0xff]
        %v4765 = vld [vmem:[%s4763 + $0x8] sm:$0xff]
        %v4766 = vld [vmem:[%s4763 + $0x10] sm:$0xff]
        %v4767 = vld [vmem:[%s4763 + $0x18] sm:$0xff]
        %v4768 = vld [vmem:[%s4763 + $0x20] sm:$0xff]
        %v4769 = vld [vmem:[%s4763 + $0x28] sm:$0xff]
        %v4770 = vld [vmem:[%s4763 + $0x30] sm:$0xff]
        %v4771 = vld [vmem:[%s4763 + $0x38] sm:$0xff]
        %v4772 = vunpack.c.l.bf16 %v4764
        %v4773 = vunpack.c.h.bf16 %v4764
        %v4774 = vunpack.c.l.bf16 %v4765
        %v4775 = vunpack.c.h.bf16 %v4765
        %v4776 = vunpack.c.l.bf16 %v4766
        %v4777 = vunpack.c.h.bf16 %v4766
        %v4778 = vunpack.c.l.bf16 %v4767
        %v4779 = vunpack.c.h.bf16 %v4767
        %v4780 = vunpack.c.l.bf16 %v4768
        %v4781 = vunpack.c.h.bf16 %v4768
        %v4782 = vunpack.c.l.bf16 %v4769
        %v4783 = vunpack.c.h.bf16 %v4769
        %v4784 = vunpack.c.l.bf16 %v4770
        %v4785 = vunpack.c.h.bf16 %v4770
        %v4786 = vunpack.c.l.bf16 %v4771
        %v4787 = vunpack.c.h.bf16 %v4771
        %v4788 = vperm.slane %v3051, 5
        %v4789 = vperm.slane %v3052, 5
        %v4790 = vmul.f32 %v4772, %v4788
        %v4791 = vmul.f32 %v4773, %v4789
        %v4792 = vmul.f32 %v4774, %v4788
        %v4793 = vmul.f32 %v4775, %v4789
        %v4794 = vmul.f32 %v4776, %v4788
        %v4795 = vmul.f32 %v4777, %v4789
        %v4796 = vmul.f32 %v4778, %v4788
        %v4797 = vmul.f32 %v4779, %v4789
        %v4798 = vmul.f32 %v4780, %v4788
        %v4799 = vmul.f32 %v4781, %v4789
        %v4800 = vmul.f32 %v4782, %v4788
        %v4801 = vmul.f32 %v4783, %v4789
        %v4802 = vmul.f32 %v4784, %v4788
        %v4803 = vmul.f32 %v4785, %v4789
        %v4804 = vmul.f32 %v4786, %v4788
        %v4805 = vmul.f32 %v4787, %v4789
        %v4806 = vadd.f32 %v4747, %v4790
        %v4807 = vadd.f32 %v4748, %v4791
        %v4808 = vadd.f32 %v4749, %v4792
        %v4809 = vadd.f32 %v4750, %v4793
        %v4810 = vadd.f32 %v4751, %v4794
        %v4811 = vadd.f32 %v4752, %v4795
        %v4812 = vadd.f32 %v4753, %v4796
        %v4813 = vadd.f32 %v4754, %v4797
        %v4814 = vadd.f32 %v4755, %v4798
        %v4815 = vadd.f32 %v4756, %v4799
        %v4816 = vadd.f32 %v4757, %v4800
        %v4817 = vadd.f32 %v4758, %v4801
        %v4818 = vadd.f32 %v4759, %v4802
        %v4819 = vadd.f32 %v4760, %v4803
        %v4820 = vadd.f32 %v4761, %v4804
        %v4821 = vadd.f32 %v4762, %v4805
        %s4822 = scalar_lea.vmem %s10, 1920
        %v4823 = vld [vmem:[%s4822] sm:$0xff]
        %v4824 = vld [vmem:[%s4822 + $0x8] sm:$0xff]
        %v4825 = vld [vmem:[%s4822 + $0x10] sm:$0xff]
        %v4826 = vld [vmem:[%s4822 + $0x18] sm:$0xff]
        %v4827 = vld [vmem:[%s4822 + $0x20] sm:$0xff]
        %v4828 = vld [vmem:[%s4822 + $0x28] sm:$0xff]
        %v4829 = vld [vmem:[%s4822 + $0x30] sm:$0xff]
        %v4830 = vld [vmem:[%s4822 + $0x38] sm:$0xff]
        %v4831 = vunpack.c.l.bf16 %v4823
        %v4832 = vunpack.c.h.bf16 %v4823
        %v4833 = vunpack.c.l.bf16 %v4824
        %v4834 = vunpack.c.h.bf16 %v4824
        %v4835 = vunpack.c.l.bf16 %v4825
        %v4836 = vunpack.c.h.bf16 %v4825
        %v4837 = vunpack.c.l.bf16 %v4826
        %v4838 = vunpack.c.h.bf16 %v4826
        %v4839 = vunpack.c.l.bf16 %v4827
        %v4840 = vunpack.c.h.bf16 %v4827
        %v4841 = vunpack.c.l.bf16 %v4828
        %v4842 = vunpack.c.h.bf16 %v4828
        %v4843 = vunpack.c.l.bf16 %v4829
        %v4844 = vunpack.c.h.bf16 %v4829
        %v4845 = vunpack.c.l.bf16 %v4830
        %v4846 = vunpack.c.h.bf16 %v4830
        %v4847 = vperm.slane %v3051, 6
        %v4848 = vperm.slane %v3052, 6
        %v4849 = vmul.f32 %v4831, %v4847
        %v4850 = vmul.f32 %v4832, %v4848
        %v4851 = vmul.f32 %v4833, %v4847
        %v4852 = vmul.f32 %v4834, %v4848
        %v4853 = vmul.f32 %v4835, %v4847
        %v4854 = vmul.f32 %v4836, %v4848
        %v4855 = vmul.f32 %v4837, %v4847
        %v4856 = vmul.f32 %v4838, %v4848
        %v4857 = vmul.f32 %v4839, %v4847
        %v4858 = vmul.f32 %v4840, %v4848
        %v4859 = vmul.f32 %v4841, %v4847
        %v4860 = vmul.f32 %v4842, %v4848
        %v4861 = vmul.f32 %v4843, %v4847
        %v4862 = vmul.f32 %v4844, %v4848
        %v4863 = vmul.f32 %v4845, %v4847
        %v4864 = vmul.f32 %v4846, %v4848
        %v4865 = vadd.f32 %v4806, %v4849
        %v4866 = vadd.f32 %v4807, %v4850
        %v4867 = vadd.f32 %v4808, %v4851
        %v4868 = vadd.f32 %v4809, %v4852
        %v4869 = vadd.f32 %v4810, %v4853
        %v4870 = vadd.f32 %v4811, %v4854
        %v4871 = vadd.f32 %v4812, %v4855
        %v4872 = vadd.f32 %v4813, %v4856
        %v4873 = vadd.f32 %v4814, %v4857
        %v4874 = vadd.f32 %v4815, %v4858
        %v4875 = vadd.f32 %v4816, %v4859
        %v4876 = vadd.f32 %v4817, %v4860
        %v4877 = vadd.f32 %v4818, %v4861
        %v4878 = vadd.f32 %v4819, %v4862
        %v4879 = vadd.f32 %v4820, %v4863
        %v4880 = vadd.f32 %v4821, %v4864
        %s4881 = scalar_lea.vmem %s10, 1984
        %v4882 = vld [vmem:[%s4881] sm:$0xff]
        %v4883 = vld [vmem:[%s4881 + $0x8] sm:$0xff]
        %v4884 = vld [vmem:[%s4881 + $0x10] sm:$0xff]
        %v4885 = vld [vmem:[%s4881 + $0x18] sm:$0xff]
        %v4886 = vld [vmem:[%s4881 + $0x20] sm:$0xff]
        %v4887 = vld [vmem:[%s4881 + $0x28] sm:$0xff]
        %v4888 = vld [vmem:[%s4881 + $0x30] sm:$0xff]
        %v4889 = vld [vmem:[%s4881 + $0x38] sm:$0xff]
        %v4890 = vunpack.c.l.bf16 %v4882
        %v4891 = vunpack.c.h.bf16 %v4882
        %v4892 = vunpack.c.l.bf16 %v4883
        %v4893 = vunpack.c.h.bf16 %v4883
        %v4894 = vunpack.c.l.bf16 %v4884
        %v4895 = vunpack.c.h.bf16 %v4884
        %v4896 = vunpack.c.l.bf16 %v4885
        %v4897 = vunpack.c.h.bf16 %v4885
        %v4898 = vunpack.c.l.bf16 %v4886
        %v4899 = vunpack.c.h.bf16 %v4886
        %v4900 = vunpack.c.l.bf16 %v4887
        %v4901 = vunpack.c.h.bf16 %v4887
        %v4902 = vunpack.c.l.bf16 %v4888
        %v4903 = vunpack.c.h.bf16 %v4888
        %v4904 = vunpack.c.l.bf16 %v4889
        %v4905 = vunpack.c.h.bf16 %v4889
        %v4906 = vperm.slane %v3051, 7
        %v4907 = vperm.slane %v3052, 7
        %v4908 = vmul.f32 %v4890, %v4906
        %v4909 = vmul.f32 %v4891, %v4907
        %v4910 = vmul.f32 %v4892, %v4906
        %v4911 = vmul.f32 %v4893, %v4907
        %v4912 = vmul.f32 %v4894, %v4906
        %v4913 = vmul.f32 %v4895, %v4907
        %v4914 = vmul.f32 %v4896, %v4906
        %v4915 = vmul.f32 %v4897, %v4907
        %v4916 = vmul.f32 %v4898, %v4906
        %v4917 = vmul.f32 %v4899, %v4907
        %v4918 = vmul.f32 %v4900, %v4906
        %v4919 = vmul.f32 %v4901, %v4907
        %v4920 = vmul.f32 %v4902, %v4906
        %v4921 = vmul.f32 %v4903, %v4907
        %v4922 = vmul.f32 %v4904, %v4906
        %v4923 = vmul.f32 %v4905, %v4907
        %v4924 = vadd.f32 %v4865, %v4908
        %v4925 = vadd.f32 %v4866, %v4909
        %v4926 = vadd.f32 %v4867, %v4910
        %v4927 = vadd.f32 %v4868, %v4911
        %v4928 = vadd.f32 %v4869, %v4912
        %v4929 = vadd.f32 %v4870, %v4913
        %v4930 = vadd.f32 %v4871, %v4914
        %v4931 = vadd.f32 %v4872, %v4915
        %v4932 = vadd.f32 %v4873, %v4916
        %v4933 = vadd.f32 %v4874, %v4917
        %v4934 = vadd.f32 %v4875, %v4918
        %v4935 = vadd.f32 %v4876, %v4919
        %v4936 = vadd.f32 %v4877, %v4920
        %v4937 = vadd.f32 %v4878, %v4921
        %v4938 = vadd.f32 %v4879, %v4922
        %v4939 = vadd.f32 %v4880, %v4923
        %v4940 = vadd.f32 %v4924, %v4925
        %4941 = vadd.xlane.f32.xlu0 %v4940
        %v4942 = vpop.xlane.xlu0 %4941
        %v4943 = vadd.f32 %v4926, %v4927
        %4944 = vadd.xlane.f32.xlu0 %v4943
        %v4945 = vpop.xlane.xlu0 %4944
        %v4946 = vadd.f32 %v4928, %v4929
        %4947 = vadd.xlane.f32.xlu0 %v4946
        %v4948 = vpop.xlane.xlu0 %4947
        %v4949 = vadd.f32 %v4930, %v4931
        %4950 = vadd.xlane.f32.xlu0 %v4949
        %v4951 = vpop.xlane.xlu0 %4950
        %v4952 = vadd.f32 %v4932, %v4933
        %4953 = vadd.xlane.f32.xlu0 %v4952
        %v4954 = vpop.xlane.xlu0 %4953
        %v4955 = vadd.f32 %v4934, %v4935
        %4956 = vadd.xlane.f32.xlu0 %v4955
        %v4957 = vpop.xlane.xlu0 %4956
        %v4958 = vadd.f32 %v4936, %v4937
        %4959 = vadd.xlane.f32.xlu0 %v4958
        %v4960 = vpop.xlane.xlu0 %4959
        %v4961 = vadd.f32 %v4938, %v4939
        %4962 = vadd.xlane.f32.xlu0 %v4961
        %v4963 = vpop.xlane.xlu0 %4962
        %v4964 = vld [vmem:[#allocation16] sm:$0xff]
        %v4965 = vld [vmem:[#allocation16 + $0x8] sm:$0xff]
        %v4966 = vld [vmem:[#allocation16 + $0x10] sm:$0xff]
        %v4967 = vld [vmem:[#allocation16 + $0x18] sm:$0xff]
        %v4968 = vld [vmem:[#allocation16 + $0x20] sm:$0xff]
        %v4969 = vld [vmem:[#allocation16 + $0x28] sm:$0xff]
        %v4970 = vld [vmem:[#allocation16 + $0x30] sm:$0xff]
        %v4971 = vld [vmem:[#allocation16 + $0x38] sm:$0xff]
        %v4972 = vmul.f32 %v4942, %v4964
        %v4973 = vmul.f32 %v4945, %v4965
        %v4974 = vmul.f32 %v4948, %v4966
        %v4975 = vmul.f32 %v4951, %v4967
        %v4976 = vmul.f32 %v4954, %v4968
        %v4977 = vmul.f32 %v4957, %v4969
        %v4978 = vmul.f32 %v4960, %v4970
        %v4979 = vmul.f32 %v4963, %v4971
        %v4980 = vld [vmem:[#allocation18] sm:$0xff]
        %v4981 = vld [vmem:[#allocation18 + $0x8] sm:$0xff]
        %v4982 = vld [vmem:[#allocation18 + $0x10] sm:$0xff]
        %v4983 = vld [vmem:[#allocation18 + $0x18] sm:$0xff]
        %v4984 = vld [vmem:[#allocation18 + $0x20] sm:$0xff]
        %v4985 = vld [vmem:[#allocation18 + $0x28] sm:$0xff]
        %v4986 = vld [vmem:[#allocation18 + $0x30] sm:$0xff]
        %v4987 = vld [vmem:[#allocation18 + $0x38] sm:$0xff]
        %v4988 = vadd.f32 %v4972, %v4980
        %v4989 = vadd.f32 %v4973, %v4981
        %v4990 = vadd.f32 %v4974, %v4982
        %v4991 = vadd.f32 %v4975, %v4983
        %v4992 = vadd.f32 %v4976, %v4984
        %v4993 = vadd.f32 %v4977, %v4985
        %v4994 = vadd.f32 %v4978, %v4986
        %v4995 = vadd.f32 %v4979, %v4987
        %v4996 = vmax.f32 %v4988, 0.0
        %v4997 = vmax.f32 %v4989, 0.0
        %v4998 = vmax.f32 %v4990, 0.0
        %v4999 = vmax.f32 %v4991, 0.0
        %v5000 = vmax.f32 %v4992, 0.0
        %v5001 = vmax.f32 %v4993, 0.0
        %v5002 = vmax.f32 %v4994, 0.0
        %v5003 = vmax.f32 %v4995, 0.0
        %v5004 = vld [vmem:[%s13] sm:$0xff]
        %v5005 = vld [vmem:[%s13 + $0x8] sm:$0xff]
        %v5006 = vld [vmem:[%s13 + $0x10] sm:$0xff]
        %v5007 = vld [vmem:[%s13 + $0x18] sm:$0xff]
        %v5008 = vld [vmem:[%s13 + $0x20] sm:$0xff]
        %v5009 = vld [vmem:[%s13 + $0x28] sm:$0xff]
        %v5010 = vld [vmem:[%s13 + $0x30] sm:$0xff]
        %v5011 = vld [vmem:[%s13 + $0x38] sm:$0xff]
        %5013 = vset.pattern.permute.xlu0 0
        %5014 = vperm.xlu0 %5013, %v4996
        %v5015 = vpop.permute.xlu0 %5014
        %5018 = vset.pattern.permute.xlu0 0
        %5019 = vperm.xlu0 %5018, %v4997
        %v5020 = vpop.permute.xlu0 %5019
        %5023 = vset.pattern.permute.xlu0 0
        %5024 = vperm.xlu0 %5023, %v4998
        %v5025 = vpop.permute.xlu0 %5024
        %5028 = vset.pattern.permute.xlu0 0
        %5029 = vperm.xlu0 %5028, %v4999
        %v5030 = vpop.permute.xlu0 %5029
        %5033 = vset.pattern.permute.xlu0 0
        %5034 = vperm.xlu0 %5033, %v5000
        %v5035 = vpop.permute.xlu0 %5034
        %5038 = vset.pattern.permute.xlu0 0
        %5039 = vperm.xlu0 %5038, %v5001
        %v5040 = vpop.permute.xlu0 %5039
        %5043 = vset.pattern.permute.xlu0 0
        %5044 = vperm.xlu0 %5043, %v5002
        %v5045 = vpop.permute.xlu0 %5044
        %5048 = vset.pattern.permute.xlu0 0
        %5049 = vperm.xlu0 %5048, %v5003
        %v5050 = vpop.permute.xlu0 %5049
        %v5052 = vmul.f32 %v5015, %v5004
        %v5053 = vmul.f32 %v5020, %v5005
        %v5054 = vmul.f32 %v5025, %v5006
        %v5055 = vmul.f32 %v5030, %v5007
        %v5056 = vmul.f32 %v5035, %v5008
        %v5057 = vmul.f32 %v5040, %v5009
        %v5058 = vmul.f32 %v5045, %v5010
        %v5059 = vmul.f32 %v5050, %v5011
        %vm5060 = vcmask 15360
        %v5061 = vsel %vm5060, %v5052, 0.0
        %v5062 = vsel %vm5060, %v5053, 0.0
        %v5063 = vadd.f32 %v5061, %v5062
        %v5064 = vsel %vm5060, %v5054, 0.0
        %v5065 = vadd.f32 %v5063, %v5064
        %v5066 = vsel %vm5060, %v5055, 0.0
        %v5067 = vadd.f32 %v5065, %v5066
        %v5068 = vsel %vm5060, %v5056, 0.0
        %v5069 = vadd.f32 %v5067, %v5068
        %v5070 = vsel %vm5060, %v5057, 0.0
        %v5071 = vadd.f32 %v5069, %v5070
        %v5072 = vsel %vm5060, %v5058, 0.0
        %v5073 = vadd.f32 %v5071, %v5072
        %v5074 = vsel %vm5060, %v5059, 0.0
        %v5075 = vadd.f32 %v5073, %v5074
        %v5076 = vrot.slane %v5075, 4
        %v5077 = vadd.f32 %v5075, %v5076
        %v5078 = vrot.slane %v5077, 2
        %v5079 = vadd.f32 %v5077, %v5078
        %v5080 = vrot.slane %v5079, 1
        %v5081 = vadd.f32 %v5079, %v5080
        %v5082 = vld [vmem:[%s14] sm:$0x1]
        %v5083 = vadd.f32 %v5081, %v5082
        %vm5084 = vcmask 8192
        %5085 = vst.msk [vmem:[%s635] sm:$0x1] %vm5084, %v5083
        %s5086 = sand.u32 %s362, 1
        %s5087 = scalar_lea.sflag [#allocation6], %s5086
        %s5088 = sand.u32 %s362, 1
        %s5089 = scalar_lea.vmem [#allocation19], %s5088
        // Predicated region
        $region117: #{forward.1} parent=79 // pred_check
          %p5090 = pneg %p372
        $region118: #{forward.1} parent=79 // pred_check_branch
          %5092 = sbr.rel (%p5090) target = $region120
        $region119: #{forward.1} parent=79 // pred_region
          %5094 = vsyncadd %s5087, 0
          %s5095 = scalar_lea.hbm %s15, %s34
          %s5097 = sshll.u32 %s5089, 4
          %s5098 = int_to_ptr.vmem [resolvable:$true] %s5097
          %s5099 = sshll.u32 %s5095, 4
          %s5100 = int_to_ptr.hbm [resolvable:$true] %s5099
          %5102 = dma.vmem_to_hbm [thread:$0]  %s5098, 16, %s5100, %s5087
        $region120: #{forward.1} parent=79 // pred_fallthru
          _
      $region80: #{forward.1} parent=5 // pred_fallthru
        _
      %p5103 = scmp.le.s32.totalorder 2, %s29
      // Predicated region
      $region121: #{forward.1} parent=5 // pred_check
        %p5104 = pneg %p5103
      $region122: #{forward.1} parent=5 // pred_check_branch
        %5106 = sbr.rel (%p5104) target = $region124
      $region123: #{forward.1} parent=5 // pred_region
        %s5107 = ssub.s32 %s29, 2
        // Predicated region
        $region125: #{forward.1} parent=123 // pred_check
          %p5108 = pneg %p378
        $region126: #{forward.1} parent=123 // pred_check_branch
          %5110 = sbr.rel (%p5108) target = $region128
        $region127: #{forward.1} parent=123 // pred_region
          %s5111 = sand.u32 %s363, 1
          %s5112 = scalar_lea.sflag [#allocation6], %s5111
          %s5113 = sand.u32 %s363, 1
          %s5114 = scalar_lea.vmem [#allocation19], %s5113
          %5116 = dma.done %s5112, 16
        $region128: #{forward.1} parent=123 // pred_fallthru
          _
      $region124: #{forward.1} parent=5 // pred_fallthru
        _
    $region6: #{forward.1} parent=1 // loop_footer
      %s33 = sadd.s32 1, %s29
    $region7: #{forward.1} parent=1 // loop_footer_branch
      %28 = sbr.rel target = $region3
    $region8: #{forward.1} parent=1 // loop_exit
      _
    %5117 = vsyncpa [#allocation5], 1
    %s5118 = scalar_lea.sflag [#allocation5], 1
    %5119 = vsyncpa %s5118, 1
    %5120 = vsyncpa [#allocation8], 1
    %5121 = vsyncpa [#allocation11], 1
    %5122 = vsyncpa [#allocation14], 1
    %5123 = vsyncpa [#allocation17], 1
    %5124 = vsyncpa [#allocation6], 1
    %s5125 = scalar_lea.sflag [#allocation6], 1
    %5126 = vsyncpa %s5125, 1

</llo_original>
